<compile_context>
chip_gen: v7x
topology: tpu7x:2x2x1
jax: 0.10.0
libtpu: 0.0.40
codegen_flags: <defaults>
</compile_context>

<pallas_src>
import functools

import jax
import jax.numpy as jnp
import numpy as np
from jax.experimental import pallas as pl
from jax.experimental.pallas import tpu as pltpu

LANE = 128


def _round_up(v, m):
    return ((v + m - 1) // m) * m


def _pick_band(h_out, w_out, target_rows=256):
    """Largest divisor of h_out whose band has ~<= target_rows matmul rows."""
    rb = max(1, min(h_out, max(1, target_rows // max(w_out, 1))))
    while h_out % rb:
        rb -= 1
    return rb


# ----------------------------------------------------------------------------
# Generation-conditional compiler params + Buffered(1) capability probe.
# Both are resolved EAGERLY (outside any jit) and cached.
# ----------------------------------------------------------------------------
@functools.lru_cache(maxsize=None)
def _compiler_params():
    vmem_limit = 48 * 1024 * 1024              # safe on v7x's 64 MiB / unknown parts
    try:
        cap = pltpu.get_tpu_info().vmem_capacity_bytes
        if cap >= 100 * 1024 * 1024:           # v5e / v6e: 128 MiB physical VMEM
            vmem_limit = 100 * 1024 * 1024
    except Exception:
        pass
    return pltpu.CompilerParams(
        dimension_semantics=("parallel",),     # batch axis -> shards across TCs
        vmem_limit_bytes=vmem_limit,
    )


@functools.lru_cache(maxsize=None)
def _weight_spec_kwargs():
    """Single-buffer grid-invariant weight blocks if this JAX supports it."""
    try:
        spec = pl.BlockSpec((8, 128), lambda i: (0, 0),
                            pipeline_mode=pl.Buffered(1))

        def _probe_kernel(w_ref, o_ref):
            o_ref[...] = w_ref[...] * 2.0

        out = pl.pallas_call(
            _probe_kernel,
            out_shape=jax.ShapeDtypeStruct((8, 128), jnp.float32),
            grid=(2,),
            in_specs=[spec],
            out_specs=pl.BlockSpec((8, 128), lambda i: (0, 0)),
        )(jnp.ones((8, 128), jnp.float32))
        jax.block_until_ready(out)
        return {"pipeline_mode": pl.Buffered(1)}
    except Exception:
        return {}


# ----------------------------------------------------------------------------
# In-kernel helpers
# ----------------------------------------------------------------------------
def _accum_taps(get_patch, w_ref, m, coutp):
    """Sum of 9 shifted (m, Cin)bf16 @ (Cin, Cout)bf16 MXU dots, f32 accumulator."""
    acc = jnp.zeros((m, coutp), jnp.float32)
    for dy in range(3):
        for dx in range(3):
            acc = acc + jnp.dot(get_patch(dy, dx), w_ref[3 * dy + dx],
                                preferred_element_type=jnp.float32)
    return acc


# ----------------------------------------------------------------------------
# Fused kernel (stride == 1): bn1+relu -> conv1 -> bn2+relu -> conv2 -> +residual
# `a` and `h` never leave VMEM (halo'd bf16 scratch planes).
# ----------------------------------------------------------------------------
def _fused_block_kernel(equal_in_out, rb, *refs):
    if equal_in_out:
        (x_ref, w1_ref, w2_ref, s1_ref, b1_ref, s2_ref, b2_ref,
         o_ref, a_pad, h_pad) = refs
        ws_ref = None
    else:
        (x_ref, w1_ref, w2_ref, ws_ref, s1_ref, b1_ref, s2_ref, b2_ref,
         o_ref, a_pad, h_pad) = refs

    _, h, w, cinp = x_ref.shape
    coutp = o_ref.shape[-1]

    # Zero the halo'd scratch planes (only the 1-wide ring truly needs it, but
    # a full zeros-store is cheap, robust under megacore grid partitioning, and
    # replaces the old iota mask + HBM spatial pre-pad entirely).
    a_pad[...] = jnp.zeros_like(a_pad)
    h_pad[...] = jnp.zeros_like(h_pad)

    # a = relu(bn1(x))  (f32 math, bf16 storage for the MXU)
    a = jnp.maximum(x_ref[0] * s1_ref[...] + b1_ref[...], 0.0)
    a_pad[1:h + 1, 1:w + 1, :] = a.astype(a_pad.dtype)

    nb = h // rb

    # conv1 + bn2 + relu -> halo'd bf16 scratch, banded over output rows so the
    # f32 accumulator of each band stays out of VMEM.
    for band in range(nb):
        r0 = band * rb

        def patch1(dy, dx, r0=r0):
            return a_pad[r0 + dy:r0 + dy + rb, dx:dx + w, :].reshape(rb * w, cinp)

        acc = _accum_taps(patch1, w1_ref, rb * w, coutp)
        hb = jnp.maximum(acc * s2_ref[...] + b2_ref[...], 0.0)
        h_pad[1 + r0:1 + r0 + rb, 1:w + 1, :] = (
            hb.reshape(rb, w, coutp).astype(h_pad.dtype))

    # conv2 (stride 1) + residual, banded; lane-dense store once per band.
    for band in range(nb):
        r0 = band * rb

        def patch2(dy, dx, r0=r0):
            return h_pad[r0 + dy:r0 + dy + rb, dx:dx + w, :].reshape(rb * w, coutp)

        acc = _accum_taps(patch2, w2_ref, rb * w, coutp)
        if equal_in_out:
            acc = acc + x_ref[0, r0:r0 + rb, :, :].reshape(rb * w, coutp)
        else:
            a_band = a_pad[1 + r0:1 + r0 + rb, 1:w + 1, :].reshape(rb * w, cinp)
            acc = acc + jnp.dot(a_band, ws_ref[...],
                                preferred_element_type=jnp.float32)
        o_ref[0, r0:r0 + rb, :, :] = acc.reshape(rb, w, coutp)


def _fused_call(xc, w1, w2, ws, s1, b1, s2, b2, equal_in_out):
    n, h, w, cinp = xc.shape
    coutp = w1.shape[-1]
    rb = _pick_band(h, w)
    wkw = _weight_spec_kwargs()

    in_specs = [
        pl.BlockSpec((1, h, w, cinp), lambda i: (i, 0, 0, 0)),
        pl.BlockSpec((9, cinp, coutp), lambda i: (0, 0, 0), **wkw),
        pl.BlockSpec((9, coutp, coutp), lambda i: (0, 0, 0), **wkw),
    ]
    args = [xc, w1, w2]
    if not equal_in_out:
        in_specs.append(pl.BlockSpec((cinp, coutp), lambda i: (0, 0), **wkw))
        args.append(ws)
    in_specs += [
        pl.BlockSpec((1, cinp), lambda i: (0, 0)),
        pl.BlockSpec((1, cinp), lambda i: (0, 0)),
        pl.BlockSpec((1, coutp), lambda i: (0, 0)),
        pl.BlockSpec((1, coutp), lambda i: (0, 0)),
    ]
    args += [s1, b1, s2, b2]

    return pl.pallas_call(
        functools.partial(_fused_block_kernel, equal_in_out, rb),
        out_shape=jax.ShapeDtypeStruct((n, h, w, coutp), jnp.float32),
        grid=(n,),
        in_specs=in_specs,
        out_specs=pl.BlockSpec((1, h, w, coutp), lambda i: (i, 0, 0, 0)),
        scratch_shapes=[
            pltpu.VMEM((h + 2, w + 2, cinp), jnp.bfloat16),   # a (halo'd)
            pltpu.VMEM((h + 2, w + 2, coutp), jnp.bfloat16),  # h (halo'd)
        ],
        compiler_params=_compiler_params(),
    )(*args)


# ----------------------------------------------------------------------------
# stride > 1 path (rare: 2 blocks per WRN): conv1 kernel -> XLA phase
# decomposition of the bf16 intermediate -> conv2 + fused 1x1 shortcut kernel.
# ----------------------------------------------------------------------------
def _conv1_kernel(rb, x_ref, w1_ref, s1_ref, b1_ref, s2_ref, b2_ref, o_ref, a_pad):
    _, h, w, cinp = x_ref.shape
    coutp = o_ref.shape[-1]

    a_pad[...] = jnp.zeros_like(a_pad)
    a = jnp.maximum(x_ref[0] * s1_ref[...] + b1_ref[...], 0.0)
    a_pad[1:h + 1, 1:w + 1, :] = a.astype(a_pad.dtype)

    for band in range(h // rb):
        r0 = band * rb

        def patch(dy, dx, r0=r0):
            return a_pad[r0 + dy:r0 + dy + rb, dx:dx + w, :].reshape(rb * w, cinp)

        acc = _accum_taps(patch, w1_ref, rb * w, coutp)
        hb = jnp.maximum(acc * s2_ref[...] + b2_ref[...], 0.0)
        o_ref[0, r0:r0 + rb, :, :] = hb.reshape(rb, w, coutp).astype(o_ref.dtype)


def _conv1_call(xc, w1, s1, b1, s2, b2):
    n, h, w, cinp = xc.shape
    coutp = w1.shape[-1]
    rb = _pick_band(h, w)
    wkw = _weight_spec_kwargs()
    return pl.pallas_call(
        functools.partial(_conv1_kernel, rb),
        out_shape=jax.ShapeDtypeStruct((n, h, w, coutp), jnp.bfloat16),
        grid=(n,),
        in_specs=[
            pl.BlockSpec((1, h, w, cinp), lambda i: (i, 0, 0, 0)),
            pl.BlockSpec((9, cinp, coutp), lambda i: (0, 0, 0), **wkw),
            pl.BlockSpec((1, cinp), lambda i: (0, 0)),
            pl.BlockSpec((1, cinp), lambda i: (0, 0)),
            pl.BlockSpec((1, coutp), lambda i: (0, 0)),
            pl.BlockSpec((1, coutp), lambda i: (0, 0)),
        ],
        out_specs=pl.BlockSpec((1, h, w, coutp), lambda i: (i, 0, 0, 0)),
        scratch_shapes=[pltpu.VMEM((h + 2, w + 2, cinp), jnp.bfloat16)],
        compiler_params=_compiler_params(),
    )(xc, w1, s1, b1, s2, b2)


def _conv2_shortcut_kernel(rb, ph_ref, w2_ref, xs_ref, ws_ref, s1_ref, b1_ref, o_ref):
    # ph_ref: (1, s, s, Hp, Wp, Coutp) bf16 phase-decomposed, zero-padded conv2
    # input: phase (dy%s, dx%s) at offset (i+dy//s, j+dx//s) == padded (s*i+dy, s*j+dx).
    _, ho, wo, coutp = o_ref.shape
    s = ph_ref.shape[1]
    cinp = xs_ref.shape[-1]

    for band in range(ho // rb):
        r0 = band * rb

        def patch(dy, dx, r0=r0):
            return ph_ref[0, dy % s, dx % s,
                          r0 + dy // s:r0 + dy // s + rb,
                          dx // s:dx // s + wo, :].reshape(rb * wo, coutp)

        acc = _accum_taps(patch, w2_ref, rb * wo, coutp)
        # Fused 1x1 shortcut on relu(bn1(x)) at the strided positions.
        a_s = jnp.maximum(xs_ref[0, r0:r0 + rb, :, :] * s1_ref[...] + b1_ref[...], 0.0)
        acc = acc + jnp.dot(a_s.reshape(rb * wo, cinp).astype(jnp.bfloat16),
                            ws_ref[...], preferred_element_type=jnp.float32)
        o_ref[0, r0:r0 + rb, :, :] = acc.reshape(rb, wo, coutp)


def _conv2_shortcut_call(ph, w2, xs, ws, s1, b1):
    n, s, _, hp_, wp_, coutp = ph.shape
    _, ho, wo, cinp = xs.shape
    rb = _pick_band(ho, wo)
    wkw = _weight_spec_kwargs()
    return pl.pallas_call(
        functools.partial(_conv2_shortcut_kernel, rb),
        out_shape=jax.ShapeDtypeStruct((n, ho, wo, coutp), jnp.float32),
        grid=(n,),
        in_specs=[
            pl.BlockSpec((1, s, s, hp_, wp_, coutp), lambda i: (i, 0, 0, 0, 0, 0)),
            pl.BlockSpec((9, coutp, coutp), lambda i: (0, 0, 0), **wkw),
            pl.BlockSpec((1, ho, wo, cinp), lambda i: (i, 0, 0, 0)),
            pl.BlockSpec((cinp, coutp), lambda i: (0, 0), **wkw),
            pl.BlockSpec((1, cinp), lambda i: (0, 0)),
            pl.BlockSpec((1, cinp), lambda i: (0, 0)),
        ],
        out_specs=pl.BlockSpec((1, ho, wo, coutp), lambda i: (i, 0, 0, 0)),
        compiler_params=_compiler_params(),
    )(ph, w2, xs, ws, s1, b1)


# ----------------------------------------------------------------------------
# Parameter / layout prep (plain JAX, cheap)
# ----------------------------------------------------------------------------
def _prep_w3x3(w_oihw, cinp, coutp):
    # (Cout, Cin, 3, 3) -> (9 taps, Cinp, Coutp) bf16, zero-padded channel dims.
    cout, cin, kh, kw = w_oihw.shape
    w = jnp.transpose(w_oihw, (2, 3, 1, 0)).reshape(kh * kw, cin, cout)
    w = jnp.pad(w, ((0, 0), (0, cinp - cin), (0, coutp - cout)))
    return w.astype(jnp.bfloat16)


def _prep_w1x1(w_oihw, cinp, coutp):
    cout, cin = w_oihw.shape[0], w_oihw.shape[1]
    wm = jnp.transpose(w_oihw.reshape(cout, cin), (1, 0))
    wm = jnp.pad(wm, ((0, cinp - cin), (0, coutp - cout)))
    return wm.astype(jnp.bfloat16)


def _prep_vec(v, cp):
    return jnp.pad(v.astype(jnp.float32), (0, cp - v.shape[0])).reshape(1, cp)


def _forward_impl(x_nchw, params, stride, equal_in_out):
    if equal_in_out:
        assert stride == 1, "identity residual requires stride == 1"
    assert stride in (1, 2)

    x = jnp.transpose(x_nchw, (0, 2, 3, 1)).astype(jnp.float32)      # NHWC
    n, h, w, cin = x.shape
    assert h % stride == 0 and w % stride == 0
    cout = params["conv1_w"].shape[0]
    cinp, coutp = _round_up(cin, LANE), _round_up(cout, LANE)

    # Channel-pad once; padded channels stay exactly zero through every stage.
    xc = jnp.pad(x, ((0, 0), (0, 0), (0, 0), (0, cinp - cin)))

    s1 = _prep_vec(params["bn1_scale"], cinp)
    b1 = _prep_vec(params["bn1_shift"], cinp)
    s2 = _prep_vec(params["bn2_scale"], coutp)
    b2 = _prep_vec(params["bn2_shift"], coutp)
    w1 = _prep_w3x3(params["conv1_w"], cinp, coutp)
    w2 = _prep_w3x3(params["conv2_w"], coutp, coutp)

    if stride == 1:
        ws = None if equal_in_out else _prep_w1x1(params["convs_w"], cinp, coutp)
        out = _fused_call(xc, w1, w2, ws, s1, b1, s2, b2, equal_in_out)
    else:
        # Kernel A: relu(bn2(conv1(relu(bn1(x))))) -> bf16 intermediate.
        hmid = _conv1_call(xc, w1, s1, b1, s2, b2)                   # (N, H, W, Cp) bf16
        # Pure-layout phase decomposition (XLA) so all in-kernel conv2 slices
        # are static and unit-stride; only the rare stride-2 blocks pay this.
        hp = jnp.pad(hmid, ((0, 0), (1, 1), (1, 1), (0, 0)))
        s = stride
        ph = hp.reshape(n, (h + 2) // s, s, (w + 2) // s, s, coutp)
        ph = jnp.transpose(ph, (0, 2, 4, 1, 3, 5))                   # (N, s, s, Hp, Wp, Cp)
        ws = _prep_w1x1(params["convs_w"], cinp, coutp)
        xs = xc[:, ::s, ::s, :]
        out = _conv2_shortcut_call(ph, w2, xs, ws, s1, b1)

    out = out[:, :, :, :cout]                                        # drop lane padding
    # TODO(synk): in a full network keep NHWC between blocks and drop this transpose.
    return jnp.transpose(out, (0, 3, 1, 2))                          # back to NCHW


_forward_jit = jax.jit(_forward_impl, static_argnames=("stride", "equal_in_out"))


def basic_block_forward(x_nchw, params, stride, equal_in_out):
    # Resolve the hardware probes eagerly (outside any trace), then dispatch.
    _weight_spec_kwargs()
    _compiler_params()
    return _forward_jit(x_nchw, params, stride=stride, equal_in_out=equal_in_out)


# ----------------------------------------------------------------------------
# Pure-JAX reference (correctness check)
# ----------------------------------------------------------------------------
def reference_forward(x_nchw, params, stride, equal_in_out):
    dn = ("NCHW", "OIHW", "NCHW")

    def bn_relu_ref(z, s, b):
        return jnp.maximum(z * s[None, :, None, None] + b[None, :, None, None], 0.0)

    a = bn_relu_ref(x_nchw, params["bn1_scale"], params["bn1_shift"])
    o = jax.lax.conv_general_dilated(a, params["conv1_w"], (1, 1), ((1, 1), (1, 1)),
                                     dimension_numbers=dn)
    o = bn_relu_ref(o, params["bn2_scale"], params["bn2_shift"])
    o = jax.lax.conv_general_dilated(o, params["conv2_w"], (stride, stride),
                                     ((1, 1), (1, 1)), dimension_numbers=dn)
    if equal_in_out:
        res = x_nchw
    else:
        res = jax.lax.conv_general_dilated(a, params["convs_w"], (stride, stride),
                                           ((0, 0), (0, 0)), dimension_numbers=dn)
    return o + res


# ----------------------------------------------------------------------------
# Deterministic parameter init (shapes from the PyTorch BasicBlock)
# ----------------------------------------------------------------------------
def make_params(key, in_planes, out_planes, equal_in_out):
    eps = 1e-5
    ks = jax.random.split(key, 12)

    def bn(kg, kb, km, kv, c):
        gamma = 1.0 + 0.1 * jax.random.normal(kg, (c,), jnp.float32)
        beta = 0.1 * jax.random.normal(kb, (c,), jnp.float32)
        mean = 0.1 * jax.random.normal(km, (c,), jnp.float32)
        var = 1.0 + 0.1 * jax.random.uniform(kv, (c,), jnp.float32)
        scale = gamma / jnp.sqrt(var + eps)
        shift = beta - mean * scale
        return scale, shift

    bn1_scale, bn1_shift = bn(ks[0], ks[1], ks[2], ks[3], in_planes)
    bn2_scale, bn2_shift = bn(ks[4], ks[5], ks[6], ks[7], out_planes)

    def conv_w(k, cout, cin, kk):
        std = np.sqrt(2.0 / (cin * kk * kk))
        return std * jax.random.normal(k, (cout, cin, kk, kk), jnp.float32)

    params = {
        "bn1_scale": bn1_scale, "bn1_shift": bn1_shift,
        "bn2_scale": bn2_scale, "bn2_shift": bn2_shift,
        "conv1_w": conv_w(ks[8], out_planes, in_planes, 3),
        "conv2_w": conv_w(ks[9], out_planes, out_planes, 3),
    }
    if not equal_in_out:
        params["convs_w"] = conv_w(ks[10], out_planes, in_planes, 1)
    return params


# ----------------------------------------------------------------------------
if __name__ == "__main__":
    key = jax.random.PRNGKey(0)
    kx, kp1, kp2 = jax.random.split(key, 3)

    # bf16 MXU operands + bf16 intermediates -> loosened tolerance vs f32 ref.
    RTOL = ATOL = 5e-2

    batch, in_planes, out_planes, spatial = 2, 4, 8, 16
    x = jax.random.normal(kx, (batch, in_planes, spatial, spatial), jnp.float32)

    # Case 1: in != out, stride 2 -> two-call path (conv1 kernel + conv2/shortcut kernel)
    params = make_params(kp1, in_planes, out_planes, equal_in_out=False)
    out = jax.block_until_ready(
        basic_block_forward(x, params, stride=2, equal_in_out=False))
    ref = reference_forward(x, params, 2, False)
    np.testing.assert_allclose(np.asarray(out), np.asarray(ref), rtol=RTOL, atol=ATOL)
    assert out.shape == (batch, out_planes, spatial // 2, spatial // 2)

    # Case 2: in == out, stride 1 -> single fused kernel, identity residual
    params_eq = make_params(kp2, in_planes, in_planes, equal_in_out=True)
    out_eq = jax.block_until_ready(
        basic_block_forward(x, params_eq, stride=1, equal_in_out=True))
    ref_eq = reference_forward(x, params_eq, 1, True)
    np.testing.assert_allclose(np.asarray(out_eq), np.asarray(ref_eq), rtol=RTOL, atol=ATOL)
    assert out_eq.shape == x.shape

    # Case 3: in != out, stride 1 -> single fused kernel with fused 1x1 shortcut
    params_us = make_params(kp1, in_planes, out_planes, equal_in_out=False)
    out_us = jax.block_until_ready(
        basic_block_forward(x, params_us, stride=1, equal_in_out=False))
    ref_us = reference_forward(x, params_us, 1, False)
    np.testing.assert_allclose(np.asarray(out_us), np.asarray(ref_us), rtol=RTOL, atol=ATOL)
    assert out_us.shape == (batch, out_planes, spatial, spatial)

    print("KERNEL_OK")
</pallas_src>

<mosaic_0001>
module attributes {stable_mosaic.version = 11 : i64} {
  func.func @_probe_kernel(%arg0: i32, %arg1: memref<8x128xf32, #tpu.memory_space<vmem>>, %arg2: memref<8x128xf32, #tpu.memory_space<vmem>>) attributes {dimension_semantics = [#tpu.dimension_semantics<arbitrary>], iteration_bounds = array<i64: 2>, scalar_prefetch = 0 : i64, scratch_operands = 0 : i64, tpu.core_type = #tpu.core_type<tc>, window_params = [{pipeline_mode = #tpu.pipeline_mode<synchronous>, transform_indices = @transform_0, window_bounds = array<i64: 8, 128>}, {pipeline_mode = #tpu.pipeline_mode<synchronous>, transform_indices = @transform_1, window_bounds = array<i64: 8, 128>}]} {
    %c0 = arith.constant 0 : index
    %c0_0 = arith.constant 0 : index
    %0 = vector.load %arg1[%c0, %c0_0] : memref<8x128xf32, #tpu.memory_space<vmem>>, vector<8x128xf32>
    %cst = arith.constant 2.000000e+00 : f32
    %1 = vector.broadcast %cst : f32 to vector<8x128xf32>
    %2 = arith.mulf %0, %1 : vector<8x128xf32>
    %c0_1 = arith.constant 0 : index
    %c0_2 = arith.constant 0 : index
    %3 = vector.load %arg2[%c0_1, %c0_2] : memref<8x128xf32, #tpu.memory_space<vmem>>, vector<8x128xf32>
    tpu.vector_store %arg2[%c0_1, %c0_2], %2 {strides = array<i32>} : memref<8x128xf32, #tpu.memory_space<vmem>>, vector<8x128xf32>,
    return
  }
  func.func @transform_0(%arg0: i32) -> (i32, i32) {
    %c0_i32 = arith.constant 0 : i32
    %c0_i32_0 = arith.constant 0 : i32
    %c0_i32_1 = arith.constant 0 : i32
    return %c0_i32, %c0_i32_0 : i32, i32
  }
  func.func @transform_1(%arg0: i32) -> (i32, i32) {
    %c0_i32 = arith.constant 0 : i32
    %c0_i32_0 = arith.constant 0 : i32
    %c0_i32_1 = arith.constant 0 : i32
    return %c0_i32, %c0_i32_0 : i32, i32
  }
}

module attributes {stable_mosaic.version = 11 : i64} {
  func.func @_conv1_kernel(%arg0: i32, %arg1: memref<1x16x16x128xf32, #tpu.memory_space<vmem>>, %arg2: memref<9x128x128xbf16, #tpu.memory_space<vmem>>, %arg3: memref<1x128xf32, #tpu.memory_space<vmem>>, %arg4: memref<1x128xf32, #tpu.memory_space<vmem>>, %arg5: memref<1x128xf32, #tpu.memory_space<vmem>>, %arg6: memref<1x128xf32, #tpu.memory_space<vmem>>, %arg7: memref<1x16x16x128xbf16, #tpu.memory_space<vmem>>, %arg8: memref<18x18x128xbf16, #tpu.memory_space<vmem>>) attributes {dimension_semantics = [#tpu.dimension_semantics<parallel>], iteration_bounds = array<i64: 2>, scalar_prefetch = 0 : i64, scratch_operands = 1 : i64, tpu.core_type = #tpu.core_type<tc>, window_params = [{transform_indices = @transform_0, window_bounds = array<i64: 1, 16, 16, 128>}, {pipeline_mode = #tpu.pipeline_mode<synchronous>, transform_indices = @transform_1, window_bounds = array<i64: 9, 128, 128>}, {pipeline_mode = #tpu.pipeline_mode<synchronous>, transform_indices = @transform_2, window_bounds = array<i64: 1, 128>}, {pipeline_mode = #tpu.pipeline_mode<synchronous>, transform_indices = @transform_3, window_bounds = array<i64: 1, 128>}, {pipeline_mode = #tpu.pipeline_mode<synchronous>, transform_indices = @transform_4, window_bounds = array<i64: 1, 128>}, {pipeline_mode = #tpu.pipeline_mode<synchronous>, transform_indices = @transform_5, window_bounds = array<i64: 1, 128>}, {transform_indices = @transform_6, window_bounds = array<i64: 1, 16, 16, 128>}]} {
    %cst = arith.constant 0.000000e+00 : bf16
    %0 = vector.broadcast %cst : bf16 to vector<18x18x128xbf16>
    %c0 = arith.constant 0 : index
    %c0_0 = arith.constant 0 : index
    %c0_1 = arith.constant 0 : index
    %1 = vector.load %arg8[%c0, %c0_0, %c0_1] : memref<18x18x128xbf16, #tpu.memory_space<vmem>>, vector<18x18x128xbf16>
    tpu.vector_store %arg8[%c0, %c0_0, %c0_1], %0 {strides = array<i32>} : memref<18x18x128xbf16, #tpu.memory_space<vmem>>, vector<18x18x128xbf16>,
    %c0_2 = arith.constant 0 : index
    %c0_3 = arith.constant 0 : index
    %c0_4 = arith.constant 0 : index
    %c0_5 = arith.constant 0 : index
    %2 = vector.load %arg1[%c0_2, %c0_3, %c0_4, %c0_5] : memref<1x16x16x128xf32, #tpu.memory_space<vmem>>, vector<1x16x16x128xf32>
    %3 = vector.shape_cast %2 : vector<1x16x16x128xf32> to vector<16x16x128xf32>
    %c0_6 = arith.constant 0 : index
    %c0_7 = arith.constant 0 : index
    %4 = vector.load %arg3[%c0_6, %c0_7] : memref<1x128xf32, #tpu.memory_space<vmem>>, vector<1x128xf32>
    %5 = vector.shape_cast %4 : vector<1x128xf32> to vector<1x1x128xf32>
    %6 = vector.broadcast %5 : vector<1x1x128xf32> to vector<16x16x128xf32>
    %7 = arith.mulf %3, %6 : vector<16x16x128xf32>
    %c0_8 = arith.constant 0 : index
    %c0_9 = arith.constant 0 : index
    %8 = vector.load %arg4[%c0_8, %c0_9] : memref<1x128xf32, #tpu.memory_space<vmem>>, vector<1x128xf32>
    %9 = vector.shape_cast %8 : vector<1x128xf32> to vector<1x1x128xf32>
    %10 = vector.broadcast %9 : vector<1x1x128xf32> to vector<16x16x128xf32>
    %11 = arith.addf %7, %10 : vector<16x16x128xf32>
    %cst_10 = arith.constant 0.000000e+00 : f32
    %12 = vector.broadcast %cst_10 : f32 to vector<16x16x128xf32>
    %13 = arith.maximumf %11, %12 : vector<16x16x128xf32>
    %14 = arith.truncf %13 : vector<16x16x128xf32> to vector<16x16x128xbf16>
    %c1 = arith.constant 1 : index
    %c1_11 = arith.constant 1 : index
    %c0_12 = arith.constant 0 : index
    %15 = vector.load %arg8[%c1, %c1_11, %c0_12] : memref<18x18x128xbf16, #tpu.memory_space<vmem>>, vector<16x16x128xbf16>
    tpu.vector_store %arg8[%c1, %c1_11, %c0_12], %14 {strides = array<i32>} : memref<18x18x128xbf16, #tpu.memory_space<vmem>>, vector<16x16x128xbf16>,
    %cst_13 = arith.constant 0.000000e+00 : f32
    %16 = vector.broadcast %cst_13 : f32 to vector<256x128xf32>
    %c0_14 = arith.constant 0 : index
    %c0_15 = arith.constant 0 : index
    %c0_16 = arith.constant 0 : index
    %17 = vector.load %arg8[%c0_14, %c0_15, %c0_16] : memref<18x18x128xbf16, #tpu.memory_space<vmem>>, vector<16x16x128xbf16>
    %18 = vector.shape_cast %17 : vector<16x16x128xbf16> to vector<256x128xbf16>
    %c0_17 = arith.constant 0 : index
    %c0_18 = arith.constant 0 : index
    %c0_19 = arith.constant 0 : index
    %19 = vector.load %arg2[%c0_17, %c0_18, %c0_19] : memref<9x128x128xbf16, #tpu.memory_space<vmem>>, vector<1x128x128xbf16>
    %20 = vector.shape_cast %19 : vector<1x128x128xbf16> to vector<128x128xbf16>
    %cst_20 = arith.constant dense<0.000000e+00> : vector<256x128xf32>
    %21 = tpu.matmul %18, %20, %cst_20 {dimension_numbers = #tpu.dot_dimension_numbers<[1], [0], [0], [1], [0, 0, 1, 1], [], []>} : vector<256x128xbf16>, vector<128x128xbf16>, vector<256x128xf32> -> vector<256x128xf32>
    %22 = arith.addf %16, %21 : vector<256x128xf32>
    %c0_21 = arith.constant 0 : index
    %c1_22 = arith.constant 1 : index
    %c0_23 = arith.constant 0 : index
    %23 = vector.load %arg8[%c0_21, %c1_22, %c0_23] : memref<18x18x128xbf16, #tpu.memory_space<vmem>>, vector<16x16x128xbf16>
    %24 = vector.shape_cast %23 : vector<16x16x128xbf16> to vector<256x128xbf16>
    %c1_24 = arith.constant 1 : index
    %c0_25 = arith.constant 0 : index
    %c0_26 = arith.constant 0 : index
    %25 = vector.load %arg2[%c1_24, %c0_25, %c0_26] : memref<9x128x128xbf16, #tpu.memory_space<vmem>>, vector<1x128x128xbf16>
    %26 = vector.shape_cast %25 : vector<1x128x128xbf16> to vector<128x128xbf16>
    %cst_27 = arith.constant dense<0.000000e+00> : vector<256x128xf32>
    %27 = tpu.matmul %24, %26, %cst_27 {dimension_numbers = #tpu.dot_dimension_numbers<[1], [0], [0], [1], [0, 0, 1, 1], [], []>} : vector<256x128xbf16>, vector<128x128xbf16>, vector<256x128xf32> -> vector<256x128xf32>
    %28 = arith.addf %22, %27 : vector<256x128xf32>
    %c0_28 = arith.constant 0 : index
    %c2 = arith.constant 2 : index
    %c0_29 = arith.constant 0 : index
    %29 = vector.load %arg8[%c0_28, %c2, %c0_29] : memref<18x18x128xbf16, #tpu.memory_space<vmem>>, vector<16x16x128xbf16>
    %30 = vector.shape_cast %29 : vector<16x16x128xbf16> to vector<256x128xbf16>
    %c2_30 = arith.constant 2 : index
    %c0_31 = arith.constant 0 : index
    %c0_32 = arith.constant 0 : index
    %31 = vector.load %arg2[%c2_30, %c0_31, %c0_32] : memref<9x128x128xbf16, #tpu.memory_space<vmem>>, vector<1x128x128xbf16>
    %32 = vector.shape_cast %31 : vector<1x128x128xbf16> to vector<128x128xbf16>
    %cst_33 = arith.constant dense<0.000000e+00> : vector<256x128xf32>
    %33 = tpu.matmul %30, %32, %cst_33 {dimension_numbers = #tpu.dot_dimension_numbers<[1], [0], [0], [1], [0, 0, 1, 1], [], []>} : vector<256x128xbf16>, vector<128x128xbf16>, vector<256x128xf32> -> vector<256x128xf32>
    %34 = arith.addf %28, %33 : vector<256x128xf32>
    %c1_34 = arith.constant 1 : index
    %c0_35 = arith.constant 0 : index
    %c0_36 = arith.constant 0 : index
    %35 = vector.load %arg8[%c1_34, %c0_35, %c0_36] : memref<18x18x128xbf16, #tpu.memory_space<vmem>>, vector<16x16x128xbf16>
    %36 = vector.shape_cast %35 : vector<16x16x128xbf16> to vector<256x128xbf16>
    %c3 = arith.constant 3 : index
    %c0_37 = arith.constant 0 : index
    %c0_38 = arith.constant 0 : index
    %37 = vector.load %arg2[%c3, %c0_37, %c0_38] : memref<9x128x128xbf16, #tpu.memory_space<vmem>>, vector<1x128x128xbf16>
    %38 = vector.shape_cast %37 : vector<1x128x128xbf16> to vector<128x128xbf16>
    %cst_39 = arith.constant dense<0.000000e+00> : vector<256x128xf32>
    %39 = tpu.matmul %36, %38, %cst_39 {dimension_numbers = #tpu.dot_dimension_numbers<[1], [0], [0], [1], [0, 0, 1, 1], [], []>} : vector<256x128xbf16>, vector<128x128xbf16>, vector<256x128xf32> -> vector<256x128xf32>
    %40 = arith.addf %34, %39 : vector<256x128xf32>
    %c1_40 = arith.constant 1 : index
    %c1_41 = arith.constant 1 : index
    %c0_42 = arith.constant 0 : index
    %41 = vector.load %arg8[%c1_40, %c1_41, %c0_42] : memref<18x18x128xbf16, #tpu.memory_space<vmem>>, vector<16x16x128xbf16>
    %42 = vector.shape_cast %41 : vector<16x16x128xbf16> to vector<256x128xbf16>
    %c4 = arith.constant 4 : index
    %c0_43 = arith.constant 0 : index
    %c0_44 = arith.constant 0 : index
    %43 = vector.load %arg2[%c4, %c0_43, %c0_44] : memref<9x128x128xbf16, #tpu.memory_space<vmem>>, vector<1x128x128xbf16>
    %44 = vector.shape_cast %43 : vector<1x128x128xbf16> to vector<128x128xbf16>
    %cst_45 = arith.constant dense<0.000000e+00> : vector<256x128xf32>
    %45 = tpu.matmul %42, %44, %cst_45 {dimension_numbers = #tpu.dot_dimension_numbers<[1], [0], [0], [1], [0, 0, 1, 1], [], []>} : vector<256x128xbf16>, vector<128x128xbf16>, vector<256x128xf32> -> vector<256x128xf32>
    %46 = arith.addf %40, %45 : vector<256x128xf32>
    %c1_46 = arith.constant 1 : index
    %c2_47 = arith.constant 2 : index
    %c0_48 = arith.constant 0 : index
    %47 = vector.load %arg8[%c1_46, %c2_47, %c0_48] : memref<18x18x128xbf16, #tpu.memory_space<vmem>>, vector<16x16x128xbf16>
    %48 = vector.shape_cast %47 : vector<16x16x128xbf16> to vector<256x128xbf16>
    %c5 = arith.constant 5 : index
    %c0_49 = arith.constant 0 : index
    %c0_50 = arith.constant 0 : index
    %49 = vector.load %arg2[%c5, %c0_49, %c0_50] : memref<9x128x128xbf16, #tpu.memory_space<vmem>>, vector<1x128x128xbf16>
    %50 = vector.shape_cast %49 : vector<1x128x128xbf16> to vector<128x128xbf16>
    %cst_51 = arith.constant dense<0.000000e+00> : vector<256x128xf32>
    %51 = tpu.matmul %48, %50, %cst_51 {dimension_numbers = #tpu.dot_dimension_numbers<[1], [0], [0], [1], [0, 0, 1, 1], [], []>} : vector<256x128xbf16>, vector<128x128xbf16>, vector<256x128xf32> -> vector<256x128xf32>
    %52 = arith.addf %46, %51 : vector<256x128xf32>
    %c2_52 = arith.constant 2 : index
    %c0_53 = arith.constant 0 : index
    %c0_54 = arith.constant 0 : index
    %53 = vector.load %arg8[%c2_52, %c0_53, %c0_54] : memref<18x18x128xbf16, #tpu.memory_space<vmem>>, vector<16x16x128xbf16>
    %54 = vector.shape_cast %53 : vector<16x16x128xbf16> to vector<256x128xbf16>
    %c6 = arith.constant 6 : index
    %c0_55 = arith.constant 0 : index
    %c0_56 = arith.constant 0 : index
    %55 = vector.load %arg2[%c6, %c0_55, %c0_56] : memref<9x128x128xbf16, #tpu.memory_space<vmem>>, vector<1x128x128xbf16>
    %56 = vector.shape_cast %55 : vector<1x128x128xbf16> to vector<128x128xbf16>
    %cst_57 = arith.constant dense<0.000000e+00> : vector<256x128xf32>
    %57 = tpu.matmul %54, %56, %cst_57 {dimension_numbers = #tpu.dot_dimension_numbers<[1], [0], [0], [1], [0, 0, 1, 1], [], []>} : vector<256x128xbf16>, vector<128x128xbf16>, vector<256x128xf32> -> vector<256x128xf32>
    %58 = arith.addf %52, %57 : vector<256x128xf32>
    %c2_58 = arith.constant 2 : index
    %c1_59 = arith.constant 1 : index
    %c0_60 = arith.constant 0 : index
    %59 = vector.load %arg8[%c2_58, %c1_59, %c0_60] : memref<18x18x128xbf16, #tpu.memory_space<vmem>>, vector<16x16x128xbf16>
    %60 = vector.shape_cast %59 : vector<16x16x128xbf16> to vector<256x128xbf16>
    %c7 = arith.constant 7 : index
    %c0_61 = arith.constant 0 : index
    %c0_62 = arith.constant 0 : index
    %61 = vector.load %arg2[%c7, %c0_61, %c0_62] : memref<9x128x128xbf16, #tpu.memory_space<vmem>>, vector<1x128x128xbf16>
    %62 = vector.shape_cast %61 : vector<1x128x128xbf16> to vector<128x128xbf16>
    %cst_63 = arith.constant dense<0.000000e+00> : vector<256x128xf32>
    %63 = tpu.matmul %60, %62, %cst_63 {dimension_numbers = #tpu.dot_dimension_numbers<[1], [0], [0], [1], [0, 0, 1, 1], [], []>} : vector<256x128xbf16>, vector<128x128xbf16>, vector<256x128xf32> -> vector<256x128xf32>
    %64 = arith.addf %58, %63 : vector<256x128xf32>
    %c2_64 = arith.constant 2 : index
    %c2_65 = arith.constant 2 : index
    %c0_66 = arith.constant 0 : index
    %65 = vector.load %arg8[%c2_64, %c2_65, %c0_66] : memref<18x18x128xbf16, #tpu.memory_space<vmem>>, vector<16x16x128xbf16>
    %66 = vector.shape_cast %65 : vector<16x16x128xbf16> to vector<256x128xbf16>
    %c8 = arith.constant 8 : index
    %c0_67 = arith.constant 0 : index
    %c0_68 = arith.constant 0 : index
    %67 = vector.load %arg2[%c8, %c0_67, %c0_68] : memref<9x128x128xbf16, #tpu.memory_space<vmem>>, vector<1x128x128xbf16>
    %68 = vector.shape_cast %67 : vector<1x128x128xbf16> to vector<128x128xbf16>
    %cst_69 = arith.constant dense<0.000000e+00> : vector<256x128xf32>
    %69 = tpu.matmul %66, %68, %cst_69 {dimension_numbers = #tpu.dot_dimension_numbers<[1], [0], [0], [1], [0, 0, 1, 1], [], []>} : vector<256x128xbf16>, vector<128x128xbf16>, vector<256x128xf32> -> vector<256x128xf32>
    %70 = arith.addf %64, %69 : vector<256x128xf32>
    %c0_70 = arith.constant 0 : index
    %c0_71 = arith.constant 0 : index
    %71 = vector.load %arg5[%c0_70, %c0_71] : memref<1x128xf32, #tpu.memory_space<vmem>>, vector<1x128xf32>
    %72 = vector.broadcast %71 : vector<1x128xf32> to vector<256x128xf32>
    %73 = arith.mulf %70, %72 : vector<256x128xf32>
    %c0_72 = arith.constant 0 : index
    %c0_73 = arith.constant 0 : index
    %74 = vector.load %arg6[%c0_72, %c0_73] : memref<1x128xf32, #tpu.memory_space<vmem>>, vector<1x128xf32>
    %75 = vector.broadcast %74 : vector<1x128xf32> to vector<256x128xf32>
    %76 = arith.addf %73, %75 : vector<256x128xf32>
    %cst_74 = arith.constant 0.000000e+00 : f32
    %77 = vector.broadcast %cst_74 : f32 to vector<256x128xf32>
    %78 = arith.maximumf %76, %77 : vector<256x128xf32>
    %79 = vector.shape_cast %78 : vector<256x128xf32> to vector<16x16x128xf32>
    %80 = arith.truncf %79 : vector<16x16x128xf32> to vector<16x16x128xbf16>
    %c0_75 = arith.constant 0 : index
    %c0_76 = arith.constant 0 : index
    %c0_77 = arith.constant 0 : index
    %c0_78 = arith.constant 0 : index
    %81 = vector.load %arg7[%c0_75, %c0_76, %c0_77, %c0_78] : memref<1x16x16x128xbf16, #tpu.memory_space<vmem>>, vector<1x16x16x128xbf16>
    %82 = vector.shape_cast %81 : vector<1x16x16x128xbf16> to vector<16x16x128xbf16>
    %83 = vector.shape_cast %80 : vector<16x16x128xbf16> to vector<1x16x16x128xbf16>
    tpu.vector_store %arg7[%c0_75, %c0_76, %c0_77, %c0_78], %83 {strides = array<i32>} : memref<1x16x16x128xbf16, #tpu.memory_space<vmem>>, vector<1x16x16x128xbf16>,
    return
  }
  func.func @transform_0(%arg0: i32) -> (i32, i32, i32, i32) {
    %c0_i32 = arith.constant 0 : i32
    %c0_i32_0 = arith.constant 0 : i32
    %c0_i32_1 = arith.constant 0 : i32
    %c0_i32_2 = arith.constant 0 : i32
    return %arg0, %c0_i32, %c0_i32_0, %c0_i32_1 : i32, i32, i32, i32
  }
  func.func @transform_1(%arg0: i32) -> (i32, i32, i32) {
    %c0_i32 = arith.constant 0 : i32
    %c0_i32_0 = arith.constant 0 : i32
    %c0_i32_1 = arith.constant 0 : i32
    %c0_i32_2 = arith.constant 0 : i32
    return %c0_i32, %c0_i32_0, %c0_i32_1 : i32, i32, i32
  }
  func.func @transform_2(%arg0: i32) -> (i32, i32) {
    %c0_i32 = arith.constant 0 : i32
    %c0_i32_0 = arith.constant 0 : i32
    %c0_i32_1 = arith.constant 0 : i32
    return %c0_i32, %c0_i32_0 : i32, i32
  }
  func.func @transform_3(%arg0: i32) -> (i32, i32) {
    %c0_i32 = arith.constant 0 : i32
    %c0_i32_0 = arith.constant 0 : i32
    %c0_i32_1 = arith.constant 0 : i32
    return %c0_i32, %c0_i32_0 : i32, i32
  }
  func.func @transform_4(%arg0: i32) -> (i32, i32) {
    %c0_i32 = arith.constant 0 : i32
    %c0_i32_0 = arith.constant 0 : i32
    %c0_i32_1 = arith.constant 0 : i32
    return %c0_i32, %c0_i32_0 : i32, i32
  }
  func.func @transform_5(%arg0: i32) -> (i32, i32) {
    %c0_i32 = arith.constant 0 : i32
    %c0_i32_0 = arith.constant 0 : i32
    %c0_i32_1 = arith.constant 0 : i32
    return %c0_i32, %c0_i32_0 : i32, i32
  }
  func.func @transform_6(%arg0: i32) -> (i32, i32, i32, i32) {
    %c0_i32 = arith.constant 0 : i32
    %c0_i32_0 = arith.constant 0 : i32
    %c0_i32_1 = arith.constant 0 : i32
    %c0_i32_2 = arith.constant 0 : i32
    return %arg0, %c0_i32, %c0_i32_0, %c0_i32_1 : i32, i32, i32, i32
  }
}

module attributes {stable_mosaic.version = 11 : i64} {
  func.func @_conv2_shortcut_kernel(%arg0: i32, %arg1: memref<1x2x2x9x9x128xbf16, #tpu.memory_space<vmem>>, %arg2: memref<9x128x128xbf16, #tpu.memory_space<vmem>>, %arg3: memref<1x8x8x128xf32, #tpu.memory_space<vmem>>, %arg4: memref<128x128xbf16, #tpu.memory_space<vmem>>, %arg5: memref<1x128xf32, #tpu.memory_space<vmem>>, %arg6: memref<1x128xf32, #tpu.memory_space<vmem>>, %arg7: memref<1x8x8x128xf32, #tpu.memory_space<vmem>>) attributes {dimension_semantics = [#tpu.dimension_semantics<parallel>], iteration_bounds = array<i64: 2>, scalar_prefetch = 0 : i64, scratch_operands = 0 : i64, tpu.core_type = #tpu.core_type<tc>, window_params = [{transform_indices = @transform_0, window_bounds = array<i64: 1, 2, 2, 9, 9, 128>}, {pipeline_mode = #tpu.pipeline_mode<synchronous>, transform_indices = @transform_1, window_bounds = array<i64: 9, 128, 128>}, {transform_indices = @transform_2, window_bounds = array<i64: 1, 8, 8, 128>}, {pipeline_mode = #tpu.pipeline_mode<synchronous>, transform_indices = @transform_3, window_bounds = array<i64: 128, 128>}, {pipeline_mode = #tpu.pipeline_mode<synchronous>, transform_indices = @transform_4, window_bounds = array<i64: 1, 128>}, {pipeline_mode = #tpu.pipeline_mode<synchronous>, transform_indices = @transform_5, window_bounds = array<i64: 1, 128>}, {transform_indices = @transform_6, window_bounds = array<i64: 1, 8, 8, 128>}]} {
    %cst = arith.constant 0.000000e+00 : f32
    %0 = vector.broadcast %cst : f32 to vector<64x128xf32>
    %c0 = arith.constant 0 : index
    %c0_0 = arith.constant 0 : index
    %c0_1 = arith.constant 0 : index
    %c0_2 = arith.constant 0 : index
    %c0_3 = arith.constant 0 : index
    %c0_4 = arith.constant 0 : index
    %1 = vector.load %arg1[%c0, %c0_0, %c0_1, %c0_2, %c0_3, %c0_4] : memref<1x2x2x9x9x128xbf16, #tpu.memory_space<vmem>>, vector<1x1x1x8x8x128xbf16>
    %2 = vector.shape_cast %1 : vector<1x1x1x8x8x128xbf16> to vector<8x8x128xbf16>
    %3 = vector.shape_cast %2 : vector<8x8x128xbf16> to vector<64x128xbf16>
    %c0_5 = arith.constant 0 : index
    %c0_6 = arith.constant 0 : index
    %c0_7 = arith.constant 0 : index
    %4 = vector.load %arg2[%c0_5, %c0_6, %c0_7] : memref<9x128x128xbf16, #tpu.memory_space<vmem>>, vector<1x128x128xbf16>
    %5 = vector.shape_cast %4 : vector<1x128x128xbf16> to vector<128x128xbf16>
    %cst_8 = arith.constant dense<0.000000e+00> : vector<64x128xf32>
    %6 = tpu.matmul %3, %5, %cst_8 {dimension_numbers = #tpu.dot_dimension_numbers<[1], [0], [0], [1], [0, 0, 1, 1], [], []>} : vector<64x128xbf16>, vector<128x128xbf16>, vector<64x128xf32> -> vector<64x128xf32>
    %7 = arith.addf %0, %6 : vector<64x128xf32>
    %c0_9 = arith.constant 0 : index
    %c0_10 = arith.constant 0 : index
    %c1 = arith.constant 1 : index
    %c0_11 = arith.constant 0 : index
    %c0_12 = arith.constant 0 : index
    %c0_13 = arith.constant 0 : index
    %8 = vector.load %arg1[%c0_9, %c0_10, %c1, %c0_11, %c0_12, %c0_13] : memref<1x2x2x9x9x128xbf16, #tpu.memory_space<vmem>>, vector<1x1x1x8x8x128xbf16>
    %9 = vector.shape_cast %8 : vector<1x1x1x8x8x128xbf16> to vector<8x8x128xbf16>
    %10 = vector.shape_cast %9 : vector<8x8x128xbf16> to vector<64x128xbf16>
    %c1_14 = arith.constant 1 : index
    %c0_15 = arith.constant 0 : index
    %c0_16 = arith.constant 0 : index
    %11 = vector.load %arg2[%c1_14, %c0_15, %c0_16] : memref<9x128x128xbf16, #tpu.memory_space<vmem>>, vector<1x128x128xbf16>
    %12 = vector.shape_cast %11 : vector<1x128x128xbf16> to vector<128x128xbf16>
    %cst_17 = arith.constant dense<0.000000e+00> : vector<64x128xf32>
    %13 = tpu.matmul %10, %12, %cst_17 {dimension_numbers = #tpu.dot_dimension_numbers<[1], [0], [0], [1], [0, 0, 1, 1], [], []>} : vector<64x128xbf16>, vector<128x128xbf16>, vector<64x128xf32> -> vector<64x128xf32>
    %14 = arith.addf %7, %13 : vector<64x128xf32>
    %c0_18 = arith.constant 0 : index
    %c0_19 = arith.constant 0 : index
    %c0_20 = arith.constant 0 : index
    %c0_21 = arith.constant 0 : index
    %c1_22 = arith.constant 1 : index
    %c0_23 = arith.constant 0 : index
    %15 = vector.load %arg1[%c0_18, %c0_19, %c0_20, %c0_21, %c1_22, %c0_23] : memref<1x2x2x9x9x128xbf16, #tpu.memory_space<vmem>>, vector<1x1x1x8x8x128xbf16>
    %16 = vector.shape_cast %15 : vector<1x1x1x8x8x128xbf16> to vector<8x8x128xbf16>
    %17 = vector.shape_cast %16 : vector<8x8x128xbf16> to vector<64x128xbf16>
    %c2 = arith.constant 2 : index
    %c0_24 = arith.constant 0 : index
    %c0_25 = arith.constant 0 : index
    %18 = vector.load %arg2[%c2, %c0_24, %c0_25] : memref<9x128x128xbf16, #tpu.memory_space<vmem>>, vector<1x128x128xbf16>
    %19 = vector.shape_cast %18 : vector<1x128x128xbf16> to vector<128x128xbf16>
    %cst_26 = arith.constant dense<0.000000e+00> : vector<64x128xf32>
    %20 = tpu.matmul %17, %19, %cst_26 {dimension_numbers = #tpu.dot_dimension_numbers<[1], [0], [0], [1], [0, 0, 1, 1], [], []>} : vector<64x128xbf16>, vector<128x128xbf16>, vector<64x128xf32> -> vector<64x128xf32>
    %21 = arith.addf %14, %20 : vector<64x128xf32>
    %c0_27 = arith.constant 0 : index
    %c1_28 = arith.constant 1 : index
    %c0_29 = arith.constant 0 : index
    %c0_30 = arith.constant 0 : index
    %c0_31 = arith.constant 0 : index
    %c0_32 = arith.constant 0 : index
    %22 = vector.load %arg1[%c0_27, %c1_28, %c0_29, %c0_30, %c0_31, %c0_32] : memref<1x2x2x9x9x128xbf16, #tpu.memory_space<vmem>>, vector<1x1x1x8x8x128xbf16>
    %23 = vector.shape_cast %22 : vector<1x1x1x8x8x128xbf16> to vector<8x8x128xbf16>
    %24 = vector.shape_cast %23 : vector<8x8x128xbf16> to vector<64x128xbf16>
    %c3 = arith.constant 3 : index
    %c0_33 = arith.constant 0 : index
    %c0_34 = arith.constant 0 : index
    %25 = vector.load %arg2[%c3, %c0_33, %c0_34] : memref<9x128x128xbf16, #tpu.memory_space<vmem>>, vector<1x128x128xbf16>
    %26 = vector.shape_cast %25 : vector<1x128x128xbf16> to vector<128x128xbf16>
    %cst_35 = arith.constant dense<0.000000e+00> : vector<64x128xf32>
    %27 = tpu.matmul %24, %26, %cst_35 {dimension_numbers = #tpu.dot_dimension_numbers<[1], [0], [0], [1], [0, 0, 1, 1], [], []>} : vector<64x128xbf16>, vector<128x128xbf16>, vector<64x128xf32> -> vector<64x128xf32>
    %28 = arith.addf %21, %27 : vector<64x128xf32>
    %c0_36 = arith.constant 0 : index
    %c1_37 = arith.constant 1 : index
    %c1_38 = arith.constant 1 : index
    %c0_39 = arith.constant 0 : index
    %c0_40 = arith.constant 0 : index
    %c0_41 = arith.constant 0 : index
    %29 = vector.load %arg1[%c0_36, %c1_37, %c1_38, %c0_39, %c0_40, %c0_41] : memref<1x2x2x9x9x128xbf16, #tpu.memory_space<vmem>>, vector<1x1x1x8x8x128xbf16>
    %30 = vector.shape_cast %29 : vector<1x1x1x8x8x128xbf16> to vector<8x8x128xbf16>
    %31 = vector.shape_cast %30 : vector<8x8x128xbf16> to vector<64x128xbf16>
    %c4 = arith.constant 4 : index
    %c0_42 = arith.constant 0 : index
    %c0_43 = arith.constant 0 : index
    %32 = vector.load %arg2[%c4, %c0_42, %c0_43] : memref<9x128x128xbf16, #tpu.memory_space<vmem>>, vector<1x128x128xbf16>
    %33 = vector.shape_cast %32 : vector<1x128x128xbf16> to vector<128x128xbf16>
    %cst_44 = arith.constant dense<0.000000e+00> : vector<64x128xf32>
    %34 = tpu.matmul %31, %33, %cst_44 {dimension_numbers = #tpu.dot_dimension_numbers<[1], [0], [0], [1], [0, 0, 1, 1], [], []>} : vector<64x128xbf16>, vector<128x128xbf16>, vector<64x128xf32> -> vector<64x128xf32>
    %35 = arith.addf %28, %34 : vector<64x128xf32>
    %c0_45 = arith.constant 0 : index
    %c1_46 = arith.constant 1 : index
    %c0_47 = arith.constant 0 : index
    %c0_48 = arith.constant 0 : index
    %c1_49 = arith.constant 1 : index
    %c0_50 = arith.constant 0 : index
    %36 = vector.load %arg1[%c0_45, %c1_46, %c0_47, %c0_48, %c1_49, %c0_50] : memref<1x2x2x9x9x128xbf16, #tpu.memory_space<vmem>>, vector<1x1x1x8x8x128xbf16>
    %37 = vector.shape_cast %36 : vector<1x1x1x8x8x128xbf16> to vector<8x8x128xbf16>
    %38 = vector.shape_cast %37 : vector<8x8x128xbf16> to vector<64x128xbf16>
    %c5 = arith.constant 5 : index
    %c0_51 = arith.constant 0 : index
    %c0_52 = arith.constant 0 : index
    %39 = vector.load %arg2[%c5, %c0_51, %c0_52] : memref<9x128x128xbf16, #tpu.memory_space<vmem>>, vector<1x128x128xbf16>
    %40 = vector.shape_cast %39 : vector<1x128x128xbf16> to vector<128x128xbf16>
    %cst_53 = arith.constant dense<0.000000e+00> : vector<64x128xf32>
    %41 = tpu.matmul %38, %40, %cst_53 {dimension_numbers = #tpu.dot_dimension_numbers<[1], [0], [0], [1], [0, 0, 1, 1], [], []>} : vector<64x128xbf16>, vector<128x128xbf16>, vector<64x128xf32> -> vector<64x128xf32>
    %42 = arith.addf %35, %41 : vector<64x128xf32>
    %c0_54 = arith.constant 0 : index
    %c0_55 = arith.constant 0 : index
    %c0_56 = arith.constant 0 : index
    %c1_57 = arith.constant 1 : index
    %c0_58 = arith.constant 0 : index
    %c0_59 = arith.constant 0 : index
    %43 = vector.load %arg1[%c0_54, %c0_55, %c0_56, %c1_57, %c0_58, %c0_59] : memref<1x2x2x9x9x128xbf16, #tpu.memory_space<vmem>>, vector<1x1x1x8x8x128xbf16>
    %44 = vector.shape_cast %43 : vector<1x1x1x8x8x128xbf16> to vector<8x8x128xbf16>
    %45 = vector.shape_cast %44 : vector<8x8x128xbf16> to vector<64x128xbf16>
    %c6 = arith.constant 6 : index
    %c0_60 = arith.constant 0 : index
    %c0_61 = arith.constant 0 : index
    %46 = vector.load %arg2[%c6, %c0_60, %c0_61] : memref<9x128x128xbf16, #tpu.memory_space<vmem>>, vector<1x128x128xbf16>
    %47 = vector.shape_cast %46 : vector<1x128x128xbf16> to vector<128x128xbf16>
    %cst_62 = arith.constant dense<0.000000e+00> : vector<64x128xf32>
    %48 = tpu.matmul %45, %47, %cst_62 {dimension_numbers = #tpu.dot_dimension_numbers<[1], [0], [0], [1], [0, 0, 1, 1], [], []>} : vector<64x128xbf16>, vector<128x128xbf16>, vector<64x128xf32> -> vector<64x128xf32>
    %49 = arith.addf %42, %48 : vector<64x128xf32>
    %c0_63 = arith.constant 0 : index
    %c0_64 = arith.constant 0 : index
    %c1_65 = arith.constant 1 : index
    %c1_66 = arith.constant 1 : index
    %c0_67 = arith.constant 0 : index
    %c0_68 = arith.constant 0 : index
    %50 = vector.load %arg1[%c0_63, %c0_64, %c1_65, %c1_66, %c0_67, %c0_68] : memref<1x2x2x9x9x128xbf16, #tpu.memory_space<vmem>>, vector<1x1x1x8x8x128xbf16>
    %51 = vector.shape_cast %50 : vector<1x1x1x8x8x128xbf16> to vector<8x8x128xbf16>
    %52 = vector.shape_cast %51 : vector<8x8x128xbf16> to vector<64x128xbf16>
    %c7 = arith.constant 7 : index
    %c0_69 = arith.constant 0 : index
    %c0_70 = arith.constant 0 : index
    %53 = vector.load %arg2[%c7, %c0_69, %c0_70] : memref<9x128x128xbf16, #tpu.memory_space<vmem>>, vector<1x128x128xbf16>
    %54 = vector.shape_cast %53 : vector<1x128x128xbf16> to vector<128x128xbf16>
    %cst_71 = arith.constant dense<0.000000e+00> : vector<64x128xf32>
    %55 = tpu.matmul %52, %54, %cst_71 {dimension_numbers = #tpu.dot_dimension_numbers<[1], [0], [0], [1], [0, 0, 1, 1], [], []>} : vector<64x128xbf16>, vector<128x128xbf16>, vector<64x128xf32> -> vector<64x128xf32>
    %56 = arith.addf %49, %55 : vector<64x128xf32>
    %c0_72 = arith.constant 0 : index
    %c0_73 = arith.constant 0 : index
    %c0_74 = arith.constant 0 : index
    %c1_75 = arith.constant 1 : index
    %c1_76 = arith.constant 1 : index
    %c0_77 = arith.constant 0 : index
    %57 = vector.load %arg1[%c0_72, %c0_73, %c0_74, %c1_75, %c1_76, %c0_77] : memref<1x2x2x9x9x128xbf16, #tpu.memory_space<vmem>>, vector<1x1x1x8x8x128xbf16>
    %58 = vector.shape_cast %57 : vector<1x1x1x8x8x128xbf16> to vector<8x8x128xbf16>
    %59 = vector.shape_cast %58 : vector<8x8x128xbf16> to vector<64x128xbf16>
    %c8 = arith.constant 8 : index
    %c0_78 = arith.constant 0 : index
    %c0_79 = arith.constant 0 : index
    %60 = vector.load %arg2[%c8, %c0_78, %c0_79] : memref<9x128x128xbf16, #tpu.memory_space<vmem>>, vector<1x128x128xbf16>
    %61 = vector.shape_cast %60 : vector<1x128x128xbf16> to vector<128x128xbf16>
    %cst_80 = arith.constant dense<0.000000e+00> : vector<64x128xf32>
    %62 = tpu.matmul %59, %61, %cst_80 {dimension_numbers = #tpu.dot_dimension_numbers<[1], [0], [0], [1], [0, 0, 1, 1], [], []>} : vector<64x128xbf16>, vector<128x128xbf16>, vector<64x128xf32> -> vector<64x128xf32>
    %63 = arith.addf %56, %62 : vector<64x128xf32>
    %c0_81 = arith.constant 0 : index
    %c0_82 = arith.constant 0 : index
    %c0_83 = arith.constant 0 : index
    %c0_84 = arith.constant 0 : index
    %64 = vector.load %arg3[%c0_81, %c0_82, %c0_83, %c0_84] : memref<1x8x8x128xf32, #tpu.memory_space<vmem>>, vector<1x8x8x128xf32>
    %65 = vector.shape_cast %64 : vector<1x8x8x128xf32> to vector<8x8x128xf32>
    %c0_85 = arith.constant 0 : index
    %c0_86 = arith.constant 0 : index
    %66 = vector.load %arg5[%c0_85, %c0_86] : memref<1x128xf32, #tpu.memory_space<vmem>>, vector<1x128xf32>
    %67 = vector.shape_cast %66 : vector<1x128xf32> to vector<1x1x128xf32>
    %68 = vector.broadcast %67 : vector<1x1x128xf32> to vector<8x8x128xf32>
    %69 = arith.mulf %65, %68 : vector<8x8x128xf32>
    %c0_87 = arith.constant 0 : index
    %c0_88 = arith.constant 0 : index
    %70 = vector.load %arg6[%c0_87, %c0_88] : memref<1x128xf32, #tpu.memory_space<vmem>>, vector<1x128xf32>
    %71 = vector.shape_cast %70 : vector<1x128xf32> to vector<1x1x128xf32>
    %72 = vector.broadcast %71 : vector<1x1x128xf32> to vector<8x8x128xf32>
    %73 = arith.addf %69, %72 : vector<8x8x128xf32>
    %cst_89 = arith.constant 0.000000e+00 : f32
    %74 = vector.broadcast %cst_89 : f32 to vector<8x8x128xf32>
    %75 = arith.maximumf %73, %74 : vector<8x8x128xf32>
    %76 = vector.shape_cast %75 : vector<8x8x128xf32> to vector<64x128xf32>
    %77 = arith.truncf %76 : vector<64x128xf32> to vector<64x128xbf16>
    %c0_90 = arith.constant 0 : index
    %c0_91 = arith.constant 0 : index
    %78 = vector.load %arg4[%c0_90, %c0_91] : memref<128x128xbf16, #tpu.memory_space<vmem>>, vector<128x128xbf16>
    %cst_92 = arith.constant dense<0.000000e+00> : vector<64x128xf32>
    %79 = tpu.matmul %77, %78, %cst_92 {dimension_numbers = #tpu.dot_dimension_numbers<[1], [0], [0], [1], [0, 0, 1, 1], [], []>} : vector<64x128xbf16>, vector<128x128xbf16>, vector<64x128xf32> -> vector<64x128xf32>
    %80 = arith.addf %63, %79 : vector<64x128xf32>
    %81 = vector.shape_cast %80 : vector<64x128xf32> to vector<8x8x128xf32>
    %c0_93 = arith.constant 0 : index
    %c0_94 = arith.constant 0 : index
    %c0_95 = arith.constant 0 : index
    %c0_96 = arith.constant 0 : index
    %82 = vector.load %arg7[%c0_93, %c0_94, %c0_95, %c0_96] : memref<1x8x8x128xf32, #tpu.memory_space<vmem>>, vector<1x8x8x128xf32>
    %83 = vector.shape_cast %82 : vector<1x8x8x128xf32> to vector<8x8x128xf32>
    %84 = vector.shape_cast %81 : vector<8x8x128xf32> to vector<1x8x8x128xf32>
    tpu.vector_store %arg7[%c0_93, %c0_94, %c0_95, %c0_96], %84 {strides = array<i32>} : memref<1x8x8x128xf32, #tpu.memory_space<vmem>>, vector<1x8x8x128xf32>,
    return
  }
  func.func @transform_0(%arg0: i32) -> (i32, i32, i32, i32, i32, i32) {
    %c0_i32 = arith.constant 0 : i32
    %c0_i32_0 = arith.constant 0 : i32
    %c0_i32_1 = arith.constant 0 : i32
    %c0_i32_2 = arith.constant 0 : i32
    %c0_i32_3 = arith.constant 0 : i32
    %c0_i32_4 = arith.constant 0 : i32
    return %arg0, %c0_i32, %c0_i32_0, %c0_i32_1, %c0_i32_2, %c0_i32_3 : i32, i32, i32, i32, i32, i32
  }
  func.func @transform_1(%arg0: i32) -> (i32, i32, i32) {
    %c0_i32 = arith.constant 0 : i32
    %c0_i32_0 = arith.constant 0 : i32
    %c0_i32_1 = arith.constant 0 : i32
    %c0_i32_2 = arith.constant 0 : i32
    return %c0_i32, %c0_i32_0, %c0_i32_1 : i32, i32, i32
  }
  func.func @transform_2(%arg0: i32) -> (i32, i32, i32, i32) {
    %c0_i32 = arith.constant 0 : i32
    %c0_i32_0 = arith.constant 0 : i32
    %c0_i32_1 = arith.constant 0 : i32
    %c0_i32_2 = arith.constant 0 : i32
    return %arg0, %c0_i32, %c0_i32_0, %c0_i32_1 : i32, i32, i32, i32
  }
  func.func @transform_3(%arg0: i32) -> (i32, i32) {
    %c0_i32 = arith.constant 0 : i32
    %c0_i32_0 = arith.constant 0 : i32
    %c0_i32_1 = arith.constant 0 : i32
    return %c0_i32, %c0_i32_0 : i32, i32
  }
  func.func @transform_4(%arg0: i32) -> (i32, i32) {
    %c0_i32 = arith.constant 0 : i32
    %c0_i32_0 = arith.constant 0 : i32
    %c0_i32_1 = arith.constant 0 : i32
    return %c0_i32, %c0_i32_0 : i32, i32
  }
  func.func @transform_5(%arg0: i32) -> (i32, i32) {
    %c0_i32 = arith.constant 0 : i32
    %c0_i32_0 = arith.constant 0 : i32
    %c0_i32_1 = arith.constant 0 : i32
    return %c0_i32, %c0_i32_0 : i32, i32
  }
  func.func @transform_6(%arg0: i32) -> (i32, i32, i32, i32) {
    %c0_i32 = arith.constant 0 : i32
    %c0_i32_0 = arith.constant 0 : i32
    %c0_i32_1 = arith.constant 0 : i32
    %c0_i32_2 = arith.constant 0 : i32
    return %arg0, %c0_i32, %c0_i32_0, %c0_i32_1 : i32, i32, i32, i32
  }
}

</mosaic_0001>

<llo_original>
// kernel: tpu_custom_call.1
$region0: #{tpu_custom_call.1}
  #allocation0 [shape = 'u32[]', space=smem, size = 0x4, offset = 0x4, fixed_abs, tag = 'smem constant byte address 0x4 - core index']
  #allocation1 [shape = 'u32[144,128]{1,0:T(1,128)}', space=vmem, size = 0x12000, scoped, tag = 'internal scratch']
  %s0 = inlined_call_operand.hbm [shape: f32[8,128], index: 0, kind: input, shape index: {}]
  %s1 = inlined_call_operand.hbm [shape: f32[8,128], index: 1, kind: output, shape index: {}]
  %s2 = sld [smem:[#allocation0]]
  $region41: #{tpu_custom_call.1} parent=0
    _
  %s4 = ssub.s32 1, %s2
  %s5 = scalar_select 0, %s4, %s2
  $region1: #{tpu_custom_call.1} parent=0
    #allocation2 [shape = 'u8[4096]{0}', space=vmem, size = 0x1000, scoped, tag = 'input window, operand 0, single buffered']
    #allocation3 [shape = 's32[2]{0}', space=sflag, size = 0x8, scoped, tag = 'scoped memory for tpu_custom_call.1']
    #allocation4 [shape = 's32[2]{0}', space=sflag, size = 0x8, scoped, tag = 'scoped memory for tpu_custom_call.1']
    #allocation5 [shape = 'u8[4096]{0}', space=vmem, size = 0x1000, scoped, tag = 'output window, operand 0, single buffered']
    %6 = vsyncpa [#allocation3], 0
    %7 = vsyncpa [#allocation4], 0
    loop: start=0, step=1, limit=4
    $region2: #{tpu_custom_call.1} parent=1 // loop_pre_header
      _
    $region3: #{tpu_custom_call.1} parent=1 // loop_header
      %s9 = sphi 0, %s13
      %p10 = scmp.ge.s32.totalorder %s9, 4
      %s17 = sphi 0, %s17
      %s19 = sphi 0, %s17
      %s20 = sphi 0, %s19
      %s34 = sphi 0, %s20
      %s38 = sphi 0, %s38
      %s40 = sphi 0, %s38
      %s41 = sphi 0, %s40
      %s55 = sphi 0, %s41
    $region4: #{tpu_custom_call.1} parent=1 // loop_header_branch
      %12 = sbr.rel (%p10) target = $region8
    $region5: #{tpu_custom_call.1} parent=1 // loop_body
      %s14 = ssub.s32 %s9, 1
      %s15 = ssub.s32 %s9, 2
      %s16 = sadd.s32 %s9, 1
      %s18 = sadd.s32 %s17, 1
      %p21 = scmp.eq.s32.totalorder %s9, 1
      %p22 = scmp.ne.s32.totalorder %s17, %s19
      %p23 = scmp.eq.s32.totalorder %s9, 0
      %p24 = por %p22, %p23
      %p25 = scmp.ne.s32.totalorder %s17, %s19
      %p26 = scmp.eq.s32.totalorder %s14, 1
      %p27 = por %p25, %p26
      %p28 = scmp.ne.s32.totalorder %s19, %s20
      %p29 = scmp.eq.s32.totalorder %s14, 0
      %p30 = por %p28, %p29
      %p31 = scmp.ne.s32.totalorder %s19, %s20
      %p32 = scmp.eq.s32.totalorder %s15, 1
      %p33 = por %p31, %p32
      %p35 = scmp.ne.s32.totalorder %s20, %s34
      %p36 = scmp.eq.s32.totalorder %s15, 0
      %p37 = por %p35, %p36
      %s39 = sadd.s32 %s38, 1
      %p42 = scmp.eq.s32.totalorder %s9, 1
      %p43 = scmp.ne.s32.totalorder %s38, %s40
      %p44 = scmp.eq.s32.totalorder %s9, 0
      %p45 = por %p43, %p44
      %p46 = scmp.ne.s32.totalorder %s38, %s40
      %p47 = scmp.eq.s32.totalorder %s14, 1
      %p48 = por %p46, %p47
      %p49 = scmp.ne.s32.totalorder %s40, %s41
      %p50 = scmp.eq.s32.totalorder %s14, 0
      %p51 = por %p49, %p50
      %p52 = scmp.ne.s32.totalorder %s40, %s41
      %p53 = scmp.eq.s32.totalorder %s15, 1
      %p54 = por %p52, %p53
      %p56 = scmp.ne.s32.totalorder %s41, %s55
      %p57 = scmp.eq.s32.totalorder %s15, 0
      %p58 = por %p56, %p57
      %p59 = scmp.le.s32.totalorder 1, %s9
      %p60 = scmp.lt.s32.totalorder %s9, 3
      %p61 = pnand %p59, %p60
      %p62 = pneg %p61
      // Predicated region
      $region9: #{tpu_custom_call.1} parent=5 // pred_check
        _
      $region10: #{tpu_custom_call.1} parent=5 // pred_check_branch
        %64 = sbr.rel (%p61) target = $region12
      $region11: #{tpu_custom_call.1} parent=5 // pred_region
        %s65 = ssub.s32 %s9, 1
        // Predicated region
        $region13: #{tpu_custom_call.1} parent=11 // pred_check
          %p66 = pneg %p30
        $region14: #{tpu_custom_call.1} parent=11 // pred_check_branch
          %68 = sbr.rel (%p66) target = $region16
        $region15: #{tpu_custom_call.1} parent=11 // pred_region
          %s70 = ssub.s32 128, 128
          %71 = vsyncadd [#allocation3], %s70
          %s73 = sshll.u32 [#allocation2], 4
          %s74 = int_to_ptr.vmem [resolvable:$true] %s73
          %76 = dma.hbm_to_vmem [thread:$0]  %s0, 128, %s74, [#allocation3]
        $region16: #{tpu_custom_call.1} parent=11 // pred_fallthru
          _
      $region12: #{tpu_custom_call.1} parent=5 // pred_fallthru
        _
      %p77 = scmp.lt.s32.totalorder %s9, 2
      // Predicated region
      $region17: #{tpu_custom_call.1} parent=5 // pred_check
        %p78 = pneg %p77
      $region18: #{tpu_custom_call.1} parent=5 // pred_check_branch
        %80 = sbr.rel (%p78) target = $region20
      $region19: #{tpu_custom_call.1} parent=5 // pred_region
        _
      $region20: #{tpu_custom_call.1} parent=5 // pred_fallthru
        _
      %p81 = scmp.le.s32.totalorder 1, %s9
      %p82 = scmp.lt.s32.totalorder %s9, 3
      %p83 = pnand %p81, %p82
      %p84 = pneg %p83
      // Predicated region
      $region21: #{tpu_custom_call.1} parent=5 // pred_check
        _
      $region22: #{tpu_custom_call.1} parent=5 // pred_check_branch
        %86 = sbr.rel (%p83) target = $region24
      $region23: #{tpu_custom_call.1} parent=5 // pred_region
        %s87 = ssub.s32 %s9, 1
        // Predicated region
        $region25: #{tpu_custom_call.1} parent=23 // pred_check
          %p88 = pneg %p30
        $region26: #{tpu_custom_call.1} parent=23 // pred_check_branch
          %90 = sbr.rel (%p88) target = $region28
        $region27: #{tpu_custom_call.1} parent=23 // pred_region
          %91 = dma.done [#allocation3], 128
        $region28: #{tpu_custom_call.1} parent=23 // pred_fallthru
          _
        %p92 = pneg %p30
        %p93 = pneg %p27
        %p94 = pneg %p51
        %p95 = pneg %p48
        %v96 = vld [vmem:[#allocation2] sm:$0xff]
        %v97 = vmul.f32 %v96, 2.0
        %98 = vst [vmem:[#allocation5] sm:$0xff] %v97
        // Predicated region
        $region29: #{tpu_custom_call.1} parent=23 // pred_check
          %p99 = pneg %p48
        $region30: #{tpu_custom_call.1} parent=23 // pred_check_branch
          %101 = sbr.rel (%p99) target = $region32
        $region31: #{tpu_custom_call.1} parent=23 // pred_region
          %s103 = ssub.s32 128, 128
          %104 = vsyncadd [#allocation4], %s103
          %s106 = sshll.u32 [#allocation5], 4
          %s107 = int_to_ptr.vmem [resolvable:$true] %s106
          %109 = dma.vmem_to_hbm [thread:$0]  %s107, 128, %s1, [#allocation4]
        $region32: #{tpu_custom_call.1} parent=23 // pred_fallthru
          _
        // Predicated region
        $region33: #{tpu_custom_call.1} parent=23 // pred_check
          %p110 = pneg %p48
        $region34: #{tpu_custom_call.1} parent=23 // pred_check_branch
          %112 = sbr.rel (%p110) target = $region36
        $region35: #{tpu_custom_call.1} parent=23 // pred_region
          %113 = dma.done [#allocation4], 128
        $region36: #{tpu_custom_call.1} parent=23 // pred_fallthru
          _
      $region24: #{tpu_custom_call.1} parent=5 // pred_fallthru
        _
      %p114 = scmp.le.s32.totalorder 2, %s9
      // Predicated region
      $region37: #{tpu_custom_call.1} parent=5 // pred_check
        %p115 = pneg %p114
      $region38: #{tpu_custom_call.1} parent=5 // pred_check_branch
        %117 = sbr.rel (%p115) target = $region40
      $region39: #{tpu_custom_call.1} parent=5 // pred_region
        %s118 = ssub.s32 %s9, 2
      $region40: #{tpu_custom_call.1} parent=5 // pred_fallthru
        _
    $region6: #{tpu_custom_call.1} parent=1 // loop_footer
      %s13 = sadd.s32 1, %s9
    $region7: #{tpu_custom_call.1} parent=1 // loop_footer_branch
      %8 = sbr.rel target = $region3
    $region8: #{tpu_custom_call.1} parent=1 // loop_exit
      _
    %119 = vsyncpa [#allocation3], 1
    %s120 = scalar_lea.sflag [#allocation3], 1
    %121 = vsyncpa %s120, 1
    %122 = vsyncpa [#allocation4], 1
    %s123 = scalar_lea.sflag [#allocation4], 1
    %124 = vsyncpa %s123, 1

// kernel: _forward_impl.3
$region0: #{_forward_impl.3}
  #allocation0 [shape = 'u32[]', space=smem, size = 0x4, offset = 0x4, fixed_abs, tag = 'smem constant byte address 0x4 - core index']
  #allocation1 [shape = 'u32[144,128]{1,0:T(1,128)}', space=vmem, size = 0x12000, scoped, tag = 'internal scratch']
  %s0 = inlined_call_operand.vmem [shape: bf16[2,2,2,9,9,128], index: 0, kind: input, shape index: {}]
  %s1 = inlined_call_operand.vmem [shape: bf16[9,128,128], index: 1, kind: input, shape index: {}]
  %s2 = inlined_call_operand.vmem [shape: f32[2,8,8,128], index: 2, kind: input, shape index: {}]
  %s3 = inlined_call_operand.vmem [shape: bf16[128,128], index: 3, kind: input, shape index: {}]
  %s4 = inlined_call_operand.vmem [shape: f32[1,128], index: 4, kind: input, shape index: {}]
  %s5 = inlined_call_operand.vmem [shape: f32[1,128], index: 5, kind: input, shape index: {}]
  %s6 = inlined_call_operand.vmem [shape: f32[2,8,8,128], index: 6, kind: output, shape index: {}]
  %s7 = sld [smem:[#allocation0]]
  $region57: #{_forward_impl.3} parent=0
    _
  %s9 = ssub.s32 1, %s7
  %s10 = scalar_select 0, %s9, %s7
  loop: start=0, step=1, limit=4
  $region2: #{_forward_impl.3} parent=0 // loop_pre_header
    _
  $region3: #{_forward_impl.3} parent=0 // loop_header
    %s12 = sphi 0, %s16
    %p13 = scmp.ge.s32.totalorder %s12, 4
    %s22 = sphi 0, %s24
    %s25 = sphi 0, %s22
    %s26 = sphi 0, %s25
    %s42 = sphi 0, %s26
    %s46 = sphi 0, %s46
    %s48 = sphi 0, %s46
    %s49 = sphi 0, %s48
    %s63 = sphi 0, %s49
    %s69 = sphi 0, %s71
    %s72 = sphi 0, %s69
    %s73 = sphi 0, %s72
    %s89 = sphi 0, %s73
    %s93 = sphi 0, %s93
    %s95 = sphi 0, %s93
    %s96 = sphi 0, %s95
    %s110 = sphi 0, %s96
    %s114 = sphi 0, %s114
    %s116 = sphi 0, %s114
    %s117 = sphi 0, %s116
    %s131 = sphi 0, %s117
    %s135 = sphi 0, %s135
    %s137 = sphi 0, %s135
    %s138 = sphi 0, %s137
    %s152 = sphi 0, %s138
    %s158 = sphi 0, %s160
    %s161 = sphi 0, %s158
    %s162 = sphi 0, %s161
    %s178 = sphi 0, %s162
  $region4: #{_forward_impl.3} parent=0 // loop_header_branch
    %15 = sbr.rel (%p13) target = $region8
  $region5: #{_forward_impl.3} parent=0 // loop_body
    %s17 = ssub.s32 %s12, 1
    %s18 = ssub.s32 %s12, 2
    %s19 = sadd.s32 %s12, 1
    %s20 = ssub.s32 %s12, %s19
    %p21 = scmp.eq.s32.totalorder %s20, 0
    %s23 = sadd.s32 %s22, 1
    %s24 = scalar_select %p21, %s22, %s23
    %p27 = pneg %p21
    %p28 = scmp.eq.s32.totalorder %s12, 1
    %p29 = por %p27, %p28
    %p30 = scmp.ne.s32.totalorder %s22, %s25
    %p31 = scmp.eq.s32.totalorder %s12, 0
    %p32 = por %p30, %p31
    %p33 = scmp.ne.s32.totalorder %s22, %s25
    %p34 = scmp.eq.s32.totalorder %s17, 1
    %p35 = por %p33, %p34
    %p36 = scmp.ne.s32.totalorder %s25, %s26
    %p37 = scmp.eq.s32.totalorder %s17, 0
    %p38 = por %p36, %p37
    %p39 = scmp.ne.s32.totalorder %s25, %s26
    %p40 = scmp.eq.s32.totalorder %s18, 1
    %p41 = por %p39, %p40
    %p43 = scmp.ne.s32.totalorder %s26, %s42
    %p44 = scmp.eq.s32.totalorder %s18, 0
    %p45 = por %p43, %p44
    %s47 = sadd.s32 %s46, 1
    %p50 = scmp.eq.s32.totalorder %s12, 1
    %p51 = scmp.ne.s32.totalorder %s46, %s48
    %p52 = scmp.eq.s32.totalorder %s12, 0
    %p53 = por %p51, %p52
    %p54 = scmp.ne.s32.totalorder %s46, %s48
    %p55 = scmp.eq.s32.totalorder %s17, 1
    %p56 = por %p54, %p55
    %p57 = scmp.ne.s32.totalorder %s48, %s49
    %p58 = scmp.eq.s32.totalorder %s17, 0
    %p59 = por %p57, %p58
    %p60 = scmp.ne.s32.totalorder %s48, %s49
    %p61 = scmp.eq.s32.totalorder %s18, 1
    %p62 = por %p60, %p61
    %p64 = scmp.ne.s32.totalorder %s49, %s63
    %p65 = scmp.eq.s32.totalorder %s18, 0
    %p66 = por %p64, %p65
    %s67 = ssub.s32 %s12, %s19
    %p68 = scmp.eq.s32.totalorder %s67, 0
    %s70 = sadd.s32 %s69, 1
    %s71 = scalar_select %p68, %s69, %s70
    %p74 = pneg %p68
    %p75 = scmp.eq.s32.totalorder %s12, 1
    %p76 = por %p74, %p75
    %p77 = scmp.ne.s32.totalorder %s69, %s72
    %p78 = scmp.eq.s32.totalorder %s12, 0
    %p79 = por %p77, %p78
    %p80 = scmp.ne.s32.totalorder %s69, %s72
    %p81 = scmp.eq.s32.totalorder %s17, 1
    %p82 = por %p80, %p81
    %p83 = scmp.ne.s32.totalorder %s72, %s73
    %p84 = scmp.eq.s32.totalorder %s17, 0
    %p85 = por %p83, %p84
    %p86 = scmp.ne.s32.totalorder %s72, %s73
    %p87 = scmp.eq.s32.totalorder %s18, 1
    %p88 = por %p86, %p87
    %p90 = scmp.ne.s32.totalorder %s73, %s89
    %p91 = scmp.eq.s32.totalorder %s18, 0
    %p92 = por %p90, %p91
    %s94 = sadd.s32 %s93, 1
    %p97 = scmp.eq.s32.totalorder %s12, 1
    %p98 = scmp.ne.s32.totalorder %s93, %s95
    %p99 = scmp.eq.s32.totalorder %s12, 0
    %p100 = por %p98, %p99
    %p101 = scmp.ne.s32.totalorder %s93, %s95
    %p102 = scmp.eq.s32.totalorder %s17, 1
    %p103 = por %p101, %p102
    %p104 = scmp.ne.s32.totalorder %s95, %s96
    %p105 = scmp.eq.s32.totalorder %s17, 0
    %p106 = por %p104, %p105
    %p107 = scmp.ne.s32.totalorder %s95, %s96
    %p108 = scmp.eq.s32.totalorder %s18, 1
    %p109 = por %p107, %p108
    %p111 = scmp.ne.s32.totalorder %s96, %s110
    %p112 = scmp.eq.s32.totalorder %s18, 0
    %p113 = por %p111, %p112
    %s115 = sadd.s32 %s114, 1
    %p118 = scmp.eq.s32.totalorder %s12, 1
    %p119 = scmp.ne.s32.totalorder %s114, %s116
    %p120 = scmp.eq.s32.totalorder %s12, 0
    %p121 = por %p119, %p120
    %p122 = scmp.ne.s32.totalorder %s114, %s116
    %p123 = scmp.eq.s32.totalorder %s17, 1
    %p124 = por %p122, %p123
    %p125 = scmp.ne.s32.totalorder %s116, %s117
    %p126 = scmp.eq.s32.totalorder %s17, 0
    %p127 = por %p125, %p126
    %p128 = scmp.ne.s32.totalorder %s116, %s117
    %p129 = scmp.eq.s32.totalorder %s18, 1
    %p130 = por %p128, %p129
    %p132 = scmp.ne.s32.totalorder %s117, %s131
    %p133 = scmp.eq.s32.totalorder %s18, 0
    %p134 = por %p132, %p133
    %s136 = sadd.s32 %s135, 1
    %p139 = scmp.eq.s32.totalorder %s12, 1
    %p140 = scmp.ne.s32.totalorder %s135, %s137
    %p141 = scmp.eq.s32.totalorder %s12, 0
    %p142 = por %p140, %p141
    %p143 = scmp.ne.s32.totalorder %s135, %s137
    %p144 = scmp.eq.s32.totalorder %s17, 1
    %p145 = por %p143, %p144
    %p146 = scmp.ne.s32.totalorder %s137, %s138
    %p147 = scmp.eq.s32.totalorder %s17, 0
    %p148 = por %p146, %p147
    %p149 = scmp.ne.s32.totalorder %s137, %s138
    %p150 = scmp.eq.s32.totalorder %s18, 1
    %p151 = por %p149, %p150
    %p153 = scmp.ne.s32.totalorder %s138, %s152
    %p154 = scmp.eq.s32.totalorder %s18, 0
    %p155 = por %p153, %p154
    %s156 = ssub.s32 %s12, %s19
    %p157 = scmp.eq.s32.totalorder %s156, 0
    %s159 = sadd.s32 %s158, 1
    %s160 = scalar_select %p157, %s158, %s159
    %p163 = pneg %p157
    %p164 = scmp.eq.s32.totalorder %s12, 1
    %p165 = por %p163, %p164
    %p166 = scmp.ne.s32.totalorder %s158, %s161
    %p167 = scmp.eq.s32.totalorder %s12, 0
    %p168 = por %p166, %p167
    %p169 = scmp.ne.s32.totalorder %s158, %s161
    %p170 = scmp.eq.s32.totalorder %s17, 1
    %p171 = por %p169, %p170
    %p172 = scmp.ne.s32.totalorder %s161, %s162
    %p173 = scmp.eq.s32.totalorder %s17, 0
    %p174 = por %p172, %p173
    %p175 = scmp.ne.s32.totalorder %s161, %s162
    %p176 = scmp.eq.s32.totalorder %s18, 1
    %p177 = por %p175, %p176
    %p179 = scmp.ne.s32.totalorder %s162, %s178
    %p180 = scmp.eq.s32.totalorder %s18, 0
    %p181 = por %p179, %p180
    %p182 = scmp.le.s32.totalorder 1, %s12
    %p183 = scmp.lt.s32.totalorder %s12, 3
    %p184 = pnand %p182, %p183
    %p185 = pneg %p184
    // Predicated region
    $region9: #{_forward_impl.3} parent=5 // pred_check
      _
    $region10: #{_forward_impl.3} parent=5 // pred_check_branch
      %187 = sbr.rel (%p184) target = $region12
    $region11: #{_forward_impl.3} parent=5 // pred_region
      %s188 = ssub.s32 %s12, 1
      // Predicated region
      $region13: #{_forward_impl.3} parent=11 // pred_check
        %p189 = pneg %p59
      $region14: #{_forward_impl.3} parent=11 // pred_check_branch
        %191 = sbr.rel (%p189) target = $region16
      $region15: #{_forward_impl.3} parent=11 // pred_region
        _
      $region16: #{_forward_impl.3} parent=11 // pred_fallthru
        _
      // Predicated region
      $region17: #{_forward_impl.3} parent=11 // pred_check
        %p192 = pneg %p106
      $region18: #{_forward_impl.3} parent=11 // pred_check_branch
        %194 = sbr.rel (%p192) target = $region20
      $region19: #{_forward_impl.3} parent=11 // pred_region
        _
      $region20: #{_forward_impl.3} parent=11 // pred_fallthru
        _
      // Predicated region
      $region21: #{_forward_impl.3} parent=11 // pred_check
        %p195 = pneg %p127
      $region22: #{_forward_impl.3} parent=11 // pred_check_branch
        %197 = sbr.rel (%p195) target = $region24
      $region23: #{_forward_impl.3} parent=11 // pred_region
        _
      $region24: #{_forward_impl.3} parent=11 // pred_fallthru
        _
      // Predicated region
      $region25: #{_forward_impl.3} parent=11 // pred_check
        %p198 = pneg %p148
      $region26: #{_forward_impl.3} parent=11 // pred_check_branch
        %200 = sbr.rel (%p198) target = $region28
      $region27: #{_forward_impl.3} parent=11 // pred_region
        _
      $region28: #{_forward_impl.3} parent=11 // pred_fallthru
        _
    $region12: #{_forward_impl.3} parent=5 // pred_fallthru
      _
    %p201 = scmp.lt.s32.totalorder %s12, 2
    // Predicated region
    $region29: #{_forward_impl.3} parent=5 // pred_check
      %p202 = pneg %p201
    $region30: #{_forward_impl.3} parent=5 // pred_check_branch
      %204 = sbr.rel (%p202) target = $region32
    $region31: #{_forward_impl.3} parent=5 // pred_region
      // Predicated region
      $region33: #{_forward_impl.3} parent=31 // pred_check
        %p205 = pneg %p32
      $region34: #{_forward_impl.3} parent=31 // pred_check_branch
        %207 = sbr.rel (%p205) target = $region36
      $region35: #{_forward_impl.3} parent=31 // pred_region
        %p208 = scmp.lt.s32.totalorder %s12, 1
        %s209 = scalar_select %p208, %s12, 1
        %s210 = smul.addr %s209, 72
        %s211 = smul.addr %s210, 4
        %s212 = scalar_lea.vmem %s0, %s211
      $region36: #{_forward_impl.3} parent=31 // pred_fallthru
        _
      // Predicated region
      $region37: #{_forward_impl.3} parent=31 // pred_check
        %p213 = pneg %p79
      $region38: #{_forward_impl.3} parent=31 // pred_check_branch
        %215 = sbr.rel (%p213) target = $region40
      $region39: #{_forward_impl.3} parent=31 // pred_region
        %p216 = scmp.lt.s32.totalorder %s12, 1
        %s217 = scalar_select %p216, %s12, 1
        %s218 = smul.addr %s217, 8
        %s219 = smul.addr %s218, 8
        %s220 = scalar_lea.vmem %s2, %s219
      $region40: #{_forward_impl.3} parent=31 // pred_fallthru
        _
    $region32: #{_forward_impl.3} parent=5 // pred_fallthru
      _
    %p221 = scmp.le.s32.totalorder 1, %s12
    %p222 = scmp.lt.s32.totalorder %s12, 3
    %p223 = pnand %p221, %p222
    %p224 = pneg %p223
    // Predicated region
    $region41: #{_forward_impl.3} parent=5 // pred_check
      _
    $region42: #{_forward_impl.3} parent=5 // pred_check_branch
      %226 = sbr.rel (%p223) target = $region44
    $region43: #{_forward_impl.3} parent=5 // pred_region
      %s227 = ssub.s32 %s12, 1
      %p228 = scmp.lt.s32.totalorder %s17, 1
      %s229 = scalar_select %p228, %s17, 1
      %s230 = smul.addr %s229, 72
      %s231 = smul.addr %s230, 4
      %s232 = scalar_lea.vmem %s0, %s231
      %p233 = pneg %p38
      %p234 = pneg %p35
      %p235 = pneg %p59
      %p236 = pneg %p56
      %p237 = scmp.lt.s32.totalorder %s17, 1
      %s238 = scalar_select %p237, %s17, 1
      %s239 = smul.addr %s238, 8
      %s240 = smul.addr %s239, 8
      %s241 = scalar_lea.vmem %s2, %s240
      %p242 = pneg %p85
      %p243 = pneg %p82
      %p244 = pneg %p106
      %p245 = pneg %p103
      %p246 = pneg %p127
      %p247 = pneg %p124
      %p248 = pneg %p148
      %p249 = pneg %p145
      %p250 = pneg %p174
      %p251 = pneg %p171
      %p252 = scmp.lt.s32.totalorder %s17, 1
      %s253 = scalar_select %p252, %s17, 1
      %s254 = smul.addr %s253, 8
      %s255 = smul.addr %s254, 8
      %s256 = scalar_lea.vmem %s6, %s255
      %p257 = scmp.lt.s32.totalorder %s17, 1
      %s258 = scalar_select %p257, %s17, 1
      %s259 = smul.addr %s258, 72
      %s260 = smul.addr %s259, 4
      %s261 = scalar_lea.vmem %s0, %s260
      %p262 = scmp.lt.s32.totalorder %s17, 1
      %s263 = scalar_select %p262, %s17, 1
      %s264 = smul.addr %s263, 8
      %s265 = smul.addr %s264, 8
      %s266 = scalar_lea.vmem %s2, %s265
      %p267 = scmp.lt.s32.totalorder %s17, 1
      %s268 = scalar_select %p267, %s17, 1
      %s269 = smul.addr %s268, 8
      %s270 = smul.addr %s269, 8
      %s271 = scalar_lea.vmem %s6, %s270
      %v273 = vld [vmem:[%s261] sm:$0xf]
      %v274 = vld [vmem:[%s261 + $0x8] sm:$0xf]
      %v275 = vld [vmem:[%s261 + $0x10] sm:$0xf]
      %v276 = vld [vmem:[%s261 + $0x18] sm:$0xf]
      %v277 = vld [vmem:[%s261 + $0x20] sm:$0xf]
      %v278 = vld [vmem:[%s261 + $0x28] sm:$0xf]
      %v279 = vld [vmem:[%s261 + $0x30] sm:$0xf]
      %v280 = vld [vmem:[%s261 + $0x38] sm:$0xf]
      %v281 = vld [vmem:[%s1] sm:$0xf]
      %v282 = vld [vmem:[%s1 + $0x4] sm:$0xf]
      %v283 = vld [vmem:[%s1 + $0x8] sm:$0xf]
      %v284 = vld [vmem:[%s1 + $0xc] sm:$0xf]
      %v285 = vld [vmem:[%s1 + $0x10] sm:$0xf]
      %v286 = vld [vmem:[%s1 + $0x14] sm:$0xf]
      %v287 = vld [vmem:[%s1 + $0x18] sm:$0xf]
      %v288 = vld [vmem:[%s1 + $0x1c] sm:$0xf]
      %v289 = vld [vmem:[%s1 + $0x20] sm:$0xf]
      %v290 = vld [vmem:[%s1 + $0x24] sm:$0xf]
      %v291 = vld [vmem:[%s1 + $0x28] sm:$0xf]
      %v292 = vld [vmem:[%s1 + $0x2c] sm:$0xf]
      %v293 = vld [vmem:[%s1 + $0x30] sm:$0xf]
      %v294 = vld [vmem:[%s1 + $0x34] sm:$0xf]
      %v295 = vld [vmem:[%s1 + $0x38] sm:$0xf]
      %v296 = vld [vmem:[%s1 + $0x3c] sm:$0xf]
      %s297 = scalar_lea.vmem %s261, 72
      %v298 = vld [vmem:[%s297] sm:$0xf]
      %v299 = vld [vmem:[%s297 + $0x8] sm:$0xf]
      %v300 = vld [vmem:[%s297 + $0x10] sm:$0xf]
      %v301 = vld [vmem:[%s297 + $0x18] sm:$0xf]
      %v302 = vld [vmem:[%s297 + $0x20] sm:$0xf]
      %v303 = vld [vmem:[%s297 + $0x28] sm:$0xf]
      %v304 = vld [vmem:[%s297 + $0x30] sm:$0xf]
      %v305 = vld [vmem:[%s297 + $0x38] sm:$0xf]
      %s306 = scalar_lea.vmem %s1, 64
      %v307 = vld [vmem:[%s306] sm:$0xf]
      %v308 = vld [vmem:[%s306 + $0x4] sm:$0xf]
      %v309 = vld [vmem:[%s306 + $0x8] sm:$0xf]
      %v310 = vld [vmem:[%s306 + $0xc] sm:$0xf]
      %v311 = vld [vmem:[%s306 + $0x10] sm:$0xf]
      %v312 = vld [vmem:[%s306 + $0x14] sm:$0xf]
      %v313 = vld [vmem:[%s306 + $0x18] sm:$0xf]
      %v314 = vld [vmem:[%s306 + $0x1c] sm:$0xf]
      %v315 = vld [vmem:[%s306 + $0x20] sm:$0xf]
      %v316 = vld [vmem:[%s306 + $0x24] sm:$0xf]
      %v317 = vld [vmem:[%s306 + $0x28] sm:$0xf]
      %v318 = vld [vmem:[%s306 + $0x2c] sm:$0xf]
      %v319 = vld [vmem:[%s306 + $0x30] sm:$0xf]
      %v320 = vld [vmem:[%s306 + $0x34] sm:$0xf]
      %v321 = vld [vmem:[%s306 + $0x38] sm:$0xf]
      %v322 = vld [vmem:[%s306 + $0x3c] sm:$0xf]
      %v331 = vunpack.c.l.b16 %v298
      %v332 = vunpack.c.l.b16 %v299
      %v333 = vunpack.c.l.b16 %v300
      %v334 = vunpack.c.l.b16 %v301
      %v335 = vunpack.c.l.b16 %v302
      %v336 = vunpack.c.l.b16 %v303
      %v337 = vunpack.c.l.b16 %v304
      %v338 = vunpack.c.l.b16 %v305
      %v339 = vpack.c.b16 %v332, %v331
      %v340 = vpack.c.b16 %v334, %v333
      %v341 = vpack.c.b16 %v336, %v335
      %v342 = vpack.c.b16 %v338, %v337
      %v363 = vunpack.c.l.b16 %v307
      %v364 = vunpack.c.l.b16 %v308
      %v365 = vunpack.c.l.b16 %v309
      %v366 = vunpack.c.l.b16 %v310
      %v367 = vunpack.c.l.b16 %v311
      %v368 = vunpack.c.l.b16 %v312
      %v369 = vunpack.c.l.b16 %v313
      %v370 = vunpack.c.l.b16 %v314
      %v371 = vunpack.c.l.b16 %v315
      %v372 = vunpack.c.l.b16 %v316
      %v373 = vunpack.c.l.b16 %v317
      %v374 = vunpack.c.l.b16 %v318
      %v375 = vunpack.c.l.b16 %v319
      %v376 = vunpack.c.l.b16 %v320
      %v377 = vunpack.c.l.b16 %v321
      %v378 = vunpack.c.l.b16 %v322
      %v379 = vpack.c.b16 %v364, %v363
      %v380 = vpack.c.b16 %v366, %v365
      %v381 = vpack.c.b16 %v368, %v367
      %v382 = vpack.c.b16 %v370, %v369
      %v383 = vpack.c.b16 %v372, %v371
      %v384 = vpack.c.b16 %v374, %v373
      %v385 = vpack.c.b16 %v376, %v375
      %v386 = vpack.c.b16 %v378, %v377
      %395 = vmatprep.subr.bf16.mxu0 0
      %396 = vmatpush1.bf16.msra.mxu0 %v379
      %397 = vmatprep.subr.bf16.mxu0 0
      %398 = vmatpush1.bf16.msra.mxu0 %v380
      %399 = vmatprep.subr.bf16.mxu0 0
      %400 = vmatpush1.bf16.msra.mxu0 %v381
      %401 = vmatprep.subr.bf16.mxu0 0
      %402 = vmatpush1.bf16.msra.mxu0 %v382
      %403 = vmatprep.subr.bf16.mxu0 0
      %404 = vmatpush1.bf16.msra.mxu0 %v383
      %405 = vmatprep.subr.bf16.mxu0 0
      %406 = vmatpush1.bf16.msra.mxu0 %v384
      %407 = vmatprep.subr.bf16.mxu0 0
      %408 = vmatpush1.bf16.msra.mxu0 %v385
      %409 = vmatprep.subr.bf16.mxu0 0
      %410 = vmatpush1.bf16.msra.mxu0 %v386
      %411 = vmatprep.subr.bf16.mxu0 0
      %412 = vmatpush1.bf16.msra.mxu0 0
      %413 = vmatprep.subr.bf16.mxu0 0
      %414 = vmatpush1.bf16.msra.mxu0 0
      %415 = vmatprep.subr.bf16.mxu0 0
      %416 = vmatpush1.bf16.msra.mxu0 0
      %417 = vmatprep.subr.bf16.mxu0 0
      %418 = vmatpush1.bf16.msra.mxu0 0
      %419 = vmatprep.subr.bf16.mxu0 0
      %420 = vmatpush1.bf16.msra.mxu0 0
      %421 = vmatprep.subr.bf16.mxu0 0
      %422 = vmatpush1.bf16.msra.mxu0 0
      %423 = vmatprep.subr.bf16.mxu0 0
      %424 = vmatpush1.bf16.msra.mxu0 0
      %425 = vmatprep.subr.bf16.mxu0 0
      %426 = vmatpush1.bf16.msra.mxu0 0
      %427 = vmatprep.mubr.bf16.mxu0 0
      %428 = vmatmul.mubr.bf16.gmra.mrb[0].mxu0 %v339
      %v429 = vpop.f32.mrb[0].mxu0
      %v430 = vadd.f32 0.0, %v429
      %v431 = vpop.f32.mrb[0].mxu0
      %v432 = vpop.f32.mrb[0].mxu0
      %v433 = vadd.f32 0.0, %v432
      %v434 = vpop.f32.mrb[0].mxu0
      %435 = vmatprep.mubr.bf16.mxu0 0
      %436 = vmatmul.mubr.bf16.gmra.mrb[0].mxu0 %v340
      %v437 = vpop.f32.mrb[0].mxu0
      %v438 = vadd.f32 0.0, %v437
      %v439 = vpop.f32.mrb[0].mxu0
      %v440 = vpop.f32.mrb[0].mxu0
      %v441 = vadd.f32 0.0, %v440
      %v442 = vpop.f32.mrb[0].mxu0
      %443 = vmatprep.mubr.bf16.mxu0 0
      %444 = vmatmul.mubr.bf16.gmra.mrb[0].mxu0 %v341
      %v445 = vpop.f32.mrb[0].mxu0
      %v446 = vadd.f32 0.0, %v445
      %v447 = vpop.f32.mrb[0].mxu0
      %v448 = vpop.f32.mrb[0].mxu0
      %v449 = vadd.f32 0.0, %v448
      %v450 = vpop.f32.mrb[0].mxu0
      %451 = vmatprep.mubr.bf16.mxu0 0
      %452 = vmatmul.mubr.bf16.gmra.mrb[0].mxu0 %v342
      %v453 = vpop.f32.mrb[0].mxu0
      %v454 = vadd.f32 0.0, %v453
      %v455 = vpop.f32.mrb[0].mxu0
      %v456 = vpop.f32.mrb[0].mxu0
      %v457 = vadd.f32 0.0, %v456
      %v458 = vpop.f32.mrb[0].mxu0
      %459 = vdwg.mxu0
      %v468 = vunpack.c.l.b16 %v273
      %v469 = vunpack.c.l.b16 %v274
      %v470 = vunpack.c.l.b16 %v275
      %v471 = vunpack.c.l.b16 %v276
      %v472 = vunpack.c.l.b16 %v277
      %v473 = vunpack.c.l.b16 %v278
      %v474 = vunpack.c.l.b16 %v279
      %v475 = vunpack.c.l.b16 %v280
      %v476 = vpack.c.b16 %v469, %v468
      %v477 = vpack.c.b16 %v471, %v470
      %v478 = vpack.c.b16 %v473, %v472
      %v479 = vpack.c.b16 %v475, %v474
      %v500 = vunpack.c.l.b16 %v281
      %v501 = vunpack.c.l.b16 %v282
      %v502 = vunpack.c.l.b16 %v283
      %v503 = vunpack.c.l.b16 %v284
      %v504 = vunpack.c.l.b16 %v285
      %v505 = vunpack.c.l.b16 %v286
      %v506 = vunpack.c.l.b16 %v287
      %v507 = vunpack.c.l.b16 %v288
      %v508 = vunpack.c.l.b16 %v289
      %v509 = vunpack.c.l.b16 %v290
      %v510 = vunpack.c.l.b16 %v291
      %v511 = vunpack.c.l.b16 %v292
      %v512 = vunpack.c.l.b16 %v293
      %v513 = vunpack.c.l.b16 %v294
      %v514 = vunpack.c.l.b16 %v295
      %v515 = vunpack.c.l.b16 %v296
      %v516 = vpack.c.b16 %v501, %v500
      %v517 = vpack.c.b16 %v503, %v502
      %v518 = vpack.c.b16 %v505, %v504
      %v519 = vpack.c.b16 %v507, %v506
      %v520 = vpack.c.b16 %v509, %v508
      %v521 = vpack.c.b16 %v511, %v510
      %v522 = vpack.c.b16 %v513, %v512
      %v523 = vpack.c.b16 %v515, %v514
      %532 = vmatprep.subr.bf16.mxu0 0
      %533 = vmatpush1.bf16.msra.mxu0 %v516
      %534 = vmatprep.subr.bf16.mxu0 0
      %535 = vmatpush1.bf16.msra.mxu0 %v517
      %536 = vmatprep.subr.bf16.mxu0 0
      %537 = vmatpush1.bf16.msra.mxu0 %v518
      %538 = vmatprep.subr.bf16.mxu0 0
      %539 = vmatpush1.bf16.msra.mxu0 %v519
      %540 = vmatprep.subr.bf16.mxu0 0
      %541 = vmatpush1.bf16.msra.mxu0 %v520
      %542 = vmatprep.subr.bf16.mxu0 0
      %543 = vmatpush1.bf16.msra.mxu0 %v521
      %544 = vmatprep.subr.bf16.mxu0 0
      %545 = vmatpush1.bf16.msra.mxu0 %v522
      %546 = vmatprep.subr.bf16.mxu0 0
      %547 = vmatpush1.bf16.msra.mxu0 %v523
      %548 = vmatprep.subr.bf16.mxu0 0
      %549 = vmatpush1.bf16.msra.mxu0 0
      %550 = vmatprep.subr.bf16.mxu0 0
      %551 = vmatpush1.bf16.msra.mxu0 0
      %552 = vmatprep.subr.bf16.mxu0 0
      %553 = vmatpush1.bf16.msra.mxu0 0
      %554 = vmatprep.subr.bf16.mxu0 0
      %555 = vmatpush1.bf16.msra.mxu0 0
      %556 = vmatprep.subr.bf16.mxu0 0
      %557 = vmatpush1.bf16.msra.mxu0 0
      %558 = vmatprep.subr.bf16.mxu0 0
      %559 = vmatpush1.bf16.msra.mxu0 0
      %560 = vmatprep.subr.bf16.mxu0 0
      %561 = vmatpush1.bf16.msra.mxu0 0
      %562 = vmatprep.subr.bf16.mxu0 0
      %563 = vmatpush1.bf16.msra.mxu0 0
      %564 = vmatprep.mubr.bf16.mxu0 0
      %565 = vmatmul.mubr.bf16.gmra.mrb[0].mxu0 %v476
      %v566 = vpop.f32.mrb[0].mxu0
      %v567 = vadd.f32 %v430, %v566
      %v568 = vpop.f32.mrb[0].mxu0
      %v569 = vpop.f32.mrb[0].mxu0
      %v570 = vadd.f32 %v433, %v569
      %v571 = vpop.f32.mrb[0].mxu0
      %572 = vmatprep.mubr.bf16.mxu0 0
      %573 = vmatmul.mubr.bf16.gmra.mrb[0].mxu0 %v477
      %v574 = vpop.f32.mrb[0].mxu0
      %v575 = vadd.f32 %v438, %v574
      %v576 = vpop.f32.mrb[0].mxu0
      %v577 = vpop.f32.mrb[0].mxu0
      %v578 = vadd.f32 %v441, %v577
      %v579 = vpop.f32.mrb[0].mxu0
      %580 = vmatprep.mubr.bf16.mxu0 0
      %581 = vmatmul.mubr.bf16.gmra.mrb[0].mxu0 %v478
      %v582 = vpop.f32.mrb[0].mxu0
      %v583 = vadd.f32 %v446, %v582
      %v584 = vpop.f32.mrb[0].mxu0
      %v585 = vpop.f32.mrb[0].mxu0
      %v586 = vadd.f32 %v449, %v585
      %v587 = vpop.f32.mrb[0].mxu0
      %588 = vmatprep.mubr.bf16.mxu0 0
      %589 = vmatmul.mubr.bf16.gmra.mrb[0].mxu0 %v479
      %v590 = vpop.f32.mrb[0].mxu0
      %v591 = vadd.f32 %v454, %v590
      %v592 = vpop.f32.mrb[0].mxu0
      %v593 = vpop.f32.mrb[0].mxu0
      %v594 = vadd.f32 %v457, %v593
      %v595 = vpop.f32.mrb[0].mxu0
      %596 = vdwg.mxu0
      %v597 = vld [vmem:[%s261] sm:$0xf]
      %v598 = vld [vmem:[%s261 + $0x4] sm:$0x1]
      %v599 = vld [vmem:[%s261 + $0x8] sm:$0xf]
      %v600 = vld [vmem:[%s261 + $0xc] sm:$0x1]
      %v601 = vld [vmem:[%s261 + $0x10] sm:$0xf]
      %v602 = vld [vmem:[%s261 + $0x14] sm:$0x1]
      %v603 = vld [vmem:[%s261 + $0x18] sm:$0xf]
      %v604 = vld [vmem:[%s261 + $0x1c] sm:$0x1]
      %v605 = vld [vmem:[%s261 + $0x20] sm:$0xf]
      %v606 = vld [vmem:[%s261 + $0x24] sm:$0x1]
      %v607 = vld [vmem:[%s261 + $0x28] sm:$0xf]
      %v608 = vld [vmem:[%s261 + $0x2c] sm:$0x1]
      %v609 = vld [vmem:[%s261 + $0x30] sm:$0xf]
      %v610 = vld [vmem:[%s261 + $0x34] sm:$0x1]
      %v611 = vld [vmem:[%s261 + $0x38] sm:$0xf]
      %v612 = vld [vmem:[%s261 + $0x3c] sm:$0x1]
      %vm613 = vsmask.f32 3328
      %vm614 = vsmask.f32 7440
      %vm615 = vmor %vm613, %vm614
      %v617 = vshrl.u32 %v597, 16
      %v619 = vrot.slane %v617, 4
      %v620 = vshll.u32 %v597, 16
      %v622 = vrot.slane %v620, 5
      %v623 = vor.u32 %v619, %v622
      %v624 = vrot.slane %v623, 4
      %v626 = vshll.u32 %v598, 16
      %v628 = vrot.slane %v626, 5
      %v629 = vsel %vm615, %v624, %v628
      %v631 = vshrl.u32 %v599, 16
      %v633 = vrot.slane %v631, 4
      %v634 = vshll.u32 %v599, 16
      %v636 = vrot.slane %v634, 5
      %v637 = vor.u32 %v633, %v636
      %v638 = vrot.slane %v637, 4
      %v640 = vshll.u32 %v600, 16
      %v642 = vrot.slane %v640, 5
      %v643 = vsel %vm615, %v638, %v642
      %v645 = vshrl.u32 %v601, 16
      %v647 = vrot.slane %v645, 4
      %v648 = vshll.u32 %v601, 16
      %v650 = vrot.slane %v648, 5
      %v651 = vor.u32 %v647, %v650
      %v652 = vrot.slane %v651, 4
      %v654 = vshll.u32 %v602, 16
      %v656 = vrot.slane %v654, 5
      %v657 = vsel %vm615, %v652, %v656
      %v659 = vshrl.u32 %v603, 16
      %v661 = vrot.slane %v659, 4
      %v662 = vshll.u32 %v603, 16
      %v664 = vrot.slane %v662, 5
      %v665 = vor.u32 %v661, %v664
      %v666 = vrot.slane %v665, 4
      %v668 = vshll.u32 %v604, 16
      %v670 = vrot.slane %v668, 5
      %v671 = vsel %vm615, %v666, %v670
      %v673 = vshrl.u32 %v605, 16
      %v675 = vrot.slane %v673, 4
      %v676 = vshll.u32 %v605, 16
      %v678 = vrot.slane %v676, 5
      %v679 = vor.u32 %v675, %v678
      %v680 = vrot.slane %v679, 4
      %v682 = vshll.u32 %v606, 16
      %v684 = vrot.slane %v682, 5
      %v685 = vsel %vm615, %v680, %v684
      %v687 = vshrl.u32 %v607, 16
      %v689 = vrot.slane %v687, 4
      %v690 = vshll.u32 %v607, 16
      %v692 = vrot.slane %v690, 5
      %v693 = vor.u32 %v689, %v692
      %v694 = vrot.slane %v693, 4
      %v696 = vshll.u32 %v608, 16
      %v698 = vrot.slane %v696, 5
      %v699 = vsel %vm615, %v694, %v698
      %v701 = vshrl.u32 %v609, 16
      %v703 = vrot.slane %v701, 4
      %v704 = vshll.u32 %v609, 16
      %v706 = vrot.slane %v704, 5
      %v707 = vor.u32 %v703, %v706
      %v708 = vrot.slane %v707, 4
      %v710 = vshll.u32 %v610, 16
      %v712 = vrot.slane %v710, 5
      %v713 = vsel %vm615, %v708, %v712
      %v715 = vshrl.u32 %v611, 16
      %v717 = vrot.slane %v715, 4
      %v718 = vshll.u32 %v611, 16
      %v720 = vrot.slane %v718, 5
      %v721 = vor.u32 %v717, %v720
      %v722 = vrot.slane %v721, 4
      %v724 = vshll.u32 %v612, 16
      %v726 = vrot.slane %v724, 5
      %v727 = vsel %vm615, %v722, %v726
      %s728 = scalar_lea.vmem %s1, 128
      %v729 = vld [vmem:[%s728] sm:$0xf]
      %v730 = vld [vmem:[%s728 + $0x4] sm:$0xf]
      %v731 = vld [vmem:[%s728 + $0x8] sm:$0xf]
      %v732 = vld [vmem:[%s728 + $0xc] sm:$0xf]
      %v733 = vld [vmem:[%s728 + $0x10] sm:$0xf]
      %v734 = vld [vmem:[%s728 + $0x14] sm:$0xf]
      %v735 = vld [vmem:[%s728 + $0x18] sm:$0xf]
      %v736 = vld [vmem:[%s728 + $0x1c] sm:$0xf]
      %v737 = vld [vmem:[%s728 + $0x20] sm:$0xf]
      %v738 = vld [vmem:[%s728 + $0x24] sm:$0xf]
      %v739 = vld [vmem:[%s728 + $0x28] sm:$0xf]
      %v740 = vld [vmem:[%s728 + $0x2c] sm:$0xf]
      %v741 = vld [vmem:[%s728 + $0x30] sm:$0xf]
      %v742 = vld [vmem:[%s728 + $0x34] sm:$0xf]
      %v743 = vld [vmem:[%s728 + $0x38] sm:$0xf]
      %v744 = vld [vmem:[%s728 + $0x3c] sm:$0xf]
      %v745 = vunpack.c.l.b16 %v629
      %v746 = vunpack.c.l.b16 %v643
      %v747 = vunpack.c.l.b16 %v657
      %v748 = vunpack.c.l.b16 %v671
      %v749 = vunpack.c.l.b16 %v685
      %v750 = vunpack.c.l.b16 %v699
      %v751 = vunpack.c.l.b16 %v713
      %v752 = vunpack.c.l.b16 %v727
      %v753 = vpack.c.b16 %v746, %v745
      %v754 = vpack.c.b16 %v748, %v747
      %v755 = vpack.c.b16 %v750, %v749
      %v756 = vpack.c.b16 %v752, %v751
      %v777 = vunpack.c.l.b16 %v729
      %v778 = vunpack.c.l.b16 %v730
      %v779 = vunpack.c.l.b16 %v731
      %v780 = vunpack.c.l.b16 %v732
      %v781 = vunpack.c.l.b16 %v733
      %v782 = vunpack.c.l.b16 %v734
      %v783 = vunpack.c.l.b16 %v735
      %v784 = vunpack.c.l.b16 %v736
      %v785 = vunpack.c.l.b16 %v737
      %v786 = vunpack.c.l.b16 %v738
      %v787 = vunpack.c.l.b16 %v739
      %v788 = vunpack.c.l.b16 %v740
      %v789 = vunpack.c.l.b16 %v741
      %v790 = vunpack.c.l.b16 %v742
      %v791 = vunpack.c.l.b16 %v743
      %v792 = vunpack.c.l.b16 %v744
      %v793 = vpack.c.b16 %v778, %v777
      %v794 = vpack.c.b16 %v780, %v779
      %v795 = vpack.c.b16 %v782, %v781
      %v796 = vpack.c.b16 %v784, %v783
      %v797 = vpack.c.b16 %v786, %v785
      %v798 = vpack.c.b16 %v788, %v787
      %v799 = vpack.c.b16 %v790, %v789
      %v800 = vpack.c.b16 %v792, %v791
      %809 = vmatprep.subr.bf16.mxu0 0
      %810 = vmatpush1.bf16.msra.mxu0 %v793
      %811 = vmatprep.subr.bf16.mxu0 0
      %812 = vmatpush1.bf16.msra.mxu0 %v794
      %813 = vmatprep.subr.bf16.mxu0 0
      %814 = vmatpush1.bf16.msra.mxu0 %v795
      %815 = vmatprep.subr.bf16.mxu0 0
      %816 = vmatpush1.bf16.msra.mxu0 %v796
      %817 = vmatprep.subr.bf16.mxu0 0
      %818 = vmatpush1.bf16.msra.mxu0 %v797
      %819 = vmatprep.subr.bf16.mxu0 0
      %820 = vmatpush1.bf16.msra.mxu0 %v798
      %821 = vmatprep.subr.bf16.mxu0 0
      %822 = vmatpush1.bf16.msra.mxu0 %v799
      %823 = vmatprep.subr.bf16.mxu0 0
      %824 = vmatpush1.bf16.msra.mxu0 %v800
      %825 = vmatprep.subr.bf16.mxu0 0
      %826 = vmatpush1.bf16.msra.mxu0 0
      %827 = vmatprep.subr.bf16.mxu0 0
      %828 = vmatpush1.bf16.msra.mxu0 0
      %829 = vmatprep.subr.bf16.mxu0 0
      %830 = vmatpush1.bf16.msra.mxu0 0
      %831 = vmatprep.subr.bf16.mxu0 0
      %832 = vmatpush1.bf16.msra.mxu0 0
      %833 = vmatprep.subr.bf16.mxu0 0
      %834 = vmatpush1.bf16.msra.mxu0 0
      %835 = vmatprep.subr.bf16.mxu0 0
      %836 = vmatpush1.bf16.msra.mxu0 0
      %837 = vmatprep.subr.bf16.mxu0 0
      %838 = vmatpush1.bf16.msra.mxu0 0
      %839 = vmatprep.subr.bf16.mxu0 0
      %840 = vmatpush1.bf16.msra.mxu0 0
      %841 = vmatprep.mubr.bf16.mxu0 0
      %842 = vmatmul.mubr.bf16.gmra.mrb[0].mxu0 %v753
      %v843 = vpop.f32.mrb[0].mxu0
      %v844 = vadd.f32 0.0, %v843
      %v845 = vpop.f32.mrb[0].mxu0
      %v846 = vpop.f32.mrb[0].mxu0
      %v847 = vadd.f32 0.0, %v846
      %v848 = vpop.f32.mrb[0].mxu0
      %849 = vmatprep.mubr.bf16.mxu0 0
      %850 = vmatmul.mubr.bf16.gmra.mrb[0].mxu0 %v754
      %v851 = vpop.f32.mrb[0].mxu0
      %v852 = vadd.f32 0.0, %v851
      %v853 = vpop.f32.mrb[0].mxu0
      %v854 = vpop.f32.mrb[0].mxu0
      %v855 = vadd.f32 0.0, %v854
      %v856 = vpop.f32.mrb[0].mxu0
      %857 = vmatprep.mubr.bf16.mxu0 0
      %858 = vmatmul.mubr.bf16.gmra.mrb[0].mxu0 %v755
      %v859 = vpop.f32.mrb[0].mxu0
      %v860 = vadd.f32 0.0, %v859
      %v861 = vpop.f32.mrb[0].mxu0
      %v862 = vpop.f32.mrb[0].mxu0
      %v863 = vadd.f32 0.0, %v862
      %v864 = vpop.f32.mrb[0].mxu0
      %865 = vmatprep.mubr.bf16.mxu0 0
      %866 = vmatmul.mubr.bf16.gmra.mrb[0].mxu0 %v756
      %v867 = vpop.f32.mrb[0].mxu0
      %v868 = vadd.f32 0.0, %v867
      %v869 = vpop.f32.mrb[0].mxu0
      %v870 = vpop.f32.mrb[0].mxu0
      %v871 = vadd.f32 0.0, %v870
      %v872 = vpop.f32.mrb[0].mxu0
      %873 = vdwg.mxu0
      %v874 = vadd.f32 %v567, %v844
      %v875 = vadd.f32 %v570, %v847
      %v876 = vadd.f32 %v575, %v852
      %v877 = vadd.f32 %v578, %v855
      %v878 = vadd.f32 %v583, %v860
      %v879 = vadd.f32 %v586, %v863
      %v880 = vadd.f32 %v591, %v868
      %v881 = vadd.f32 %v594, %v871
      %s882 = scalar_lea.vmem %s261, 144
      %v883 = vld [vmem:[%s882] sm:$0xf]
      %v884 = vld [vmem:[%s882 + $0x8] sm:$0xf]
      %v885 = vld [vmem:[%s882 + $0x10] sm:$0xf]
      %v886 = vld [vmem:[%s882 + $0x18] sm:$0xf]
      %v887 = vld [vmem:[%s882 + $0x20] sm:$0xf]
      %v888 = vld [vmem:[%s882 + $0x28] sm:$0xf]
      %v889 = vld [vmem:[%s882 + $0x30] sm:$0xf]
      %v890 = vld [vmem:[%s882 + $0x38] sm:$0xf]
      %s891 = scalar_lea.vmem %s1, 192
      %v892 = vld [vmem:[%s891] sm:$0xf]
      %v893 = vld [vmem:[%s891 + $0x4] sm:$0xf]
      %v894 = vld [vmem:[%s891 + $0x8] sm:$0xf]
      %v895 = vld [vmem:[%s891 + $0xc] sm:$0xf]
      %v896 = vld [vmem:[%s891 + $0x10] sm:$0xf]
      %v897 = vld [vmem:[%s891 + $0x14] sm:$0xf]
      %v898 = vld [vmem:[%s891 + $0x18] sm:$0xf]
      %v899 = vld [vmem:[%s891 + $0x1c] sm:$0xf]
      %v900 = vld [vmem:[%s891 + $0x20] sm:$0xf]
      %v901 = vld [vmem:[%s891 + $0x24] sm:$0xf]
      %v902 = vld [vmem:[%s891 + $0x28] sm:$0xf]
      %v903 = vld [vmem:[%s891 + $0x2c] sm:$0xf]
      %v904 = vld [vmem:[%s891 + $0x30] sm:$0xf]
      %v905 = vld [vmem:[%s891 + $0x34] sm:$0xf]
      %v906 = vld [vmem:[%s891 + $0x38] sm:$0xf]
      %v907 = vld [vmem:[%s891 + $0x3c] sm:$0xf]
      %v916 = vunpack.c.l.b16 %v883
      %v917 = vunpack.c.l.b16 %v884
      %v918 = vunpack.c.l.b16 %v885
      %v919 = vunpack.c.l.b16 %v886
      %v920 = vunpack.c.l.b16 %v887
      %v921 = vunpack.c.l.b16 %v888
      %v922 = vunpack.c.l.b16 %v889
      %v923 = vunpack.c.l.b16 %v890
      %v924 = vpack.c.b16 %v917, %v916
      %v925 = vpack.c.b16 %v919, %v918
      %v926 = vpack.c.b16 %v921, %v920
      %v927 = vpack.c.b16 %v923, %v922
      %v948 = vunpack.c.l.b16 %v892
      %v949 = vunpack.c.l.b16 %v893
      %v950 = vunpack.c.l.b16 %v894
      %v951 = vunpack.c.l.b16 %v895
      %v952 = vunpack.c.l.b16 %v896
      %v953 = vunpack.c.l.b16 %v897
      %v954 = vunpack.c.l.b16 %v898
      %v955 = vunpack.c.l.b16 %v899
      %v956 = vunpack.c.l.b16 %v900
      %v957 = vunpack.c.l.b16 %v901
      %v958 = vunpack.c.l.b16 %v902
      %v959 = vunpack.c.l.b16 %v903
      %v960 = vunpack.c.l.b16 %v904
      %v961 = vunpack.c.l.b16 %v905
      %v962 = vunpack.c.l.b16 %v906
      %v963 = vunpack.c.l.b16 %v907
      %v964 = vpack.c.b16 %v949, %v948
      %v965 = vpack.c.b16 %v951, %v950
      %v966 = vpack.c.b16 %v953, %v952
      %v967 = vpack.c.b16 %v955, %v954
      %v968 = vpack.c.b16 %v957, %v956
      %v969 = vpack.c.b16 %v959, %v958
      %v970 = vpack.c.b16 %v961, %v960
      %v971 = vpack.c.b16 %v963, %v962
      %980 = vmatprep.subr.bf16.mxu0 0
      %981 = vmatpush1.bf16.msra.mxu0 %v964
      %982 = vmatprep.subr.bf16.mxu0 0
      %983 = vmatpush1.bf16.msra.mxu0 %v965
      %984 = vmatprep.subr.bf16.mxu0 0
      %985 = vmatpush1.bf16.msra.mxu0 %v966
      %986 = vmatprep.subr.bf16.mxu0 0
      %987 = vmatpush1.bf16.msra.mxu0 %v967
      %988 = vmatprep.subr.bf16.mxu0 0
      %989 = vmatpush1.bf16.msra.mxu0 %v968
      %990 = vmatprep.subr.bf16.mxu0 0
      %991 = vmatpush1.bf16.msra.mxu0 %v969
      %992 = vmatprep.subr.bf16.mxu0 0
      %993 = vmatpush1.bf16.msra.mxu0 %v970
      %994 = vmatprep.subr.bf16.mxu0 0
      %995 = vmatpush1.bf16.msra.mxu0 %v971
      %996 = vmatprep.subr.bf16.mxu0 0
      %997 = vmatpush1.bf16.msra.mxu0 0
      %998 = vmatprep.subr.bf16.mxu0 0
      %999 = vmatpush1.bf16.msra.mxu0 0
      %1000 = vmatprep.subr.bf16.mxu0 0
      %1001 = vmatpush1.bf16.msra.mxu0 0
      %1002 = vmatprep.subr.bf16.mxu0 0
      %1003 = vmatpush1.bf16.msra.mxu0 0
      %1004 = vmatprep.subr.bf16.mxu0 0
      %1005 = vmatpush1.bf16.msra.mxu0 0
      %1006 = vmatprep.subr.bf16.mxu0 0
      %1007 = vmatpush1.bf16.msra.mxu0 0
      %1008 = vmatprep.subr.bf16.mxu0 0
      %1009 = vmatpush1.bf16.msra.mxu0 0
      %1010 = vmatprep.subr.bf16.mxu0 0
      %1011 = vmatpush1.bf16.msra.mxu0 0
      %1012 = vmatprep.mubr.bf16.mxu0 0
      %1013 = vmatmul.mubr.bf16.gmra.mrb[0].mxu0 %v924
      %v1014 = vpop.f32.mrb[0].mxu0
      %v1015 = vadd.f32 0.0, %v1014
      %v1016 = vpop.f32.mrb[0].mxu0
      %v1017 = vpop.f32.mrb[0].mxu0
      %v1018 = vadd.f32 0.0, %v1017
      %v1019 = vpop.f32.mrb[0].mxu0
      %1020 = vmatprep.mubr.bf16.mxu0 0
      %1021 = vmatmul.mubr.bf16.gmra.mrb[0].mxu0 %v925
      %v1022 = vpop.f32.mrb[0].mxu0
      %v1023 = vadd.f32 0.0, %v1022
      %v1024 = vpop.f32.mrb[0].mxu0
      %v1025 = vpop.f32.mrb[0].mxu0
      %v1026 = vadd.f32 0.0, %v1025
      %v1027 = vpop.f32.mrb[0].mxu0
      %1028 = vmatprep.mubr.bf16.mxu0 0
      %1029 = vmatmul.mubr.bf16.gmra.mrb[0].mxu0 %v926
      %v1030 = vpop.f32.mrb[0].mxu0
      %v1031 = vadd.f32 0.0, %v1030
      %v1032 = vpop.f32.mrb[0].mxu0
      %v1033 = vpop.f32.mrb[0].mxu0
      %v1034 = vadd.f32 0.0, %v1033
      %v1035 = vpop.f32.mrb[0].mxu0
      %1036 = vmatprep.mubr.bf16.mxu0 0
      %1037 = vmatmul.mubr.bf16.gmra.mrb[0].mxu0 %v927
      %v1038 = vpop.f32.mrb[0].mxu0
      %v1039 = vadd.f32 0.0, %v1038
      %v1040 = vpop.f32.mrb[0].mxu0
      %v1041 = vpop.f32.mrb[0].mxu0
      %v1042 = vadd.f32 0.0, %v1041
      %v1043 = vpop.f32.mrb[0].mxu0
      %1044 = vdwg.mxu0
      %v1045 = vadd.f32 %v874, %v1015
      %v1046 = vadd.f32 %v875, %v1018
      %v1047 = vadd.f32 %v876, %v1023
      %v1048 = vadd.f32 %v877, %v1026
      %v1049 = vadd.f32 %v878, %v1031
      %v1050 = vadd.f32 %v879, %v1034
      %v1051 = vadd.f32 %v880, %v1039
      %v1052 = vadd.f32 %v881, %v1042
      %s1053 = scalar_lea.vmem %s261, 216
      %v1054 = vld [vmem:[%s1053] sm:$0xf]
      %v1055 = vld [vmem:[%s1053 + $0x8] sm:$0xf]
      %v1056 = vld [vmem:[%s1053 + $0x10] sm:$0xf]
      %v1057 = vld [vmem:[%s1053 + $0x18] sm:$0xf]
      %v1058 = vld [vmem:[%s1053 + $0x20] sm:$0xf]
      %v1059 = vld [vmem:[%s1053 + $0x28] sm:$0xf]
      %v1060 = vld [vmem:[%s1053 + $0x30] sm:$0xf]
      %v1061 = vld [vmem:[%s1053 + $0x38] sm:$0xf]
      %s1062 = scalar_lea.vmem %s1, 256
      %v1063 = vld [vmem:[%s1062] sm:$0xf]
      %v1064 = vld [vmem:[%s1062 + $0x4] sm:$0xf]
      %v1065 = vld [vmem:[%s1062 + $0x8] sm:$0xf]
      %v1066 = vld [vmem:[%s1062 + $0xc] sm:$0xf]
      %v1067 = vld [vmem:[%s1062 + $0x10] sm:$0xf]
      %v1068 = vld [vmem:[%s1062 + $0x14] sm:$0xf]
      %v1069 = vld [vmem:[%s1062 + $0x18] sm:$0xf]
      %v1070 = vld [vmem:[%s1062 + $0x1c] sm:$0xf]
      %v1071 = vld [vmem:[%s1062 + $0x20] sm:$0xf]
      %v1072 = vld [vmem:[%s1062 + $0x24] sm:$0xf]
      %v1073 = vld [vmem:[%s1062 + $0x28] sm:$0xf]
      %v1074 = vld [vmem:[%s1062 + $0x2c] sm:$0xf]
      %v1075 = vld [vmem:[%s1062 + $0x30] sm:$0xf]
      %v1076 = vld [vmem:[%s1062 + $0x34] sm:$0xf]
      %v1077 = vld [vmem:[%s1062 + $0x38] sm:$0xf]
      %v1078 = vld [vmem:[%s1062 + $0x3c] sm:$0xf]
      %v1087 = vunpack.c.l.b16 %v1054
      %v1088 = vunpack.c.l.b16 %v1055
      %v1089 = vunpack.c.l.b16 %v1056
      %v1090 = vunpack.c.l.b16 %v1057
      %v1091 = vunpack.c.l.b16 %v1058
      %v1092 = vunpack.c.l.b16 %v1059
      %v1093 = vunpack.c.l.b16 %v1060
      %v1094 = vunpack.c.l.b16 %v1061
      %v1095 = vpack.c.b16 %v1088, %v1087
      %v1096 = vpack.c.b16 %v1090, %v1089
      %v1097 = vpack.c.b16 %v1092, %v1091
      %v1098 = vpack.c.b16 %v1094, %v1093
      %v1119 = vunpack.c.l.b16 %v1063
      %v1120 = vunpack.c.l.b16 %v1064
      %v1121 = vunpack.c.l.b16 %v1065
      %v1122 = vunpack.c.l.b16 %v1066
      %v1123 = vunpack.c.l.b16 %v1067
      %v1124 = vunpack.c.l.b16 %v1068
      %v1125 = vunpack.c.l.b16 %v1069
      %v1126 = vunpack.c.l.b16 %v1070
      %v1127 = vunpack.c.l.b16 %v1071
      %v1128 = vunpack.c.l.b16 %v1072
      %v1129 = vunpack.c.l.b16 %v1073
      %v1130 = vunpack.c.l.b16 %v1074
      %v1131 = vunpack.c.l.b16 %v1075
      %v1132 = vunpack.c.l.b16 %v1076
      %v1133 = vunpack.c.l.b16 %v1077
      %v1134 = vunpack.c.l.b16 %v1078
      %v1135 = vpack.c.b16 %v1120, %v1119
      %v1136 = vpack.c.b16 %v1122, %v1121
      %v1137 = vpack.c.b16 %v1124, %v1123
      %v1138 = vpack.c.b16 %v1126, %v1125
      %v1139 = vpack.c.b16 %v1128, %v1127
      %v1140 = vpack.c.b16 %v1130, %v1129
      %v1141 = vpack.c.b16 %v1132, %v1131
      %v1142 = vpack.c.b16 %v1134, %v1133
      %1151 = vmatprep.subr.bf16.mxu0 0
      %1152 = vmatpush1.bf16.msra.mxu0 %v1135
      %1153 = vmatprep.subr.bf16.mxu0 0
      %1154 = vmatpush1.bf16.msra.mxu0 %v1136
      %1155 = vmatprep.subr.bf16.mxu0 0
      %1156 = vmatpush1.bf16.msra.mxu0 %v1137
      %1157 = vmatprep.subr.bf16.mxu0 0
      %1158 = vmatpush1.bf16.msra.mxu0 %v1138
      %1159 = vmatprep.subr.bf16.mxu0 0
      %1160 = vmatpush1.bf16.msra.mxu0 %v1139
      %1161 = vmatprep.subr.bf16.mxu0 0
      %1162 = vmatpush1.bf16.msra.mxu0 %v1140
      %1163 = vmatprep.subr.bf16.mxu0 0
      %1164 = vmatpush1.bf16.msra.mxu0 %v1141
      %1165 = vmatprep.subr.bf16.mxu0 0
      %1166 = vmatpush1.bf16.msra.mxu0 %v1142
      %1167 = vmatprep.subr.bf16.mxu0 0
      %1168 = vmatpush1.bf16.msra.mxu0 0
      %1169 = vmatprep.subr.bf16.mxu0 0
      %1170 = vmatpush1.bf16.msra.mxu0 0
      %1171 = vmatprep.subr.bf16.mxu0 0
      %1172 = vmatpush1.bf16.msra.mxu0 0
      %1173 = vmatprep.subr.bf16.mxu0 0
      %1174 = vmatpush1.bf16.msra.mxu0 0
      %1175 = vmatprep.subr.bf16.mxu0 0
      %1176 = vmatpush1.bf16.msra.mxu0 0
      %1177 = vmatprep.subr.bf16.mxu0 0
      %1178 = vmatpush1.bf16.msra.mxu0 0
      %1179 = vmatprep.subr.bf16.mxu0 0
      %1180 = vmatpush1.bf16.msra.mxu0 0
      %1181 = vmatprep.subr.bf16.mxu0 0
      %1182 = vmatpush1.bf16.msra.mxu0 0
      %1183 = vmatprep.mubr.bf16.mxu0 0
      %1184 = vmatmul.mubr.bf16.gmra.mrb[0].mxu0 %v1095
      %v1185 = vpop.f32.mrb[0].mxu0
      %v1186 = vadd.f32 0.0, %v1185
      %v1187 = vpop.f32.mrb[0].mxu0
      %v1188 = vpop.f32.mrb[0].mxu0
      %v1189 = vadd.f32 0.0, %v1188
      %v1190 = vpop.f32.mrb[0].mxu0
      %1191 = vmatprep.mubr.bf16.mxu0 0
      %1192 = vmatmul.mubr.bf16.gmra.mrb[0].mxu0 %v1096
      %v1193 = vpop.f32.mrb[0].mxu0
      %v1194 = vadd.f32 0.0, %v1193
      %v1195 = vpop.f32.mrb[0].mxu0
      %v1196 = vpop.f32.mrb[0].mxu0
      %v1197 = vadd.f32 0.0, %v1196
      %v1198 = vpop.f32.mrb[0].mxu0
      %1199 = vmatprep.mubr.bf16.mxu0 0
      %1200 = vmatmul.mubr.bf16.gmra.mrb[0].mxu0 %v1097
      %v1201 = vpop.f32.mrb[0].mxu0
      %v1202 = vadd.f32 0.0, %v1201
      %v1203 = vpop.f32.mrb[0].mxu0
      %v1204 = vpop.f32.mrb[0].mxu0
      %v1205 = vadd.f32 0.0, %v1204
      %v1206 = vpop.f32.mrb[0].mxu0
      %1207 = vmatprep.mubr.bf16.mxu0 0
      %1208 = vmatmul.mubr.bf16.gmra.mrb[0].mxu0 %v1098
      %v1209 = vpop.f32.mrb[0].mxu0
      %v1210 = vadd.f32 0.0, %v1209
      %v1211 = vpop.f32.mrb[0].mxu0
      %v1212 = vpop.f32.mrb[0].mxu0
      %v1213 = vadd.f32 0.0, %v1212
      %v1214 = vpop.f32.mrb[0].mxu0
      %1215 = vdwg.mxu0
      %v1216 = vadd.f32 %v1045, %v1186
      %v1217 = vadd.f32 %v1046, %v1189
      %v1218 = vadd.f32 %v1047, %v1194
      %v1219 = vadd.f32 %v1048, %v1197
      %v1220 = vadd.f32 %v1049, %v1202
      %v1221 = vadd.f32 %v1050, %v1205
      %v1222 = vadd.f32 %v1051, %v1210
      %v1223 = vadd.f32 %v1052, %v1213
      %v1224 = vld [vmem:[%s882] sm:$0xf]
      %v1225 = vld [vmem:[%s882 + $0x4] sm:$0x1]
      %v1226 = vld [vmem:[%s882 + $0x8] sm:$0xf]
      %v1227 = vld [vmem:[%s882 + $0xc] sm:$0x1]
      %v1228 = vld [vmem:[%s882 + $0x10] sm:$0xf]
      %v1229 = vld [vmem:[%s882 + $0x14] sm:$0x1]
      %v1230 = vld [vmem:[%s882 + $0x18] sm:$0xf]
      %v1231 = vld [vmem:[%s882 + $0x1c] sm:$0x1]
      %v1232 = vld [vmem:[%s882 + $0x20] sm:$0xf]
      %v1233 = vld [vmem:[%s882 + $0x24] sm:$0x1]
      %v1234 = vld [vmem:[%s882 + $0x28] sm:$0xf]
      %v1235 = vld [vmem:[%s882 + $0x2c] sm:$0x1]
      %v1236 = vld [vmem:[%s882 + $0x30] sm:$0xf]
      %v1237 = vld [vmem:[%s882 + $0x34] sm:$0x1]
      %v1238 = vld [vmem:[%s882 + $0x38] sm:$0xf]
      %v1239 = vld [vmem:[%s882 + $0x3c] sm:$0x1]
      %v1241 = vshrl.u32 %v1224, 16
      %v1243 = vrot.slane %v1241, 4
      %v1244 = vshll.u32 %v1224, 16
      %v1246 = vrot.slane %v1244, 5
      %v1247 = vor.u32 %v1243, %v1246
      %v1248 = vrot.slane %v1247, 4
      %v1250 = vshll.u32 %v1225, 16
      %v1252 = vrot.slane %v1250, 5
      %v1253 = vsel %vm615, %v1248, %v1252
      %v1255 = vshrl.u32 %v1226, 16
      %v1257 = vrot.slane %v1255, 4
      %v1258 = vshll.u32 %v1226, 16
      %v1260 = vrot.slane %v1258, 5
      %v1261 = vor.u32 %v1257, %v1260
      %v1262 = vrot.slane %v1261, 4
      %v1264 = vshll.u32 %v1227, 16
      %v1266 = vrot.slane %v1264, 5
      %v1267 = vsel %vm615, %v1262, %v1266
      %v1269 = vshrl.u32 %v1228, 16
      %v1271 = vrot.slane %v1269, 4
      %v1272 = vshll.u32 %v1228, 16
      %v1274 = vrot.slane %v1272, 5
      %v1275 = vor.u32 %v1271, %v1274
      %v1276 = vrot.slane %v1275, 4
      %v1278 = vshll.u32 %v1229, 16
      %v1280 = vrot.slane %v1278, 5
      %v1281 = vsel %vm615, %v1276, %v1280
      %v1283 = vshrl.u32 %v1230, 16
      %v1285 = vrot.slane %v1283, 4
      %v1286 = vshll.u32 %v1230, 16
      %v1288 = vrot.slane %v1286, 5
      %v1289 = vor.u32 %v1285, %v1288
      %v1290 = vrot.slane %v1289, 4
      %v1292 = vshll.u32 %v1231, 16
      %v1294 = vrot.slane %v1292, 5
      %v1295 = vsel %vm615, %v1290, %v1294
      %v1297 = vshrl.u32 %v1232, 16
      %v1299 = vrot.slane %v1297, 4
      %v1300 = vshll.u32 %v1232, 16
      %v1302 = vrot.slane %v1300, 5
      %v1303 = vor.u32 %v1299, %v1302
      %v1304 = vrot.slane %v1303, 4
      %v1306 = vshll.u32 %v1233, 16
      %v1308 = vrot.slane %v1306, 5
      %v1309 = vsel %vm615, %v1304, %v1308
      %v1311 = vshrl.u32 %v1234, 16
      %v1313 = vrot.slane %v1311, 4
      %v1314 = vshll.u32 %v1234, 16
      %v1316 = vrot.slane %v1314, 5
      %v1317 = vor.u32 %v1313, %v1316
      %v1318 = vrot.slane %v1317, 4
      %v1320 = vshll.u32 %v1235, 16
      %v1322 = vrot.slane %v1320, 5
      %v1323 = vsel %vm615, %v1318, %v1322
      %v1325 = vshrl.u32 %v1236, 16
      %v1327 = vrot.slane %v1325, 4
      %v1328 = vshll.u32 %v1236, 16
      %v1330 = vrot.slane %v1328, 5
      %v1331 = vor.u32 %v1327, %v1330
      %v1332 = vrot.slane %v1331, 4
      %v1334 = vshll.u32 %v1237, 16
      %v1336 = vrot.slane %v1334, 5
      %v1337 = vsel %vm615, %v1332, %v1336
      %v1339 = vshrl.u32 %v1238, 16
      %v1341 = vrot.slane %v1339, 4
      %v1342 = vshll.u32 %v1238, 16
      %v1344 = vrot.slane %v1342, 5
      %v1345 = vor.u32 %v1341, %v1344
      %v1346 = vrot.slane %v1345, 4
      %v1348 = vshll.u32 %v1239, 16
      %v1350 = vrot.slane %v1348, 5
      %v1351 = vsel %vm615, %v1346, %v1350
      %s1352 = scalar_lea.vmem %s1, 320
      %v1353 = vld [vmem:[%s1352] sm:$0xf]
      %v1354 = vld [vmem:[%s1352 + $0x4] sm:$0xf]
      %v1355 = vld [vmem:[%s1352 + $0x8] sm:$0xf]
      %v1356 = vld [vmem:[%s1352 + $0xc] sm:$0xf]
      %v1357 = vld [vmem:[%s1352 + $0x10] sm:$0xf]
      %v1358 = vld [vmem:[%s1352 + $0x14] sm:$0xf]
      %v1359 = vld [vmem:[%s1352 + $0x18] sm:$0xf]
      %v1360 = vld [vmem:[%s1352 + $0x1c] sm:$0xf]
      %v1361 = vld [vmem:[%s1352 + $0x20] sm:$0xf]
      %v1362 = vld [vmem:[%s1352 + $0x24] sm:$0xf]
      %v1363 = vld [vmem:[%s1352 + $0x28] sm:$0xf]
      %v1364 = vld [vmem:[%s1352 + $0x2c] sm:$0xf]
      %v1365 = vld [vmem:[%s1352 + $0x30] sm:$0xf]
      %v1366 = vld [vmem:[%s1352 + $0x34] sm:$0xf]
      %v1367 = vld [vmem:[%s1352 + $0x38] sm:$0xf]
      %v1368 = vld [vmem:[%s1352 + $0x3c] sm:$0xf]
      %v1369 = vunpack.c.l.b16 %v1253
      %v1370 = vunpack.c.l.b16 %v1267
      %v1371 = vunpack.c.l.b16 %v1281
      %v1372 = vunpack.c.l.b16 %v1295
      %v1373 = vunpack.c.l.b16 %v1309
      %v1374 = vunpack.c.l.b16 %v1323
      %v1375 = vunpack.c.l.b16 %v1337
      %v1376 = vunpack.c.l.b16 %v1351
      %v1377 = vpack.c.b16 %v1370, %v1369
      %v1378 = vpack.c.b16 %v1372, %v1371
      %v1379 = vpack.c.b16 %v1374, %v1373
      %v1380 = vpack.c.b16 %v1376, %v1375
      %v1401 = vunpack.c.l.b16 %v1353
      %v1402 = vunpack.c.l.b16 %v1354
      %v1403 = vunpack.c.l.b16 %v1355
      %v1404 = vunpack.c.l.b16 %v1356
      %v1405 = vunpack.c.l.b16 %v1357
      %v1406 = vunpack.c.l.b16 %v1358
      %v1407 = vunpack.c.l.b16 %v1359
      %v1408 = vunpack.c.l.b16 %v1360
      %v1409 = vunpack.c.l.b16 %v1361
      %v1410 = vunpack.c.l.b16 %v1362
      %v1411 = vunpack.c.l.b16 %v1363
      %v1412 = vunpack.c.l.b16 %v1364
      %v1413 = vunpack.c.l.b16 %v1365
      %v1414 = vunpack.c.l.b16 %v1366
      %v1415 = vunpack.c.l.b16 %v1367
      %v1416 = vunpack.c.l.b16 %v1368
      %v1417 = vpack.c.b16 %v1402, %v1401
      %v1418 = vpack.c.b16 %v1404, %v1403
      %v1419 = vpack.c.b16 %v1406, %v1405
      %v1420 = vpack.c.b16 %v1408, %v1407
      %v1421 = vpack.c.b16 %v1410, %v1409
      %v1422 = vpack.c.b16 %v1412, %v1411
      %v1423 = vpack.c.b16 %v1414, %v1413
      %v1424 = vpack.c.b16 %v1416, %v1415
      %1433 = vmatprep.subr.bf16.mxu0 0
      %1434 = vmatpush1.bf16.msra.mxu0 %v1417
      %1435 = vmatprep.subr.bf16.mxu0 0
      %1436 = vmatpush1.bf16.msra.mxu0 %v1418
      %1437 = vmatprep.subr.bf16.mxu0 0
      %1438 = vmatpush1.bf16.msra.mxu0 %v1419
      %1439 = vmatprep.subr.bf16.mxu0 0
      %1440 = vmatpush1.bf16.msra.mxu0 %v1420
      %1441 = vmatprep.subr.bf16.mxu0 0
      %1442 = vmatpush1.bf16.msra.mxu0 %v1421
      %1443 = vmatprep.subr.bf16.mxu0 0
      %1444 = vmatpush1.bf16.msra.mxu0 %v1422
      %1445 = vmatprep.subr.bf16.mxu0 0
      %1446 = vmatpush1.bf16.msra.mxu0 %v1423
      %1447 = vmatprep.subr.bf16.mxu0 0
      %1448 = vmatpush1.bf16.msra.mxu0 %v1424
      %1449 = vmatprep.subr.bf16.mxu0 0
      %1450 = vmatpush1.bf16.msra.mxu0 0
      %1451 = vmatprep.subr.bf16.mxu0 0
      %1452 = vmatpush1.bf16.msra.mxu0 0
      %1453 = vmatprep.subr.bf16.mxu0 0
      %1454 = vmatpush1.bf16.msra.mxu0 0
      %1455 = vmatprep.subr.bf16.mxu0 0
      %1456 = vmatpush1.bf16.msra.mxu0 0
      %1457 = vmatprep.subr.bf16.mxu0 0
      %1458 = vmatpush1.bf16.msra.mxu0 0
      %1459 = vmatprep.subr.bf16.mxu0 0
      %1460 = vmatpush1.bf16.msra.mxu0 0
      %1461 = vmatprep.subr.bf16.mxu0 0
      %1462 = vmatpush1.bf16.msra.mxu0 0
      %1463 = vmatprep.subr.bf16.mxu0 0
      %1464 = vmatpush1.bf16.msra.mxu0 0
      %1465 = vmatprep.mubr.bf16.mxu0 0
      %1466 = vmatmul.mubr.bf16.gmra.mrb[0].mxu0 %v1377
      %v1467 = vpop.f32.mrb[0].mxu0
      %v1468 = vadd.f32 0.0, %v1467
      %v1469 = vpop.f32.mrb[0].mxu0
      %v1470 = vpop.f32.mrb[0].mxu0
      %v1471 = vadd.f32 0.0, %v1470
      %v1472 = vpop.f32.mrb[0].mxu0
      %1473 = vmatprep.mubr.bf16.mxu0 0
      %1474 = vmatmul.mubr.bf16.gmra.mrb[0].mxu0 %v1378
      %v1475 = vpop.f32.mrb[0].mxu0
      %v1476 = vadd.f32 0.0, %v1475
      %v1477 = vpop.f32.mrb[0].mxu0
      %v1478 = vpop.f32.mrb[0].mxu0
      %v1479 = vadd.f32 0.0, %v1478
      %v1480 = vpop.f32.mrb[0].mxu0
      %1481 = vmatprep.mubr.bf16.mxu0 0
      %1482 = vmatmul.mubr.bf16.gmra.mrb[0].mxu0 %v1379
      %v1483 = vpop.f32.mrb[0].mxu0
      %v1484 = vadd.f32 0.0, %v1483
      %v1485 = vpop.f32.mrb[0].mxu0
      %v1486 = vpop.f32.mrb[0].mxu0
      %v1487 = vadd.f32 0.0, %v1486
      %v1488 = vpop.f32.mrb[0].mxu0
      %1489 = vmatprep.mubr.bf16.mxu0 0
      %1490 = vmatmul.mubr.bf16.gmra.mrb[0].mxu0 %v1380
      %v1491 = vpop.f32.mrb[0].mxu0
      %v1492 = vadd.f32 0.0, %v1491
      %v1493 = vpop.f32.mrb[0].mxu0
      %v1494 = vpop.f32.mrb[0].mxu0
      %v1495 = vadd.f32 0.0, %v1494
      %v1496 = vpop.f32.mrb[0].mxu0
      %1497 = vdwg.mxu0
      %v1498 = vadd.f32 %v1216, %v1468
      %v1499 = vadd.f32 %v1217, %v1471
      %v1500 = vadd.f32 %v1218, %v1476
      %v1501 = vadd.f32 %v1219, %v1479
      %v1502 = vadd.f32 %v1220, %v1484
      %v1503 = vadd.f32 %v1221, %v1487
      %v1504 = vadd.f32 %v1222, %v1492
      %v1505 = vadd.f32 %v1223, %v1495
      %s1506 = scalar_lea.vmem %s261, 8
      %v1507 = vld [vmem:[%s1506] sm:$0xf]
      %v1508 = vld [vmem:[%s1506 + $0x8] sm:$0xf]
      %v1509 = vld [vmem:[%s1506 + $0x10] sm:$0xf]
      %v1510 = vld [vmem:[%s1506 + $0x18] sm:$0xf]
      %v1511 = vld [vmem:[%s1506 + $0x20] sm:$0xf]
      %v1512 = vld [vmem:[%s1506 + $0x28] sm:$0xf]
      %v1513 = vld [vmem:[%s1506 + $0x30] sm:$0xf]
      %v1514 = vld [vmem:[%s1506 + $0x38] sm:$0xf]
      %s1515 = scalar_lea.vmem %s1, 384
      %v1516 = vld [vmem:[%s1515] sm:$0xf]
      %v1517 = vld [vmem:[%s1515 + $0x4] sm:$0xf]
      %v1518 = vld [vmem:[%s1515 + $0x8] sm:$0xf]
      %v1519 = vld [vmem:[%s1515 + $0xc] sm:$0xf]
      %v1520 = vld [vmem:[%s1515 + $0x10] sm:$0xf]
      %v1521 = vld [vmem:[%s1515 + $0x14] sm:$0xf]
      %v1522 = vld [vmem:[%s1515 + $0x18] sm:$0xf]
      %v1523 = vld [vmem:[%s1515 + $0x1c] sm:$0xf]
      %v1524 = vld [vmem:[%s1515 + $0x20] sm:$0xf]
      %v1525 = vld [vmem:[%s1515 + $0x24] sm:$0xf]
      %v1526 = vld [vmem:[%s1515 + $0x28] sm:$0xf]
      %v1527 = vld [vmem:[%s1515 + $0x2c] sm:$0xf]
      %v1528 = vld [vmem:[%s1515 + $0x30] sm:$0xf]
      %v1529 = vld [vmem:[%s1515 + $0x34] sm:$0xf]
      %v1530 = vld [vmem:[%s1515 + $0x38] sm:$0xf]
      %v1531 = vld [vmem:[%s1515 + $0x3c] sm:$0xf]
      %v1540 = vunpack.c.l.b16 %v1507
      %v1541 = vunpack.c.l.b16 %v1508
      %v1542 = vunpack.c.l.b16 %v1509
      %v1543 = vunpack.c.l.b16 %v1510
      %v1544 = vunpack.c.l.b16 %v1511
      %v1545 = vunpack.c.l.b16 %v1512
      %v1546 = vunpack.c.l.b16 %v1513
      %v1547 = vunpack.c.l.b16 %v1514
      %v1548 = vpack.c.b16 %v1541, %v1540
      %v1549 = vpack.c.b16 %v1543, %v1542
      %v1550 = vpack.c.b16 %v1545, %v1544
      %v1551 = vpack.c.b16 %v1547, %v1546
      %v1572 = vunpack.c.l.b16 %v1516
      %v1573 = vunpack.c.l.b16 %v1517
      %v1574 = vunpack.c.l.b16 %v1518
      %v1575 = vunpack.c.l.b16 %v1519
      %v1576 = vunpack.c.l.b16 %v1520
      %v1577 = vunpack.c.l.b16 %v1521
      %v1578 = vunpack.c.l.b16 %v1522
      %v1579 = vunpack.c.l.b16 %v1523
      %v1580 = vunpack.c.l.b16 %v1524
      %v1581 = vunpack.c.l.b16 %v1525
      %v1582 = vunpack.c.l.b16 %v1526
      %v1583 = vunpack.c.l.b16 %v1527
      %v1584 = vunpack.c.l.b16 %v1528
      %v1585 = vunpack.c.l.b16 %v1529
      %v1586 = vunpack.c.l.b16 %v1530
      %v1587 = vunpack.c.l.b16 %v1531
      %v1588 = vpack.c.b16 %v1573, %v1572
      %v1589 = vpack.c.b16 %v1575, %v1574
      %v1590 = vpack.c.b16 %v1577, %v1576
      %v1591 = vpack.c.b16 %v1579, %v1578
      %v1592 = vpack.c.b16 %v1581, %v1580
      %v1593 = vpack.c.b16 %v1583, %v1582
      %v1594 = vpack.c.b16 %v1585, %v1584
      %v1595 = vpack.c.b16 %v1587, %v1586
      %1604 = vmatprep.subr.bf16.mxu0 0
      %1605 = vmatpush1.bf16.msra.mxu0 %v1588
      %1606 = vmatprep.subr.bf16.mxu0 0
      %1607 = vmatpush1.bf16.msra.mxu0 %v1589
      %1608 = vmatprep.subr.bf16.mxu0 0
      %1609 = vmatpush1.bf16.msra.mxu0 %v1590
      %1610 = vmatprep.subr.bf16.mxu0 0
      %1611 = vmatpush1.bf16.msra.mxu0 %v1591
      %1612 = vmatprep.subr.bf16.mxu0 0
      %1613 = vmatpush1.bf16.msra.mxu0 %v1592
      %1614 = vmatprep.subr.bf16.mxu0 0
      %1615 = vmatpush1.bf16.msra.mxu0 %v1593
      %1616 = vmatprep.subr.bf16.mxu0 0
      %1617 = vmatpush1.bf16.msra.mxu0 %v1594
      %1618 = vmatprep.subr.bf16.mxu0 0
      %1619 = vmatpush1.bf16.msra.mxu0 %v1595
      %1620 = vmatprep.subr.bf16.mxu0 0
      %1621 = vmatpush1.bf16.msra.mxu0 0
      %1622 = vmatprep.subr.bf16.mxu0 0
      %1623 = vmatpush1.bf16.msra.mxu0 0
      %1624 = vmatprep.subr.bf16.mxu0 0
      %1625 = vmatpush1.bf16.msra.mxu0 0
      %1626 = vmatprep.subr.bf16.mxu0 0
      %1627 = vmatpush1.bf16.msra.mxu0 0
      %1628 = vmatprep.subr.bf16.mxu0 0
      %1629 = vmatpush1.bf16.msra.mxu0 0
      %1630 = vmatprep.subr.bf16.mxu0 0
      %1631 = vmatpush1.bf16.msra.mxu0 0
      %1632 = vmatprep.subr.bf16.mxu0 0
      %1633 = vmatpush1.bf16.msra.mxu0 0
      %1634 = vmatprep.subr.bf16.mxu0 0
      %1635 = vmatpush1.bf16.msra.mxu0 0
      %1636 = vmatprep.mubr.bf16.mxu0 0
      %1637 = vmatmul.mubr.bf16.gmra.mrb[0].mxu0 %v1548
      %v1638 = vpop.f32.mrb[0].mxu0
      %v1639 = vadd.f32 0.0, %v1638
      %v1640 = vpop.f32.mrb[0].mxu0
      %v1641 = vpop.f32.mrb[0].mxu0
      %v1642 = vadd.f32 0.0, %v1641
      %v1643 = vpop.f32.mrb[0].mxu0
      %1644 = vmatprep.mubr.bf16.mxu0 0
      %1645 = vmatmul.mubr.bf16.gmra.mrb[0].mxu0 %v1549
      %v1646 = vpop.f32.mrb[0].mxu0
      %v1647 = vadd.f32 0.0, %v1646
      %v1648 = vpop.f32.mrb[0].mxu0
      %v1649 = vpop.f32.mrb[0].mxu0
      %v1650 = vadd.f32 0.0, %v1649
      %v1651 = vpop.f32.mrb[0].mxu0
      %1652 = vmatprep.mubr.bf16.mxu0 0
      %1653 = vmatmul.mubr.bf16.gmra.mrb[0].mxu0 %v1550
      %v1654 = vpop.f32.mrb[0].mxu0
      %v1655 = vadd.f32 0.0, %v1654
      %v1656 = vpop.f32.mrb[0].mxu0
      %v1657 = vpop.f32.mrb[0].mxu0
      %v1658 = vadd.f32 0.0, %v1657
      %v1659 = vpop.f32.mrb[0].mxu0
      %1660 = vmatprep.mubr.bf16.mxu0 0
      %1661 = vmatmul.mubr.bf16.gmra.mrb[0].mxu0 %v1551
      %v1662 = vpop.f32.mrb[0].mxu0
      %v1663 = vadd.f32 0.0, %v1662
      %v1664 = vpop.f32.mrb[0].mxu0
      %v1665 = vpop.f32.mrb[0].mxu0
      %v1666 = vadd.f32 0.0, %v1665
      %v1667 = vpop.f32.mrb[0].mxu0
      %1668 = vdwg.mxu0
      %v1669 = vadd.f32 %v1498, %v1639
      %v1670 = vadd.f32 %v1499, %v1642
      %v1671 = vadd.f32 %v1500, %v1647
      %v1672 = vadd.f32 %v1501, %v1650
      %v1673 = vadd.f32 %v1502, %v1655
      %v1674 = vadd.f32 %v1503, %v1658
      %v1675 = vadd.f32 %v1504, %v1663
      %v1676 = vadd.f32 %v1505, %v1666
      %s1677 = scalar_lea.vmem %s261, 80
      %v1678 = vld [vmem:[%s1677] sm:$0xf]
      %v1679 = vld [vmem:[%s1677 + $0x8] sm:$0xf]
      %v1680 = vld [vmem:[%s1677 + $0x10] sm:$0xf]
      %v1681 = vld [vmem:[%s1677 + $0x18] sm:$0xf]
      %v1682 = vld [vmem:[%s1677 + $0x20] sm:$0xf]
      %v1683 = vld [vmem:[%s1677 + $0x28] sm:$0xf]
      %v1684 = vld [vmem:[%s1677 + $0x30] sm:$0xf]
      %v1685 = vld [vmem:[%s1677 + $0x38] sm:$0xf]
      %s1686 = scalar_lea.vmem %s1, 448
      %v1687 = vld [vmem:[%s1686] sm:$0xf]
      %v1688 = vld [vmem:[%s1686 + $0x4] sm:$0xf]
      %v1689 = vld [vmem:[%s1686 + $0x8] sm:$0xf]
      %v1690 = vld [vmem:[%s1686 + $0xc] sm:$0xf]
      %v1691 = vld [vmem:[%s1686 + $0x10] sm:$0xf]
      %v1692 = vld [vmem:[%s1686 + $0x14] sm:$0xf]
      %v1693 = vld [vmem:[%s1686 + $0x18] sm:$0xf]
      %v1694 = vld [vmem:[%s1686 + $0x1c] sm:$0xf]
      %v1695 = vld [vmem:[%s1686 + $0x20] sm:$0xf]
      %v1696 = vld [vmem:[%s1686 + $0x24] sm:$0xf]
      %v1697 = vld [vmem:[%s1686 + $0x28] sm:$0xf]
      %v1698 = vld [vmem:[%s1686 + $0x2c] sm:$0xf]
      %v1699 = vld [vmem:[%s1686 + $0x30] sm:$0xf]
      %v1700 = vld [vmem:[%s1686 + $0x34] sm:$0xf]
      %v1701 = vld [vmem:[%s1686 + $0x38] sm:$0xf]
      %v1702 = vld [vmem:[%s1686 + $0x3c] sm:$0xf]
      %v1711 = vunpack.c.l.b16 %v1678
      %v1712 = vunpack.c.l.b16 %v1679
      %v1713 = vunpack.c.l.b16 %v1680
      %v1714 = vunpack.c.l.b16 %v1681
      %v1715 = vunpack.c.l.b16 %v1682
      %v1716 = vunpack.c.l.b16 %v1683
      %v1717 = vunpack.c.l.b16 %v1684
      %v1718 = vunpack.c.l.b16 %v1685
      %v1719 = vpack.c.b16 %v1712, %v1711
      %v1720 = vpack.c.b16 %v1714, %v1713
      %v1721 = vpack.c.b16 %v1716, %v1715
      %v1722 = vpack.c.b16 %v1718, %v1717
      %v1743 = vunpack.c.l.b16 %v1687
      %v1744 = vunpack.c.l.b16 %v1688
      %v1745 = vunpack.c.l.b16 %v1689
      %v1746 = vunpack.c.l.b16 %v1690
      %v1747 = vunpack.c.l.b16 %v1691
      %v1748 = vunpack.c.l.b16 %v1692
      %v1749 = vunpack.c.l.b16 %v1693
      %v1750 = vunpack.c.l.b16 %v1694
      %v1751 = vunpack.c.l.b16 %v1695
      %v1752 = vunpack.c.l.b16 %v1696
      %v1753 = vunpack.c.l.b16 %v1697
      %v1754 = vunpack.c.l.b16 %v1698
      %v1755 = vunpack.c.l.b16 %v1699
      %v1756 = vunpack.c.l.b16 %v1700
      %v1757 = vunpack.c.l.b16 %v1701
      %v1758 = vunpack.c.l.b16 %v1702
      %v1759 = vpack.c.b16 %v1744, %v1743
      %v1760 = vpack.c.b16 %v1746, %v1745
      %v1761 = vpack.c.b16 %v1748, %v1747
      %v1762 = vpack.c.b16 %v1750, %v1749
      %v1763 = vpack.c.b16 %v1752, %v1751
      %v1764 = vpack.c.b16 %v1754, %v1753
      %v1765 = vpack.c.b16 %v1756, %v1755
      %v1766 = vpack.c.b16 %v1758, %v1757
      %1775 = vmatprep.subr.bf16.mxu0 0
      %1776 = vmatpush1.bf16.msra.mxu0 %v1759
      %1777 = vmatprep.subr.bf16.mxu0 0
      %1778 = vmatpush1.bf16.msra.mxu0 %v1760
      %1779 = vmatprep.subr.bf16.mxu0 0
      %1780 = vmatpush1.bf16.msra.mxu0 %v1761
      %1781 = vmatprep.subr.bf16.mxu0 0
      %1782 = vmatpush1.bf16.msra.mxu0 %v1762
      %1783 = vmatprep.subr.bf16.mxu0 0
      %1784 = vmatpush1.bf16.msra.mxu0 %v1763
      %1785 = vmatprep.subr.bf16.mxu0 0
      %1786 = vmatpush1.bf16.msra.mxu0 %v1764
      %1787 = vmatprep.subr.bf16.mxu0 0
      %1788 = vmatpush1.bf16.msra.mxu0 %v1765
      %1789 = vmatprep.subr.bf16.mxu0 0
      %1790 = vmatpush1.bf16.msra.mxu0 %v1766
      %1791 = vmatprep.subr.bf16.mxu0 0
      %1792 = vmatpush1.bf16.msra.mxu0 0
      %1793 = vmatprep.subr.bf16.mxu0 0
      %1794 = vmatpush1.bf16.msra.mxu0 0
      %1795 = vmatprep.subr.bf16.mxu0 0
      %1796 = vmatpush1.bf16.msra.mxu0 0
      %1797 = vmatprep.subr.bf16.mxu0 0
      %1798 = vmatpush1.bf16.msra.mxu0 0
      %1799 = vmatprep.subr.bf16.mxu0 0
      %1800 = vmatpush1.bf16.msra.mxu0 0
      %1801 = vmatprep.subr.bf16.mxu0 0
      %1802 = vmatpush1.bf16.msra.mxu0 0
      %1803 = vmatprep.subr.bf16.mxu0 0
      %1804 = vmatpush1.bf16.msra.mxu0 0
      %1805 = vmatprep.subr.bf16.mxu0 0
      %1806 = vmatpush1.bf16.msra.mxu0 0
      %1807 = vmatprep.mubr.bf16.mxu0 0
      %1808 = vmatmul.mubr.bf16.gmra.mrb[0].mxu0 %v1719
      %v1809 = vpop.f32.mrb[0].mxu0
      %v1810 = vadd.f32 0.0, %v1809
      %v1811 = vpop.f32.mrb[0].mxu0
      %v1812 = vpop.f32.mrb[0].mxu0
      %v1813 = vadd.f32 0.0, %v1812
      %v1814 = vpop.f32.mrb[0].mxu0
      %1815 = vmatprep.mubr.bf16.mxu0 0
      %1816 = vmatmul.mubr.bf16.gmra.mrb[0].mxu0 %v1720
      %v1817 = vpop.f32.mrb[0].mxu0
      %v1818 = vadd.f32 0.0, %v1817
      %v1819 = vpop.f32.mrb[0].mxu0
      %v1820 = vpop.f32.mrb[0].mxu0
      %v1821 = vadd.f32 0.0, %v1820
      %v1822 = vpop.f32.mrb[0].mxu0
      %1823 = vmatprep.mubr.bf16.mxu0 0
      %1824 = vmatmul.mubr.bf16.gmra.mrb[0].mxu0 %v1721
      %v1825 = vpop.f32.mrb[0].mxu0
      %v1826 = vadd.f32 0.0, %v1825
      %v1827 = vpop.f32.mrb[0].mxu0
      %v1828 = vpop.f32.mrb[0].mxu0
      %v1829 = vadd.f32 0.0, %v1828
      %v1830 = vpop.f32.mrb[0].mxu0
      %1831 = vmatprep.mubr.bf16.mxu0 0
      %1832 = vmatmul.mubr.bf16.gmra.mrb[0].mxu0 %v1722
      %v1833 = vpop.f32.mrb[0].mxu0
      %v1834 = vadd.f32 0.0, %v1833
      %v1835 = vpop.f32.mrb[0].mxu0
      %v1836 = vpop.f32.mrb[0].mxu0
      %v1837 = vadd.f32 0.0, %v1836
      %v1838 = vpop.f32.mrb[0].mxu0
      %1839 = vdwg.mxu0
      %v1840 = vadd.f32 %v1669, %v1810
      %v1841 = vadd.f32 %v1670, %v1813
      %v1842 = vadd.f32 %v1671, %v1818
      %v1843 = vadd.f32 %v1672, %v1821
      %v1844 = vadd.f32 %v1673, %v1826
      %v1845 = vadd.f32 %v1674, %v1829
      %v1846 = vadd.f32 %v1675, %v1834
      %v1847 = vadd.f32 %v1676, %v1837
      %v1848 = vld [vmem:[%s1506] sm:$0xf]
      %v1849 = vld [vmem:[%s1506 + $0x4] sm:$0x1]
      %v1850 = vld [vmem:[%s1506 + $0x8] sm:$0xf]
      %v1851 = vld [vmem:[%s1506 + $0xc] sm:$0x1]
      %v1852 = vld [vmem:[%s1506 + $0x10] sm:$0xf]
      %v1853 = vld [vmem:[%s1506 + $0x14] sm:$0x1]
      %v1854 = vld [vmem:[%s1506 + $0x18] sm:$0xf]
      %v1855 = vld [vmem:[%s1506 + $0x1c] sm:$0x1]
      %v1856 = vld [vmem:[%s1506 + $0x20] sm:$0xf]
      %v1857 = vld [vmem:[%s1506 + $0x24] sm:$0x1]
      %v1858 = vld [vmem:[%s1506 + $0x28] sm:$0xf]
      %v1859 = vld [vmem:[%s1506 + $0x2c] sm:$0x1]
      %v1860 = vld [vmem:[%s1506 + $0x30] sm:$0xf]
      %v1861 = vld [vmem:[%s1506 + $0x34] sm:$0x1]
      %v1862 = vld [vmem:[%s1506 + $0x38] sm:$0xf]
      %v1863 = vld [vmem:[%s1506 + $0x3c] sm:$0x1]
      %v1865 = vshrl.u32 %v1848, 16
      %v1867 = vrot.slane %v1865, 4
      %v1868 = vshll.u32 %v1848, 16
      %v1870 = vrot.slane %v1868, 5
      %v1871 = vor.u32 %v1867, %v1870
      %v1872 = vrot.slane %v1871, 4
      %v1874 = vshll.u32 %v1849, 16
      %v1876 = vrot.slane %v1874, 5
      %v1877 = vsel %vm615, %v1872, %v1876
      %v1879 = vshrl.u32 %v1850, 16
      %v1881 = vrot.slane %v1879, 4
      %v1882 = vshll.u32 %v1850, 16
      %v1884 = vrot.slane %v1882, 5
      %v1885 = vor.u32 %v1881, %v1884
      %v1886 = vrot.slane %v1885, 4
      %v1888 = vshll.u32 %v1851, 16
      %v1890 = vrot.slane %v1888, 5
      %v1891 = vsel %vm615, %v1886, %v1890
      %v1893 = vshrl.u32 %v1852, 16
      %v1895 = vrot.slane %v1893, 4
      %v1896 = vshll.u32 %v1852, 16
      %v1898 = vrot.slane %v1896, 5
      %v1899 = vor.u32 %v1895, %v1898
      %v1900 = vrot.slane %v1899, 4
      %v1902 = vshll.u32 %v1853, 16
      %v1904 = vrot.slane %v1902, 5
      %v1905 = vsel %vm615, %v1900, %v1904
      %v1907 = vshrl.u32 %v1854, 16
      %v1909 = vrot.slane %v1907, 4
      %v1910 = vshll.u32 %v1854, 16
      %v1912 = vrot.slane %v1910, 5
      %v1913 = vor.u32 %v1909, %v1912
      %v1914 = vrot.slane %v1913, 4
      %v1916 = vshll.u32 %v1855, 16
      %v1918 = vrot.slane %v1916, 5
      %v1919 = vsel %vm615, %v1914, %v1918
      %v1921 = vshrl.u32 %v1856, 16
      %v1923 = vrot.slane %v1921, 4
      %v1924 = vshll.u32 %v1856, 16
      %v1926 = vrot.slane %v1924, 5
      %v1927 = vor.u32 %v1923, %v1926
      %v1928 = vrot.slane %v1927, 4
      %v1930 = vshll.u32 %v1857, 16
      %v1932 = vrot.slane %v1930, 5
      %v1933 = vsel %vm615, %v1928, %v1932
      %v1935 = vshrl.u32 %v1858, 16
      %v1937 = vrot.slane %v1935, 4
      %v1938 = vshll.u32 %v1858, 16
      %v1940 = vrot.slane %v1938, 5
      %v1941 = vor.u32 %v1937, %v1940
      %v1942 = vrot.slane %v1941, 4
      %v1944 = vshll.u32 %v1859, 16
      %v1946 = vrot.slane %v1944, 5
      %v1947 = vsel %vm615, %v1942, %v1946
      %v1949 = vshrl.u32 %v1860, 16
      %v1951 = vrot.slane %v1949, 4
      %v1952 = vshll.u32 %v1860, 16
      %v1954 = vrot.slane %v1952, 5
      %v1955 = vor.u32 %v1951, %v1954
      %v1956 = vrot.slane %v1955, 4
      %v1958 = vshll.u32 %v1861, 16
      %v1960 = vrot.slane %v1958, 5
      %v1961 = vsel %vm615, %v1956, %v1960
      %v1963 = vshrl.u32 %v1862, 16
      %v1965 = vrot.slane %v1963, 4
      %v1966 = vshll.u32 %v1862, 16
      %v1968 = vrot.slane %v1966, 5
      %v1969 = vor.u32 %v1965, %v1968
      %v1970 = vrot.slane %v1969, 4
      %v1972 = vshll.u32 %v1863, 16
      %v1974 = vrot.slane %v1972, 5
      %v1975 = vsel %vm615, %v1970, %v1974
      %s1976 = scalar_lea.vmem %s1, 512
      %v1977 = vld [vmem:[%s1976] sm:$0xf]
      %v1978 = vld [vmem:[%s1976 + $0x4] sm:$0xf]
      %v1979 = vld [vmem:[%s1976 + $0x8] sm:$0xf]
      %v1980 = vld [vmem:[%s1976 + $0xc] sm:$0xf]
      %v1981 = vld [vmem:[%s1976 + $0x10] sm:$0xf]
      %v1982 = vld [vmem:[%s1976 + $0x14] sm:$0xf]
      %v1983 = vld [vmem:[%s1976 + $0x18] sm:$0xf]
      %v1984 = vld [vmem:[%s1976 + $0x1c] sm:$0xf]
      %v1985 = vld [vmem:[%s1976 + $0x20] sm:$0xf]
      %v1986 = vld [vmem:[%s1976 + $0x24] sm:$0xf]
      %v1987 = vld [vmem:[%s1976 + $0x28] sm:$0xf]
      %v1988 = vld [vmem:[%s1976 + $0x2c] sm:$0xf]
      %v1989 = vld [vmem:[%s1976 + $0x30] sm:$0xf]
      %v1990 = vld [vmem:[%s1976 + $0x34] sm:$0xf]
      %v1991 = vld [vmem:[%s1976 + $0x38] sm:$0xf]
      %v1992 = vld [vmem:[%s1976 + $0x3c] sm:$0xf]
      %v1993 = vunpack.c.l.b16 %v1877
      %v1994 = vunpack.c.l.b16 %v1891
      %v1995 = vunpack.c.l.b16 %v1905
      %v1996 = vunpack.c.l.b16 %v1919
      %v1997 = vunpack.c.l.b16 %v1933
      %v1998 = vunpack.c.l.b16 %v1947
      %v1999 = vunpack.c.l.b16 %v1961
      %v2000 = vunpack.c.l.b16 %v1975
      %v2001 = vpack.c.b16 %v1994, %v1993
      %v2002 = vpack.c.b16 %v1996, %v1995
      %v2003 = vpack.c.b16 %v1998, %v1997
      %v2004 = vpack.c.b16 %v2000, %v1999
      %v2025 = vunpack.c.l.b16 %v1977
      %v2026 = vunpack.c.l.b16 %v1978
      %v2027 = vunpack.c.l.b16 %v1979
      %v2028 = vunpack.c.l.b16 %v1980
      %v2029 = vunpack.c.l.b16 %v1981
      %v2030 = vunpack.c.l.b16 %v1982
      %v2031 = vunpack.c.l.b16 %v1983
      %v2032 = vunpack.c.l.b16 %v1984
      %v2033 = vunpack.c.l.b16 %v1985
      %v2034 = vunpack.c.l.b16 %v1986
      %v2035 = vunpack.c.l.b16 %v1987
      %v2036 = vunpack.c.l.b16 %v1988
      %v2037 = vunpack.c.l.b16 %v1989
      %v2038 = vunpack.c.l.b16 %v1990
      %v2039 = vunpack.c.l.b16 %v1991
      %v2040 = vunpack.c.l.b16 %v1992
      %v2041 = vpack.c.b16 %v2026, %v2025
      %v2042 = vpack.c.b16 %v2028, %v2027
      %v2043 = vpack.c.b16 %v2030, %v2029
      %v2044 = vpack.c.b16 %v2032, %v2031
      %v2045 = vpack.c.b16 %v2034, %v2033
      %v2046 = vpack.c.b16 %v2036, %v2035
      %v2047 = vpack.c.b16 %v2038, %v2037
      %v2048 = vpack.c.b16 %v2040, %v2039
      %2057 = vmatprep.subr.bf16.mxu0 0
      %2058 = vmatpush1.bf16.msra.mxu0 %v2041
      %2059 = vmatprep.subr.bf16.mxu0 0
      %2060 = vmatpush1.bf16.msra.mxu0 %v2042
      %2061 = vmatprep.subr.bf16.mxu0 0
      %2062 = vmatpush1.bf16.msra.mxu0 %v2043
      %2063 = vmatprep.subr.bf16.mxu0 0
      %2064 = vmatpush1.bf16.msra.mxu0 %v2044
      %2065 = vmatprep.subr.bf16.mxu0 0
      %2066 = vmatpush1.bf16.msra.mxu0 %v2045
      %2067 = vmatprep.subr.bf16.mxu0 0
      %2068 = vmatpush1.bf16.msra.mxu0 %v2046
      %2069 = vmatprep.subr.bf16.mxu0 0
      %2070 = vmatpush1.bf16.msra.mxu0 %v2047
      %2071 = vmatprep.subr.bf16.mxu0 0
      %2072 = vmatpush1.bf16.msra.mxu0 %v2048
      %2073 = vmatprep.subr.bf16.mxu0 0
      %2074 = vmatpush1.bf16.msra.mxu0 0
      %2075 = vmatprep.subr.bf16.mxu0 0
      %2076 = vmatpush1.bf16.msra.mxu0 0
      %2077 = vmatprep.subr.bf16.mxu0 0
      %2078 = vmatpush1.bf16.msra.mxu0 0
      %2079 = vmatprep.subr.bf16.mxu0 0
      %2080 = vmatpush1.bf16.msra.mxu0 0
      %2081 = vmatprep.subr.bf16.mxu0 0
      %2082 = vmatpush1.bf16.msra.mxu0 0
      %2083 = vmatprep.subr.bf16.mxu0 0
      %2084 = vmatpush1.bf16.msra.mxu0 0
      %2085 = vmatprep.subr.bf16.mxu0 0
      %2086 = vmatpush1.bf16.msra.mxu0 0
      %2087 = vmatprep.subr.bf16.mxu0 0
      %2088 = vmatpush1.bf16.msra.mxu0 0
      %2089 = vmatprep.mubr.bf16.mxu0 0
      %2090 = vmatmul.mubr.bf16.gmra.mrb[0].mxu0 %v2001
      %v2091 = vpop.f32.mrb[0].mxu0
      %v2092 = vadd.f32 0.0, %v2091
      %v2093 = vpop.f32.mrb[0].mxu0
      %v2094 = vpop.f32.mrb[0].mxu0
      %v2095 = vadd.f32 0.0, %v2094
      %v2096 = vpop.f32.mrb[0].mxu0
      %2097 = vmatprep.mubr.bf16.mxu0 0
      %2098 = vmatmul.mubr.bf16.gmra.mrb[0].mxu0 %v2002
      %v2099 = vpop.f32.mrb[0].mxu0
      %v2100 = vadd.f32 0.0, %v2099
      %v2101 = vpop.f32.mrb[0].mxu0
      %v2102 = vpop.f32.mrb[0].mxu0
      %v2103 = vadd.f32 0.0, %v2102
      %v2104 = vpop.f32.mrb[0].mxu0
      %2105 = vmatprep.mubr.bf16.mxu0 0
      %2106 = vmatmul.mubr.bf16.gmra.mrb[0].mxu0 %v2003
      %v2107 = vpop.f32.mrb[0].mxu0
      %v2108 = vadd.f32 0.0, %v2107
      %v2109 = vpop.f32.mrb[0].mxu0
      %v2110 = vpop.f32.mrb[0].mxu0
      %v2111 = vadd.f32 0.0, %v2110
      %v2112 = vpop.f32.mrb[0].mxu0
      %2113 = vmatprep.mubr.bf16.mxu0 0
      %2114 = vmatmul.mubr.bf16.gmra.mrb[0].mxu0 %v2004
      %v2115 = vpop.f32.mrb[0].mxu0
      %v2116 = vadd.f32 0.0, %v2115
      %v2117 = vpop.f32.mrb[0].mxu0
      %v2118 = vpop.f32.mrb[0].mxu0
      %v2119 = vadd.f32 0.0, %v2118
      %v2120 = vpop.f32.mrb[0].mxu0
      %2121 = vdwg.mxu0
      %v2122 = vadd.f32 %v1840, %v2092
      %v2123 = vadd.f32 %v1841, %v2095
      %v2124 = vadd.f32 %v1842, %v2100
      %v2125 = vadd.f32 %v1843, %v2103
      %v2126 = vadd.f32 %v1844, %v2108
      %v2127 = vadd.f32 %v1845, %v2111
      %v2128 = vadd.f32 %v1846, %v2116
      %v2129 = vadd.f32 %v1847, %v2119
      %v2130 = vld [vmem:[%s266] sm:$0xff]
      %v2131 = vld [vmem:[%s266 + $0x8] sm:$0xff]
      %v2132 = vld [vmem:[%s266 + $0x10] sm:$0xff]
      %v2133 = vld [vmem:[%s266 + $0x18] sm:$0xff]
      %v2134 = vld [vmem:[%s266 + $0x20] sm:$0xff]
      %v2135 = vld [vmem:[%s266 + $0x28] sm:$0xff]
      %v2136 = vld [vmem:[%s266 + $0x30] sm:$0xff]
      %v2137 = vld [vmem:[%s266 + $0x38] sm:$0xff]
      %v2138 = vld [vmem:[%s4] sm:$0x1]
      %v2140 = vlaneseq
      %v2141 = vshrl.u32 %v2140, 7
      %v2142 = vsub.s32 0, %v2141
      %v2143 = vrot.slane %v2138, %v2142
      %v2145 = vmul.f32 %v2130, %v2143
      %v2146 = vmul.f32 %v2131, %v2143
      %v2147 = vmul.f32 %v2132, %v2143
      %v2148 = vmul.f32 %v2133, %v2143
      %v2149 = vmul.f32 %v2134, %v2143
      %v2150 = vmul.f32 %v2135, %v2143
      %v2151 = vmul.f32 %v2136, %v2143
      %v2152 = vmul.f32 %v2137, %v2143
      %v2153 = vld [vmem:[%s5] sm:$0x1]
      %v2155 = vlaneseq
      %v2156 = vshrl.u32 %v2155, 7
      %v2157 = vsub.s32 0, %v2156
      %v2158 = vrot.slane %v2153, %v2157
      %v2160 = vadd.f32 %v2145, %v2158
      %v2161 = vadd.f32 %v2146, %v2158
      %v2162 = vadd.f32 %v2147, %v2158
      %v2163 = vadd.f32 %v2148, %v2158
      %v2164 = vadd.f32 %v2149, %v2158
      %v2165 = vadd.f32 %v2150, %v2158
      %v2166 = vadd.f32 %v2151, %v2158
      %v2167 = vadd.f32 %v2152, %v2158
      %v2168 = vmax.f32 %v2160, 0.0
      %v2169 = vmax.f32 %v2161, 0.0
      %v2170 = vmax.f32 %v2162, 0.0
      %v2171 = vmax.f32 %v2163, 0.0
      %v2172 = vmax.f32 %v2164, 0.0
      %v2173 = vmax.f32 %v2165, 0.0
      %v2174 = vmax.f32 %v2166, 0.0
      %v2175 = vmax.f32 %v2167, 0.0
      %v2176 = vpack.c.bf16 %v2169, %v2168
      %v2177 = vpack.c.bf16 %v2171, %v2170
      %v2178 = vpack.c.bf16 %v2173, %v2172
      %v2179 = vpack.c.bf16 %v2175, %v2174
      %v2180 = vld [vmem:[%s3] sm:$0xf]
      %v2181 = vld [vmem:[%s3 + $0x4] sm:$0xf]
      %v2182 = vld [vmem:[%s3 + $0x8] sm:$0xf]
      %v2183 = vld [vmem:[%s3 + $0xc] sm:$0xf]
      %v2184 = vld [vmem:[%s3 + $0x10] sm:$0xf]
      %v2185 = vld [vmem:[%s3 + $0x14] sm:$0xf]
      %v2186 = vld [vmem:[%s3 + $0x18] sm:$0xf]
      %v2187 = vld [vmem:[%s3 + $0x1c] sm:$0xf]
      %v2188 = vld [vmem:[%s3 + $0x20] sm:$0xf]
      %v2189 = vld [vmem:[%s3 + $0x24] sm:$0xf]
      %v2190 = vld [vmem:[%s3 + $0x28] sm:$0xf]
      %v2191 = vld [vmem:[%s3 + $0x2c] sm:$0xf]
      %v2192 = vld [vmem:[%s3 + $0x30] sm:$0xf]
      %v2193 = vld [vmem:[%s3 + $0x34] sm:$0xf]
      %v2194 = vld [vmem:[%s3 + $0x38] sm:$0xf]
      %v2195 = vld [vmem:[%s3 + $0x3c] sm:$0xf]
      %v2212 = vunpack.c.l.b16 %v2180
      %v2213 = vunpack.c.l.b16 %v2181
      %v2214 = vunpack.c.l.b16 %v2182
      %v2215 = vunpack.c.l.b16 %v2183
      %v2216 = vunpack.c.l.b16 %v2184
      %v2217 = vunpack.c.l.b16 %v2185
      %v2218 = vunpack.c.l.b16 %v2186
      %v2219 = vunpack.c.l.b16 %v2187
      %v2220 = vunpack.c.l.b16 %v2188
      %v2221 = vunpack.c.l.b16 %v2189
      %v2222 = vunpack.c.l.b16 %v2190
      %v2223 = vunpack.c.l.b16 %v2191
      %v2224 = vunpack.c.l.b16 %v2192
      %v2225 = vunpack.c.l.b16 %v2193
      %v2226 = vunpack.c.l.b16 %v2194
      %v2227 = vunpack.c.l.b16 %v2195
      %v2228 = vpack.c.b16 %v2213, %v2212
      %v2229 = vpack.c.b16 %v2215, %v2214
      %v2230 = vpack.c.b16 %v2217, %v2216
      %v2231 = vpack.c.b16 %v2219, %v2218
      %v2232 = vpack.c.b16 %v2221, %v2220
      %v2233 = vpack.c.b16 %v2223, %v2222
      %v2234 = vpack.c.b16 %v2225, %v2224
      %v2235 = vpack.c.b16 %v2227, %v2226
      %2244 = vmatprep.subr.bf16.mxu0 0
      %2245 = vmatpush1.bf16.msra.mxu0 %v2228
      %2246 = vmatprep.subr.bf16.mxu0 0
      %2247 = vmatpush1.bf16.msra.mxu0 %v2229
      %2248 = vmatprep.subr.bf16.mxu0 0
      %2249 = vmatpush1.bf16.msra.mxu0 %v2230
      %2250 = vmatprep.subr.bf16.mxu0 0
      %2251 = vmatpush1.bf16.msra.mxu0 %v2231
      %2252 = vmatprep.subr.bf16.mxu0 0
      %2253 = vmatpush1.bf16.msra.mxu0 %v2232
      %2254 = vmatprep.subr.bf16.mxu0 0
      %2255 = vmatpush1.bf16.msra.mxu0 %v2233
      %2256 = vmatprep.subr.bf16.mxu0 0
      %2257 = vmatpush1.bf16.msra.mxu0 %v2234
      %2258 = vmatprep.subr.bf16.mxu0 0
      %2259 = vmatpush1.bf16.msra.mxu0 %v2235
      %2260 = vmatprep.subr.bf16.mxu0 0
      %2261 = vmatpush1.bf16.msra.mxu0 0
      %2262 = vmatprep.subr.bf16.mxu0 0
      %2263 = vmatpush1.bf16.msra.mxu0 0
      %2264 = vmatprep.subr.bf16.mxu0 0
      %2265 = vmatpush1.bf16.msra.mxu0 0
      %2266 = vmatprep.subr.bf16.mxu0 0
      %2267 = vmatpush1.bf16.msra.mxu0 0
      %2268 = vmatprep.subr.bf16.mxu0 0
      %2269 = vmatpush1.bf16.msra.mxu0 0
      %2270 = vmatprep.subr.bf16.mxu0 0
      %2271 = vmatpush1.bf16.msra.mxu0 0
      %2272 = vmatprep.subr.bf16.mxu0 0
      %2273 = vmatpush1.bf16.msra.mxu0 0
      %2274 = vmatprep.subr.bf16.mxu0 0
      %2275 = vmatpush1.bf16.msra.mxu0 0
      %2276 = vmatprep.mubr.bf16.mxu0 0
      %2277 = vmatmul.mubr.bf16.gmra.mrb[0].mxu0 %v2176
      %v2278 = vpop.f32.mrb[0].mxu0
      %v2279 = vadd.f32 0.0, %v2278
      %v2280 = vpop.f32.mrb[0].mxu0
      %v2281 = vpop.f32.mrb[0].mxu0
      %v2282 = vadd.f32 0.0, %v2281
      %v2283 = vpop.f32.mrb[0].mxu0
      %2284 = vmatprep.mubr.bf16.mxu0 0
      %2285 = vmatmul.mubr.bf16.gmra.mrb[0].mxu0 %v2177
      %v2286 = vpop.f32.mrb[0].mxu0
      %v2287 = vadd.f32 0.0, %v2286
      %v2288 = vpop.f32.mrb[0].mxu0
      %v2289 = vpop.f32.mrb[0].mxu0
      %v2290 = vadd.f32 0.0, %v2289
      %v2291 = vpop.f32.mrb[0].mxu0
      %2292 = vmatprep.mubr.bf16.mxu0 0
      %2293 = vmatmul.mubr.bf16.gmra.mrb[0].mxu0 %v2178
      %v2294 = vpop.f32.mrb[0].mxu0
      %v2295 = vadd.f32 0.0, %v2294
      %v2296 = vpop.f32.mrb[0].mxu0
      %v2297 = vpop.f32.mrb[0].mxu0
      %v2298 = vadd.f32 0.0, %v2297
      %v2299 = vpop.f32.mrb[0].mxu0
      %2300 = vmatprep.mubr.bf16.mxu0 0
      %2301 = vmatmul.mubr.bf16.gmra.mrb[0].mxu0 %v2179
      %v2302 = vpop.f32.mrb[0].mxu0
      %v2303 = vadd.f32 0.0, %v2302
      %v2304 = vpop.f32.mrb[0].mxu0
      %v2305 = vpop.f32.mrb[0].mxu0
      %v2306 = vadd.f32 0.0, %v2305
      %v2307 = vpop.f32.mrb[0].mxu0
      %2308 = vdwg.mxu0
      %v2309 = vadd.f32 %v2122, %v2279
      %v2310 = vadd.f32 %v2123, %v2282
      %v2311 = vadd.f32 %v2124, %v2287
      %v2312 = vadd.f32 %v2125, %v2290
      %v2313 = vadd.f32 %v2126, %v2295
      %v2314 = vadd.f32 %v2127, %v2298
      %v2315 = vadd.f32 %v2128, %v2303
      %v2316 = vadd.f32 %v2129, %v2306
      %2317 = vst [vmem:[%s271] sm:$0xff] %v2309
      %2318 = vst [vmem:[%s271 + $0x8] sm:$0xff] %v2310
      %2319 = vst [vmem:[%s271 + $0x10] sm:$0xff] %v2311
      %2320 = vst [vmem:[%s271 + $0x18] sm:$0xff] %v2312
      %2321 = vst [vmem:[%s271 + $0x20] sm:$0xff] %v2313
      %2322 = vst [vmem:[%s271 + $0x28] sm:$0xff] %v2314
      %2323 = vst [vmem:[%s271 + $0x30] sm:$0xff] %v2315
      %2324 = vst [vmem:[%s271 + $0x38] sm:$0xff] %v2316
      %p2325 = scmp.lt.s32.totalorder %s17, 1
      %s2326 = scalar_select %p2325, %s17, 1
      %s2327 = smul.addr %s2326, 8
      %s2328 = smul.addr %s2327, 8
      %s2329 = scalar_lea.vmem %s6, %s2328
      // Predicated region
      $region45: #{_forward_impl.3} parent=43 // pred_check
        %p2330 = pneg %p171
      $region46: #{_forward_impl.3} parent=43 // pred_check_branch
        %2332 = sbr.rel (%p2330) target = $region48
      $region47: #{_forward_impl.3} parent=43 // pred_region
        _
      $region48: #{_forward_impl.3} parent=43 // pred_fallthru
        _
    $region44: #{_forward_impl.3} parent=5 // pred_fallthru
      _
    %p2333 = scmp.le.s32.totalorder 2, %s12
    // Predicated region
    $region49: #{_forward_impl.3} parent=5 // pred_check
      %p2334 = pneg %p2333
    $region50: #{_forward_impl.3} parent=5 // pred_check_branch
      %2336 = sbr.rel (%p2334) target = $region52
    $region51: #{_forward_impl.3} parent=5 // pred_region
      %s2337 = ssub.s32 %s12, 2
      // Predicated region
      $region53: #{_forward_impl.3} parent=51 // pred_check
        %p2338 = pneg %p177
      $region54: #{_forward_impl.3} parent=51 // pred_check_branch
        %2340 = sbr.rel (%p2338) target = $region56
      $region55: #{_forward_impl.3} parent=51 // pred_region
        %p2341 = scmp.lt.s32.totalorder %s18, 1
        %s2342 = scalar_select %p2341, %s18, 1
        %s2343 = smul.addr %s2342, 8
        %s2344 = smul.addr %s2343, 8
        %s2345 = scalar_lea.vmem %s6, %s2344
      $region56: #{_forward_impl.3} parent=51 // pred_fallthru
        _
    $region52: #{_forward_impl.3} parent=5 // pred_fallthru
      _
  $region6: #{_forward_impl.3} parent=0 // loop_footer
    %s16 = sadd.s32 1, %s12
  $region7: #{_forward_impl.3} parent=0 // loop_footer_branch
    %11 = sbr.rel target = $region3
  $region8: #{_forward_impl.3} parent=0 // loop_exit
    _

// kernel: _forward_impl.2
$region0: #{_forward_impl.2}
  #allocation0 [shape = 'u32[]', space=smem, size = 0x4, offset = 0x4, fixed_abs, tag = 'smem constant byte address 0x4 - core index']
  #allocation1 [shape = 'u32[144,128]{1,0:T(1,128)}', space=vmem, size = 0x12000, scoped, tag = 'internal scratch']
  #allocation2 [shape = 'bf16[18,18,128]{2,1,0:T(8,128)(2,1)}', space=vmem, size = 0x1b000, scoped, tag = 'scratch operand']
  %s0 = inlined_call_operand.vmem [shape: f32[2,16,16,128], index: 0, kind: input, shape index: {}]
  %s1 = inlined_call_operand.vmem [shape: bf16[9,128,128], index: 1, kind: input, shape index: {}]
  %s2 = inlined_call_operand.vmem [shape: f32[1,128], index: 2, kind: input, shape index: {}]
  %s3 = inlined_call_operand.vmem [shape: f32[1,128], index: 3, kind: input, shape index: {}]
  %s4 = inlined_call_operand.vmem [shape: f32[1,128], index: 4, kind: input, shape index: {}]
  %s5 = inlined_call_operand.vmem [shape: f32[1,128], index: 5, kind: input, shape index: {}]
  %s6 = inlined_call_operand.vmem [shape: bf16[2,16,16,128], index: 6, kind: output, shape index: {}]
  %s7 = sld [smem:[#allocation0]]
  $region57: #{_forward_impl.2} parent=0
    _
  %s9 = ssub.s32 1, %s7
  %s10 = scalar_select 0, %s9, %s7
  loop: start=0, step=1, limit=4
  $region2: #{_forward_impl.2} parent=0 // loop_pre_header
    _
  $region3: #{_forward_impl.2} parent=0 // loop_header
    %s12 = sphi 0, %s16
    %p13 = scmp.ge.s32.totalorder %s12, 4
    %s22 = sphi 0, %s24
    %s25 = sphi 0, %s22
    %s26 = sphi 0, %s25
    %s42 = sphi 0, %s26
    %s46 = sphi 0, %s46
    %s48 = sphi 0, %s46
    %s49 = sphi 0, %s48
    %s63 = sphi 0, %s49
    %s67 = sphi 0, %s67
    %s69 = sphi 0, %s67
    %s70 = sphi 0, %s69
    %s84 = sphi 0, %s70
    %s88 = sphi 0, %s88
    %s90 = sphi 0, %s88
    %s91 = sphi 0, %s90
    %s105 = sphi 0, %s91
    %s109 = sphi 0, %s109
    %s111 = sphi 0, %s109
    %s112 = sphi 0, %s111
    %s126 = sphi 0, %s112
    %s130 = sphi 0, %s130
    %s132 = sphi 0, %s130
    %s133 = sphi 0, %s132
    %s147 = sphi 0, %s133
    %s153 = sphi 0, %s155
    %s156 = sphi 0, %s153
    %s157 = sphi 0, %s156
    %s173 = sphi 0, %s157
  $region4: #{_forward_impl.2} parent=0 // loop_header_branch
    %15 = sbr.rel (%p13) target = $region8
  $region5: #{_forward_impl.2} parent=0 // loop_body
    %s17 = ssub.s32 %s12, 1
    %s18 = ssub.s32 %s12, 2
    %s19 = sadd.s32 %s12, 1
    %s20 = ssub.s32 %s12, %s19
    %p21 = scmp.eq.s32.totalorder %s20, 0
    %s23 = sadd.s32 %s22, 1
    %s24 = scalar_select %p21, %s22, %s23
    %p27 = pneg %p21
    %p28 = scmp.eq.s32.totalorder %s12, 1
    %p29 = por %p27, %p28
    %p30 = scmp.ne.s32.totalorder %s22, %s25
    %p31 = scmp.eq.s32.totalorder %s12, 0
    %p32 = por %p30, %p31
    %p33 = scmp.ne.s32.totalorder %s22, %s25
    %p34 = scmp.eq.s32.totalorder %s17, 1
    %p35 = por %p33, %p34
    %p36 = scmp.ne.s32.totalorder %s25, %s26
    %p37 = scmp.eq.s32.totalorder %s17, 0
    %p38 = por %p36, %p37
    %p39 = scmp.ne.s32.totalorder %s25, %s26
    %p40 = scmp.eq.s32.totalorder %s18, 1
    %p41 = por %p39, %p40
    %p43 = scmp.ne.s32.totalorder %s26, %s42
    %p44 = scmp.eq.s32.totalorder %s18, 0
    %p45 = por %p43, %p44
    %s47 = sadd.s32 %s46, 1
    %p50 = scmp.eq.s32.totalorder %s12, 1
    %p51 = scmp.ne.s32.totalorder %s46, %s48
    %p52 = scmp.eq.s32.totalorder %s12, 0
    %p53 = por %p51, %p52
    %p54 = scmp.ne.s32.totalorder %s46, %s48
    %p55 = scmp.eq.s32.totalorder %s17, 1
    %p56 = por %p54, %p55
    %p57 = scmp.ne.s32.totalorder %s48, %s49
    %p58 = scmp.eq.s32.totalorder %s17, 0
    %p59 = por %p57, %p58
    %p60 = scmp.ne.s32.totalorder %s48, %s49
    %p61 = scmp.eq.s32.totalorder %s18, 1
    %p62 = por %p60, %p61
    %p64 = scmp.ne.s32.totalorder %s49, %s63
    %p65 = scmp.eq.s32.totalorder %s18, 0
    %p66 = por %p64, %p65
    %s68 = sadd.s32 %s67, 1
    %p71 = scmp.eq.s32.totalorder %s12, 1
    %p72 = scmp.ne.s32.totalorder %s67, %s69
    %p73 = scmp.eq.s32.totalorder %s12, 0
    %p74 = por %p72, %p73
    %p75 = scmp.ne.s32.totalorder %s67, %s69
    %p76 = scmp.eq.s32.totalorder %s17, 1
    %p77 = por %p75, %p76
    %p78 = scmp.ne.s32.totalorder %s69, %s70
    %p79 = scmp.eq.s32.totalorder %s17, 0
    %p80 = por %p78, %p79
    %p81 = scmp.ne.s32.totalorder %s69, %s70
    %p82 = scmp.eq.s32.totalorder %s18, 1
    %p83 = por %p81, %p82
    %p85 = scmp.ne.s32.totalorder %s70, %s84
    %p86 = scmp.eq.s32.totalorder %s18, 0
    %p87 = por %p85, %p86
    %s89 = sadd.s32 %s88, 1
    %p92 = scmp.eq.s32.totalorder %s12, 1
    %p93 = scmp.ne.s32.totalorder %s88, %s90
    %p94 = scmp.eq.s32.totalorder %s12, 0
    %p95 = por %p93, %p94
    %p96 = scmp.ne.s32.totalorder %s88, %s90
    %p97 = scmp.eq.s32.totalorder %s17, 1
    %p98 = por %p96, %p97
    %p99 = scmp.ne.s32.totalorder %s90, %s91
    %p100 = scmp.eq.s32.totalorder %s17, 0
    %p101 = por %p99, %p100
    %p102 = scmp.ne.s32.totalorder %s90, %s91
    %p103 = scmp.eq.s32.totalorder %s18, 1
    %p104 = por %p102, %p103
    %p106 = scmp.ne.s32.totalorder %s91, %s105
    %p107 = scmp.eq.s32.totalorder %s18, 0
    %p108 = por %p106, %p107
    %s110 = sadd.s32 %s109, 1
    %p113 = scmp.eq.s32.totalorder %s12, 1
    %p114 = scmp.ne.s32.totalorder %s109, %s111
    %p115 = scmp.eq.s32.totalorder %s12, 0
    %p116 = por %p114, %p115
    %p117 = scmp.ne.s32.totalorder %s109, %s111
    %p118 = scmp.eq.s32.totalorder %s17, 1
    %p119 = por %p117, %p118
    %p120 = scmp.ne.s32.totalorder %s111, %s112
    %p121 = scmp.eq.s32.totalorder %s17, 0
    %p122 = por %p120, %p121
    %p123 = scmp.ne.s32.totalorder %s111, %s112
    %p124 = scmp.eq.s32.totalorder %s18, 1
    %p125 = por %p123, %p124
    %p127 = scmp.ne.s32.totalorder %s112, %s126
    %p128 = scmp.eq.s32.totalorder %s18, 0
    %p129 = por %p127, %p128
    %s131 = sadd.s32 %s130, 1
    %p134 = scmp.eq.s32.totalorder %s12, 1
    %p135 = scmp.ne.s32.totalorder %s130, %s132
    %p136 = scmp.eq.s32.totalorder %s12, 0
    %p137 = por %p135, %p136
    %p138 = scmp.ne.s32.totalorder %s130, %s132
    %p139 = scmp.eq.s32.totalorder %s17, 1
    %p140 = por %p138, %p139
    %p141 = scmp.ne.s32.totalorder %s132, %s133
    %p142 = scmp.eq.s32.totalorder %s17, 0
    %p143 = por %p141, %p142
    %p144 = scmp.ne.s32.totalorder %s132, %s133
    %p145 = scmp.eq.s32.totalorder %s18, 1
    %p146 = por %p144, %p145
    %p148 = scmp.ne.s32.totalorder %s133, %s147
    %p149 = scmp.eq.s32.totalorder %s18, 0
    %p150 = por %p148, %p149
    %s151 = ssub.s32 %s12, %s19
    %p152 = scmp.eq.s32.totalorder %s151, 0
    %s154 = sadd.s32 %s153, 1
    %s155 = scalar_select %p152, %s153, %s154
    %p158 = pneg %p152
    %p159 = scmp.eq.s32.totalorder %s12, 1
    %p160 = por %p158, %p159
    %p161 = scmp.ne.s32.totalorder %s153, %s156
    %p162 = scmp.eq.s32.totalorder %s12, 0
    %p163 = por %p161, %p162
    %p164 = scmp.ne.s32.totalorder %s153, %s156
    %p165 = scmp.eq.s32.totalorder %s17, 1
    %p166 = por %p164, %p165
    %p167 = scmp.ne.s32.totalorder %s156, %s157
    %p168 = scmp.eq.s32.totalorder %s17, 0
    %p169 = por %p167, %p168
    %p170 = scmp.ne.s32.totalorder %s156, %s157
    %p171 = scmp.eq.s32.totalorder %s18, 1
    %p172 = por %p170, %p171
    %p174 = scmp.ne.s32.totalorder %s157, %s173
    %p175 = scmp.eq.s32.totalorder %s18, 0
    %p176 = por %p174, %p175
    %p177 = scmp.le.s32.totalorder 1, %s12
    %p178 = scmp.lt.s32.totalorder %s12, 3
    %p179 = pnand %p177, %p178
    %p180 = pneg %p179
    // Predicated region
    $region9: #{_forward_impl.2} parent=5 // pred_check
      _
    $region10: #{_forward_impl.2} parent=5 // pred_check_branch
      %182 = sbr.rel (%p179) target = $region12
    $region11: #{_forward_impl.2} parent=5 // pred_region
      %s183 = ssub.s32 %s12, 1
      // Predicated region
      $region13: #{_forward_impl.2} parent=11 // pred_check
        %p184 = pneg %p59
      $region14: #{_forward_impl.2} parent=11 // pred_check_branch
        %186 = sbr.rel (%p184) target = $region16
      $region15: #{_forward_impl.2} parent=11 // pred_region
        _
      $region16: #{_forward_impl.2} parent=11 // pred_fallthru
        _
      // Predicated region
      $region17: #{_forward_impl.2} parent=11 // pred_check
        %p187 = pneg %p80
      $region18: #{_forward_impl.2} parent=11 // pred_check_branch
        %189 = sbr.rel (%p187) target = $region20
      $region19: #{_forward_impl.2} parent=11 // pred_region
        _
      $region20: #{_forward_impl.2} parent=11 // pred_fallthru
        _
      // Predicated region
      $region21: #{_forward_impl.2} parent=11 // pred_check
        %p190 = pneg %p101
      $region22: #{_forward_impl.2} parent=11 // pred_check_branch
        %192 = sbr.rel (%p190) target = $region24
      $region23: #{_forward_impl.2} parent=11 // pred_region
        _
      $region24: #{_forward_impl.2} parent=11 // pred_fallthru
        _
      // Predicated region
      $region25: #{_forward_impl.2} parent=11 // pred_check
        %p193 = pneg %p122
      $region26: #{_forward_impl.2} parent=11 // pred_check_branch
        %195 = sbr.rel (%p193) target = $region28
      $region27: #{_forward_impl.2} parent=11 // pred_region
        _
      $region28: #{_forward_impl.2} parent=11 // pred_fallthru
        _
      // Predicated region
      $region29: #{_forward_impl.2} parent=11 // pred_check
        %p196 = pneg %p143
      $region30: #{_forward_impl.2} parent=11 // pred_check_branch
        %198 = sbr.rel (%p196) target = $region32
      $region31: #{_forward_impl.2} parent=11 // pred_region
        _
      $region32: #{_forward_impl.2} parent=11 // pred_fallthru
        _
    $region12: #{_forward_impl.2} parent=5 // pred_fallthru
      _
    %p199 = scmp.lt.s32.totalorder %s12, 2
    // Predicated region
    $region33: #{_forward_impl.2} parent=5 // pred_check
      %p200 = pneg %p199
    $region34: #{_forward_impl.2} parent=5 // pred_check_branch
      %202 = sbr.rel (%p200) target = $region36
    $region35: #{_forward_impl.2} parent=5 // pred_region
      // Predicated region
      $region37: #{_forward_impl.2} parent=35 // pred_check
        %p203 = pneg %p32
      $region38: #{_forward_impl.2} parent=35 // pred_check_branch
        %205 = sbr.rel (%p203) target = $region40
      $region39: #{_forward_impl.2} parent=35 // pred_region
        %p206 = scmp.lt.s32.totalorder %s12, 1
        %s207 = scalar_select %p206, %s12, 1
        %s208 = smul.addr %s207, 32
        %s209 = smul.addr %s208, 8
        %s210 = scalar_lea.vmem %s0, %s209
      $region40: #{_forward_impl.2} parent=35 // pred_fallthru
        _
    $region36: #{_forward_impl.2} parent=5 // pred_fallthru
      _
    %p211 = scmp.le.s32.totalorder 1, %s12
    %p212 = scmp.lt.s32.totalorder %s12, 3
    %p213 = pnand %p211, %p212
    %p214 = pneg %p213
    // Predicated region
    $region41: #{_forward_impl.2} parent=5 // pred_check
      _
    $region42: #{_forward_impl.2} parent=5 // pred_check_branch
      %216 = sbr.rel (%p213) target = $region44
    $region43: #{_forward_impl.2} parent=5 // pred_region
      %s217 = ssub.s32 %s12, 1
      %p218 = scmp.lt.s32.totalorder %s17, 1
      %s219 = scalar_select %p218, %s17, 1
      %s220 = smul.addr %s219, 32
      %s221 = smul.addr %s220, 8
      %s222 = scalar_lea.vmem %s0, %s221
      %p223 = pneg %p38
      %p224 = pneg %p35
      %p225 = pneg %p59
      %p226 = pneg %p56
      %p227 = pneg %p80
      %p228 = pneg %p77
      %p229 = pneg %p101
      %p230 = pneg %p98
      %p231 = pneg %p122
      %p232 = pneg %p119
      %p233 = pneg %p143
      %p234 = pneg %p140
      %p235 = pneg %p169
      %p236 = pneg %p166
      %p237 = scmp.lt.s32.totalorder %s17, 1
      %s238 = scalar_select %p237, %s17, 1
      %s239 = smul.addr %s238, 32
      %s240 = smul.addr %s239, 4
      %s241 = scalar_lea.vmem %s6, %s240
      %p242 = scmp.lt.s32.totalorder %s17, 1
      %s243 = scalar_select %p242, %s17, 1
      %s244 = smul.addr %s243, 32
      %s245 = smul.addr %s244, 8
      %s246 = scalar_lea.vmem %s0, %s245
      %p247 = scmp.lt.s32.totalorder %s17, 1
      %s248 = scalar_select %p247, %s17, 1
      %s249 = smul.addr %s248, 32
      %s250 = smul.addr %s249, 4
      %s251 = scalar_lea.vmem %s6, %s250
      %253 = vst [vmem:[#allocation2] sm:$0xf] 0
      %254 = vst [vmem:[#allocation2 + $0x4] sm:$0xf] 0
      %255 = vst [vmem:[#allocation2 + $0x8] sm:$0x1] 0
      %256 = vst [vmem:[#allocation2 + $0xc] sm:$0xf] 0
      %257 = vst [vmem:[#allocation2 + $0x10] sm:$0xf] 0
      %258 = vst [vmem:[#allocation2 + $0x14] sm:$0x1] 0
      %259 = vst [vmem:[#allocation2 + $0x18] sm:$0xf] 0
      %260 = vst [vmem:[#allocation2 + $0x1c] sm:$0xf] 0
      %261 = vst [vmem:[#allocation2 + $0x20] sm:$0x1] 0
      %262 = vst [vmem:[#allocation2 + $0x24] sm:$0xf] 0
      %263 = vst [vmem:[#allocation2 + $0x28] sm:$0xf] 0
      %264 = vst [vmem:[#allocation2 + $0x2c] sm:$0x1] 0
      %265 = vst [vmem:[#allocation2 + $0x30] sm:$0xf] 0
      %266 = vst [vmem:[#allocation2 + $0x34] sm:$0xf] 0
      %267 = vst [vmem:[#allocation2 + $0x38] sm:$0x1] 0
      %268 = vst [vmem:[#allocation2 + $0x3c] sm:$0xf] 0
      %269 = vst [vmem:[#allocation2 + $0x40] sm:$0xf] 0
      %270 = vst [vmem:[#allocation2 + $0x44] sm:$0x1] 0
      %271 = vst [vmem:[#allocation2 + $0x48] sm:$0xf] 0
      %272 = vst [vmem:[#allocation2 + $0x4c] sm:$0xf] 0
      %273 = vst [vmem:[#allocation2 + $0x50] sm:$0x1] 0
      %274 = vst [vmem:[#allocation2 + $0x54] sm:$0xf] 0
      %275 = vst [vmem:[#allocation2 + $0x58] sm:$0xf] 0
      %276 = vst [vmem:[#allocation2 + $0x5c] sm:$0x1] 0
      %277 = vst [vmem:[#allocation2 + $0x60] sm:$0xf] 0
      %278 = vst [vmem:[#allocation2 + $0x64] sm:$0xf] 0
      %279 = vst [vmem:[#allocation2 + $0x68] sm:$0x1] 0
      %280 = vst [vmem:[#allocation2 + $0x6c] sm:$0xf] 0
      %281 = vst [vmem:[#allocation2 + $0x70] sm:$0xf] 0
      %282 = vst [vmem:[#allocation2 + $0x74] sm:$0x1] 0
      %283 = vst [vmem:[#allocation2 + $0x78] sm:$0xf] 0
      %284 = vst [vmem:[#allocation2 + $0x7c] sm:$0xf] 0
      %285 = vst [vmem:[#allocation2 + $0x80] sm:$0x1] 0
      %286 = vst [vmem:[#allocation2 + $0x84] sm:$0xf] 0
      %287 = vst [vmem:[#allocation2 + $0x88] sm:$0xf] 0
      %288 = vst [vmem:[#allocation2 + $0x8c] sm:$0x1] 0
      %289 = vst [vmem:[#allocation2 + $0x90] sm:$0xf] 0
      %290 = vst [vmem:[#allocation2 + $0x94] sm:$0xf] 0
      %291 = vst [vmem:[#allocation2 + $0x98] sm:$0x1] 0
      %292 = vst [vmem:[#allocation2 + $0x9c] sm:$0xf] 0
      %293 = vst [vmem:[#allocation2 + $0xa0] sm:$0xf] 0
      %294 = vst [vmem:[#allocation2 + $0xa4] sm:$0x1] 0
      %295 = vst [vmem:[#allocation2 + $0xa8] sm:$0xf] 0
      %296 = vst [vmem:[#allocation2 + $0xac] sm:$0xf] 0
      %297 = vst [vmem:[#allocation2 + $0xb0] sm:$0x1] 0
      %298 = vst [vmem:[#allocation2 + $0xb4] sm:$0xf] 0
      %299 = vst [vmem:[#allocation2 + $0xb8] sm:$0xf] 0
      %300 = vst [vmem:[#allocation2 + $0xbc] sm:$0x1] 0
      %301 = vst [vmem:[#allocation2 + $0xc0] sm:$0xf] 0
      %302 = vst [vmem:[#allocation2 + $0xc4] sm:$0xf] 0
      %303 = vst [vmem:[#allocation2 + $0xc8] sm:$0x1] 0
      %304 = vst [vmem:[#allocation2 + $0xcc] sm:$0xf] 0
      %305 = vst [vmem:[#allocation2 + $0xd0] sm:$0xf] 0
      %306 = vst [vmem:[#allocation2 + $0xd4] sm:$0x1] 0
      %v307 = vld [vmem:[%s246] sm:$0xff]
      %v308 = vld [vmem:[%s246 + $0x8] sm:$0xff]
      %v309 = vld [vmem:[%s246 + $0x10] sm:$0xff]
      %v310 = vld [vmem:[%s246 + $0x18] sm:$0xff]
      %v311 = vld [vmem:[%s246 + $0x20] sm:$0xff]
      %v312 = vld [vmem:[%s246 + $0x28] sm:$0xff]
      %v313 = vld [vmem:[%s246 + $0x30] sm:$0xff]
      %v314 = vld [vmem:[%s246 + $0x38] sm:$0xff]
      %v315 = vld [vmem:[%s246 + $0x40] sm:$0xff]
      %v316 = vld [vmem:[%s246 + $0x48] sm:$0xff]
      %v317 = vld [vmem:[%s246 + $0x50] sm:$0xff]
      %v318 = vld [vmem:[%s246 + $0x58] sm:$0xff]
      %v319 = vld [vmem:[%s246 + $0x60] sm:$0xff]
      %v320 = vld [vmem:[%s246 + $0x68] sm:$0xff]
      %v321 = vld [vmem:[%s246 + $0x70] sm:$0xff]
      %v322 = vld [vmem:[%s246 + $0x78] sm:$0xff]
      %v323 = vld [vmem:[%s246 + $0x80] sm:$0xff]
      %v324 = vld [vmem:[%s246 + $0x88] sm:$0xff]
      %v325 = vld [vmem:[%s246 + $0x90] sm:$0xff]
      %v326 = vld [vmem:[%s246 + $0x98] sm:$0xff]
      %v327 = vld [vmem:[%s246 + $0xa0] sm:$0xff]
      %v328 = vld [vmem:[%s246 + $0xa8] sm:$0xff]
      %v329 = vld [vmem:[%s246 + $0xb0] sm:$0xff]
      %v330 = vld [vmem:[%s246 + $0xb8] sm:$0xff]
      %v331 = vld [vmem:[%s246 + $0xc0] sm:$0xff]
      %v332 = vld [vmem:[%s246 + $0xc8] sm:$0xff]
      %v333 = vld [vmem:[%s246 + $0xd0] sm:$0xff]
      %v334 = vld [vmem:[%s246 + $0xd8] sm:$0xff]
      %v335 = vld [vmem:[%s246 + $0xe0] sm:$0xff]
      %v336 = vld [vmem:[%s246 + $0xe8] sm:$0xff]
      %v337 = vld [vmem:[%s246 + $0xf0] sm:$0xff]
      %v338 = vld [vmem:[%s246 + $0xf8] sm:$0xff]
      %v339 = vld [vmem:[%s2] sm:$0x1]
      %v341 = vlaneseq
      %v342 = vshrl.u32 %v341, 7
      %v343 = vsub.s32 0, %v342
      %v344 = vrot.slane %v339, %v343
      %v346 = vmul.f32 %v307, %v344
      %v347 = vmul.f32 %v308, %v344
      %v348 = vmul.f32 %v309, %v344
      %v349 = vmul.f32 %v310, %v344
      %v350 = vmul.f32 %v311, %v344
      %v351 = vmul.f32 %v312, %v344
      %v352 = vmul.f32 %v313, %v344
      %v353 = vmul.f32 %v314, %v344
      %v354 = vmul.f32 %v315, %v344
      %v355 = vmul.f32 %v316, %v344
      %v356 = vmul.f32 %v317, %v344
      %v357 = vmul.f32 %v318, %v344
      %v358 = vmul.f32 %v319, %v344
      %v359 = vmul.f32 %v320, %v344
      %v360 = vmul.f32 %v321, %v344
      %v361 = vmul.f32 %v322, %v344
      %v362 = vmul.f32 %v323, %v344
      %v363 = vmul.f32 %v324, %v344
      %v364 = vmul.f32 %v325, %v344
      %v365 = vmul.f32 %v326, %v344
      %v366 = vmul.f32 %v327, %v344
      %v367 = vmul.f32 %v328, %v344
      %v368 = vmul.f32 %v329, %v344
      %v369 = vmul.f32 %v330, %v344
      %v370 = vmul.f32 %v331, %v344
      %v371 = vmul.f32 %v332, %v344
      %v372 = vmul.f32 %v333, %v344
      %v373 = vmul.f32 %v334, %v344
      %v374 = vmul.f32 %v335, %v344
      %v375 = vmul.f32 %v336, %v344
      %v376 = vmul.f32 %v337, %v344
      %v377 = vmul.f32 %v338, %v344
      %v378 = vld [vmem:[%s3] sm:$0x1]
      %v380 = vlaneseq
      %v381 = vshrl.u32 %v380, 7
      %v382 = vsub.s32 0, %v381
      %v383 = vrot.slane %v378, %v382
      %v385 = vadd.f32 %v346, %v383
      %v386 = vadd.f32 %v347, %v383
      %v387 = vadd.f32 %v348, %v383
      %v388 = vadd.f32 %v349, %v383
      %v389 = vadd.f32 %v350, %v383
      %v390 = vadd.f32 %v351, %v383
      %v391 = vadd.f32 %v352, %v383
      %v392 = vadd.f32 %v353, %v383
      %v393 = vadd.f32 %v354, %v383
      %v394 = vadd.f32 %v355, %v383
      %v395 = vadd.f32 %v356, %v383
      %v396 = vadd.f32 %v357, %v383
      %v397 = vadd.f32 %v358, %v383
      %v398 = vadd.f32 %v359, %v383
      %v399 = vadd.f32 %v360, %v383
      %v400 = vadd.f32 %v361, %v383
      %v401 = vadd.f32 %v362, %v383
      %v402 = vadd.f32 %v363, %v383
      %v403 = vadd.f32 %v364, %v383
      %v404 = vadd.f32 %v365, %v383
      %v405 = vadd.f32 %v366, %v383
      %v406 = vadd.f32 %v367, %v383
      %v407 = vadd.f32 %v368, %v383
      %v408 = vadd.f32 %v369, %v383
      %v409 = vadd.f32 %v370, %v383
      %v410 = vadd.f32 %v371, %v383
      %v411 = vadd.f32 %v372, %v383
      %v412 = vadd.f32 %v373, %v383
      %v413 = vadd.f32 %v374, %v383
      %v414 = vadd.f32 %v375, %v383
      %v415 = vadd.f32 %v376, %v383
      %v416 = vadd.f32 %v377, %v383
      %v417 = vmax.f32 %v385, 0.0
      %v418 = vmax.f32 %v386, 0.0
      %v419 = vmax.f32 %v387, 0.0
      %v420 = vmax.f32 %v388, 0.0
      %v421 = vmax.f32 %v389, 0.0
      %v422 = vmax.f32 %v390, 0.0
      %v423 = vmax.f32 %v391, 0.0
      %v424 = vmax.f32 %v392, 0.0
      %v425 = vmax.f32 %v393, 0.0
      %v426 = vmax.f32 %v394, 0.0
      %v427 = vmax.f32 %v395, 0.0
      %v428 = vmax.f32 %v396, 0.0
      %v429 = vmax.f32 %v397, 0.0
      %v430 = vmax.f32 %v398, 0.0
      %v431 = vmax.f32 %v399, 0.0
      %v432 = vmax.f32 %v400, 0.0
      %v433 = vmax.f32 %v401, 0.0
      %v434 = vmax.f32 %v402, 0.0
      %v435 = vmax.f32 %v403, 0.0
      %v436 = vmax.f32 %v404, 0.0
      %v437 = vmax.f32 %v405, 0.0
      %v438 = vmax.f32 %v406, 0.0
      %v439 = vmax.f32 %v407, 0.0
      %v440 = vmax.f32 %v408, 0.0
      %v441 = vmax.f32 %v409, 0.0
      %v442 = vmax.f32 %v410, 0.0
      %v443 = vmax.f32 %v411, 0.0
      %v444 = vmax.f32 %v412, 0.0
      %v445 = vmax.f32 %v413, 0.0
      %v446 = vmax.f32 %v414, 0.0
      %v447 = vmax.f32 %v415, 0.0
      %v448 = vmax.f32 %v416, 0.0
      %v449 = vpack.c.bf16 %v418, %v417
      %v450 = vpack.c.bf16 %v420, %v419
      %v451 = vpack.c.bf16 %v422, %v421
      %v452 = vpack.c.bf16 %v424, %v423
      %v453 = vpack.c.bf16 %v426, %v425
      %v454 = vpack.c.bf16 %v428, %v427
      %v455 = vpack.c.bf16 %v430, %v429
      %v456 = vpack.c.bf16 %v432, %v431
      %v457 = vpack.c.bf16 %v434, %v433
      %v458 = vpack.c.bf16 %v436, %v435
      %v459 = vpack.c.bf16 %v438, %v437
      %v460 = vpack.c.bf16 %v440, %v439
      %v461 = vpack.c.bf16 %v442, %v441
      %v462 = vpack.c.bf16 %v444, %v443
      %v463 = vpack.c.bf16 %v446, %v445
      %v464 = vpack.c.bf16 %v448, %v447
      %v481 = vunpack.c.l.b16 %v449
      %v482 = vunpack.c.h.b16 %v449
      %v483 = vunpack.c.l.b16 %v450
      %v484 = vunpack.c.h.b16 %v450
      %v485 = vunpack.c.l.b16 %v451
      %v486 = vunpack.c.h.b16 %v451
      %v487 = vunpack.c.l.b16 %v452
      %v488 = vunpack.c.h.b16 %v452
      %v489 = vunpack.c.l.b16 %v453
      %v490 = vunpack.c.h.b16 %v453
      %v491 = vunpack.c.l.b16 %v454
      %v492 = vunpack.c.h.b16 %v454
      %v493 = vunpack.c.l.b16 %v455
      %v494 = vunpack.c.h.b16 %v455
      %v495 = vunpack.c.l.b16 %v456
      %v496 = vunpack.c.h.b16 %v456
      %v497 = vunpack.c.l.b16 %v457
      %v498 = vunpack.c.h.b16 %v457
      %v499 = vunpack.c.l.b16 %v458
      %v500 = vunpack.c.h.b16 %v458
      %v501 = vunpack.c.l.b16 %v459
      %v502 = vunpack.c.h.b16 %v459
      %v503 = vunpack.c.l.b16 %v460
      %v504 = vunpack.c.h.b16 %v460
      %v505 = vunpack.c.l.b16 %v461
      %v506 = vunpack.c.h.b16 %v461
      %v507 = vunpack.c.l.b16 %v462
      %v508 = vunpack.c.h.b16 %v462
      %v509 = vunpack.c.l.b16 %v463
      %v510 = vunpack.c.h.b16 %v463
      %v511 = vunpack.c.l.b16 %v464
      %v512 = vunpack.c.h.b16 %v464
      %v513 = vpack.c.b16 %v481, %v481
      %v514 = vpack.c.b16 %v482, %v482
      %v515 = vpack.c.b16 %v483, %v483
      %v516 = vpack.c.b16 %v484, %v484
      %v517 = vpack.c.b16 %v485, %v485
      %v518 = vpack.c.b16 %v486, %v486
      %v519 = vpack.c.b16 %v487, %v487
      %v520 = vpack.c.b16 %v488, %v488
      %v521 = vpack.c.b16 %v489, %v489
      %v522 = vpack.c.b16 %v490, %v490
      %v523 = vpack.c.b16 %v491, %v491
      %v524 = vpack.c.b16 %v492, %v492
      %v525 = vpack.c.b16 %v493, %v493
      %v526 = vpack.c.b16 %v494, %v494
      %v527 = vpack.c.b16 %v495, %v495
      %v528 = vpack.c.b16 %v496, %v496
      %v529 = vpack.c.b16 %v497, %v497
      %v530 = vpack.c.b16 %v498, %v498
      %v531 = vpack.c.b16 %v499, %v499
      %v532 = vpack.c.b16 %v500, %v500
      %v533 = vpack.c.b16 %v501, %v501
      %v534 = vpack.c.b16 %v502, %v502
      %v535 = vpack.c.b16 %v503, %v503
      %v536 = vpack.c.b16 %v504, %v504
      %v537 = vpack.c.b16 %v505, %v505
      %v538 = vpack.c.b16 %v506, %v506
      %v539 = vpack.c.b16 %v507, %v507
      %v540 = vpack.c.b16 %v508, %v508
      %v541 = vpack.c.b16 %v509, %v509
      %v542 = vpack.c.b16 %v510, %v510
      %v543 = vpack.c.b16 %v511, %v511
      %v544 = vpack.c.b16 %v512, %v512
      %vm545 = vsmask.f32 256
      %vm546 = vsmask.f32 4368
      %vm547 = vmor %vm545, %vm546
      %v549 = vshrl.u32 %v513, 16
      %v551 = vrot.slane %v549, 7
      %v552 = vshll.u32 %v513, 16
      %v554 = vor.u32 %v551, %v552
      %v555 = vrot.slane %v551, 4
      %v557 = vshrl.u32 %v514, 16
      %v559 = vrot.slane %v557, 7
      %v560 = vshll.u32 %v514, 16
      %v562 = vor.u32 %v559, %v560
      %v563 = vsel %vm547, %v555, %v562
      %v564 = vrot.slane %v559, 4
      %v566 = vshrl.u32 %v515, 16
      %v568 = vrot.slane %v566, 7
      %v569 = vshll.u32 %v515, 16
      %v571 = vor.u32 %v568, %v569
      %v572 = vrot.slane %v568, 4
      %v574 = vshrl.u32 %v516, 16
      %v576 = vrot.slane %v574, 7
      %v577 = vshll.u32 %v516, 16
      %v579 = vor.u32 %v576, %v577
      %v580 = vsel %vm547, %v572, %v579
      %v581 = vrot.slane %v576, 4
      %v583 = vshrl.u32 %v517, 16
      %v585 = vrot.slane %v583, 7
      %v586 = vshll.u32 %v517, 16
      %v588 = vor.u32 %v585, %v586
      %v589 = vrot.slane %v585, 4
      %v591 = vshrl.u32 %v518, 16
      %v593 = vrot.slane %v591, 7
      %v594 = vshll.u32 %v518, 16
      %v596 = vor.u32 %v593, %v594
      %v597 = vsel %vm547, %v589, %v596
      %v598 = vrot.slane %v593, 4
      %v600 = vshrl.u32 %v519, 16
      %v602 = vrot.slane %v600, 7
      %v603 = vshll.u32 %v519, 16
      %v605 = vor.u32 %v602, %v603
      %v606 = vrot.slane %v602, 4
      %v608 = vshrl.u32 %v520, 16
      %v610 = vrot.slane %v608, 7
      %v611 = vshll.u32 %v520, 16
      %v613 = vor.u32 %v610, %v611
      %v614 = vsel %vm547, %v606, %v613
      %v615 = vrot.slane %v610, 4
      %v617 = vshrl.u32 %v521, 16
      %v619 = vrot.slane %v617, 7
      %v620 = vshll.u32 %v521, 16
      %v622 = vor.u32 %v619, %v620
      %v623 = vrot.slane %v619, 4
      %v625 = vshrl.u32 %v522, 16
      %v627 = vrot.slane %v625, 7
      %v628 = vshll.u32 %v522, 16
      %v630 = vor.u32 %v627, %v628
      %v631 = vsel %vm547, %v623, %v630
      %v632 = vrot.slane %v627, 4
      %v634 = vshrl.u32 %v523, 16
      %v636 = vrot.slane %v634, 7
      %v637 = vshll.u32 %v523, 16
      %v639 = vor.u32 %v636, %v637
      %v640 = vrot.slane %v636, 4
      %v642 = vshrl.u32 %v524, 16
      %v644 = vrot.slane %v642, 7
      %v645 = vshll.u32 %v524, 16
      %v647 = vor.u32 %v644, %v645
      %v648 = vsel %vm547, %v640, %v647
      %v649 = vrot.slane %v644, 4
      %v651 = vshrl.u32 %v525, 16
      %v653 = vrot.slane %v651, 7
      %v654 = vshll.u32 %v525, 16
      %v656 = vor.u32 %v653, %v654
      %v657 = vrot.slane %v653, 4
      %v659 = vshrl.u32 %v526, 16
      %v661 = vrot.slane %v659, 7
      %v662 = vshll.u32 %v526, 16
      %v664 = vor.u32 %v661, %v662
      %v665 = vsel %vm547, %v657, %v664
      %v666 = vrot.slane %v661, 4
      %v668 = vshrl.u32 %v527, 16
      %v670 = vrot.slane %v668, 7
      %v671 = vshll.u32 %v527, 16
      %v673 = vor.u32 %v670, %v671
      %v674 = vrot.slane %v670, 4
      %v676 = vshrl.u32 %v528, 16
      %v678 = vrot.slane %v676, 7
      %v679 = vshll.u32 %v528, 16
      %v681 = vor.u32 %v678, %v679
      %v682 = vsel %vm547, %v674, %v681
      %v683 = vrot.slane %v678, 4
      %v685 = vshrl.u32 %v529, 16
      %v687 = vrot.slane %v685, 7
      %v688 = vshll.u32 %v529, 16
      %v690 = vor.u32 %v687, %v688
      %v691 = vrot.slane %v687, 4
      %v693 = vshrl.u32 %v530, 16
      %v695 = vrot.slane %v693, 7
      %v696 = vshll.u32 %v530, 16
      %v698 = vor.u32 %v695, %v696
      %v699 = vsel %vm547, %v691, %v698
      %v700 = vrot.slane %v695, 4
      %v702 = vshrl.u32 %v531, 16
      %v704 = vrot.slane %v702, 7
      %v705 = vshll.u32 %v531, 16
      %v707 = vor.u32 %v704, %v705
      %v708 = vrot.slane %v704, 4
      %v710 = vshrl.u32 %v532, 16
      %v712 = vrot.slane %v710, 7
      %v713 = vshll.u32 %v532, 16
      %v715 = vor.u32 %v712, %v713
      %v716 = vsel %vm547, %v708, %v715
      %v717 = vrot.slane %v712, 4
      %v719 = vshrl.u32 %v533, 16
      %v721 = vrot.slane %v719, 7
      %v722 = vshll.u32 %v533, 16
      %v724 = vor.u32 %v721, %v722
      %v725 = vrot.slane %v721, 4
      %v727 = vshrl.u32 %v534, 16
      %v729 = vrot.slane %v727, 7
      %v730 = vshll.u32 %v534, 16
      %v732 = vor.u32 %v729, %v730
      %v733 = vsel %vm547, %v725, %v732
      %v734 = vrot.slane %v729, 4
      %v736 = vshrl.u32 %v535, 16
      %v738 = vrot.slane %v736, 7
      %v739 = vshll.u32 %v535, 16
      %v741 = vor.u32 %v738, %v739
      %v742 = vrot.slane %v738, 4
      %v744 = vshrl.u32 %v536, 16
      %v746 = vrot.slane %v744, 7
      %v747 = vshll.u32 %v536, 16
      %v749 = vor.u32 %v746, %v747
      %v750 = vsel %vm547, %v742, %v749
      %v751 = vrot.slane %v746, 4
      %v753 = vshrl.u32 %v537, 16
      %v755 = vrot.slane %v753, 7
      %v756 = vshll.u32 %v537, 16
      %v758 = vor.u32 %v755, %v756
      %v759 = vrot.slane %v755, 4
      %v761 = vshrl.u32 %v538, 16
      %v763 = vrot.slane %v761, 7
      %v764 = vshll.u32 %v538, 16
      %v766 = vor.u32 %v763, %v764
      %v767 = vsel %vm547, %v759, %v766
      %v768 = vrot.slane %v763, 4
      %v770 = vshrl.u32 %v539, 16
      %v772 = vrot.slane %v770, 7
      %v773 = vshll.u32 %v539, 16
      %v775 = vor.u32 %v772, %v773
      %v776 = vrot.slane %v772, 4
      %v778 = vshrl.u32 %v540, 16
      %v780 = vrot.slane %v778, 7
      %v781 = vshll.u32 %v540, 16
      %v783 = vor.u32 %v780, %v781
      %v784 = vsel %vm547, %v776, %v783
      %v785 = vrot.slane %v780, 4
      %v787 = vshrl.u32 %v541, 16
      %v789 = vrot.slane %v787, 7
      %v790 = vshll.u32 %v541, 16
      %v792 = vor.u32 %v789, %v790
      %v793 = vrot.slane %v789, 4
      %v795 = vshrl.u32 %v542, 16
      %v797 = vrot.slane %v795, 7
      %v798 = vshll.u32 %v542, 16
      %v800 = vor.u32 %v797, %v798
      %v801 = vsel %vm547, %v793, %v800
      %v802 = vrot.slane %v797, 4
      %v804 = vshrl.u32 %v543, 16
      %v806 = vrot.slane %v804, 7
      %v807 = vshll.u32 %v543, 16
      %v809 = vor.u32 %v806, %v807
      %v810 = vrot.slane %v806, 4
      %v812 = vshrl.u32 %v544, 16
      %v814 = vrot.slane %v812, 7
      %v815 = vshll.u32 %v544, 16
      %v817 = vor.u32 %v814, %v815
      %v818 = vsel %vm547, %v810, %v817
      %v819 = vrot.slane %v814, 4
      %s868 = scalar_lea.vmem [#allocation2], 12
      %vm869 = vcmask 1043456
      %vm870 = vsmask.f32 7938
      %vm871 = vmand %vm869, %vm870
      %v872 = vld [vmem:[%s868] sm:$0xf]
      %v873 = vsel %vm871, %v554, %v872
      %874 = vst [vmem:[%s868] sm:$0xf] %v873
      %875 = vst [vmem:[%s868 + $0x4] sm:$0xf] %v563
      %vm876 = vcmask 1040384
      %vm877 = vmand %vm876, %vm545
      %v878 = vld [vmem:[%s868 + $0x8] sm:$0x1]
      %v879 = vsel %vm877, %v564, %v878
      %880 = vst [vmem:[%s868 + $0x8] sm:$0x1] %v879
      %v881 = vld [vmem:[%s868 + $0xc] sm:$0xf]
      %v882 = vsel %vm871, %v571, %v881
      %883 = vst [vmem:[%s868 + $0xc] sm:$0xf] %v882
      %884 = vst [vmem:[%s868 + $0x10] sm:$0xf] %v580
      %v885 = vld [vmem:[%s868 + $0x14] sm:$0x1]
      %v886 = vsel %vm877, %v581, %v885
      %887 = vst [vmem:[%s868 + $0x14] sm:$0x1] %v886
      %v888 = vld [vmem:[%s868 + $0x18] sm:$0xf]
      %v889 = vsel %vm871, %v588, %v888
      %890 = vst [vmem:[%s868 + $0x18] sm:$0xf] %v889
      %891 = vst [vmem:[%s868 + $0x1c] sm:$0xf] %v597
      %v892 = vld [vmem:[%s868 + $0x20] sm:$0x1]
      %v893 = vsel %vm877, %v598, %v892
      %894 = vst [vmem:[%s868 + $0x20] sm:$0x1] %v893
      %v895 = vld [vmem:[%s868 + $0x24] sm:$0xf]
      %v896 = vsel %vm871, %v605, %v895
      %897 = vst [vmem:[%s868 + $0x24] sm:$0xf] %v896
      %898 = vst [vmem:[%s868 + $0x28] sm:$0xf] %v614
      %v899 = vld [vmem:[%s868 + $0x2c] sm:$0x1]
      %v900 = vsel %vm877, %v615, %v899
      %901 = vst [vmem:[%s868 + $0x2c] sm:$0x1] %v900
      %v902 = vld [vmem:[%s868 + $0x30] sm:$0xf]
      %v903 = vsel %vm871, %v622, %v902
      %904 = vst [vmem:[%s868 + $0x30] sm:$0xf] %v903
      %905 = vst [vmem:[%s868 + $0x34] sm:$0xf] %v631
      %v906 = vld [vmem:[%s868 + $0x38] sm:$0x1]
      %v907 = vsel %vm877, %v632, %v906
      %908 = vst [vmem:[%s868 + $0x38] sm:$0x1] %v907
      %v909 = vld [vmem:[%s868 + $0x3c] sm:$0xf]
      %v910 = vsel %vm871, %v639, %v909
      %911 = vst [vmem:[%s868 + $0x3c] sm:$0xf] %v910
      %912 = vst [vmem:[%s868 + $0x40] sm:$0xf] %v648
      %v913 = vld [vmem:[%s868 + $0x44] sm:$0x1]
      %v914 = vsel %vm877, %v649, %v913
      %915 = vst [vmem:[%s868 + $0x44] sm:$0x1] %v914
      %v916 = vld [vmem:[%s868 + $0x48] sm:$0xf]
      %v917 = vsel %vm871, %v656, %v916
      %918 = vst [vmem:[%s868 + $0x48] sm:$0xf] %v917
      %919 = vst [vmem:[%s868 + $0x4c] sm:$0xf] %v665
      %v920 = vld [vmem:[%s868 + $0x50] sm:$0x1]
      %v921 = vsel %vm877, %v666, %v920
      %922 = vst [vmem:[%s868 + $0x50] sm:$0x1] %v921
      %v923 = vld [vmem:[%s868 + $0x54] sm:$0xf]
      %v924 = vsel %vm871, %v673, %v923
      %925 = vst [vmem:[%s868 + $0x54] sm:$0xf] %v924
      %926 = vst [vmem:[%s868 + $0x58] sm:$0xf] %v682
      %v927 = vld [vmem:[%s868 + $0x5c] sm:$0x1]
      %v928 = vsel %vm877, %v683, %v927
      %929 = vst [vmem:[%s868 + $0x5c] sm:$0x1] %v928
      %v930 = vld [vmem:[%s868 + $0x60] sm:$0xf]
      %v931 = vsel %vm871, %v690, %v930
      %932 = vst [vmem:[%s868 + $0x60] sm:$0xf] %v931
      %933 = vst [vmem:[%s868 + $0x64] sm:$0xf] %v699
      %v934 = vld [vmem:[%s868 + $0x68] sm:$0x1]
      %v935 = vsel %vm877, %v700, %v934
      %936 = vst [vmem:[%s868 + $0x68] sm:$0x1] %v935
      %v937 = vld [vmem:[%s868 + $0x6c] sm:$0xf]
      %v938 = vsel %vm871, %v707, %v937
      %939 = vst [vmem:[%s868 + $0x6c] sm:$0xf] %v938
      %940 = vst [vmem:[%s868 + $0x70] sm:$0xf] %v716
      %v941 = vld [vmem:[%s868 + $0x74] sm:$0x1]
      %v942 = vsel %vm877, %v717, %v941
      %943 = vst [vmem:[%s868 + $0x74] sm:$0x1] %v942
      %v944 = vld [vmem:[%s868 + $0x78] sm:$0xf]
      %v945 = vsel %vm871, %v724, %v944
      %946 = vst [vmem:[%s868 + $0x78] sm:$0xf] %v945
      %947 = vst [vmem:[%s868 + $0x7c] sm:$0xf] %v733
      %v948 = vld [vmem:[%s868 + $0x80] sm:$0x1]
      %v949 = vsel %vm877, %v734, %v948
      %950 = vst [vmem:[%s868 + $0x80] sm:$0x1] %v949
      %v951 = vld [vmem:[%s868 + $0x84] sm:$0xf]
      %v952 = vsel %vm871, %v741, %v951
      %953 = vst [vmem:[%s868 + $0x84] sm:$0xf] %v952
      %954 = vst [vmem:[%s868 + $0x88] sm:$0xf] %v750
      %v955 = vld [vmem:[%s868 + $0x8c] sm:$0x1]
      %v956 = vsel %vm877, %v751, %v955
      %957 = vst [vmem:[%s868 + $0x8c] sm:$0x1] %v956
      %v958 = vld [vmem:[%s868 + $0x90] sm:$0xf]
      %v959 = vsel %vm871, %v758, %v958
      %960 = vst [vmem:[%s868 + $0x90] sm:$0xf] %v959
      %961 = vst [vmem:[%s868 + $0x94] sm:$0xf] %v767
      %v962 = vld [vmem:[%s868 + $0x98] sm:$0x1]
      %v963 = vsel %vm877, %v768, %v962
      %964 = vst [vmem:[%s868 + $0x98] sm:$0x1] %v963
      %v965 = vld [vmem:[%s868 + $0x9c] sm:$0xf]
      %v966 = vsel %vm871, %v775, %v965
      %967 = vst [vmem:[%s868 + $0x9c] sm:$0xf] %v966
      %968 = vst [vmem:[%s868 + $0xa0] sm:$0xf] %v784
      %v969 = vld [vmem:[%s868 + $0xa4] sm:$0x1]
      %v970 = vsel %vm877, %v785, %v969
      %971 = vst [vmem:[%s868 + $0xa4] sm:$0x1] %v970
      %v972 = vld [vmem:[%s868 + $0xa8] sm:$0xf]
      %v973 = vsel %vm871, %v792, %v972
      %974 = vst [vmem:[%s868 + $0xa8] sm:$0xf] %v973
      %975 = vst [vmem:[%s868 + $0xac] sm:$0xf] %v801
      %v976 = vld [vmem:[%s868 + $0xb0] sm:$0x1]
      %v977 = vsel %vm877, %v802, %v976
      %978 = vst [vmem:[%s868 + $0xb0] sm:$0x1] %v977
      %v979 = vld [vmem:[%s868 + $0xb4] sm:$0xf]
      %v980 = vsel %vm871, %v809, %v979
      %981 = vst [vmem:[%s868 + $0xb4] sm:$0xf] %v980
      %982 = vst [vmem:[%s868 + $0xb8] sm:$0xf] %v818
      %v983 = vld [vmem:[%s868 + $0xbc] sm:$0x1]
      %v984 = vsel %vm877, %v819, %v983
      %985 = vst [vmem:[%s868 + $0xbc] sm:$0x1] %v984
      %v986 = vld [vmem:[#allocation2] sm:$0xf]
      %v987 = vld [vmem:[#allocation2 + $0x4] sm:$0xf]
      %v988 = vld [vmem:[#allocation2 + $0xc] sm:$0xf]
      %v989 = vld [vmem:[#allocation2 + $0x10] sm:$0xf]
      %v990 = vld [vmem:[#allocation2 + $0x18] sm:$0xf]
      %v991 = vld [vmem:[#allocation2 + $0x1c] sm:$0xf]
      %v992 = vld [vmem:[#allocation2 + $0x24] sm:$0xf]
      %v993 = vld [vmem:[#allocation2 + $0x28] sm:$0xf]
      %v994 = vld [vmem:[#allocation2 + $0x30] sm:$0xf]
      %v995 = vld [vmem:[#allocation2 + $0x34] sm:$0xf]
      %v996 = vld [vmem:[#allocation2 + $0x3c] sm:$0xf]
      %v997 = vld [vmem:[#allocation2 + $0x40] sm:$0xf]
      %v998 = vld [vmem:[#allocation2 + $0x48] sm:$0xf]
      %v999 = vld [vmem:[#allocation2 + $0x4c] sm:$0xf]
      %v1000 = vld [vmem:[#allocation2 + $0x54] sm:$0xf]
      %v1001 = vld [vmem:[#allocation2 + $0x58] sm:$0xf]
      %v1002 = vld [vmem:[#allocation2 + $0x60] sm:$0xf]
      %v1003 = vld [vmem:[#allocation2 + $0x64] sm:$0xf]
      %v1004 = vld [vmem:[#allocation2 + $0x6c] sm:$0xf]
      %v1005 = vld [vmem:[#allocation2 + $0x70] sm:$0xf]
      %v1006 = vld [vmem:[#allocation2 + $0x78] sm:$0xf]
      %v1007 = vld [vmem:[#allocation2 + $0x7c] sm:$0xf]
      %v1008 = vld [vmem:[#allocation2 + $0x84] sm:$0xf]
      %v1009 = vld [vmem:[#allocation2 + $0x88] sm:$0xf]
      %v1010 = vld [vmem:[#allocation2 + $0x90] sm:$0xf]
      %v1011 = vld [vmem:[#allocation2 + $0x94] sm:$0xf]
      %v1012 = vld [vmem:[#allocation2 + $0x9c] sm:$0xf]
      %v1013 = vld [vmem:[#allocation2 + $0xa0] sm:$0xf]
      %v1014 = vld [vmem:[#allocation2 + $0xa8] sm:$0xf]
      %v1015 = vld [vmem:[#allocation2 + $0xac] sm:$0xf]
      %v1016 = vld [vmem:[#allocation2 + $0xb4] sm:$0xf]
      %v1017 = vld [vmem:[#allocation2 + $0xb8] sm:$0xf]
      %v1018 = vld [vmem:[%s1] sm:$0xf]
      %v1019 = vld [vmem:[%s1 + $0x4] sm:$0xf]
      %v1020 = vld [vmem:[%s1 + $0x8] sm:$0xf]
      %v1021 = vld [vmem:[%s1 + $0xc] sm:$0xf]
      %v1022 = vld [vmem:[%s1 + $0x10] sm:$0xf]
      %v1023 = vld [vmem:[%s1 + $0x14] sm:$0xf]
      %v1024 = vld [vmem:[%s1 + $0x18] sm:$0xf]
      %v1025 = vld [vmem:[%s1 + $0x1c] sm:$0xf]
      %v1026 = vld [vmem:[%s1 + $0x20] sm:$0xf]
      %v1027 = vld [vmem:[%s1 + $0x24] sm:$0xf]
      %v1028 = vld [vmem:[%s1 + $0x28] sm:$0xf]
      %v1029 = vld [vmem:[%s1 + $0x2c] sm:$0xf]
      %v1030 = vld [vmem:[%s1 + $0x30] sm:$0xf]
      %v1031 = vld [vmem:[%s1 + $0x34] sm:$0xf]
      %v1032 = vld [vmem:[%s1 + $0x38] sm:$0xf]
      %v1033 = vld [vmem:[%s1 + $0x3c] sm:$0xf]
      %v1034 = vld [vmem:[#allocation2 + $0x8] sm:$0x1]
      %v1035 = vld [vmem:[#allocation2 + $0x14] sm:$0x1]
      %v1036 = vld [vmem:[#allocation2 + $0x20] sm:$0x1]
      %v1037 = vld [vmem:[#allocation2 + $0x2c] sm:$0x1]
      %v1038 = vld [vmem:[#allocation2 + $0x38] sm:$0x1]
      %v1039 = vld [vmem:[#allocation2 + $0x44] sm:$0x1]
      %v1040 = vld [vmem:[#allocation2 + $0x50] sm:$0x1]
      %v1041 = vld [vmem:[#allocation2 + $0x5c] sm:$0x1]
      %v1042 = vld [vmem:[#allocation2 + $0x68] sm:$0x1]
      %v1043 = vld [vmem:[#allocation2 + $0x74] sm:$0x1]
      %v1044 = vld [vmem:[#allocation2 + $0x80] sm:$0x1]
      %v1045 = vld [vmem:[#allocation2 + $0x8c] sm:$0x1]
      %v1046 = vld [vmem:[#allocation2 + $0x98] sm:$0x1]
      %v1047 = vld [vmem:[#allocation2 + $0xa4] sm:$0x1]
      %v1048 = vld [vmem:[#allocation2 + $0xb0] sm:$0x1]
      %v1049 = vld [vmem:[#allocation2 + $0xbc] sm:$0x1]
      %vm1050 = vsmask.f32 3328
      %vm1051 = vsmask.f32 7440
      %vm1052 = vmor %vm1050, %vm1051
      %v1054 = vshrl.u32 %v986, 16
      %v1056 = vrot.slane %v1054, 4
      %v1057 = vshll.u32 %v986, 16
      %v1059 = vrot.slane %v1057, 5
      %v1060 = vor.u32 %v1056, %v1059
      %v1061 = vrot.slane %v1060, 4
      %v1063 = vshll.u32 %v987, 16
      %v1065 = vrot.slane %v1063, 5
      %v1066 = vsel %vm1052, %v1061, %v1065
      %v1067 = vshrl.u32 %v987, 16
      %v1069 = vrot.slane %v1067, 4
      %v1070 = vor.u32 %v1069, %v1065
      %v1071 = vrot.slane %v1070, 4
      %v1073 = vshll.u32 %v1034, 16
      %v1075 = vrot.slane %v1073, 5
      %v1076 = vsel %vm1052, %v1071, %v1075
      %v1078 = vshrl.u32 %v988, 16
      %v1080 = vrot.slane %v1078, 4
      %v1081 = vshll.u32 %v988, 16
      %v1083 = vrot.slane %v1081, 5
      %v1084 = vor.u32 %v1080, %v1083
      %v1085 = vrot.slane %v1084, 4
      %v1087 = vshll.u32 %v989, 16
      %v1089 = vrot.slane %v1087, 5
      %v1090 = vsel %vm1052, %v1085, %v1089
      %v1091 = vshrl.u32 %v989, 16
      %v1093 = vrot.slane %v1091, 4
      %v1094 = vor.u32 %v1093, %v1089
      %v1095 = vrot.slane %v1094, 4
      %v1097 = vshll.u32 %v1035, 16
      %v1099 = vrot.slane %v1097, 5
      %v1100 = vsel %vm1052, %v1095, %v1099
      %v1102 = vshrl.u32 %v990, 16
      %v1104 = vrot.slane %v1102, 4
      %v1105 = vshll.u32 %v990, 16
      %v1107 = vrot.slane %v1105, 5
      %v1108 = vor.u32 %v1104, %v1107
      %v1109 = vrot.slane %v1108, 4
      %v1111 = vshll.u32 %v991, 16
      %v1113 = vrot.slane %v1111, 5
      %v1114 = vsel %vm1052, %v1109, %v1113
      %v1115 = vshrl.u32 %v991, 16
      %v1117 = vrot.slane %v1115, 4
      %v1118 = vor.u32 %v1117, %v1113
      %v1119 = vrot.slane %v1118, 4
      %v1121 = vshll.u32 %v1036, 16
      %v1123 = vrot.slane %v1121, 5
      %v1124 = vsel %vm1052, %v1119, %v1123
      %v1126 = vshrl.u32 %v992, 16
      %v1128 = vrot.slane %v1126, 4
      %v1129 = vshll.u32 %v992, 16
      %v1131 = vrot.slane %v1129, 5
      %v1132 = vor.u32 %v1128, %v1131
      %v1133 = vrot.slane %v1132, 4
      %v1135 = vshll.u32 %v993, 16
      %v1137 = vrot.slane %v1135, 5
      %v1138 = vsel %vm1052, %v1133, %v1137
      %v1139 = vshrl.u32 %v993, 16
      %v1141 = vrot.slane %v1139, 4
      %v1142 = vor.u32 %v1141, %v1137
      %v1143 = vrot.slane %v1142, 4
      %v1145 = vshll.u32 %v1037, 16
      %v1147 = vrot.slane %v1145, 5
      %v1148 = vsel %vm1052, %v1143, %v1147
      %v1150 = vshrl.u32 %v994, 16
      %v1152 = vrot.slane %v1150, 4
      %v1153 = vshll.u32 %v994, 16
      %v1155 = vrot.slane %v1153, 5
      %v1156 = vor.u32 %v1152, %v1155
      %v1157 = vrot.slane %v1156, 4
      %v1159 = vshll.u32 %v995, 16
      %v1161 = vrot.slane %v1159, 5
      %v1162 = vsel %vm1052, %v1157, %v1161
      %v1163 = vshrl.u32 %v995, 16
      %v1165 = vrot.slane %v1163, 4
      %v1166 = vor.u32 %v1165, %v1161
      %v1167 = vrot.slane %v1166, 4
      %v1169 = vshll.u32 %v1038, 16
      %v1171 = vrot.slane %v1169, 5
      %v1172 = vsel %vm1052, %v1167, %v1171
      %v1174 = vshrl.u32 %v996, 16
      %v1176 = vrot.slane %v1174, 4
      %v1177 = vshll.u32 %v996, 16
      %v1179 = vrot.slane %v1177, 5
      %v1180 = vor.u32 %v1176, %v1179
      %v1181 = vrot.slane %v1180, 4
      %v1183 = vshll.u32 %v997, 16
      %v1185 = vrot.slane %v1183, 5
      %v1186 = vsel %vm1052, %v1181, %v1185
      %v1187 = vshrl.u32 %v997, 16
      %v1189 = vrot.slane %v1187, 4
      %v1190 = vor.u32 %v1189, %v1185
      %v1191 = vrot.slane %v1190, 4
      %v1193 = vshll.u32 %v1039, 16
      %v1195 = vrot.slane %v1193, 5
      %v1196 = vsel %vm1052, %v1191, %v1195
      %v1198 = vshrl.u32 %v998, 16
      %v1200 = vrot.slane %v1198, 4
      %v1201 = vshll.u32 %v998, 16
      %v1203 = vrot.slane %v1201, 5
      %v1204 = vor.u32 %v1200, %v1203
      %v1205 = vrot.slane %v1204, 4
      %v1207 = vshll.u32 %v999, 16
      %v1209 = vrot.slane %v1207, 5
      %v1210 = vsel %vm1052, %v1205, %v1209
      %v1211 = vshrl.u32 %v999, 16
      %v1213 = vrot.slane %v1211, 4
      %v1214 = vor.u32 %v1213, %v1209
      %v1215 = vrot.slane %v1214, 4
      %v1217 = vshll.u32 %v1040, 16
      %v1219 = vrot.slane %v1217, 5
      %v1220 = vsel %vm1052, %v1215, %v1219
      %v1222 = vshrl.u32 %v1000, 16
      %v1224 = vrot.slane %v1222, 4
      %v1225 = vshll.u32 %v1000, 16
      %v1227 = vrot.slane %v1225, 5
      %v1228 = vor.u32 %v1224, %v1227
      %v1229 = vrot.slane %v1228, 4
      %v1231 = vshll.u32 %v1001, 16
      %v1233 = vrot.slane %v1231, 5
      %v1234 = vsel %vm1052, %v1229, %v1233
      %v1235 = vshrl.u32 %v1001, 16
      %v1237 = vrot.slane %v1235, 4
      %v1238 = vor.u32 %v1237, %v1233
      %v1239 = vrot.slane %v1238, 4
      %v1241 = vshll.u32 %v1041, 16
      %v1243 = vrot.slane %v1241, 5
      %v1244 = vsel %vm1052, %v1239, %v1243
      %v1246 = vshrl.u32 %v1002, 16
      %v1248 = vrot.slane %v1246, 4
      %v1249 = vshll.u32 %v1002, 16
      %v1251 = vrot.slane %v1249, 5
      %v1252 = vor.u32 %v1248, %v1251
      %v1253 = vrot.slane %v1252, 4
      %v1255 = vshll.u32 %v1003, 16
      %v1257 = vrot.slane %v1255, 5
      %v1258 = vsel %vm1052, %v1253, %v1257
      %v1259 = vshrl.u32 %v1003, 16
      %v1261 = vrot.slane %v1259, 4
      %v1262 = vor.u32 %v1261, %v1257
      %v1263 = vrot.slane %v1262, 4
      %v1265 = vshll.u32 %v1042, 16
      %v1267 = vrot.slane %v1265, 5
      %v1268 = vsel %vm1052, %v1263, %v1267
      %v1270 = vshrl.u32 %v1004, 16
      %v1272 = vrot.slane %v1270, 4
      %v1273 = vshll.u32 %v1004, 16
      %v1275 = vrot.slane %v1273, 5
      %v1276 = vor.u32 %v1272, %v1275
      %v1277 = vrot.slane %v1276, 4
      %v1279 = vshll.u32 %v1005, 16
      %v1281 = vrot.slane %v1279, 5
      %v1282 = vsel %vm1052, %v1277, %v1281
      %v1283 = vshrl.u32 %v1005, 16
      %v1285 = vrot.slane %v1283, 4
      %v1286 = vor.u32 %v1285, %v1281
      %v1287 = vrot.slane %v1286, 4
      %v1289 = vshll.u32 %v1043, 16
      %v1291 = vrot.slane %v1289, 5
      %v1292 = vsel %vm1052, %v1287, %v1291
      %v1294 = vshrl.u32 %v1006, 16
      %v1296 = vrot.slane %v1294, 4
      %v1297 = vshll.u32 %v1006, 16
      %v1299 = vrot.slane %v1297, 5
      %v1300 = vor.u32 %v1296, %v1299
      %v1301 = vrot.slane %v1300, 4
      %v1303 = vshll.u32 %v1007, 16
      %v1305 = vrot.slane %v1303, 5
      %v1306 = vsel %vm1052, %v1301, %v1305
      %v1307 = vshrl.u32 %v1007, 16
      %v1309 = vrot.slane %v1307, 4
      %v1310 = vor.u32 %v1309, %v1305
      %v1311 = vrot.slane %v1310, 4
      %v1313 = vshll.u32 %v1044, 16
      %v1315 = vrot.slane %v1313, 5
      %v1316 = vsel %vm1052, %v1311, %v1315
      %v1318 = vshrl.u32 %v1008, 16
      %v1320 = vrot.slane %v1318, 4
      %v1321 = vshll.u32 %v1008, 16
      %v1323 = vrot.slane %v1321, 5
      %v1324 = vor.u32 %v1320, %v1323
      %v1325 = vrot.slane %v1324, 4
      %v1327 = vshll.u32 %v1009, 16
      %v1329 = vrot.slane %v1327, 5
      %v1330 = vsel %vm1052, %v1325, %v1329
      %v1331 = vshrl.u32 %v1009, 16
      %v1333 = vrot.slane %v1331, 4
      %v1334 = vor.u32 %v1333, %v1329
      %v1335 = vrot.slane %v1334, 4
      %v1337 = vshll.u32 %v1045, 16
      %v1339 = vrot.slane %v1337, 5
      %v1340 = vsel %vm1052, %v1335, %v1339
      %v1342 = vshrl.u32 %v1010, 16
      %v1344 = vrot.slane %v1342, 4
      %v1345 = vshll.u32 %v1010, 16
      %v1347 = vrot.slane %v1345, 5
      %v1348 = vor.u32 %v1344, %v1347
      %v1349 = vrot.slane %v1348, 4
      %v1351 = vshll.u32 %v1011, 16
      %v1353 = vrot.slane %v1351, 5
      %v1354 = vsel %vm1052, %v1349, %v1353
      %v1355 = vshrl.u32 %v1011, 16
      %v1357 = vrot.slane %v1355, 4
      %v1358 = vor.u32 %v1357, %v1353
      %v1359 = vrot.slane %v1358, 4
      %v1361 = vshll.u32 %v1046, 16
      %v1363 = vrot.slane %v1361, 5
      %v1364 = vsel %vm1052, %v1359, %v1363
      %v1366 = vshrl.u32 %v1012, 16
      %v1368 = vrot.slane %v1366, 4
      %v1369 = vshll.u32 %v1012, 16
      %v1371 = vrot.slane %v1369, 5
      %v1372 = vor.u32 %v1368, %v1371
      %v1373 = vrot.slane %v1372, 4
      %v1375 = vshll.u32 %v1013, 16
      %v1377 = vrot.slane %v1375, 5
      %v1378 = vsel %vm1052, %v1373, %v1377
      %v1379 = vshrl.u32 %v1013, 16
      %v1381 = vrot.slane %v1379, 4
      %v1382 = vor.u32 %v1381, %v1377
      %v1383 = vrot.slane %v1382, 4
      %v1385 = vshll.u32 %v1047, 16
      %v1387 = vrot.slane %v1385, 5
      %v1388 = vsel %vm1052, %v1383, %v1387
      %v1390 = vshrl.u32 %v1014, 16
      %v1392 = vrot.slane %v1390, 4
      %v1393 = vshll.u32 %v1014, 16
      %v1395 = vrot.slane %v1393, 5
      %v1396 = vor.u32 %v1392, %v1395
      %v1397 = vrot.slane %v1396, 4
      %v1399 = vshll.u32 %v1015, 16
      %v1401 = vrot.slane %v1399, 5
      %v1402 = vsel %vm1052, %v1397, %v1401
      %v1403 = vshrl.u32 %v1015, 16
      %v1405 = vrot.slane %v1403, 4
      %v1406 = vor.u32 %v1405, %v1401
      %v1407 = vrot.slane %v1406, 4
      %v1409 = vshll.u32 %v1048, 16
      %v1411 = vrot.slane %v1409, 5
      %v1412 = vsel %vm1052, %v1407, %v1411
      %v1414 = vshrl.u32 %v1016, 16
      %v1416 = vrot.slane %v1414, 4
      %v1417 = vshll.u32 %v1016, 16
      %v1419 = vrot.slane %v1417, 5
      %v1420 = vor.u32 %v1416, %v1419
      %v1421 = vrot.slane %v1420, 4
      %v1423 = vshll.u32 %v1017, 16
      %v1425 = vrot.slane %v1423, 5
      %v1426 = vsel %vm1052, %v1421, %v1425
      %v1427 = vshrl.u32 %v1017, 16
      %v1429 = vrot.slane %v1427, 4
      %v1430 = vor.u32 %v1429, %v1425
      %v1431 = vrot.slane %v1430, 4
      %v1433 = vshll.u32 %v1049, 16
      %v1435 = vrot.slane %v1433, 5
      %v1436 = vsel %vm1052, %v1431, %v1435
      %s1437 = scalar_lea.vmem %s1, 64
      %v1438 = vld [vmem:[%s1437] sm:$0xf]
      %v1439 = vld [vmem:[%s1437 + $0x4] sm:$0xf]
      %v1440 = vld [vmem:[%s1437 + $0x8] sm:$0xf]
      %v1441 = vld [vmem:[%s1437 + $0xc] sm:$0xf]
      %v1442 = vld [vmem:[%s1437 + $0x10] sm:$0xf]
      %v1443 = vld [vmem:[%s1437 + $0x14] sm:$0xf]
      %v1444 = vld [vmem:[%s1437 + $0x18] sm:$0xf]
      %v1445 = vld [vmem:[%s1437 + $0x1c] sm:$0xf]
      %v1446 = vld [vmem:[%s1437 + $0x20] sm:$0xf]
      %v1447 = vld [vmem:[%s1437 + $0x24] sm:$0xf]
      %v1448 = vld [vmem:[%s1437 + $0x28] sm:$0xf]
      %v1449 = vld [vmem:[%s1437 + $0x2c] sm:$0xf]
      %v1450 = vld [vmem:[%s1437 + $0x30] sm:$0xf]
      %v1451 = vld [vmem:[%s1437 + $0x34] sm:$0xf]
      %v1452 = vld [vmem:[%s1437 + $0x38] sm:$0xf]
      %v1453 = vld [vmem:[%s1437 + $0x3c] sm:$0xf]
      %v1454 = vunpack.c.l.b16 %v1066
      %v1455 = vunpack.c.l.b16 %v1076
      %v1456 = vunpack.c.l.b16 %v1090
      %v1457 = vunpack.c.l.b16 %v1100
      %v1458 = vunpack.c.l.b16 %v1114
      %v1459 = vunpack.c.l.b16 %v1124
      %v1460 = vunpack.c.l.b16 %v1138
      %v1461 = vunpack.c.l.b16 %v1148
      %v1462 = vunpack.c.l.b16 %v1162
      %v1463 = vunpack.c.l.b16 %v1172
      %v1464 = vunpack.c.l.b16 %v1186
      %v1465 = vunpack.c.l.b16 %v1196
      %v1466 = vunpack.c.l.b16 %v1210
      %v1467 = vunpack.c.l.b16 %v1220
      %v1468 = vunpack.c.l.b16 %v1234
      %v1469 = vunpack.c.l.b16 %v1244
      %v1470 = vunpack.c.l.b16 %v1258
      %v1471 = vunpack.c.l.b16 %v1268
      %v1472 = vunpack.c.l.b16 %v1282
      %v1473 = vunpack.c.l.b16 %v1292
      %v1474 = vunpack.c.l.b16 %v1306
      %v1475 = vunpack.c.l.b16 %v1316
      %v1476 = vunpack.c.l.b16 %v1330
      %v1477 = vunpack.c.l.b16 %v1340
      %v1478 = vunpack.c.l.b16 %v1354
      %v1479 = vunpack.c.l.b16 %v1364
      %v1480 = vunpack.c.l.b16 %v1378
      %v1481 = vunpack.c.l.b16 %v1388
      %v1482 = vunpack.c.l.b16 %v1402
      %v1483 = vunpack.c.l.b16 %v1412
      %v1484 = vunpack.c.l.b16 %v1426
      %v1485 = vunpack.c.l.b16 %v1436
      %v1486 = vpack.c.b16 %v1455, %v1454
      %v1487 = vpack.c.b16 %v1457, %v1456
      %v1488 = vpack.c.b16 %v1459, %v1458
      %v1489 = vpack.c.b16 %v1461, %v1460
      %v1490 = vpack.c.b16 %v1463, %v1462
      %v1491 = vpack.c.b16 %v1465, %v1464
      %v1492 = vpack.c.b16 %v1467, %v1466
      %v1493 = vpack.c.b16 %v1469, %v1468
      %v1494 = vpack.c.b16 %v1471, %v1470
      %v1495 = vpack.c.b16 %v1473, %v1472
      %v1496 = vpack.c.b16 %v1475, %v1474
      %v1497 = vpack.c.b16 %v1477, %v1476
      %v1498 = vpack.c.b16 %v1479, %v1478
      %v1499 = vpack.c.b16 %v1481, %v1480
      %v1500 = vpack.c.b16 %v1483, %v1482
      %v1501 = vpack.c.b16 %v1485, %v1484
      %v1534 = vunpack.c.l.b16 %v1438
      %v1535 = vunpack.c.l.b16 %v1439
      %v1536 = vunpack.c.l.b16 %v1440
      %v1537 = vunpack.c.l.b16 %v1441
      %v1538 = vunpack.c.l.b16 %v1442
      %v1539 = vunpack.c.l.b16 %v1443
      %v1540 = vunpack.c.l.b16 %v1444
      %v1541 = vunpack.c.l.b16 %v1445
      %v1542 = vunpack.c.l.b16 %v1446
      %v1543 = vunpack.c.l.b16 %v1447
      %v1544 = vunpack.c.l.b16 %v1448
      %v1545 = vunpack.c.l.b16 %v1449
      %v1546 = vunpack.c.l.b16 %v1450
      %v1547 = vunpack.c.l.b16 %v1451
      %v1548 = vunpack.c.l.b16 %v1452
      %v1549 = vunpack.c.l.b16 %v1453
      %v1550 = vpack.c.b16 %v1535, %v1534
      %v1551 = vpack.c.b16 %v1537, %v1536
      %v1552 = vpack.c.b16 %v1539, %v1538
      %v1553 = vpack.c.b16 %v1541, %v1540
      %v1554 = vpack.c.b16 %v1543, %v1542
      %v1555 = vpack.c.b16 %v1545, %v1544
      %v1556 = vpack.c.b16 %v1547, %v1546
      %v1557 = vpack.c.b16 %v1549, %v1548
      %1566 = vmatprep.subr.bf16.mxu0 0
      %1567 = vmatpush1.bf16.msra.mxu0 %v1550
      %1568 = vmatprep.subr.bf16.mxu0 0
      %1569 = vmatpush1.bf16.msra.mxu0 %v1551
      %1570 = vmatprep.subr.bf16.mxu0 0
      %1571 = vmatpush1.bf16.msra.mxu0 %v1552
      %1572 = vmatprep.subr.bf16.mxu0 0
      %1573 = vmatpush1.bf16.msra.mxu0 %v1553
      %1574 = vmatprep.subr.bf16.mxu0 0
      %1575 = vmatpush1.bf16.msra.mxu0 %v1554
      %1576 = vmatprep.subr.bf16.mxu0 0
      %1577 = vmatpush1.bf16.msra.mxu0 %v1555
      %1578 = vmatprep.subr.bf16.mxu0 0
      %1579 = vmatpush1.bf16.msra.mxu0 %v1556
      %1580 = vmatprep.subr.bf16.mxu0 0
      %1581 = vmatpush1.bf16.msra.mxu0 %v1557
      %1582 = vmatprep.subr.bf16.mxu0 0
      %1583 = vmatpush1.bf16.msra.mxu0 0
      %1584 = vmatprep.subr.bf16.mxu0 0
      %1585 = vmatpush1.bf16.msra.mxu0 0
      %1586 = vmatprep.subr.bf16.mxu0 0
      %1587 = vmatpush1.bf16.msra.mxu0 0
      %1588 = vmatprep.subr.bf16.mxu0 0
      %1589 = vmatpush1.bf16.msra.mxu0 0
      %1590 = vmatprep.subr.bf16.mxu0 0
      %1591 = vmatpush1.bf16.msra.mxu0 0
      %1592 = vmatprep.subr.bf16.mxu0 0
      %1593 = vmatpush1.bf16.msra.mxu0 0
      %1594 = vmatprep.subr.bf16.mxu0 0
      %1595 = vmatpush1.bf16.msra.mxu0 0
      %1596 = vmatprep.subr.bf16.mxu0 0
      %1597 = vmatpush1.bf16.msra.mxu0 0
      %1598 = vmatprep.mubr.bf16.mxu0 0
      %1599 = vmatmul.mubr.bf16.gmra.mrb[0].mxu0 %v1486
      %v1600 = vpop.f32.mrb[0].mxu0
      %v1601 = vadd.f32 0.0, %v1600
      %v1602 = vpop.f32.mrb[0].mxu0
      %v1603 = vpop.f32.mrb[0].mxu0
      %v1604 = vadd.f32 0.0, %v1603
      %v1605 = vpop.f32.mrb[0].mxu0
      %1606 = vmatprep.mubr.bf16.mxu0 0
      %1607 = vmatmul.mubr.bf16.gmra.mrb[0].mxu0 %v1487
      %v1608 = vpop.f32.mrb[0].mxu0
      %v1609 = vadd.f32 0.0, %v1608
      %v1610 = vpop.f32.mrb[0].mxu0
      %v1611 = vpop.f32.mrb[0].mxu0
      %v1612 = vadd.f32 0.0, %v1611
      %v1613 = vpop.f32.mrb[0].mxu0
      %1614 = vmatprep.mubr.bf16.mxu0 0
      %1615 = vmatmul.mubr.bf16.gmra.mrb[0].mxu0 %v1488
      %v1616 = vpop.f32.mrb[0].mxu0
      %v1617 = vadd.f32 0.0, %v1616
      %v1618 = vpop.f32.mrb[0].mxu0
      %v1619 = vpop.f32.mrb[0].mxu0
      %v1620 = vadd.f32 0.0, %v1619
      %v1621 = vpop.f32.mrb[0].mxu0
      %1622 = vmatprep.mubr.bf16.mxu0 0
      %1623 = vmatmul.mubr.bf16.gmra.mrb[0].mxu0 %v1489
      %v1624 = vpop.f32.mrb[0].mxu0
      %v1625 = vadd.f32 0.0, %v1624
      %v1626 = vpop.f32.mrb[0].mxu0
      %v1627 = vpop.f32.mrb[0].mxu0
      %v1628 = vadd.f32 0.0, %v1627
      %v1629 = vpop.f32.mrb[0].mxu0
      %1630 = vmatprep.mubr.bf16.mxu0 0
      %1631 = vmatmul.mubr.bf16.gmra.mrb[0].mxu0 %v1490
      %v1632 = vpop.f32.mrb[0].mxu0
      %v1633 = vadd.f32 0.0, %v1632
      %v1634 = vpop.f32.mrb[0].mxu0
      %v1635 = vpop.f32.mrb[0].mxu0
      %v1636 = vadd.f32 0.0, %v1635
      %v1637 = vpop.f32.mrb[0].mxu0
      %1638 = vmatprep.mubr.bf16.mxu0 0
      %1639 = vmatmul.mubr.bf16.gmra.mrb[0].mxu0 %v1491
      %v1640 = vpop.f32.mrb[0].mxu0
      %v1641 = vadd.f32 0.0, %v1640
      %v1642 = vpop.f32.mrb[0].mxu0
      %v1643 = vpop.f32.mrb[0].mxu0
      %v1644 = vadd.f32 0.0, %v1643
      %v1645 = vpop.f32.mrb[0].mxu0
      %1646 = vmatprep.mubr.bf16.mxu0 0
      %1647 = vmatmul.mubr.bf16.gmra.mrb[0].mxu0 %v1492
      %v1648 = vpop.f32.mrb[0].mxu0
      %v1649 = vadd.f32 0.0, %v1648
      %v1650 = vpop.f32.mrb[0].mxu0
      %v1651 = vpop.f32.mrb[0].mxu0
      %v1652 = vadd.f32 0.0, %v1651
      %v1653 = vpop.f32.mrb[0].mxu0
      %1654 = vmatprep.mubr.bf16.mxu0 0
      %1655 = vmatmul.mubr.bf16.gmra.mrb[0].mxu0 %v1493
      %v1656 = vpop.f32.mrb[0].mxu0
      %v1657 = vadd.f32 0.0, %v1656
      %v1658 = vpop.f32.mrb[0].mxu0
      %v1659 = vpop.f32.mrb[0].mxu0
      %v1660 = vadd.f32 0.0, %v1659
      %v1661 = vpop.f32.mrb[0].mxu0
      %1662 = vmatprep.mubr.bf16.mxu0 0
      %1663 = vmatmul.mubr.bf16.gmra.mrb[0].mxu0 %v1494
      %v1664 = vpop.f32.mrb[0].mxu0
      %v1665 = vadd.f32 0.0, %v1664
      %v1666 = vpop.f32.mrb[0].mxu0
      %v1667 = vpop.f32.mrb[0].mxu0
      %v1668 = vadd.f32 0.0, %v1667
      %v1669 = vpop.f32.mrb[0].mxu0
      %1670 = vmatprep.mubr.bf16.mxu0 0
      %1671 = vmatmul.mubr.bf16.gmra.mrb[0].mxu0 %v1495
      %v1672 = vpop.f32.mrb[0].mxu0
      %v1673 = vadd.f32 0.0, %v1672
      %v1674 = vpop.f32.mrb[0].mxu0
      %v1675 = vpop.f32.mrb[0].mxu0
      %v1676 = vadd.f32 0.0, %v1675
      %v1677 = vpop.f32.mrb[0].mxu0
      %1678 = vmatprep.mubr.bf16.mxu0 0
      %1679 = vmatmul.mubr.bf16.gmra.mrb[0].mxu0 %v1496
      %v1680 = vpop.f32.mrb[0].mxu0
      %v1681 = vadd.f32 0.0, %v1680
      %v1682 = vpop.f32.mrb[0].mxu0
      %v1683 = vpop.f32.mrb[0].mxu0
      %v1684 = vadd.f32 0.0, %v1683
      %v1685 = vpop.f32.mrb[0].mxu0
      %1686 = vmatprep.mubr.bf16.mxu0 0
      %1687 = vmatmul.mubr.bf16.gmra.mrb[0].mxu0 %v1497
      %v1688 = vpop.f32.mrb[0].mxu0
      %v1689 = vadd.f32 0.0, %v1688
      %v1690 = vpop.f32.mrb[0].mxu0
      %v1691 = vpop.f32.mrb[0].mxu0
      %v1692 = vadd.f32 0.0, %v1691
      %v1693 = vpop.f32.mrb[0].mxu0
      %1694 = vmatprep.mubr.bf16.mxu0 0
      %1695 = vmatmul.mubr.bf16.gmra.mrb[0].mxu0 %v1498
      %v1696 = vpop.f32.mrb[0].mxu0
      %v1697 = vadd.f32 0.0, %v1696
      %v1698 = vpop.f32.mrb[0].mxu0
      %v1699 = vpop.f32.mrb[0].mxu0
      %v1700 = vadd.f32 0.0, %v1699
      %v1701 = vpop.f32.mrb[0].mxu0
      %1702 = vmatprep.mubr.bf16.mxu0 0
      %1703 = vmatmul.mubr.bf16.gmra.mrb[0].mxu0 %v1499
      %v1704 = vpop.f32.mrb[0].mxu0
      %v1705 = vadd.f32 0.0, %v1704
      %v1706 = vpop.f32.mrb[0].mxu0
      %v1707 = vpop.f32.mrb[0].mxu0
      %v1708 = vadd.f32 0.0, %v1707
      %v1709 = vpop.f32.mrb[0].mxu0
      %1710 = vmatprep.mubr.bf16.mxu0 0
      %1711 = vmatmul.mubr.bf16.gmra.mrb[0].mxu0 %v1500
      %v1712 = vpop.f32.mrb[0].mxu0
      %v1713 = vadd.f32 0.0, %v1712
      %v1714 = vpop.f32.mrb[0].mxu0
      %v1715 = vpop.f32.mrb[0].mxu0
      %v1716 = vadd.f32 0.0, %v1715
      %v1717 = vpop.f32.mrb[0].mxu0
      %1718 = vmatprep.mubr.bf16.mxu0 0
      %1719 = vmatmul.mubr.bf16.gmra.mrb[0].mxu0 %v1501
      %v1720 = vpop.f32.mrb[0].mxu0
      %v1721 = vadd.f32 0.0, %v1720
      %v1722 = vpop.f32.mrb[0].mxu0
      %v1723 = vpop.f32.mrb[0].mxu0
      %v1724 = vadd.f32 0.0, %v1723
      %v1725 = vpop.f32.mrb[0].mxu0
      %1726 = vdwg.mxu0
      %v1759 = vunpack.c.l.b16 %v986
      %v1760 = vunpack.c.l.b16 %v987
      %v1761 = vunpack.c.l.b16 %v988
      %v1762 = vunpack.c.l.b16 %v989
      %v1763 = vunpack.c.l.b16 %v990
      %v1764 = vunpack.c.l.b16 %v991
      %v1765 = vunpack.c.l.b16 %v992
      %v1766 = vunpack.c.l.b16 %v993
      %v1767 = vunpack.c.l.b16 %v994
      %v1768 = vunpack.c.l.b16 %v995
      %v1769 = vunpack.c.l.b16 %v996
      %v1770 = vunpack.c.l.b16 %v997
      %v1771 = vunpack.c.l.b16 %v998
      %v1772 = vunpack.c.l.b16 %v999
      %v1773 = vunpack.c.l.b16 %v1000
      %v1774 = vunpack.c.l.b16 %v1001
      %v1775 = vunpack.c.l.b16 %v1002
      %v1776 = vunpack.c.l.b16 %v1003
      %v1777 = vunpack.c.l.b16 %v1004
      %v1778 = vunpack.c.l.b16 %v1005
      %v1779 = vunpack.c.l.b16 %v1006
      %v1780 = vunpack.c.l.b16 %v1007
      %v1781 = vunpack.c.l.b16 %v1008
      %v1782 = vunpack.c.l.b16 %v1009
      %v1783 = vunpack.c.l.b16 %v1010
      %v1784 = vunpack.c.l.b16 %v1011
      %v1785 = vunpack.c.l.b16 %v1012
      %v1786 = vunpack.c.l.b16 %v1013
      %v1787 = vunpack.c.l.b16 %v1014
      %v1788 = vunpack.c.l.b16 %v1015
      %v1789 = vunpack.c.l.b16 %v1016
      %v1790 = vunpack.c.l.b16 %v1017
      %v1791 = vpack.c.b16 %v1760, %v1759
      %v1792 = vpack.c.b16 %v1762, %v1761
      %v1793 = vpack.c.b16 %v1764, %v1763
      %v1794 = vpack.c.b16 %v1766, %v1765
      %v1795 = vpack.c.b16 %v1768, %v1767
      %v1796 = vpack.c.b16 %v1770, %v1769
      %v1797 = vpack.c.b16 %v1772, %v1771
      %v1798 = vpack.c.b16 %v1774, %v1773
      %v1799 = vpack.c.b16 %v1776, %v1775
      %v1800 = vpack.c.b16 %v1778, %v1777
      %v1801 = vpack.c.b16 %v1780, %v1779
      %v1802 = vpack.c.b16 %v1782, %v1781
      %v1803 = vpack.c.b16 %v1784, %v1783
      %v1804 = vpack.c.b16 %v1786, %v1785
      %v1805 = vpack.c.b16 %v1788, %v1787
      %v1806 = vpack.c.b16 %v1790, %v1789
      %v1839 = vunpack.c.l.b16 %v1018
      %v1840 = vunpack.c.l.b16 %v1019
      %v1841 = vunpack.c.l.b16 %v1020
      %v1842 = vunpack.c.l.b16 %v1021
      %v1843 = vunpack.c.l.b16 %v1022
      %v1844 = vunpack.c.l.b16 %v1023
      %v1845 = vunpack.c.l.b16 %v1024
      %v1846 = vunpack.c.l.b16 %v1025
      %v1847 = vunpack.c.l.b16 %v1026
      %v1848 = vunpack.c.l.b16 %v1027
      %v1849 = vunpack.c.l.b16 %v1028
      %v1850 = vunpack.c.l.b16 %v1029
      %v1851 = vunpack.c.l.b16 %v1030
      %v1852 = vunpack.c.l.b16 %v1031
      %v1853 = vunpack.c.l.b16 %v1032
      %v1854 = vunpack.c.l.b16 %v1033
      %v1855 = vpack.c.b16 %v1840, %v1839
      %v1856 = vpack.c.b16 %v1842, %v1841
      %v1857 = vpack.c.b16 %v1844, %v1843
      %v1858 = vpack.c.b16 %v1846, %v1845
      %v1859 = vpack.c.b16 %v1848, %v1847
      %v1860 = vpack.c.b16 %v1850, %v1849
      %v1861 = vpack.c.b16 %v1852, %v1851
      %v1862 = vpack.c.b16 %v1854, %v1853
      %1871 = vmatprep.subr.bf16.mxu0 0
      %1872 = vmatpush1.bf16.msra.mxu0 %v1855
      %1873 = vmatprep.subr.bf16.mxu0 0
      %1874 = vmatpush1.bf16.msra.mxu0 %v1856
      %1875 = vmatprep.subr.bf16.mxu0 0
      %1876 = vmatpush1.bf16.msra.mxu0 %v1857
      %1877 = vmatprep.subr.bf16.mxu0 0
      %1878 = vmatpush1.bf16.msra.mxu0 %v1858
      %1879 = vmatprep.subr.bf16.mxu0 0
      %1880 = vmatpush1.bf16.msra.mxu0 %v1859
      %1881 = vmatprep.subr.bf16.mxu0 0
      %1882 = vmatpush1.bf16.msra.mxu0 %v1860
      %1883 = vmatprep.subr.bf16.mxu0 0
      %1884 = vmatpush1.bf16.msra.mxu0 %v1861
      %1885 = vmatprep.subr.bf16.mxu0 0
      %1886 = vmatpush1.bf16.msra.mxu0 %v1862
      %1887 = vmatprep.subr.bf16.mxu0 0
      %1888 = vmatpush1.bf16.msra.mxu0 0
      %1889 = vmatprep.subr.bf16.mxu0 0
      %1890 = vmatpush1.bf16.msra.mxu0 0
      %1891 = vmatprep.subr.bf16.mxu0 0
      %1892 = vmatpush1.bf16.msra.mxu0 0
      %1893 = vmatprep.subr.bf16.mxu0 0
      %1894 = vmatpush1.bf16.msra.mxu0 0
      %1895 = vmatprep.subr.bf16.mxu0 0
      %1896 = vmatpush1.bf16.msra.mxu0 0
      %1897 = vmatprep.subr.bf16.mxu0 0
      %1898 = vmatpush1.bf16.msra.mxu0 0
      %1899 = vmatprep.subr.bf16.mxu0 0
      %1900 = vmatpush1.bf16.msra.mxu0 0
      %1901 = vmatprep.subr.bf16.mxu0 0
      %1902 = vmatpush1.bf16.msra.mxu0 0
      %1903 = vmatprep.mubr.bf16.mxu0 0
      %1904 = vmatmul.mubr.bf16.gmra.mrb[0].mxu0 %v1791
      %v1905 = vpop.f32.mrb[0].mxu0
      %v1906 = vadd.f32 %v1601, %v1905
      %v1907 = vpop.f32.mrb[0].mxu0
      %v1908 = vpop.f32.mrb[0].mxu0
      %v1909 = vadd.f32 %v1604, %v1908
      %v1910 = vpop.f32.mrb[0].mxu0
      %1911 = vmatprep.mubr.bf16.mxu0 0
      %1912 = vmatmul.mubr.bf16.gmra.mrb[0].mxu0 %v1792
      %v1913 = vpop.f32.mrb[0].mxu0
      %v1914 = vadd.f32 %v1609, %v1913
      %v1915 = vpop.f32.mrb[0].mxu0
      %v1916 = vpop.f32.mrb[0].mxu0
      %v1917 = vadd.f32 %v1612, %v1916
      %v1918 = vpop.f32.mrb[0].mxu0
      %1919 = vmatprep.mubr.bf16.mxu0 0
      %1920 = vmatmul.mubr.bf16.gmra.mrb[0].mxu0 %v1793
      %v1921 = vpop.f32.mrb[0].mxu0
      %v1922 = vadd.f32 %v1617, %v1921
      %v1923 = vpop.f32.mrb[0].mxu0
      %v1924 = vpop.f32.mrb[0].mxu0
      %v1925 = vadd.f32 %v1620, %v1924
      %v1926 = vpop.f32.mrb[0].mxu0
      %1927 = vmatprep.mubr.bf16.mxu0 0
      %1928 = vmatmul.mubr.bf16.gmra.mrb[0].mxu0 %v1794
      %v1929 = vpop.f32.mrb[0].mxu0
      %v1930 = vadd.f32 %v1625, %v1929
      %v1931 = vpop.f32.mrb[0].mxu0
      %v1932 = vpop.f32.mrb[0].mxu0
      %v1933 = vadd.f32 %v1628, %v1932
      %v1934 = vpop.f32.mrb[0].mxu0
      %1935 = vmatprep.mubr.bf16.mxu0 0
      %1936 = vmatmul.mubr.bf16.gmra.mrb[0].mxu0 %v1795
      %v1937 = vpop.f32.mrb[0].mxu0
      %v1938 = vadd.f32 %v1633, %v1937
      %v1939 = vpop.f32.mrb[0].mxu0
      %v1940 = vpop.f32.mrb[0].mxu0
      %v1941 = vadd.f32 %v1636, %v1940
      %v1942 = vpop.f32.mrb[0].mxu0
      %1943 = vmatprep.mubr.bf16.mxu0 0
      %1944 = vmatmul.mubr.bf16.gmra.mrb[0].mxu0 %v1796
      %v1945 = vpop.f32.mrb[0].mxu0
      %v1946 = vadd.f32 %v1641, %v1945
      %v1947 = vpop.f32.mrb[0].mxu0
      %v1948 = vpop.f32.mrb[0].mxu0
      %v1949 = vadd.f32 %v1644, %v1948
      %v1950 = vpop.f32.mrb[0].mxu0
      %1951 = vmatprep.mubr.bf16.mxu0 0
      %1952 = vmatmul.mubr.bf16.gmra.mrb[0].mxu0 %v1797
      %v1953 = vpop.f32.mrb[0].mxu0
      %v1954 = vadd.f32 %v1649, %v1953
      %v1955 = vpop.f32.mrb[0].mxu0
      %v1956 = vpop.f32.mrb[0].mxu0
      %v1957 = vadd.f32 %v1652, %v1956
      %v1958 = vpop.f32.mrb[0].mxu0
      %1959 = vmatprep.mubr.bf16.mxu0 0
      %1960 = vmatmul.mubr.bf16.gmra.mrb[0].mxu0 %v1798
      %v1961 = vpop.f32.mrb[0].mxu0
      %v1962 = vadd.f32 %v1657, %v1961
      %v1963 = vpop.f32.mrb[0].mxu0
      %v1964 = vpop.f32.mrb[0].mxu0
      %v1965 = vadd.f32 %v1660, %v1964
      %v1966 = vpop.f32.mrb[0].mxu0
      %1967 = vmatprep.mubr.bf16.mxu0 0
      %1968 = vmatmul.mubr.bf16.gmra.mrb[0].mxu0 %v1799
      %v1969 = vpop.f32.mrb[0].mxu0
      %v1970 = vadd.f32 %v1665, %v1969
      %v1971 = vpop.f32.mrb[0].mxu0
      %v1972 = vpop.f32.mrb[0].mxu0
      %v1973 = vadd.f32 %v1668, %v1972
      %v1974 = vpop.f32.mrb[0].mxu0
      %1975 = vmatprep.mubr.bf16.mxu0 0
      %1976 = vmatmul.mubr.bf16.gmra.mrb[0].mxu0 %v1800
      %v1977 = vpop.f32.mrb[0].mxu0
      %v1978 = vadd.f32 %v1673, %v1977
      %v1979 = vpop.f32.mrb[0].mxu0
      %v1980 = vpop.f32.mrb[0].mxu0
      %v1981 = vadd.f32 %v1676, %v1980
      %v1982 = vpop.f32.mrb[0].mxu0
      %1983 = vmatprep.mubr.bf16.mxu0 0
      %1984 = vmatmul.mubr.bf16.gmra.mrb[0].mxu0 %v1801
      %v1985 = vpop.f32.mrb[0].mxu0
      %v1986 = vadd.f32 %v1681, %v1985
      %v1987 = vpop.f32.mrb[0].mxu0
      %v1988 = vpop.f32.mrb[0].mxu0
      %v1989 = vadd.f32 %v1684, %v1988
      %v1990 = vpop.f32.mrb[0].mxu0
      %1991 = vmatprep.mubr.bf16.mxu0 0
      %1992 = vmatmul.mubr.bf16.gmra.mrb[0].mxu0 %v1802
      %v1993 = vpop.f32.mrb[0].mxu0
      %v1994 = vadd.f32 %v1689, %v1993
      %v1995 = vpop.f32.mrb[0].mxu0
      %v1996 = vpop.f32.mrb[0].mxu0
      %v1997 = vadd.f32 %v1692, %v1996
      %v1998 = vpop.f32.mrb[0].mxu0
      %1999 = vmatprep.mubr.bf16.mxu0 0
      %2000 = vmatmul.mubr.bf16.gmra.mrb[0].mxu0 %v1803
      %v2001 = vpop.f32.mrb[0].mxu0
      %v2002 = vadd.f32 %v1697, %v2001
      %v2003 = vpop.f32.mrb[0].mxu0
      %v2004 = vpop.f32.mrb[0].mxu0
      %v2005 = vadd.f32 %v1700, %v2004
      %v2006 = vpop.f32.mrb[0].mxu0
      %2007 = vmatprep.mubr.bf16.mxu0 0
      %2008 = vmatmul.mubr.bf16.gmra.mrb[0].mxu0 %v1804
      %v2009 = vpop.f32.mrb[0].mxu0
      %v2010 = vadd.f32 %v1705, %v2009
      %v2011 = vpop.f32.mrb[0].mxu0
      %v2012 = vpop.f32.mrb[0].mxu0
      %v2013 = vadd.f32 %v1708, %v2012
      %v2014 = vpop.f32.mrb[0].mxu0
      %2015 = vmatprep.mubr.bf16.mxu0 0
      %2016 = vmatmul.mubr.bf16.gmra.mrb[0].mxu0 %v1805
      %v2017 = vpop.f32.mrb[0].mxu0
      %v2018 = vadd.f32 %v1713, %v2017
      %v2019 = vpop.f32.mrb[0].mxu0
      %v2020 = vpop.f32.mrb[0].mxu0
      %v2021 = vadd.f32 %v1716, %v2020
      %v2022 = vpop.f32.mrb[0].mxu0
      %2023 = vmatprep.mubr.bf16.mxu0 0
      %2024 = vmatmul.mubr.bf16.gmra.mrb[0].mxu0 %v1806
      %v2025 = vpop.f32.mrb[0].mxu0
      %v2026 = vadd.f32 %v1721, %v2025
      %v2027 = vpop.f32.mrb[0].mxu0
      %v2028 = vpop.f32.mrb[0].mxu0
      %v2029 = vadd.f32 %v1724, %v2028
      %v2030 = vpop.f32.mrb[0].mxu0
      %2031 = vdwg.mxu0
      %v2032 = vld [vmem:[#allocation2] sm:$0xe]
      %v2033 = vld [vmem:[#allocation2 + $0xc] sm:$0xe]
      %v2034 = vld [vmem:[#allocation2 + $0x18] sm:$0xe]
      %v2035 = vld [vmem:[#allocation2 + $0x24] sm:$0xe]
      %v2036 = vld [vmem:[#allocation2 + $0x30] sm:$0xe]
      %v2037 = vld [vmem:[#allocation2 + $0x3c] sm:$0xe]
      %v2038 = vld [vmem:[#allocation2 + $0x48] sm:$0xe]
      %v2039 = vld [vmem:[#allocation2 + $0x54] sm:$0xe]
      %v2040 = vld [vmem:[#allocation2 + $0x60] sm:$0xe]
      %v2041 = vld [vmem:[#allocation2 + $0x6c] sm:$0xe]
      %v2042 = vld [vmem:[#allocation2 + $0x78] sm:$0xe]
      %v2043 = vld [vmem:[#allocation2 + $0x84] sm:$0xe]
      %v2044 = vld [vmem:[#allocation2 + $0x90] sm:$0xe]
      %v2045 = vld [vmem:[#allocation2 + $0x9c] sm:$0xe]
      %v2046 = vld [vmem:[#allocation2 + $0xa8] sm:$0xe]
      %v2047 = vld [vmem:[#allocation2 + $0xb4] sm:$0xe]
      %vm2080 = vcmask 1042432
      %vm2081 = vcmask 1046532
      %vm2082 = vmor %vm2080, %vm2081
      %v2083 = vrot.slane %v2032, 5
      %v2084 = vrot.slane %v2083, 4
      %v2085 = vrot.slane %v987, 5
      %v2086 = vsel %vm2082, %v2084, %v2085
      %v2087 = vrot.slane %v2085, 4
      %v2088 = vrot.slane %v1034, 5
      %v2089 = vsel %vm2082, %v2087, %v2088
      %v2090 = vrot.slane %v2033, 5
      %v2091 = vrot.slane %v2090, 4
      %v2092 = vrot.slane %v989, 5
      %v2093 = vsel %vm2082, %v2091, %v2092
      %v2094 = vrot.slane %v2092, 4
      %v2095 = vrot.slane %v1035, 5
      %v2096 = vsel %vm2082, %v2094, %v2095
      %v2097 = vrot.slane %v2034, 5
      %v2098 = vrot.slane %v2097, 4
      %v2099 = vrot.slane %v991, 5
      %v2100 = vsel %vm2082, %v2098, %v2099
      %v2101 = vrot.slane %v2099, 4
      %v2102 = vrot.slane %v1036, 5
      %v2103 = vsel %vm2082, %v2101, %v2102
      %v2104 = vrot.slane %v2035, 5
      %v2105 = vrot.slane %v2104, 4
      %v2106 = vrot.slane %v993, 5
      %v2107 = vsel %vm2082, %v2105, %v2106
      %v2108 = vrot.slane %v2106, 4
      %v2109 = vrot.slane %v1037, 5
      %v2110 = vsel %vm2082, %v2108, %v2109
      %v2111 = vrot.slane %v2036, 5
      %v2112 = vrot.slane %v2111, 4
      %v2113 = vrot.slane %v995, 5
      %v2114 = vsel %vm2082, %v2112, %v2113
      %v2115 = vrot.slane %v2113, 4
      %v2116 = vrot.slane %v1038, 5
      %v2117 = vsel %vm2082, %v2115, %v2116
      %v2118 = vrot.slane %v2037, 5
      %v2119 = vrot.slane %v2118, 4
      %v2120 = vrot.slane %v997, 5
      %v2121 = vsel %vm2082, %v2119, %v2120
      %v2122 = vrot.slane %v2120, 4
      %v2123 = vrot.slane %v1039, 5
      %v2124 = vsel %vm2082, %v2122, %v2123
      %v2125 = vrot.slane %v2038, 5
      %v2126 = vrot.slane %v2125, 4
      %v2127 = vrot.slane %v999, 5
      %v2128 = vsel %vm2082, %v2126, %v2127
      %v2129 = vrot.slane %v2127, 4
      %v2130 = vrot.slane %v1040, 5
      %v2131 = vsel %vm2082, %v2129, %v2130
      %v2132 = vrot.slane %v2039, 5
      %v2133 = vrot.slane %v2132, 4
      %v2134 = vrot.slane %v1001, 5
      %v2135 = vsel %vm2082, %v2133, %v2134
      %v2136 = vrot.slane %v2134, 4
      %v2137 = vrot.slane %v1041, 5
      %v2138 = vsel %vm2082, %v2136, %v2137
      %v2139 = vrot.slane %v2040, 5
      %v2140 = vrot.slane %v2139, 4
      %v2141 = vrot.slane %v1003, 5
      %v2142 = vsel %vm2082, %v2140, %v2141
      %v2143 = vrot.slane %v2141, 4
      %v2144 = vrot.slane %v1042, 5
      %v2145 = vsel %vm2082, %v2143, %v2144
      %v2146 = vrot.slane %v2041, 5
      %v2147 = vrot.slane %v2146, 4
      %v2148 = vrot.slane %v1005, 5
      %v2149 = vsel %vm2082, %v2147, %v2148
      %v2150 = vrot.slane %v2148, 4
      %v2151 = vrot.slane %v1043, 5
      %v2152 = vsel %vm2082, %v2150, %v2151
      %v2153 = vrot.slane %v2042, 5
      %v2154 = vrot.slane %v2153, 4
      %v2155 = vrot.slane %v1007, 5
      %v2156 = vsel %vm2082, %v2154, %v2155
      %v2157 = vrot.slane %v2155, 4
      %v2158 = vrot.slane %v1044, 5
      %v2159 = vsel %vm2082, %v2157, %v2158
      %v2160 = vrot.slane %v2043, 5
      %v2161 = vrot.slane %v2160, 4
      %v2162 = vrot.slane %v1009, 5
      %v2163 = vsel %vm2082, %v2161, %v2162
      %v2164 = vrot.slane %v2162, 4
      %v2165 = vrot.slane %v1045, 5
      %v2166 = vsel %vm2082, %v2164, %v2165
      %v2167 = vrot.slane %v2044, 5
      %v2168 = vrot.slane %v2167, 4
      %v2169 = vrot.slane %v1011, 5
      %v2170 = vsel %vm2082, %v2168, %v2169
      %v2171 = vrot.slane %v2169, 4
      %v2172 = vrot.slane %v1046, 5
      %v2173 = vsel %vm2082, %v2171, %v2172
      %v2174 = vrot.slane %v2045, 5
      %v2175 = vrot.slane %v2174, 4
      %v2176 = vrot.slane %v1013, 5
      %v2177 = vsel %vm2082, %v2175, %v2176
      %v2178 = vrot.slane %v2176, 4
      %v2179 = vrot.slane %v1047, 5
      %v2180 = vsel %vm2082, %v2178, %v2179
      %v2181 = vrot.slane %v2046, 5
      %v2182 = vrot.slane %v2181, 4
      %v2183 = vrot.slane %v1015, 5
      %v2184 = vsel %vm2082, %v2182, %v2183
      %v2185 = vrot.slane %v2183, 4
      %v2186 = vrot.slane %v1048, 5
      %v2187 = vsel %vm2082, %v2185, %v2186
      %v2188 = vrot.slane %v2047, 5
      %v2189 = vrot.slane %v2188, 4
      %v2190 = vrot.slane %v1017, 5
      %v2191 = vsel %vm2082, %v2189, %v2190
      %v2192 = vrot.slane %v2190, 4
      %v2193 = vrot.slane %v1049, 5
      %v2194 = vsel %vm2082, %v2192, %v2193
      %s2195 = scalar_lea.vmem %s1, 128
      %v2196 = vld [vmem:[%s2195] sm:$0xf]
      %v2197 = vld [vmem:[%s2195 + $0x4] sm:$0xf]
      %v2198 = vld [vmem:[%s2195 + $0x8] sm:$0xf]
      %v2199 = vld [vmem:[%s2195 + $0xc] sm:$0xf]
      %v2200 = vld [vmem:[%s2195 + $0x10] sm:$0xf]
      %v2201 = vld [vmem:[%s2195 + $0x14] sm:$0xf]
      %v2202 = vld [vmem:[%s2195 + $0x18] sm:$0xf]
      %v2203 = vld [vmem:[%s2195 + $0x1c] sm:$0xf]
      %v2204 = vld [vmem:[%s2195 + $0x20] sm:$0xf]
      %v2205 = vld [vmem:[%s2195 + $0x24] sm:$0xf]
      %v2206 = vld [vmem:[%s2195 + $0x28] sm:$0xf]
      %v2207 = vld [vmem:[%s2195 + $0x2c] sm:$0xf]
      %v2208 = vld [vmem:[%s2195 + $0x30] sm:$0xf]
      %v2209 = vld [vmem:[%s2195 + $0x34] sm:$0xf]
      %v2210 = vld [vmem:[%s2195 + $0x38] sm:$0xf]
      %v2211 = vld [vmem:[%s2195 + $0x3c] sm:$0xf]
      %v2212 = vunpack.c.l.b16 %v2086
      %v2213 = vunpack.c.l.b16 %v2089
      %v2214 = vunpack.c.l.b16 %v2093
      %v2215 = vunpack.c.l.b16 %v2096
      %v2216 = vunpack.c.l.b16 %v2100
      %v2217 = vunpack.c.l.b16 %v2103
      %v2218 = vunpack.c.l.b16 %v2107
      %v2219 = vunpack.c.l.b16 %v2110
      %v2220 = vunpack.c.l.b16 %v2114
      %v2221 = vunpack.c.l.b16 %v2117
      %v2222 = vunpack.c.l.b16 %v2121
      %v2223 = vunpack.c.l.b16 %v2124
      %v2224 = vunpack.c.l.b16 %v2128
      %v2225 = vunpack.c.l.b16 %v2131
      %v2226 = vunpack.c.l.b16 %v2135
      %v2227 = vunpack.c.l.b16 %v2138
      %v2228 = vunpack.c.l.b16 %v2142
      %v2229 = vunpack.c.l.b16 %v2145
      %v2230 = vunpack.c.l.b16 %v2149
      %v2231 = vunpack.c.l.b16 %v2152
      %v2232 = vunpack.c.l.b16 %v2156
      %v2233 = vunpack.c.l.b16 %v2159
      %v2234 = vunpack.c.l.b16 %v2163
      %v2235 = vunpack.c.l.b16 %v2166
      %v2236 = vunpack.c.l.b16 %v2170
      %v2237 = vunpack.c.l.b16 %v2173
      %v2238 = vunpack.c.l.b16 %v2177
      %v2239 = vunpack.c.l.b16 %v2180
      %v2240 = vunpack.c.l.b16 %v2184
      %v2241 = vunpack.c.l.b16 %v2187
      %v2242 = vunpack.c.l.b16 %v2191
      %v2243 = vunpack.c.l.b16 %v2194
      %v2244 = vpack.c.b16 %v2213, %v2212
      %v2245 = vpack.c.b16 %v2215, %v2214
      %v2246 = vpack.c.b16 %v2217, %v2216
      %v2247 = vpack.c.b16 %v2219, %v2218
      %v2248 = vpack.c.b16 %v2221, %v2220
      %v2249 = vpack.c.b16 %v2223, %v2222
      %v2250 = vpack.c.b16 %v2225, %v2224
      %v2251 = vpack.c.b16 %v2227, %v2226
      %v2252 = vpack.c.b16 %v2229, %v2228
      %v2253 = vpack.c.b16 %v2231, %v2230
      %v2254 = vpack.c.b16 %v2233, %v2232
      %v2255 = vpack.c.b16 %v2235, %v2234
      %v2256 = vpack.c.b16 %v2237, %v2236
      %v2257 = vpack.c.b16 %v2239, %v2238
      %v2258 = vpack.c.b16 %v2241, %v2240
      %v2259 = vpack.c.b16 %v2243, %v2242
      %v2292 = vunpack.c.l.b16 %v2196
      %v2293 = vunpack.c.l.b16 %v2197
      %v2294 = vunpack.c.l.b16 %v2198
      %v2295 = vunpack.c.l.b16 %v2199
      %v2296 = vunpack.c.l.b16 %v2200
      %v2297 = vunpack.c.l.b16 %v2201
      %v2298 = vunpack.c.l.b16 %v2202
      %v2299 = vunpack.c.l.b16 %v2203
      %v2300 = vunpack.c.l.b16 %v2204
      %v2301 = vunpack.c.l.b16 %v2205
      %v2302 = vunpack.c.l.b16 %v2206
      %v2303 = vunpack.c.l.b16 %v2207
      %v2304 = vunpack.c.l.b16 %v2208
      %v2305 = vunpack.c.l.b16 %v2209
      %v2306 = vunpack.c.l.b16 %v2210
      %v2307 = vunpack.c.l.b16 %v2211
      %v2308 = vpack.c.b16 %v2293, %v2292
      %v2309 = vpack.c.b16 %v2295, %v2294
      %v2310 = vpack.c.b16 %v2297, %v2296
      %v2311 = vpack.c.b16 %v2299, %v2298
      %v2312 = vpack.c.b16 %v2301, %v2300
      %v2313 = vpack.c.b16 %v2303, %v2302
      %v2314 = vpack.c.b16 %v2305, %v2304
      %v2315 = vpack.c.b16 %v2307, %v2306
      %2324 = vmatprep.subr.bf16.mxu0 0
      %2325 = vmatpush1.bf16.msra.mxu0 %v2308
      %2326 = vmatprep.subr.bf16.mxu0 0
      %2327 = vmatpush1.bf16.msra.mxu0 %v2309
      %2328 = vmatprep.subr.bf16.mxu0 0
      %2329 = vmatpush1.bf16.msra.mxu0 %v2310
      %2330 = vmatprep.subr.bf16.mxu0 0
      %2331 = vmatpush1.bf16.msra.mxu0 %v2311
      %2332 = vmatprep.subr.bf16.mxu0 0
      %2333 = vmatpush1.bf16.msra.mxu0 %v2312
      %2334 = vmatprep.subr.bf16.mxu0 0
      %2335 = vmatpush1.bf16.msra.mxu0 %v2313
      %2336 = vmatprep.subr.bf16.mxu0 0
      %2337 = vmatpush1.bf16.msra.mxu0 %v2314
      %2338 = vmatprep.subr.bf16.mxu0 0
      %2339 = vmatpush1.bf16.msra.mxu0 %v2315
      %2340 = vmatprep.subr.bf16.mxu0 0
      %2341 = vmatpush1.bf16.msra.mxu0 0
      %2342 = vmatprep.subr.bf16.mxu0 0
      %2343 = vmatpush1.bf16.msra.mxu0 0
      %2344 = vmatprep.subr.bf16.mxu0 0
      %2345 = vmatpush1.bf16.msra.mxu0 0
      %2346 = vmatprep.subr.bf16.mxu0 0
      %2347 = vmatpush1.bf16.msra.mxu0 0
      %2348 = vmatprep.subr.bf16.mxu0 0
      %2349 = vmatpush1.bf16.msra.mxu0 0
      %2350 = vmatprep.subr.bf16.mxu0 0
      %2351 = vmatpush1.bf16.msra.mxu0 0
      %2352 = vmatprep.subr.bf16.mxu0 0
      %2353 = vmatpush1.bf16.msra.mxu0 0
      %2354 = vmatprep.subr.bf16.mxu0 0
      %2355 = vmatpush1.bf16.msra.mxu0 0
      %2356 = vmatprep.mubr.bf16.mxu0 0
      %2357 = vmatmul.mubr.bf16.gmra.mrb[0].mxu0 %v2244
      %v2358 = vpop.f32.mrb[0].mxu0
      %v2359 = vadd.f32 0.0, %v2358
      %v2360 = vpop.f32.mrb[0].mxu0
      %v2361 = vpop.f32.mrb[0].mxu0
      %v2362 = vadd.f32 0.0, %v2361
      %v2363 = vpop.f32.mrb[0].mxu0
      %2364 = vmatprep.mubr.bf16.mxu0 0
      %2365 = vmatmul.mubr.bf16.gmra.mrb[0].mxu0 %v2245
      %v2366 = vpop.f32.mrb[0].mxu0
      %v2367 = vadd.f32 0.0, %v2366
      %v2368 = vpop.f32.mrb[0].mxu0
      %v2369 = vpop.f32.mrb[0].mxu0
      %v2370 = vadd.f32 0.0, %v2369
      %v2371 = vpop.f32.mrb[0].mxu0
      %2372 = vmatprep.mubr.bf16.mxu0 0
      %2373 = vmatmul.mubr.bf16.gmra.mrb[0].mxu0 %v2246
      %v2374 = vpop.f32.mrb[0].mxu0
      %v2375 = vadd.f32 0.0, %v2374
      %v2376 = vpop.f32.mrb[0].mxu0
      %v2377 = vpop.f32.mrb[0].mxu0
      %v2378 = vadd.f32 0.0, %v2377
      %v2379 = vpop.f32.mrb[0].mxu0
      %2380 = vmatprep.mubr.bf16.mxu0 0
      %2381 = vmatmul.mubr.bf16.gmra.mrb[0].mxu0 %v2247
      %v2382 = vpop.f32.mrb[0].mxu0
      %v2383 = vadd.f32 0.0, %v2382
      %v2384 = vpop.f32.mrb[0].mxu0
      %v2385 = vpop.f32.mrb[0].mxu0
      %v2386 = vadd.f32 0.0, %v2385
      %v2387 = vpop.f32.mrb[0].mxu0
      %2388 = vmatprep.mubr.bf16.mxu0 0
      %2389 = vmatmul.mubr.bf16.gmra.mrb[0].mxu0 %v2248
      %v2390 = vpop.f32.mrb[0].mxu0
      %v2391 = vadd.f32 0.0, %v2390
      %v2392 = vpop.f32.mrb[0].mxu0
      %v2393 = vpop.f32.mrb[0].mxu0
      %v2394 = vadd.f32 0.0, %v2393
      %v2395 = vpop.f32.mrb[0].mxu0
      %2396 = vmatprep.mubr.bf16.mxu0 0
      %2397 = vmatmul.mubr.bf16.gmra.mrb[0].mxu0 %v2249
      %v2398 = vpop.f32.mrb[0].mxu0
      %v2399 = vadd.f32 0.0, %v2398
      %v2400 = vpop.f32.mrb[0].mxu0
      %v2401 = vpop.f32.mrb[0].mxu0
      %v2402 = vadd.f32 0.0, %v2401
      %v2403 = vpop.f32.mrb[0].mxu0
      %2404 = vmatprep.mubr.bf16.mxu0 0
      %2405 = vmatmul.mubr.bf16.gmra.mrb[0].mxu0 %v2250
      %v2406 = vpop.f32.mrb[0].mxu0
      %v2407 = vadd.f32 0.0, %v2406
      %v2408 = vpop.f32.mrb[0].mxu0
      %v2409 = vpop.f32.mrb[0].mxu0
      %v2410 = vadd.f32 0.0, %v2409
      %v2411 = vpop.f32.mrb[0].mxu0
      %2412 = vmatprep.mubr.bf16.mxu0 0
      %2413 = vmatmul.mubr.bf16.gmra.mrb[0].mxu0 %v2251
      %v2414 = vpop.f32.mrb[0].mxu0
      %v2415 = vadd.f32 0.0, %v2414
      %v2416 = vpop.f32.mrb[0].mxu0
      %v2417 = vpop.f32.mrb[0].mxu0
      %v2418 = vadd.f32 0.0, %v2417
      %v2419 = vpop.f32.mrb[0].mxu0
      %2420 = vmatprep.mubr.bf16.mxu0 0
      %2421 = vmatmul.mubr.bf16.gmra.mrb[0].mxu0 %v2252
      %v2422 = vpop.f32.mrb[0].mxu0
      %v2423 = vadd.f32 0.0, %v2422
      %v2424 = vpop.f32.mrb[0].mxu0
      %v2425 = vpop.f32.mrb[0].mxu0
      %v2426 = vadd.f32 0.0, %v2425
      %v2427 = vpop.f32.mrb[0].mxu0
      %2428 = vmatprep.mubr.bf16.mxu0 0
      %2429 = vmatmul.mubr.bf16.gmra.mrb[0].mxu0 %v2253
      %v2430 = vpop.f32.mrb[0].mxu0
      %v2431 = vadd.f32 0.0, %v2430
      %v2432 = vpop.f32.mrb[0].mxu0
      %v2433 = vpop.f32.mrb[0].mxu0
      %v2434 = vadd.f32 0.0, %v2433
      %v2435 = vpop.f32.mrb[0].mxu0
      %2436 = vmatprep.mubr.bf16.mxu0 0
      %2437 = vmatmul.mubr.bf16.gmra.mrb[0].mxu0 %v2254
      %v2438 = vpop.f32.mrb[0].mxu0
      %v2439 = vadd.f32 0.0, %v2438
      %v2440 = vpop.f32.mrb[0].mxu0
      %v2441 = vpop.f32.mrb[0].mxu0
      %v2442 = vadd.f32 0.0, %v2441
      %v2443 = vpop.f32.mrb[0].mxu0
      %2444 = vmatprep.mubr.bf16.mxu0 0
      %2445 = vmatmul.mubr.bf16.gmra.mrb[0].mxu0 %v2255
      %v2446 = vpop.f32.mrb[0].mxu0
      %v2447 = vadd.f32 0.0, %v2446
      %v2448 = vpop.f32.mrb[0].mxu0
      %v2449 = vpop.f32.mrb[0].mxu0
      %v2450 = vadd.f32 0.0, %v2449
      %v2451 = vpop.f32.mrb[0].mxu0
      %2452 = vmatprep.mubr.bf16.mxu0 0
      %2453 = vmatmul.mubr.bf16.gmra.mrb[0].mxu0 %v2256
      %v2454 = vpop.f32.mrb[0].mxu0
      %v2455 = vadd.f32 0.0, %v2454
      %v2456 = vpop.f32.mrb[0].mxu0
      %v2457 = vpop.f32.mrb[0].mxu0
      %v2458 = vadd.f32 0.0, %v2457
      %v2459 = vpop.f32.mrb[0].mxu0
      %2460 = vmatprep.mubr.bf16.mxu0 0
      %2461 = vmatmul.mubr.bf16.gmra.mrb[0].mxu0 %v2257
      %v2462 = vpop.f32.mrb[0].mxu0
      %v2463 = vadd.f32 0.0, %v2462
      %v2464 = vpop.f32.mrb[0].mxu0
      %v2465 = vpop.f32.mrb[0].mxu0
      %v2466 = vadd.f32 0.0, %v2465
      %v2467 = vpop.f32.mrb[0].mxu0
      %2468 = vmatprep.mubr.bf16.mxu0 0
      %2469 = vmatmul.mubr.bf16.gmra.mrb[0].mxu0 %v2258
      %v2470 = vpop.f32.mrb[0].mxu0
      %v2471 = vadd.f32 0.0, %v2470
      %v2472 = vpop.f32.mrb[0].mxu0
      %v2473 = vpop.f32.mrb[0].mxu0
      %v2474 = vadd.f32 0.0, %v2473
      %v2475 = vpop.f32.mrb[0].mxu0
      %2476 = vmatprep.mubr.bf16.mxu0 0
      %2477 = vmatmul.mubr.bf16.gmra.mrb[0].mxu0 %v2259
      %v2478 = vpop.f32.mrb[0].mxu0
      %v2479 = vadd.f32 0.0, %v2478
      %v2480 = vpop.f32.mrb[0].mxu0
      %v2481 = vpop.f32.mrb[0].mxu0
      %v2482 = vadd.f32 0.0, %v2481
      %v2483 = vpop.f32.mrb[0].mxu0
      %2484 = vdwg.mxu0
      %v2485 = vadd.f32 %v1906, %v2359
      %v2486 = vadd.f32 %v1909, %v2362
      %v2487 = vadd.f32 %v1914, %v2367
      %v2488 = vadd.f32 %v1917, %v2370
      %v2489 = vadd.f32 %v1922, %v2375
      %v2490 = vadd.f32 %v1925, %v2378
      %v2491 = vadd.f32 %v1930, %v2383
      %v2492 = vadd.f32 %v1933, %v2386
      %v2493 = vadd.f32 %v1938, %v2391
      %v2494 = vadd.f32 %v1941, %v2394
      %v2495 = vadd.f32 %v1946, %v2399
      %v2496 = vadd.f32 %v1949, %v2402
      %v2497 = vadd.f32 %v1954, %v2407
      %v2498 = vadd.f32 %v1957, %v2410
      %v2499 = vadd.f32 %v1962, %v2415
      %v2500 = vadd.f32 %v1965, %v2418
      %v2501 = vadd.f32 %v1970, %v2423
      %v2502 = vadd.f32 %v1973, %v2426
      %v2503 = vadd.f32 %v1978, %v2431
      %v2504 = vadd.f32 %v1981, %v2434
      %v2505 = vadd.f32 %v1986, %v2439
      %v2506 = vadd.f32 %v1989, %v2442
      %v2507 = vadd.f32 %v1994, %v2447
      %v2508 = vadd.f32 %v1997, %v2450
      %v2509 = vadd.f32 %v2002, %v2455
      %v2510 = vadd.f32 %v2005, %v2458
      %v2511 = vadd.f32 %v2010, %v2463
      %v2512 = vadd.f32 %v2013, %v2466
      %v2513 = vadd.f32 %v2018, %v2471
      %v2514 = vadd.f32 %v2021, %v2474
      %v2515 = vadd.f32 %v2026, %v2479
      %v2516 = vadd.f32 %v2029, %v2482
      %v2517 = vld [vmem:[%s868] sm:$0xf]
      %v2518 = vld [vmem:[%s868 + $0x4] sm:$0xf]
      %v2519 = vld [vmem:[%s868 + $0xc] sm:$0xf]
      %v2520 = vld [vmem:[%s868 + $0x10] sm:$0xf]
      %v2521 = vld [vmem:[%s868 + $0x18] sm:$0xf]
      %v2522 = vld [vmem:[%s868 + $0x1c] sm:$0xf]
      %v2523 = vld [vmem:[%s868 + $0x24] sm:$0xf]
      %v2524 = vld [vmem:[%s868 + $0x28] sm:$0xf]
      %v2525 = vld [vmem:[%s868 + $0x30] sm:$0xf]
      %v2526 = vld [vmem:[%s868 + $0x34] sm:$0xf]
      %v2527 = vld [vmem:[%s868 + $0x3c] sm:$0xf]
      %v2528 = vld [vmem:[%s868 + $0x40] sm:$0xf]
      %v2529 = vld [vmem:[%s868 + $0x48] sm:$0xf]
      %v2530 = vld [vmem:[%s868 + $0x4c] sm:$0xf]
      %v2531 = vld [vmem:[%s868 + $0x54] sm:$0xf]
      %v2532 = vld [vmem:[%s868 + $0x58] sm:$0xf]
      %v2533 = vld [vmem:[%s868 + $0x60] sm:$0xf]
      %v2534 = vld [vmem:[%s868 + $0x64] sm:$0xf]
      %v2535 = vld [vmem:[%s868 + $0x6c] sm:$0xf]
      %v2536 = vld [vmem:[%s868 + $0x70] sm:$0xf]
      %v2537 = vld [vmem:[%s868 + $0x78] sm:$0xf]
      %v2538 = vld [vmem:[%s868 + $0x7c] sm:$0xf]
      %v2539 = vld [vmem:[%s868 + $0x84] sm:$0xf]
      %v2540 = vld [vmem:[%s868 + $0x88] sm:$0xf]
      %v2541 = vld [vmem:[%s868 + $0x90] sm:$0xf]
      %v2542 = vld [vmem:[%s868 + $0x94] sm:$0xf]
      %v2543 = vld [vmem:[%s868 + $0x9c] sm:$0xf]
      %v2544 = vld [vmem:[%s868 + $0xa0] sm:$0xf]
      %v2545 = vld [vmem:[%s868 + $0xa8] sm:$0xf]
      %v2546 = vld [vmem:[%s868 + $0xac] sm:$0xf]
      %v2547 = vld [vmem:[%s868 + $0xb4] sm:$0xf]
      %v2548 = vld [vmem:[%s868 + $0xb8] sm:$0xf]
      %s2549 = scalar_lea.vmem %s1, 192
      %v2550 = vld [vmem:[%s2549] sm:$0xf]
      %v2551 = vld [vmem:[%s2549 + $0x4] sm:$0xf]
      %v2552 = vld [vmem:[%s2549 + $0x8] sm:$0xf]
      %v2553 = vld [vmem:[%s2549 + $0xc] sm:$0xf]
      %v2554 = vld [vmem:[%s2549 + $0x10] sm:$0xf]
      %v2555 = vld [vmem:[%s2549 + $0x14] sm:$0xf]
      %v2556 = vld [vmem:[%s2549 + $0x18] sm:$0xf]
      %v2557 = vld [vmem:[%s2549 + $0x1c] sm:$0xf]
      %v2558 = vld [vmem:[%s2549 + $0x20] sm:$0xf]
      %v2559 = vld [vmem:[%s2549 + $0x24] sm:$0xf]
      %v2560 = vld [vmem:[%s2549 + $0x28] sm:$0xf]
      %v2561 = vld [vmem:[%s2549 + $0x2c] sm:$0xf]
      %v2562 = vld [vmem:[%s2549 + $0x30] sm:$0xf]
      %v2563 = vld [vmem:[%s2549 + $0x34] sm:$0xf]
      %v2564 = vld [vmem:[%s2549 + $0x38] sm:$0xf]
      %v2565 = vld [vmem:[%s2549 + $0x3c] sm:$0xf]
      %v2598 = vunpack.c.l.b16 %v2517
      %v2599 = vunpack.c.l.b16 %v2518
      %v2600 = vunpack.c.l.b16 %v2519
      %v2601 = vunpack.c.l.b16 %v2520
      %v2602 = vunpack.c.l.b16 %v2521
      %v2603 = vunpack.c.l.b16 %v2522
      %v2604 = vunpack.c.l.b16 %v2523
      %v2605 = vunpack.c.l.b16 %v2524
      %v2606 = vunpack.c.l.b16 %v2525
      %v2607 = vunpack.c.l.b16 %v2526
      %v2608 = vunpack.c.l.b16 %v2527
      %v2609 = vunpack.c.l.b16 %v2528
      %v2610 = vunpack.c.l.b16 %v2529
      %v2611 = vunpack.c.l.b16 %v2530
      %v2612 = vunpack.c.l.b16 %v2531
      %v2613 = vunpack.c.l.b16 %v2532
      %v2614 = vunpack.c.l.b16 %v2533
      %v2615 = vunpack.c.l.b16 %v2534
      %v2616 = vunpack.c.l.b16 %v2535
      %v2617 = vunpack.c.l.b16 %v2536
      %v2618 = vunpack.c.l.b16 %v2537
      %v2619 = vunpack.c.l.b16 %v2538
      %v2620 = vunpack.c.l.b16 %v2539
      %v2621 = vunpack.c.l.b16 %v2540
      %v2622 = vunpack.c.l.b16 %v2541
      %v2623 = vunpack.c.l.b16 %v2542
      %v2624 = vunpack.c.l.b16 %v2543
      %v2625 = vunpack.c.l.b16 %v2544
      %v2626 = vunpack.c.l.b16 %v2545
      %v2627 = vunpack.c.l.b16 %v2546
      %v2628 = vunpack.c.l.b16 %v2547
      %v2629 = vunpack.c.l.b16 %v2548
      %v2630 = vpack.c.b16 %v2599, %v2598
      %v2631 = vpack.c.b16 %v2601, %v2600
      %v2632 = vpack.c.b16 %v2603, %v2602
      %v2633 = vpack.c.b16 %v2605, %v2604
      %v2634 = vpack.c.b16 %v2607, %v2606
      %v2635 = vpack.c.b16 %v2609, %v2608
      %v2636 = vpack.c.b16 %v2611, %v2610
      %v2637 = vpack.c.b16 %v2613, %v2612
      %v2638 = vpack.c.b16 %v2615, %v2614
      %v2639 = vpack.c.b16 %v2617, %v2616
      %v2640 = vpack.c.b16 %v2619, %v2618
      %v2641 = vpack.c.b16 %v2621, %v2620
      %v2642 = vpack.c.b16 %v2623, %v2622
      %v2643 = vpack.c.b16 %v2625, %v2624
      %v2644 = vpack.c.b16 %v2627, %v2626
      %v2645 = vpack.c.b16 %v2629, %v2628
      %v2678 = vunpack.c.l.b16 %v2550
      %v2679 = vunpack.c.l.b16 %v2551
      %v2680 = vunpack.c.l.b16 %v2552
      %v2681 = vunpack.c.l.b16 %v2553
      %v2682 = vunpack.c.l.b16 %v2554
      %v2683 = vunpack.c.l.b16 %v2555
      %v2684 = vunpack.c.l.b16 %v2556
      %v2685 = vunpack.c.l.b16 %v2557
      %v2686 = vunpack.c.l.b16 %v2558
      %v2687 = vunpack.c.l.b16 %v2559
      %v2688 = vunpack.c.l.b16 %v2560
      %v2689 = vunpack.c.l.b16 %v2561
      %v2690 = vunpack.c.l.b16 %v2562
      %v2691 = vunpack.c.l.b16 %v2563
      %v2692 = vunpack.c.l.b16 %v2564
      %v2693 = vunpack.c.l.b16 %v2565
      %v2694 = vpack.c.b16 %v2679, %v2678
      %v2695 = vpack.c.b16 %v2681, %v2680
      %v2696 = vpack.c.b16 %v2683, %v2682
      %v2697 = vpack.c.b16 %v2685, %v2684
      %v2698 = vpack.c.b16 %v2687, %v2686
      %v2699 = vpack.c.b16 %v2689, %v2688
      %v2700 = vpack.c.b16 %v2691, %v2690
      %v2701 = vpack.c.b16 %v2693, %v2692
      %2710 = vmatprep.subr.bf16.mxu0 0
      %2711 = vmatpush1.bf16.msra.mxu0 %v2694
      %2712 = vmatprep.subr.bf16.mxu0 0
      %2713 = vmatpush1.bf16.msra.mxu0 %v2695
      %2714 = vmatprep.subr.bf16.mxu0 0
      %2715 = vmatpush1.bf16.msra.mxu0 %v2696
      %2716 = vmatprep.subr.bf16.mxu0 0
      %2717 = vmatpush1.bf16.msra.mxu0 %v2697
      %2718 = vmatprep.subr.bf16.mxu0 0
      %2719 = vmatpush1.bf16.msra.mxu0 %v2698
      %2720 = vmatprep.subr.bf16.mxu0 0
      %2721 = vmatpush1.bf16.msra.mxu0 %v2699
      %2722 = vmatprep.subr.bf16.mxu0 0
      %2723 = vmatpush1.bf16.msra.mxu0 %v2700
      %2724 = vmatprep.subr.bf16.mxu0 0
      %2725 = vmatpush1.bf16.msra.mxu0 %v2701
      %2726 = vmatprep.subr.bf16.mxu0 0
      %2727 = vmatpush1.bf16.msra.mxu0 0
      %2728 = vmatprep.subr.bf16.mxu0 0
      %2729 = vmatpush1.bf16.msra.mxu0 0
      %2730 = vmatprep.subr.bf16.mxu0 0
      %2731 = vmatpush1.bf16.msra.mxu0 0
      %2732 = vmatprep.subr.bf16.mxu0 0
      %2733 = vmatpush1.bf16.msra.mxu0 0
      %2734 = vmatprep.subr.bf16.mxu0 0
      %2735 = vmatpush1.bf16.msra.mxu0 0
      %2736 = vmatprep.subr.bf16.mxu0 0
      %2737 = vmatpush1.bf16.msra.mxu0 0
      %2738 = vmatprep.subr.bf16.mxu0 0
      %2739 = vmatpush1.bf16.msra.mxu0 0
      %2740 = vmatprep.subr.bf16.mxu0 0
      %2741 = vmatpush1.bf16.msra.mxu0 0
      %2742 = vmatprep.mubr.bf16.mxu0 0
      %2743 = vmatmul.mubr.bf16.gmra.mrb[0].mxu0 %v2630
      %v2744 = vpop.f32.mrb[0].mxu0
      %v2745 = vadd.f32 0.0, %v2744
      %v2746 = vpop.f32.mrb[0].mxu0
      %v2747 = vpop.f32.mrb[0].mxu0
      %v2748 = vadd.f32 0.0, %v2747
      %v2749 = vpop.f32.mrb[0].mxu0
      %2750 = vmatprep.mubr.bf16.mxu0 0
      %2751 = vmatmul.mubr.bf16.gmra.mrb[0].mxu0 %v2631
      %v2752 = vpop.f32.mrb[0].mxu0
      %v2753 = vadd.f32 0.0, %v2752
      %v2754 = vpop.f32.mrb[0].mxu0
      %v2755 = vpop.f32.mrb[0].mxu0
      %v2756 = vadd.f32 0.0, %v2755
      %v2757 = vpop.f32.mrb[0].mxu0
      %2758 = vmatprep.mubr.bf16.mxu0 0
      %2759 = vmatmul.mubr.bf16.gmra.mrb[0].mxu0 %v2632
      %v2760 = vpop.f32.mrb[0].mxu0
      %v2761 = vadd.f32 0.0, %v2760
      %v2762 = vpop.f32.mrb[0].mxu0
      %v2763 = vpop.f32.mrb[0].mxu0
      %v2764 = vadd.f32 0.0, %v2763
      %v2765 = vpop.f32.mrb[0].mxu0
      %2766 = vmatprep.mubr.bf16.mxu0 0
      %2767 = vmatmul.mubr.bf16.gmra.mrb[0].mxu0 %v2633
      %v2768 = vpop.f32.mrb[0].mxu0
      %v2769 = vadd.f32 0.0, %v2768
      %v2770 = vpop.f32.mrb[0].mxu0
      %v2771 = vpop.f32.mrb[0].mxu0
      %v2772 = vadd.f32 0.0, %v2771
      %v2773 = vpop.f32.mrb[0].mxu0
      %2774 = vmatprep.mubr.bf16.mxu0 0
      %2775 = vmatmul.mubr.bf16.gmra.mrb[0].mxu0 %v2634
      %v2776 = vpop.f32.mrb[0].mxu0
      %v2777 = vadd.f32 0.0, %v2776
      %v2778 = vpop.f32.mrb[0].mxu0
      %v2779 = vpop.f32.mrb[0].mxu0
      %v2780 = vadd.f32 0.0, %v2779
      %v2781 = vpop.f32.mrb[0].mxu0
      %2782 = vmatprep.mubr.bf16.mxu0 0
      %2783 = vmatmul.mubr.bf16.gmra.mrb[0].mxu0 %v2635
      %v2784 = vpop.f32.mrb[0].mxu0
      %v2785 = vadd.f32 0.0, %v2784
      %v2786 = vpop.f32.mrb[0].mxu0
      %v2787 = vpop.f32.mrb[0].mxu0
      %v2788 = vadd.f32 0.0, %v2787
      %v2789 = vpop.f32.mrb[0].mxu0
      %2790 = vmatprep.mubr.bf16.mxu0 0
      %2791 = vmatmul.mubr.bf16.gmra.mrb[0].mxu0 %v2636
      %v2792 = vpop.f32.mrb[0].mxu0
      %v2793 = vadd.f32 0.0, %v2792
      %v2794 = vpop.f32.mrb[0].mxu0
      %v2795 = vpop.f32.mrb[0].mxu0
      %v2796 = vadd.f32 0.0, %v2795
      %v2797 = vpop.f32.mrb[0].mxu0
      %2798 = vmatprep.mubr.bf16.mxu0 0
      %2799 = vmatmul.mubr.bf16.gmra.mrb[0].mxu0 %v2637
      %v2800 = vpop.f32.mrb[0].mxu0
      %v2801 = vadd.f32 0.0, %v2800
      %v2802 = vpop.f32.mrb[0].mxu0
      %v2803 = vpop.f32.mrb[0].mxu0
      %v2804 = vadd.f32 0.0, %v2803
      %v2805 = vpop.f32.mrb[0].mxu0
      %2806 = vmatprep.mubr.bf16.mxu0 0
      %2807 = vmatmul.mubr.bf16.gmra.mrb[0].mxu0 %v2638
      %v2808 = vpop.f32.mrb[0].mxu0
      %v2809 = vadd.f32 0.0, %v2808
      %v2810 = vpop.f32.mrb[0].mxu0
      %v2811 = vpop.f32.mrb[0].mxu0
      %v2812 = vadd.f32 0.0, %v2811
      %v2813 = vpop.f32.mrb[0].mxu0
      %2814 = vmatprep.mubr.bf16.mxu0 0
      %2815 = vmatmul.mubr.bf16.gmra.mrb[0].mxu0 %v2639
      %v2816 = vpop.f32.mrb[0].mxu0
      %v2817 = vadd.f32 0.0, %v2816
      %v2818 = vpop.f32.mrb[0].mxu0
      %v2819 = vpop.f32.mrb[0].mxu0
      %v2820 = vadd.f32 0.0, %v2819
      %v2821 = vpop.f32.mrb[0].mxu0
      %2822 = vmatprep.mubr.bf16.mxu0 0
      %2823 = vmatmul.mubr.bf16.gmra.mrb[0].mxu0 %v2640
      %v2824 = vpop.f32.mrb[0].mxu0
      %v2825 = vadd.f32 0.0, %v2824
      %v2826 = vpop.f32.mrb[0].mxu0
      %v2827 = vpop.f32.mrb[0].mxu0
      %v2828 = vadd.f32 0.0, %v2827
      %v2829 = vpop.f32.mrb[0].mxu0
      %2830 = vmatprep.mubr.bf16.mxu0 0
      %2831 = vmatmul.mubr.bf16.gmra.mrb[0].mxu0 %v2641
      %v2832 = vpop.f32.mrb[0].mxu0
      %v2833 = vadd.f32 0.0, %v2832
      %v2834 = vpop.f32.mrb[0].mxu0
      %v2835 = vpop.f32.mrb[0].mxu0
      %v2836 = vadd.f32 0.0, %v2835
      %v2837 = vpop.f32.mrb[0].mxu0
      %2838 = vmatprep.mubr.bf16.mxu0 0
      %2839 = vmatmul.mubr.bf16.gmra.mrb[0].mxu0 %v2642
      %v2840 = vpop.f32.mrb[0].mxu0
      %v2841 = vadd.f32 0.0, %v2840
      %v2842 = vpop.f32.mrb[0].mxu0
      %v2843 = vpop.f32.mrb[0].mxu0
      %v2844 = vadd.f32 0.0, %v2843
      %v2845 = vpop.f32.mrb[0].mxu0
      %2846 = vmatprep.mubr.bf16.mxu0 0
      %2847 = vmatmul.mubr.bf16.gmra.mrb[0].mxu0 %v2643
      %v2848 = vpop.f32.mrb[0].mxu0
      %v2849 = vadd.f32 0.0, %v2848
      %v2850 = vpop.f32.mrb[0].mxu0
      %v2851 = vpop.f32.mrb[0].mxu0
      %v2852 = vadd.f32 0.0, %v2851
      %v2853 = vpop.f32.mrb[0].mxu0
      %2854 = vmatprep.mubr.bf16.mxu0 0
      %2855 = vmatmul.mubr.bf16.gmra.mrb[0].mxu0 %v2644
      %v2856 = vpop.f32.mrb[0].mxu0
      %v2857 = vadd.f32 0.0, %v2856
      %v2858 = vpop.f32.mrb[0].mxu0
      %v2859 = vpop.f32.mrb[0].mxu0
      %v2860 = vadd.f32 0.0, %v2859
      %v2861 = vpop.f32.mrb[0].mxu0
      %2862 = vmatprep.mubr.bf16.mxu0 0
      %2863 = vmatmul.mubr.bf16.gmra.mrb[0].mxu0 %v2645
      %v2864 = vpop.f32.mrb[0].mxu0
      %v2865 = vadd.f32 0.0, %v2864
      %v2866 = vpop.f32.mrb[0].mxu0
      %v2867 = vpop.f32.mrb[0].mxu0
      %v2868 = vadd.f32 0.0, %v2867
      %v2869 = vpop.f32.mrb[0].mxu0
      %2870 = vdwg.mxu0
      %v2871 = vadd.f32 %v2485, %v2745
      %v2872 = vadd.f32 %v2486, %v2748
      %v2873 = vadd.f32 %v2487, %v2753
      %v2874 = vadd.f32 %v2488, %v2756
      %v2875 = vadd.f32 %v2489, %v2761
      %v2876 = vadd.f32 %v2490, %v2764
      %v2877 = vadd.f32 %v2491, %v2769
      %v2878 = vadd.f32 %v2492, %v2772
      %v2879 = vadd.f32 %v2493, %v2777
      %v2880 = vadd.f32 %v2494, %v2780
      %v2881 = vadd.f32 %v2495, %v2785
      %v2882 = vadd.f32 %v2496, %v2788
      %v2883 = vadd.f32 %v2497, %v2793
      %v2884 = vadd.f32 %v2498, %v2796
      %v2885 = vadd.f32 %v2499, %v2801
      %v2886 = vadd.f32 %v2500, %v2804
      %v2887 = vadd.f32 %v2501, %v2809
      %v2888 = vadd.f32 %v2502, %v2812
      %v2889 = vadd.f32 %v2503, %v2817
      %v2890 = vadd.f32 %v2504, %v2820
      %v2891 = vadd.f32 %v2505, %v2825
      %v2892 = vadd.f32 %v2506, %v2828
      %v2893 = vadd.f32 %v2507, %v2833
      %v2894 = vadd.f32 %v2508, %v2836
      %v2895 = vadd.f32 %v2509, %v2841
      %v2896 = vadd.f32 %v2510, %v2844
      %v2897 = vadd.f32 %v2511, %v2849
      %v2898 = vadd.f32 %v2512, %v2852
      %v2899 = vadd.f32 %v2513, %v2857
      %v2900 = vadd.f32 %v2514, %v2860
      %v2901 = vadd.f32 %v2515, %v2865
      %v2902 = vadd.f32 %v2516, %v2868
      %v2903 = vld [vmem:[%s868] sm:$0xf]
      %v2904 = vld [vmem:[%s868 + $0x4] sm:$0xf]
      %v2905 = vld [vmem:[%s868 + $0x8] sm:$0x1]
      %v2906 = vld [vmem:[%s868 + $0xc] sm:$0xf]
      %v2907 = vld [vmem:[%s868 + $0x10] sm:$0xf]
      %v2908 = vld [vmem:[%s868 + $0x14] sm:$0x1]
      %v2909 = vld [vmem:[%s868 + $0x18] sm:$0xf]
      %v2910 = vld [vmem:[%s868 + $0x1c] sm:$0xf]
      %v2911 = vld [vmem:[%s868 + $0x20] sm:$0x1]
      %v2912 = vld [vmem:[%s868 + $0x24] sm:$0xf]
      %v2913 = vld [vmem:[%s868 + $0x28] sm:$0xf]
      %v2914 = vld [vmem:[%s868 + $0x2c] sm:$0x1]
      %v2915 = vld [vmem:[%s868 + $0x30] sm:$0xf]
      %v2916 = vld [vmem:[%s868 + $0x34] sm:$0xf]
      %v2917 = vld [vmem:[%s868 + $0x38] sm:$0x1]
      %v2918 = vld [vmem:[%s868 + $0x3c] sm:$0xf]
      %v2919 = vld [vmem:[%s868 + $0x40] sm:$0xf]
      %v2920 = vld [vmem:[%s868 + $0x44] sm:$0x1]
      %v2921 = vld [vmem:[%s868 + $0x48] sm:$0xf]
      %v2922 = vld [vmem:[%s868 + $0x4c] sm:$0xf]
      %v2923 = vld [vmem:[%s868 + $0x50] sm:$0x1]
      %v2924 = vld [vmem:[%s868 + $0x54] sm:$0xf]
      %v2925 = vld [vmem:[%s868 + $0x58] sm:$0xf]
      %v2926 = vld [vmem:[%s868 + $0x5c] sm:$0x1]
      %v2927 = vld [vmem:[%s868 + $0x60] sm:$0xf]
      %v2928 = vld [vmem:[%s868 + $0x64] sm:$0xf]
      %v2929 = vld [vmem:[%s868 + $0x68] sm:$0x1]
      %v2930 = vld [vmem:[%s868 + $0x6c] sm:$0xf]
      %v2931 = vld [vmem:[%s868 + $0x70] sm:$0xf]
      %v2932 = vld [vmem:[%s868 + $0x74] sm:$0x1]
      %v2933 = vld [vmem:[%s868 + $0x78] sm:$0xf]
      %v2934 = vld [vmem:[%s868 + $0x7c] sm:$0xf]
      %v2935 = vld [vmem:[%s868 + $0x80] sm:$0x1]
      %v2936 = vld [vmem:[%s868 + $0x84] sm:$0xf]
      %v2937 = vld [vmem:[%s868 + $0x88] sm:$0xf]
      %v2938 = vld [vmem:[%s868 + $0x8c] sm:$0x1]
      %v2939 = vld [vmem:[%s868 + $0x90] sm:$0xf]
      %v2940 = vld [vmem:[%s868 + $0x94] sm:$0xf]
      %v2941 = vld [vmem:[%s868 + $0x98] sm:$0x1]
      %v2942 = vld [vmem:[%s868 + $0x9c] sm:$0xf]
      %v2943 = vld [vmem:[%s868 + $0xa0] sm:$0xf]
      %v2944 = vld [vmem:[%s868 + $0xa4] sm:$0x1]
      %v2945 = vld [vmem:[%s868 + $0xa8] sm:$0xf]
      %v2946 = vld [vmem:[%s868 + $0xac] sm:$0xf]
      %v2947 = vld [vmem:[%s868 + $0xb0] sm:$0x1]
      %v2948 = vld [vmem:[%s868 + $0xb4] sm:$0xf]
      %v2949 = vld [vmem:[%s868 + $0xb8] sm:$0xf]
      %v2950 = vld [vmem:[%s868 + $0xbc] sm:$0x1]
      %v2952 = vshrl.u32 %v2903, 16
      %v2954 = vrot.slane %v2952, 4
      %v2955 = vshll.u32 %v2903, 16
      %v2957 = vrot.slane %v2955, 5
      %v2958 = vor.u32 %v2954, %v2957
      %v2959 = vrot.slane %v2958, 4
      %v2961 = vshll.u32 %v2904, 16
      %v2963 = vrot.slane %v2961, 5
      %v2964 = vsel %vm1052, %v2959, %v2963
      %v2965 = vshrl.u32 %v2904, 16
      %v2967 = vrot.slane %v2965, 4
      %v2968 = vor.u32 %v2967, %v2963
      %v2969 = vrot.slane %v2968, 4
      %v2971 = vshll.u32 %v2905, 16
      %v2973 = vrot.slane %v2971, 5
      %v2974 = vsel %vm1052, %v2969, %v2973
      %v2976 = vshrl.u32 %v2906, 16
      %v2978 = vrot.slane %v2976, 4
      %v2979 = vshll.u32 %v2906, 16
      %v2981 = vrot.slane %v2979, 5
      %v2982 = vor.u32 %v2978, %v2981
      %v2983 = vrot.slane %v2982, 4
      %v2985 = vshll.u32 %v2907, 16
      %v2987 = vrot.slane %v2985, 5
      %v2988 = vsel %vm1052, %v2983, %v2987
      %v2989 = vshrl.u32 %v2907, 16
      %v2991 = vrot.slane %v2989, 4
      %v2992 = vor.u32 %v2991, %v2987
      %v2993 = vrot.slane %v2992, 4
      %v2995 = vshll.u32 %v2908, 16
      %v2997 = vrot.slane %v2995, 5
      %v2998 = vsel %vm1052, %v2993, %v2997
      %v3000 = vshrl.u32 %v2909, 16
      %v3002 = vrot.slane %v3000, 4
      %v3003 = vshll.u32 %v2909, 16
      %v3005 = vrot.slane %v3003, 5
      %v3006 = vor.u32 %v3002, %v3005
      %v3007 = vrot.slane %v3006, 4
      %v3009 = vshll.u32 %v2910, 16
      %v3011 = vrot.slane %v3009, 5
      %v3012 = vsel %vm1052, %v3007, %v3011
      %v3013 = vshrl.u32 %v2910, 16
      %v3015 = vrot.slane %v3013, 4
      %v3016 = vor.u32 %v3015, %v3011
      %v3017 = vrot.slane %v3016, 4
      %v3019 = vshll.u32 %v2911, 16
      %v3021 = vrot.slane %v3019, 5
      %v3022 = vsel %vm1052, %v3017, %v3021
      %v3024 = vshrl.u32 %v2912, 16
      %v3026 = vrot.slane %v3024, 4
      %v3027 = vshll.u32 %v2912, 16
      %v3029 = vrot.slane %v3027, 5
      %v3030 = vor.u32 %v3026, %v3029
      %v3031 = vrot.slane %v3030, 4
      %v3033 = vshll.u32 %v2913, 16
      %v3035 = vrot.slane %v3033, 5
      %v3036 = vsel %vm1052, %v3031, %v3035
      %v3037 = vshrl.u32 %v2913, 16
      %v3039 = vrot.slane %v3037, 4
      %v3040 = vor.u32 %v3039, %v3035
      %v3041 = vrot.slane %v3040, 4
      %v3043 = vshll.u32 %v2914, 16
      %v3045 = vrot.slane %v3043, 5
      %v3046 = vsel %vm1052, %v3041, %v3045
      %v3048 = vshrl.u32 %v2915, 16
      %v3050 = vrot.slane %v3048, 4
      %v3051 = vshll.u32 %v2915, 16
      %v3053 = vrot.slane %v3051, 5
      %v3054 = vor.u32 %v3050, %v3053
      %v3055 = vrot.slane %v3054, 4
      %v3057 = vshll.u32 %v2916, 16
      %v3059 = vrot.slane %v3057, 5
      %v3060 = vsel %vm1052, %v3055, %v3059
      %v3061 = vshrl.u32 %v2916, 16
      %v3063 = vrot.slane %v3061, 4
      %v3064 = vor.u32 %v3063, %v3059
      %v3065 = vrot.slane %v3064, 4
      %v3067 = vshll.u32 %v2917, 16
      %v3069 = vrot.slane %v3067, 5
      %v3070 = vsel %vm1052, %v3065, %v3069
      %v3072 = vshrl.u32 %v2918, 16
      %v3074 = vrot.slane %v3072, 4
      %v3075 = vshll.u32 %v2918, 16
      %v3077 = vrot.slane %v3075, 5
      %v3078 = vor.u32 %v3074, %v3077
      %v3079 = vrot.slane %v3078, 4
      %v3081 = vshll.u32 %v2919, 16
      %v3083 = vrot.slane %v3081, 5
      %v3084 = vsel %vm1052, %v3079, %v3083
      %v3085 = vshrl.u32 %v2919, 16
      %v3087 = vrot.slane %v3085, 4
      %v3088 = vor.u32 %v3087, %v3083
      %v3089 = vrot.slane %v3088, 4
      %v3091 = vshll.u32 %v2920, 16
      %v3093 = vrot.slane %v3091, 5
      %v3094 = vsel %vm1052, %v3089, %v3093
      %v3096 = vshrl.u32 %v2921, 16
      %v3098 = vrot.slane %v3096, 4
      %v3099 = vshll.u32 %v2921, 16
      %v3101 = vrot.slane %v3099, 5
      %v3102 = vor.u32 %v3098, %v3101
      %v3103 = vrot.slane %v3102, 4
      %v3105 = vshll.u32 %v2922, 16
      %v3107 = vrot.slane %v3105, 5
      %v3108 = vsel %vm1052, %v3103, %v3107
      %v3109 = vshrl.u32 %v2922, 16
      %v3111 = vrot.slane %v3109, 4
      %v3112 = vor.u32 %v3111, %v3107
      %v3113 = vrot.slane %v3112, 4
      %v3115 = vshll.u32 %v2923, 16
      %v3117 = vrot.slane %v3115, 5
      %v3118 = vsel %vm1052, %v3113, %v3117
      %v3120 = vshrl.u32 %v2924, 16
      %v3122 = vrot.slane %v3120, 4
      %v3123 = vshll.u32 %v2924, 16
      %v3125 = vrot.slane %v3123, 5
      %v3126 = vor.u32 %v3122, %v3125
      %v3127 = vrot.slane %v3126, 4
      %v3129 = vshll.u32 %v2925, 16
      %v3131 = vrot.slane %v3129, 5
      %v3132 = vsel %vm1052, %v3127, %v3131
      %v3133 = vshrl.u32 %v2925, 16
      %v3135 = vrot.slane %v3133, 4
      %v3136 = vor.u32 %v3135, %v3131
      %v3137 = vrot.slane %v3136, 4
      %v3139 = vshll.u32 %v2926, 16
      %v3141 = vrot.slane %v3139, 5
      %v3142 = vsel %vm1052, %v3137, %v3141
      %v3144 = vshrl.u32 %v2927, 16
      %v3146 = vrot.slane %v3144, 4
      %v3147 = vshll.u32 %v2927, 16
      %v3149 = vrot.slane %v3147, 5
      %v3150 = vor.u32 %v3146, %v3149
      %v3151 = vrot.slane %v3150, 4
      %v3153 = vshll.u32 %v2928, 16
      %v3155 = vrot.slane %v3153, 5
      %v3156 = vsel %vm1052, %v3151, %v3155
      %v3157 = vshrl.u32 %v2928, 16
      %v3159 = vrot.slane %v3157, 4
      %v3160 = vor.u32 %v3159, %v3155
      %v3161 = vrot.slane %v3160, 4
      %v3163 = vshll.u32 %v2929, 16
      %v3165 = vrot.slane %v3163, 5
      %v3166 = vsel %vm1052, %v3161, %v3165
      %v3168 = vshrl.u32 %v2930, 16
      %v3170 = vrot.slane %v3168, 4
      %v3171 = vshll.u32 %v2930, 16
      %v3173 = vrot.slane %v3171, 5
      %v3174 = vor.u32 %v3170, %v3173
      %v3175 = vrot.slane %v3174, 4
      %v3177 = vshll.u32 %v2931, 16
      %v3179 = vrot.slane %v3177, 5
      %v3180 = vsel %vm1052, %v3175, %v3179
      %v3181 = vshrl.u32 %v2931, 16
      %v3183 = vrot.slane %v3181, 4
      %v3184 = vor.u32 %v3183, %v3179
      %v3185 = vrot.slane %v3184, 4
      %v3187 = vshll.u32 %v2932, 16
      %v3189 = vrot.slane %v3187, 5
      %v3190 = vsel %vm1052, %v3185, %v3189
      %v3192 = vshrl.u32 %v2933, 16
      %v3194 = vrot.slane %v3192, 4
      %v3195 = vshll.u32 %v2933, 16
      %v3197 = vrot.slane %v3195, 5
      %v3198 = vor.u32 %v3194, %v3197
      %v3199 = vrot.slane %v3198, 4
      %v3201 = vshll.u32 %v2934, 16
      %v3203 = vrot.slane %v3201, 5
      %v3204 = vsel %vm1052, %v3199, %v3203
      %v3205 = vshrl.u32 %v2934, 16
      %v3207 = vrot.slane %v3205, 4
      %v3208 = vor.u32 %v3207, %v3203
      %v3209 = vrot.slane %v3208, 4
      %v3211 = vshll.u32 %v2935, 16
      %v3213 = vrot.slane %v3211, 5
      %v3214 = vsel %vm1052, %v3209, %v3213
      %v3216 = vshrl.u32 %v2936, 16
      %v3218 = vrot.slane %v3216, 4
      %v3219 = vshll.u32 %v2936, 16
      %v3221 = vrot.slane %v3219, 5
      %v3222 = vor.u32 %v3218, %v3221
      %v3223 = vrot.slane %v3222, 4
      %v3225 = vshll.u32 %v2937, 16
      %v3227 = vrot.slane %v3225, 5
      %v3228 = vsel %vm1052, %v3223, %v3227
      %v3229 = vshrl.u32 %v2937, 16
      %v3231 = vrot.slane %v3229, 4
      %v3232 = vor.u32 %v3231, %v3227
      %v3233 = vrot.slane %v3232, 4
      %v3235 = vshll.u32 %v2938, 16
      %v3237 = vrot.slane %v3235, 5
      %v3238 = vsel %vm1052, %v3233, %v3237
      %v3240 = vshrl.u32 %v2939, 16
      %v3242 = vrot.slane %v3240, 4
      %v3243 = vshll.u32 %v2939, 16
      %v3245 = vrot.slane %v3243, 5
      %v3246 = vor.u32 %v3242, %v3245
      %v3247 = vrot.slane %v3246, 4
      %v3249 = vshll.u32 %v2940, 16
      %v3251 = vrot.slane %v3249, 5
      %v3252 = vsel %vm1052, %v3247, %v3251
      %v3253 = vshrl.u32 %v2940, 16
      %v3255 = vrot.slane %v3253, 4
      %v3256 = vor.u32 %v3255, %v3251
      %v3257 = vrot.slane %v3256, 4
      %v3259 = vshll.u32 %v2941, 16
      %v3261 = vrot.slane %v3259, 5
      %v3262 = vsel %vm1052, %v3257, %v3261
      %v3264 = vshrl.u32 %v2942, 16
      %v3266 = vrot.slane %v3264, 4
      %v3267 = vshll.u32 %v2942, 16
      %v3269 = vrot.slane %v3267, 5
      %v3270 = vor.u32 %v3266, %v3269
      %v3271 = vrot.slane %v3270, 4
      %v3273 = vshll.u32 %v2943, 16
      %v3275 = vrot.slane %v3273, 5
      %v3276 = vsel %vm1052, %v3271, %v3275
      %v3277 = vshrl.u32 %v2943, 16
      %v3279 = vrot.slane %v3277, 4
      %v3280 = vor.u32 %v3279, %v3275
      %v3281 = vrot.slane %v3280, 4
      %v3283 = vshll.u32 %v2944, 16
      %v3285 = vrot.slane %v3283, 5
      %v3286 = vsel %vm1052, %v3281, %v3285
      %v3288 = vshrl.u32 %v2945, 16
      %v3290 = vrot.slane %v3288, 4
      %v3291 = vshll.u32 %v2945, 16
      %v3293 = vrot.slane %v3291, 5
      %v3294 = vor.u32 %v3290, %v3293
      %v3295 = vrot.slane %v3294, 4
      %v3297 = vshll.u32 %v2946, 16
      %v3299 = vrot.slane %v3297, 5
      %v3300 = vsel %vm1052, %v3295, %v3299
      %v3301 = vshrl.u32 %v2946, 16
      %v3303 = vrot.slane %v3301, 4
      %v3304 = vor.u32 %v3303, %v3299
      %v3305 = vrot.slane %v3304, 4
      %v3307 = vshll.u32 %v2947, 16
      %v3309 = vrot.slane %v3307, 5
      %v3310 = vsel %vm1052, %v3305, %v3309
      %v3312 = vshrl.u32 %v2948, 16
      %v3314 = vrot.slane %v3312, 4
      %v3315 = vshll.u32 %v2948, 16
      %v3317 = vrot.slane %v3315, 5
      %v3318 = vor.u32 %v3314, %v3317
      %v3319 = vrot.slane %v3318, 4
      %v3321 = vshll.u32 %v2949, 16
      %v3323 = vrot.slane %v3321, 5
      %v3324 = vsel %vm1052, %v3319, %v3323
      %v3325 = vshrl.u32 %v2949, 16
      %v3327 = vrot.slane %v3325, 4
      %v3328 = vor.u32 %v3327, %v3323
      %v3329 = vrot.slane %v3328, 4
      %v3331 = vshll.u32 %v2950, 16
      %v3333 = vrot.slane %v3331, 5
      %v3334 = vsel %vm1052, %v3329, %v3333
      %s3335 = scalar_lea.vmem %s1, 256
      %v3336 = vld [vmem:[%s3335] sm:$0xf]
      %v3337 = vld [vmem:[%s3335 + $0x4] sm:$0xf]
      %v3338 = vld [vmem:[%s3335 + $0x8] sm:$0xf]
      %v3339 = vld [vmem:[%s3335 + $0xc] sm:$0xf]
      %v3340 = vld [vmem:[%s3335 + $0x10] sm:$0xf]
      %v3341 = vld [vmem:[%s3335 + $0x14] sm:$0xf]
      %v3342 = vld [vmem:[%s3335 + $0x18] sm:$0xf]
      %v3343 = vld [vmem:[%s3335 + $0x1c] sm:$0xf]
      %v3344 = vld [vmem:[%s3335 + $0x20] sm:$0xf]
      %v3345 = vld [vmem:[%s3335 + $0x24] sm:$0xf]
      %v3346 = vld [vmem:[%s3335 + $0x28] sm:$0xf]
      %v3347 = vld [vmem:[%s3335 + $0x2c] sm:$0xf]
      %v3348 = vld [vmem:[%s3335 + $0x30] sm:$0xf]
      %v3349 = vld [vmem:[%s3335 + $0x34] sm:$0xf]
      %v3350 = vld [vmem:[%s3335 + $0x38] sm:$0xf]
      %v3351 = vld [vmem:[%s3335 + $0x3c] sm:$0xf]
      %v3352 = vunpack.c.l.b16 %v2964
      %v3353 = vunpack.c.l.b16 %v2974
      %v3354 = vunpack.c.l.b16 %v2988
      %v3355 = vunpack.c.l.b16 %v2998
      %v3356 = vunpack.c.l.b16 %v3012
      %v3357 = vunpack.c.l.b16 %v3022
      %v3358 = vunpack.c.l.b16 %v3036
      %v3359 = vunpack.c.l.b16 %v3046
      %v3360 = vunpack.c.l.b16 %v3060
      %v3361 = vunpack.c.l.b16 %v3070
      %v3362 = vunpack.c.l.b16 %v3084
      %v3363 = vunpack.c.l.b16 %v3094
      %v3364 = vunpack.c.l.b16 %v3108
      %v3365 = vunpack.c.l.b16 %v3118
      %v3366 = vunpack.c.l.b16 %v3132
      %v3367 = vunpack.c.l.b16 %v3142
      %v3368 = vunpack.c.l.b16 %v3156
      %v3369 = vunpack.c.l.b16 %v3166
      %v3370 = vunpack.c.l.b16 %v3180
      %v3371 = vunpack.c.l.b16 %v3190
      %v3372 = vunpack.c.l.b16 %v3204
      %v3373 = vunpack.c.l.b16 %v3214
      %v3374 = vunpack.c.l.b16 %v3228
      %v3375 = vunpack.c.l.b16 %v3238
      %v3376 = vunpack.c.l.b16 %v3252
      %v3377 = vunpack.c.l.b16 %v3262
      %v3378 = vunpack.c.l.b16 %v3276
      %v3379 = vunpack.c.l.b16 %v3286
      %v3380 = vunpack.c.l.b16 %v3300
      %v3381 = vunpack.c.l.b16 %v3310
      %v3382 = vunpack.c.l.b16 %v3324
      %v3383 = vunpack.c.l.b16 %v3334
      %v3384 = vpack.c.b16 %v3353, %v3352
      %v3385 = vpack.c.b16 %v3355, %v3354
      %v3386 = vpack.c.b16 %v3357, %v3356
      %v3387 = vpack.c.b16 %v3359, %v3358
      %v3388 = vpack.c.b16 %v3361, %v3360
      %v3389 = vpack.c.b16 %v3363, %v3362
      %v3390 = vpack.c.b16 %v3365, %v3364
      %v3391 = vpack.c.b16 %v3367, %v3366
      %v3392 = vpack.c.b16 %v3369, %v3368
      %v3393 = vpack.c.b16 %v3371, %v3370
      %v3394 = vpack.c.b16 %v3373, %v3372
      %v3395 = vpack.c.b16 %v3375, %v3374
      %v3396 = vpack.c.b16 %v3377, %v3376
      %v3397 = vpack.c.b16 %v3379, %v3378
      %v3398 = vpack.c.b16 %v3381, %v3380
      %v3399 = vpack.c.b16 %v3383, %v3382
      %v3432 = vunpack.c.l.b16 %v3336
      %v3433 = vunpack.c.l.b16 %v3337
      %v3434 = vunpack.c.l.b16 %v3338
      %v3435 = vunpack.c.l.b16 %v3339
      %v3436 = vunpack.c.l.b16 %v3340
      %v3437 = vunpack.c.l.b16 %v3341
      %v3438 = vunpack.c.l.b16 %v3342
      %v3439 = vunpack.c.l.b16 %v3343
      %v3440 = vunpack.c.l.b16 %v3344
      %v3441 = vunpack.c.l.b16 %v3345
      %v3442 = vunpack.c.l.b16 %v3346
      %v3443 = vunpack.c.l.b16 %v3347
      %v3444 = vunpack.c.l.b16 %v3348
      %v3445 = vunpack.c.l.b16 %v3349
      %v3446 = vunpack.c.l.b16 %v3350
      %v3447 = vunpack.c.l.b16 %v3351
      %v3448 = vpack.c.b16 %v3433, %v3432
      %v3449 = vpack.c.b16 %v3435, %v3434
      %v3450 = vpack.c.b16 %v3437, %v3436
      %v3451 = vpack.c.b16 %v3439, %v3438
      %v3452 = vpack.c.b16 %v3441, %v3440
      %v3453 = vpack.c.b16 %v3443, %v3442
      %v3454 = vpack.c.b16 %v3445, %v3444
      %v3455 = vpack.c.b16 %v3447, %v3446
      %3464 = vmatprep.subr.bf16.mxu0 0
      %3465 = vmatpush1.bf16.msra.mxu0 %v3448
      %3466 = vmatprep.subr.bf16.mxu0 0
      %3467 = vmatpush1.bf16.msra.mxu0 %v3449
      %3468 = vmatprep.subr.bf16.mxu0 0
      %3469 = vmatpush1.bf16.msra.mxu0 %v3450
      %3470 = vmatprep.subr.bf16.mxu0 0
      %3471 = vmatpush1.bf16.msra.mxu0 %v3451
      %3472 = vmatprep.subr.bf16.mxu0 0
      %3473 = vmatpush1.bf16.msra.mxu0 %v3452
      %3474 = vmatprep.subr.bf16.mxu0 0
      %3475 = vmatpush1.bf16.msra.mxu0 %v3453
      %3476 = vmatprep.subr.bf16.mxu0 0
      %3477 = vmatpush1.bf16.msra.mxu0 %v3454
      %3478 = vmatprep.subr.bf16.mxu0 0
      %3479 = vmatpush1.bf16.msra.mxu0 %v3455
      %3480 = vmatprep.subr.bf16.mxu0 0
      %3481 = vmatpush1.bf16.msra.mxu0 0
      %3482 = vmatprep.subr.bf16.mxu0 0
      %3483 = vmatpush1.bf16.msra.mxu0 0
      %3484 = vmatprep.subr.bf16.mxu0 0
      %3485 = vmatpush1.bf16.msra.mxu0 0
      %3486 = vmatprep.subr.bf16.mxu0 0
      %3487 = vmatpush1.bf16.msra.mxu0 0
      %3488 = vmatprep.subr.bf16.mxu0 0
      %3489 = vmatpush1.bf16.msra.mxu0 0
      %3490 = vmatprep.subr.bf16.mxu0 0
      %3491 = vmatpush1.bf16.msra.mxu0 0
      %3492 = vmatprep.subr.bf16.mxu0 0
      %3493 = vmatpush1.bf16.msra.mxu0 0
      %3494 = vmatprep.subr.bf16.mxu0 0
      %3495 = vmatpush1.bf16.msra.mxu0 0
      %3496 = vmatprep.mubr.bf16.mxu0 0
      %3497 = vmatmul.mubr.bf16.gmra.mrb[0].mxu0 %v3384
      %v3498 = vpop.f32.mrb[0].mxu0
      %v3499 = vadd.f32 0.0, %v3498
      %v3500 = vpop.f32.mrb[0].mxu0
      %v3501 = vpop.f32.mrb[0].mxu0
      %v3502 = vadd.f32 0.0, %v3501
      %v3503 = vpop.f32.mrb[0].mxu0
      %3504 = vmatprep.mubr.bf16.mxu0 0
      %3505 = vmatmul.mubr.bf16.gmra.mrb[0].mxu0 %v3385
      %v3506 = vpop.f32.mrb[0].mxu0
      %v3507 = vadd.f32 0.0, %v3506
      %v3508 = vpop.f32.mrb[0].mxu0
      %v3509 = vpop.f32.mrb[0].mxu0
      %v3510 = vadd.f32 0.0, %v3509
      %v3511 = vpop.f32.mrb[0].mxu0
      %3512 = vmatprep.mubr.bf16.mxu0 0
      %3513 = vmatmul.mubr.bf16.gmra.mrb[0].mxu0 %v3386
      %v3514 = vpop.f32.mrb[0].mxu0
      %v3515 = vadd.f32 0.0, %v3514
      %v3516 = vpop.f32.mrb[0].mxu0
      %v3517 = vpop.f32.mrb[0].mxu0
      %v3518 = vadd.f32 0.0, %v3517
      %v3519 = vpop.f32.mrb[0].mxu0
      %3520 = vmatprep.mubr.bf16.mxu0 0
      %3521 = vmatmul.mubr.bf16.gmra.mrb[0].mxu0 %v3387
      %v3522 = vpop.f32.mrb[0].mxu0
      %v3523 = vadd.f32 0.0, %v3522
      %v3524 = vpop.f32.mrb[0].mxu0
      %v3525 = vpop.f32.mrb[0].mxu0
      %v3526 = vadd.f32 0.0, %v3525
      %v3527 = vpop.f32.mrb[0].mxu0
      %3528 = vmatprep.mubr.bf16.mxu0 0
      %3529 = vmatmul.mubr.bf16.gmra.mrb[0].mxu0 %v3388
      %v3530 = vpop.f32.mrb[0].mxu0
      %v3531 = vadd.f32 0.0, %v3530
      %v3532 = vpop.f32.mrb[0].mxu0
      %v3533 = vpop.f32.mrb[0].mxu0
      %v3534 = vadd.f32 0.0, %v3533
      %v3535 = vpop.f32.mrb[0].mxu0
      %3536 = vmatprep.mubr.bf16.mxu0 0
      %3537 = vmatmul.mubr.bf16.gmra.mrb[0].mxu0 %v3389
      %v3538 = vpop.f32.mrb[0].mxu0
      %v3539 = vadd.f32 0.0, %v3538
      %v3540 = vpop.f32.mrb[0].mxu0
      %v3541 = vpop.f32.mrb[0].mxu0
      %v3542 = vadd.f32 0.0, %v3541
      %v3543 = vpop.f32.mrb[0].mxu0
      %3544 = vmatprep.mubr.bf16.mxu0 0
      %3545 = vmatmul.mubr.bf16.gmra.mrb[0].mxu0 %v3390
      %v3546 = vpop.f32.mrb[0].mxu0
      %v3547 = vadd.f32 0.0, %v3546
      %v3548 = vpop.f32.mrb[0].mxu0
      %v3549 = vpop.f32.mrb[0].mxu0
      %v3550 = vadd.f32 0.0, %v3549
      %v3551 = vpop.f32.mrb[0].mxu0
      %3552 = vmatprep.mubr.bf16.mxu0 0
      %3553 = vmatmul.mubr.bf16.gmra.mrb[0].mxu0 %v3391
      %v3554 = vpop.f32.mrb[0].mxu0
      %v3555 = vadd.f32 0.0, %v3554
      %v3556 = vpop.f32.mrb[0].mxu0
      %v3557 = vpop.f32.mrb[0].mxu0
      %v3558 = vadd.f32 0.0, %v3557
      %v3559 = vpop.f32.mrb[0].mxu0
      %3560 = vmatprep.mubr.bf16.mxu0 0
      %3561 = vmatmul.mubr.bf16.gmra.mrb[0].mxu0 %v3392
      %v3562 = vpop.f32.mrb[0].mxu0
      %v3563 = vadd.f32 0.0, %v3562
      %v3564 = vpop.f32.mrb[0].mxu0
      %v3565 = vpop.f32.mrb[0].mxu0
      %v3566 = vadd.f32 0.0, %v3565
      %v3567 = vpop.f32.mrb[0].mxu0
      %3568 = vmatprep.mubr.bf16.mxu0 0
      %3569 = vmatmul.mubr.bf16.gmra.mrb[0].mxu0 %v3393
      %v3570 = vpop.f32.mrb[0].mxu0
      %v3571 = vadd.f32 0.0, %v3570
      %v3572 = vpop.f32.mrb[0].mxu0
      %v3573 = vpop.f32.mrb[0].mxu0
      %v3574 = vadd.f32 0.0, %v3573
      %v3575 = vpop.f32.mrb[0].mxu0
      %3576 = vmatprep.mubr.bf16.mxu0 0
      %3577 = vmatmul.mubr.bf16.gmra.mrb[0].mxu0 %v3394
      %v3578 = vpop.f32.mrb[0].mxu0
      %v3579 = vadd.f32 0.0, %v3578
      %v3580 = vpop.f32.mrb[0].mxu0
      %v3581 = vpop.f32.mrb[0].mxu0
      %v3582 = vadd.f32 0.0, %v3581
      %v3583 = vpop.f32.mrb[0].mxu0
      %3584 = vmatprep.mubr.bf16.mxu0 0
      %3585 = vmatmul.mubr.bf16.gmra.mrb[0].mxu0 %v3395
      %v3586 = vpop.f32.mrb[0].mxu0
      %v3587 = vadd.f32 0.0, %v3586
      %v3588 = vpop.f32.mrb[0].mxu0
      %v3589 = vpop.f32.mrb[0].mxu0
      %v3590 = vadd.f32 0.0, %v3589
      %v3591 = vpop.f32.mrb[0].mxu0
      %3592 = vmatprep.mubr.bf16.mxu0 0
      %3593 = vmatmul.mubr.bf16.gmra.mrb[0].mxu0 %v3396
      %v3594 = vpop.f32.mrb[0].mxu0
      %v3595 = vadd.f32 0.0, %v3594
      %v3596 = vpop.f32.mrb[0].mxu0
      %v3597 = vpop.f32.mrb[0].mxu0
      %v3598 = vadd.f32 0.0, %v3597
      %v3599 = vpop.f32.mrb[0].mxu0
      %3600 = vmatprep.mubr.bf16.mxu0 0
      %3601 = vmatmul.mubr.bf16.gmra.mrb[0].mxu0 %v3397
      %v3602 = vpop.f32.mrb[0].mxu0
      %v3603 = vadd.f32 0.0, %v3602
      %v3604 = vpop.f32.mrb[0].mxu0
      %v3605 = vpop.f32.mrb[0].mxu0
      %v3606 = vadd.f32 0.0, %v3605
      %v3607 = vpop.f32.mrb[0].mxu0
      %3608 = vmatprep.mubr.bf16.mxu0 0
      %3609 = vmatmul.mubr.bf16.gmra.mrb[0].mxu0 %v3398
      %v3610 = vpop.f32.mrb[0].mxu0
      %v3611 = vadd.f32 0.0, %v3610
      %v3612 = vpop.f32.mrb[0].mxu0
      %v3613 = vpop.f32.mrb[0].mxu0
      %v3614 = vadd.f32 0.0, %v3613
      %v3615 = vpop.f32.mrb[0].mxu0
      %3616 = vmatprep.mubr.bf16.mxu0 0
      %3617 = vmatmul.mubr.bf16.gmra.mrb[0].mxu0 %v3399
      %v3618 = vpop.f32.mrb[0].mxu0
      %v3619 = vadd.f32 0.0, %v3618
      %v3620 = vpop.f32.mrb[0].mxu0
      %v3621 = vpop.f32.mrb[0].mxu0
      %v3622 = vadd.f32 0.0, %v3621
      %v3623 = vpop.f32.mrb[0].mxu0
      %3624 = vdwg.mxu0
      %v3625 = vadd.f32 %v2871, %v3499
      %v3626 = vadd.f32 %v2872, %v3502
      %v3627 = vadd.f32 %v2873, %v3507
      %v3628 = vadd.f32 %v2874, %v3510
      %v3629 = vadd.f32 %v2875, %v3515
      %v3630 = vadd.f32 %v2876, %v3518
      %v3631 = vadd.f32 %v2877, %v3523
      %v3632 = vadd.f32 %v2878, %v3526
      %v3633 = vadd.f32 %v2879, %v3531
      %v3634 = vadd.f32 %v2880, %v3534
      %v3635 = vadd.f32 %v2881, %v3539
      %v3636 = vadd.f32 %v2882, %v3542
      %v3637 = vadd.f32 %v2883, %v3547
      %v3638 = vadd.f32 %v2884, %v3550
      %v3639 = vadd.f32 %v2885, %v3555
      %v3640 = vadd.f32 %v2886, %v3558
      %v3641 = vadd.f32 %v2887, %v3563
      %v3642 = vadd.f32 %v2888, %v3566
      %v3643 = vadd.f32 %v2889, %v3571
      %v3644 = vadd.f32 %v2890, %v3574
      %v3645 = vadd.f32 %v2891, %v3579
      %v3646 = vadd.f32 %v2892, %v3582
      %v3647 = vadd.f32 %v2893, %v3587
      %v3648 = vadd.f32 %v2894, %v3590
      %v3649 = vadd.f32 %v2895, %v3595
      %v3650 = vadd.f32 %v2896, %v3598
      %v3651 = vadd.f32 %v2897, %v3603
      %v3652 = vadd.f32 %v2898, %v3606
      %v3653 = vadd.f32 %v2899, %v3611
      %v3654 = vadd.f32 %v2900, %v3614
      %v3655 = vadd.f32 %v2901, %v3619
      %v3656 = vadd.f32 %v2902, %v3622
      %v3657 = vld [vmem:[%s868] sm:$0xe]
      %v3658 = vld [vmem:[%s868 + $0xc] sm:$0xe]
      %v3659 = vld [vmem:[%s868 + $0x18] sm:$0xe]
      %v3660 = vld [vmem:[%s868 + $0x24] sm:$0xe]
      %v3661 = vld [vmem:[%s868 + $0x30] sm:$0xe]
      %v3662 = vld [vmem:[%s868 + $0x3c] sm:$0xe]
      %v3663 = vld [vmem:[%s868 + $0x48] sm:$0xe]
      %v3664 = vld [vmem:[%s868 + $0x54] sm:$0xe]
      %v3665 = vld [vmem:[%s868 + $0x60] sm:$0xe]
      %v3666 = vld [vmem:[%s868 + $0x6c] sm:$0xe]
      %v3667 = vld [vmem:[%s868 + $0x78] sm:$0xe]
      %v3668 = vld [vmem:[%s868 + $0x84] sm:$0xe]
      %v3669 = vld [vmem:[%s868 + $0x90] sm:$0xe]
      %v3670 = vld [vmem:[%s868 + $0x9c] sm:$0xe]
      %v3671 = vld [vmem:[%s868 + $0xa8] sm:$0xe]
      %v3672 = vld [vmem:[%s868 + $0xb4] sm:$0xe]
      %v3721 = vrot.slane %v3657, 5
      %v3722 = vrot.slane %v3721, 4
      %v3723 = vrot.slane %v2904, 5
      %v3724 = vsel %vm2082, %v3722, %v3723
      %v3725 = vrot.slane %v3723, 4
      %v3726 = vrot.slane %v2905, 5
      %v3727 = vsel %vm2082, %v3725, %v3726
      %v3728 = vrot.slane %v3658, 5
      %v3729 = vrot.slane %v3728, 4
      %v3730 = vrot.slane %v2907, 5
      %v3731 = vsel %vm2082, %v3729, %v3730
      %v3732 = vrot.slane %v3730, 4
      %v3733 = vrot.slane %v2908, 5
      %v3734 = vsel %vm2082, %v3732, %v3733
      %v3735 = vrot.slane %v3659, 5
      %v3736 = vrot.slane %v3735, 4
      %v3737 = vrot.slane %v2910, 5
      %v3738 = vsel %vm2082, %v3736, %v3737
      %v3739 = vrot.slane %v3737, 4
      %v3740 = vrot.slane %v2911, 5
      %v3741 = vsel %vm2082, %v3739, %v3740
      %v3742 = vrot.slane %v3660, 5
      %v3743 = vrot.slane %v3742, 4
      %v3744 = vrot.slane %v2913, 5
      %v3745 = vsel %vm2082, %v3743, %v3744
      %v3746 = vrot.slane %v3744, 4
      %v3747 = vrot.slane %v2914, 5
      %v3748 = vsel %vm2082, %v3746, %v3747
      %v3749 = vrot.slane %v3661, 5
      %v3750 = vrot.slane %v3749, 4
      %v3751 = vrot.slane %v2916, 5
      %v3752 = vsel %vm2082, %v3750, %v3751
      %v3753 = vrot.slane %v3751, 4
      %v3754 = vrot.slane %v2917, 5
      %v3755 = vsel %vm2082, %v3753, %v3754
      %v3756 = vrot.slane %v3662, 5
      %v3757 = vrot.slane %v3756, 4
      %v3758 = vrot.slane %v2919, 5
      %v3759 = vsel %vm2082, %v3757, %v3758
      %v3760 = vrot.slane %v3758, 4
      %v3761 = vrot.slane %v2920, 5
      %v3762 = vsel %vm2082, %v3760, %v3761
      %v3763 = vrot.slane %v3663, 5
      %v3764 = vrot.slane %v3763, 4
      %v3765 = vrot.slane %v2922, 5
      %v3766 = vsel %vm2082, %v3764, %v3765
      %v3767 = vrot.slane %v3765, 4
      %v3768 = vrot.slane %v2923, 5
      %v3769 = vsel %vm2082, %v3767, %v3768
      %v3770 = vrot.slane %v3664, 5
      %v3771 = vrot.slane %v3770, 4
      %v3772 = vrot.slane %v2925, 5
      %v3773 = vsel %vm2082, %v3771, %v3772
      %v3774 = vrot.slane %v3772, 4
      %v3775 = vrot.slane %v2926, 5
      %v3776 = vsel %vm2082, %v3774, %v3775
      %v3777 = vrot.slane %v3665, 5
      %v3778 = vrot.slane %v3777, 4
      %v3779 = vrot.slane %v2928, 5
      %v3780 = vsel %vm2082, %v3778, %v3779
      %v3781 = vrot.slane %v3779, 4
      %v3782 = vrot.slane %v2929, 5
      %v3783 = vsel %vm2082, %v3781, %v3782
      %v3784 = vrot.slane %v3666, 5
      %v3785 = vrot.slane %v3784, 4
      %v3786 = vrot.slane %v2931, 5
      %v3787 = vsel %vm2082, %v3785, %v3786
      %v3788 = vrot.slane %v3786, 4
      %v3789 = vrot.slane %v2932, 5
      %v3790 = vsel %vm2082, %v3788, %v3789
      %v3791 = vrot.slane %v3667, 5
      %v3792 = vrot.slane %v3791, 4
      %v3793 = vrot.slane %v2934, 5
      %v3794 = vsel %vm2082, %v3792, %v3793
      %v3795 = vrot.slane %v3793, 4
      %v3796 = vrot.slane %v2935, 5
      %v3797 = vsel %vm2082, %v3795, %v3796
      %v3798 = vrot.slane %v3668, 5
      %v3799 = vrot.slane %v3798, 4
      %v3800 = vrot.slane %v2937, 5
      %v3801 = vsel %vm2082, %v3799, %v3800
      %v3802 = vrot.slane %v3800, 4
      %v3803 = vrot.slane %v2938, 5
      %v3804 = vsel %vm2082, %v3802, %v3803
      %v3805 = vrot.slane %v3669, 5
      %v3806 = vrot.slane %v3805, 4
      %v3807 = vrot.slane %v2940, 5
      %v3808 = vsel %vm2082, %v3806, %v3807
      %v3809 = vrot.slane %v3807, 4
      %v3810 = vrot.slane %v2941, 5
      %v3811 = vsel %vm2082, %v3809, %v3810
      %v3812 = vrot.slane %v3670, 5
      %v3813 = vrot.slane %v3812, 4
      %v3814 = vrot.slane %v2943, 5
      %v3815 = vsel %vm2082, %v3813, %v3814
      %v3816 = vrot.slane %v3814, 4
      %v3817 = vrot.slane %v2944, 5
      %v3818 = vsel %vm2082, %v3816, %v3817
      %v3819 = vrot.slane %v3671, 5
      %v3820 = vrot.slane %v3819, 4
      %v3821 = vrot.slane %v2946, 5
      %v3822 = vsel %vm2082, %v3820, %v3821
      %v3823 = vrot.slane %v3821, 4
      %v3824 = vrot.slane %v2947, 5
      %v3825 = vsel %vm2082, %v3823, %v3824
      %v3826 = vrot.slane %v3672, 5
      %v3827 = vrot.slane %v3826, 4
      %v3828 = vrot.slane %v2949, 5
      %v3829 = vsel %vm2082, %v3827, %v3828
      %v3830 = vrot.slane %v3828, 4
      %v3831 = vrot.slane %v2950, 5
      %v3832 = vsel %vm2082, %v3830, %v3831
      %s3833 = scalar_lea.vmem %s1, 320
      %v3834 = vld [vmem:[%s3833] sm:$0xf]
      %v3835 = vld [vmem:[%s3833 + $0x4] sm:$0xf]
      %v3836 = vld [vmem:[%s3833 + $0x8] sm:$0xf]
      %v3837 = vld [vmem:[%s3833 + $0xc] sm:$0xf]
      %v3838 = vld [vmem:[%s3833 + $0x10] sm:$0xf]
      %v3839 = vld [vmem:[%s3833 + $0x14] sm:$0xf]
      %v3840 = vld [vmem:[%s3833 + $0x18] sm:$0xf]
      %v3841 = vld [vmem:[%s3833 + $0x1c] sm:$0xf]
      %v3842 = vld [vmem:[%s3833 + $0x20] sm:$0xf]
      %v3843 = vld [vmem:[%s3833 + $0x24] sm:$0xf]
      %v3844 = vld [vmem:[%s3833 + $0x28] sm:$0xf]
      %v3845 = vld [vmem:[%s3833 + $0x2c] sm:$0xf]
      %v3846 = vld [vmem:[%s3833 + $0x30] sm:$0xf]
      %v3847 = vld [vmem:[%s3833 + $0x34] sm:$0xf]
      %v3848 = vld [vmem:[%s3833 + $0x38] sm:$0xf]
      %v3849 = vld [vmem:[%s3833 + $0x3c] sm:$0xf]
      %v3850 = vunpack.c.l.b16 %v3724
      %v3851 = vunpack.c.l.b16 %v3727
      %v3852 = vunpack.c.l.b16 %v3731
      %v3853 = vunpack.c.l.b16 %v3734
      %v3854 = vunpack.c.l.b16 %v3738
      %v3855 = vunpack.c.l.b16 %v3741
      %v3856 = vunpack.c.l.b16 %v3745
      %v3857 = vunpack.c.l.b16 %v3748
      %v3858 = vunpack.c.l.b16 %v3752
      %v3859 = vunpack.c.l.b16 %v3755
      %v3860 = vunpack.c.l.b16 %v3759
      %v3861 = vunpack.c.l.b16 %v3762
      %v3862 = vunpack.c.l.b16 %v3766
      %v3863 = vunpack.c.l.b16 %v3769
      %v3864 = vunpack.c.l.b16 %v3773
      %v3865 = vunpack.c.l.b16 %v3776
      %v3866 = vunpack.c.l.b16 %v3780
      %v3867 = vunpack.c.l.b16 %v3783
      %v3868 = vunpack.c.l.b16 %v3787
      %v3869 = vunpack.c.l.b16 %v3790
      %v3870 = vunpack.c.l.b16 %v3794
      %v3871 = vunpack.c.l.b16 %v3797
      %v3872 = vunpack.c.l.b16 %v3801
      %v3873 = vunpack.c.l.b16 %v3804
      %v3874 = vunpack.c.l.b16 %v3808
      %v3875 = vunpack.c.l.b16 %v3811
      %v3876 = vunpack.c.l.b16 %v3815
      %v3877 = vunpack.c.l.b16 %v3818
      %v3878 = vunpack.c.l.b16 %v3822
      %v3879 = vunpack.c.l.b16 %v3825
      %v3880 = vunpack.c.l.b16 %v3829
      %v3881 = vunpack.c.l.b16 %v3832
      %v3882 = vpack.c.b16 %v3851, %v3850
      %v3883 = vpack.c.b16 %v3853, %v3852
      %v3884 = vpack.c.b16 %v3855, %v3854
      %v3885 = vpack.c.b16 %v3857, %v3856
      %v3886 = vpack.c.b16 %v3859, %v3858
      %v3887 = vpack.c.b16 %v3861, %v3860
      %v3888 = vpack.c.b16 %v3863, %v3862
      %v3889 = vpack.c.b16 %v3865, %v3864
      %v3890 = vpack.c.b16 %v3867, %v3866
      %v3891 = vpack.c.b16 %v3869, %v3868
      %v3892 = vpack.c.b16 %v3871, %v3870
      %v3893 = vpack.c.b16 %v3873, %v3872
      %v3894 = vpack.c.b16 %v3875, %v3874
      %v3895 = vpack.c.b16 %v3877, %v3876
      %v3896 = vpack.c.b16 %v3879, %v3878
      %v3897 = vpack.c.b16 %v3881, %v3880
      %v3930 = vunpack.c.l.b16 %v3834
      %v3931 = vunpack.c.l.b16 %v3835
      %v3932 = vunpack.c.l.b16 %v3836
      %v3933 = vunpack.c.l.b16 %v3837
      %v3934 = vunpack.c.l.b16 %v3838
      %v3935 = vunpack.c.l.b16 %v3839
      %v3936 = vunpack.c.l.b16 %v3840
      %v3937 = vunpack.c.l.b16 %v3841
      %v3938 = vunpack.c.l.b16 %v3842
      %v3939 = vunpack.c.l.b16 %v3843
      %v3940 = vunpack.c.l.b16 %v3844
      %v3941 = vunpack.c.l.b16 %v3845
      %v3942 = vunpack.c.l.b16 %v3846
      %v3943 = vunpack.c.l.b16 %v3847
      %v3944 = vunpack.c.l.b16 %v3848
      %v3945 = vunpack.c.l.b16 %v3849
      %v3946 = vpack.c.b16 %v3931, %v3930
      %v3947 = vpack.c.b16 %v3933, %v3932
      %v3948 = vpack.c.b16 %v3935, %v3934
      %v3949 = vpack.c.b16 %v3937, %v3936
      %v3950 = vpack.c.b16 %v3939, %v3938
      %v3951 = vpack.c.b16 %v3941, %v3940
      %v3952 = vpack.c.b16 %v3943, %v3942
      %v3953 = vpack.c.b16 %v3945, %v3944
      %3962 = vmatprep.subr.bf16.mxu0 0
      %3963 = vmatpush1.bf16.msra.mxu0 %v3946
      %3964 = vmatprep.subr.bf16.mxu0 0
      %3965 = vmatpush1.bf16.msra.mxu0 %v3947
      %3966 = vmatprep.subr.bf16.mxu0 0
      %3967 = vmatpush1.bf16.msra.mxu0 %v3948
      %3968 = vmatprep.subr.bf16.mxu0 0
      %3969 = vmatpush1.bf16.msra.mxu0 %v3949
      %3970 = vmatprep.subr.bf16.mxu0 0
      %3971 = vmatpush1.bf16.msra.mxu0 %v3950
      %3972 = vmatprep.subr.bf16.mxu0 0
      %3973 = vmatpush1.bf16.msra.mxu0 %v3951
      %3974 = vmatprep.subr.bf16.mxu0 0
      %3975 = vmatpush1.bf16.msra.mxu0 %v3952
      %3976 = vmatprep.subr.bf16.mxu0 0
      %3977 = vmatpush1.bf16.msra.mxu0 %v3953
      %3978 = vmatprep.subr.bf16.mxu0 0
      %3979 = vmatpush1.bf16.msra.mxu0 0
      %3980 = vmatprep.subr.bf16.mxu0 0
      %3981 = vmatpush1.bf16.msra.mxu0 0
      %3982 = vmatprep.subr.bf16.mxu0 0
      %3983 = vmatpush1.bf16.msra.mxu0 0
      %3984 = vmatprep.subr.bf16.mxu0 0
      %3985 = vmatpush1.bf16.msra.mxu0 0
      %3986 = vmatprep.subr.bf16.mxu0 0
      %3987 = vmatpush1.bf16.msra.mxu0 0
      %3988 = vmatprep.subr.bf16.mxu0 0
      %3989 = vmatpush1.bf16.msra.mxu0 0
      %3990 = vmatprep.subr.bf16.mxu0 0
      %3991 = vmatpush1.bf16.msra.mxu0 0
      %3992 = vmatprep.subr.bf16.mxu0 0
      %3993 = vmatpush1.bf16.msra.mxu0 0
      %3994 = vmatprep.mubr.bf16.mxu0 0
      %3995 = vmatmul.mubr.bf16.gmra.mrb[0].mxu0 %v3882
      %v3996 = vpop.f32.mrb[0].mxu0
      %v3997 = vadd.f32 0.0, %v3996
      %v3998 = vpop.f32.mrb[0].mxu0
      %v3999 = vpop.f32.mrb[0].mxu0
      %v4000 = vadd.f32 0.0, %v3999
      %v4001 = vpop.f32.mrb[0].mxu0
      %4002 = vmatprep.mubr.bf16.mxu0 0
      %4003 = vmatmul.mubr.bf16.gmra.mrb[0].mxu0 %v3883
      %v4004 = vpop.f32.mrb[0].mxu0
      %v4005 = vadd.f32 0.0, %v4004
      %v4006 = vpop.f32.mrb[0].mxu0
      %v4007 = vpop.f32.mrb[0].mxu0
      %v4008 = vadd.f32 0.0, %v4007
      %v4009 = vpop.f32.mrb[0].mxu0
      %4010 = vmatprep.mubr.bf16.mxu0 0
      %4011 = vmatmul.mubr.bf16.gmra.mrb[0].mxu0 %v3884
      %v4012 = vpop.f32.mrb[0].mxu0
      %v4013 = vadd.f32 0.0, %v4012
      %v4014 = vpop.f32.mrb[0].mxu0
      %v4015 = vpop.f32.mrb[0].mxu0
      %v4016 = vadd.f32 0.0, %v4015
      %v4017 = vpop.f32.mrb[0].mxu0
      %4018 = vmatprep.mubr.bf16.mxu0 0
      %4019 = vmatmul.mubr.bf16.gmra.mrb[0].mxu0 %v3885
      %v4020 = vpop.f32.mrb[0].mxu0
      %v4021 = vadd.f32 0.0, %v4020
      %v4022 = vpop.f32.mrb[0].mxu0
      %v4023 = vpop.f32.mrb[0].mxu0
      %v4024 = vadd.f32 0.0, %v4023
      %v4025 = vpop.f32.mrb[0].mxu0
      %4026 = vmatprep.mubr.bf16.mxu0 0
      %4027 = vmatmul.mubr.bf16.gmra.mrb[0].mxu0 %v3886
      %v4028 = vpop.f32.mrb[0].mxu0
      %v4029 = vadd.f32 0.0, %v4028
      %v4030 = vpop.f32.mrb[0].mxu0
      %v4031 = vpop.f32.mrb[0].mxu0
      %v4032 = vadd.f32 0.0, %v4031
      %v4033 = vpop.f32.mrb[0].mxu0
      %4034 = vmatprep.mubr.bf16.mxu0 0
      %4035 = vmatmul.mubr.bf16.gmra.mrb[0].mxu0 %v3887
      %v4036 = vpop.f32.mrb[0].mxu0
      %v4037 = vadd.f32 0.0, %v4036
      %v4038 = vpop.f32.mrb[0].mxu0
      %v4039 = vpop.f32.mrb[0].mxu0
      %v4040 = vadd.f32 0.0, %v4039
      %v4041 = vpop.f32.mrb[0].mxu0
      %4042 = vmatprep.mubr.bf16.mxu0 0
      %4043 = vmatmul.mubr.bf16.gmra.mrb[0].mxu0 %v3888
      %v4044 = vpop.f32.mrb[0].mxu0
      %v4045 = vadd.f32 0.0, %v4044
      %v4046 = vpop.f32.mrb[0].mxu0
      %v4047 = vpop.f32.mrb[0].mxu0
      %v4048 = vadd.f32 0.0, %v4047
      %v4049 = vpop.f32.mrb[0].mxu0
      %4050 = vmatprep.mubr.bf16.mxu0 0
      %4051 = vmatmul.mubr.bf16.gmra.mrb[0].mxu0 %v3889
      %v4052 = vpop.f32.mrb[0].mxu0
      %v4053 = vadd.f32 0.0, %v4052
      %v4054 = vpop.f32.mrb[0].mxu0
      %v4055 = vpop.f32.mrb[0].mxu0
      %v4056 = vadd.f32 0.0, %v4055
      %v4057 = vpop.f32.mrb[0].mxu0
      %4058 = vmatprep.mubr.bf16.mxu0 0
      %4059 = vmatmul.mubr.bf16.gmra.mrb[0].mxu0 %v3890
      %v4060 = vpop.f32.mrb[0].mxu0
      %v4061 = vadd.f32 0.0, %v4060
      %v4062 = vpop.f32.mrb[0].mxu0
      %v4063 = vpop.f32.mrb[0].mxu0
      %v4064 = vadd.f32 0.0, %v4063
      %v4065 = vpop.f32.mrb[0].mxu0
      %4066 = vmatprep.mubr.bf16.mxu0 0
      %4067 = vmatmul.mubr.bf16.gmra.mrb[0].mxu0 %v3891
      %v4068 = vpop.f32.mrb[0].mxu0
      %v4069 = vadd.f32 0.0, %v4068
      %v4070 = vpop.f32.mrb[0].mxu0
      %v4071 = vpop.f32.mrb[0].mxu0
      %v4072 = vadd.f32 0.0, %v4071
      %v4073 = vpop.f32.mrb[0].mxu0
      %4074 = vmatprep.mubr.bf16.mxu0 0
      %4075 = vmatmul.mubr.bf16.gmra.mrb[0].mxu0 %v3892
      %v4076 = vpop.f32.mrb[0].mxu0
      %v4077 = vadd.f32 0.0, %v4076
      %v4078 = vpop.f32.mrb[0].mxu0
      %v4079 = vpop.f32.mrb[0].mxu0
      %v4080 = vadd.f32 0.0, %v4079
      %v4081 = vpop.f32.mrb[0].mxu0
      %4082 = vmatprep.mubr.bf16.mxu0 0
      %4083 = vmatmul.mubr.bf16.gmra.mrb[0].mxu0 %v3893
      %v4084 = vpop.f32.mrb[0].mxu0
      %v4085 = vadd.f32 0.0, %v4084
      %v4086 = vpop.f32.mrb[0].mxu0
      %v4087 = vpop.f32.mrb[0].mxu0
      %v4088 = vadd.f32 0.0, %v4087
      %v4089 = vpop.f32.mrb[0].mxu0
      %4090 = vmatprep.mubr.bf16.mxu0 0
      %4091 = vmatmul.mubr.bf16.gmra.mrb[0].mxu0 %v3894
      %v4092 = vpop.f32.mrb[0].mxu0
      %v4093 = vadd.f32 0.0, %v4092
      %v4094 = vpop.f32.mrb[0].mxu0
      %v4095 = vpop.f32.mrb[0].mxu0
      %v4096 = vadd.f32 0.0, %v4095
      %v4097 = vpop.f32.mrb[0].mxu0
      %4098 = vmatprep.mubr.bf16.mxu0 0
      %4099 = vmatmul.mubr.bf16.gmra.mrb[0].mxu0 %v3895
      %v4100 = vpop.f32.mrb[0].mxu0
      %v4101 = vadd.f32 0.0, %v4100
      %v4102 = vpop.f32.mrb[0].mxu0
      %v4103 = vpop.f32.mrb[0].mxu0
      %v4104 = vadd.f32 0.0, %v4103
      %v4105 = vpop.f32.mrb[0].mxu0
      %4106 = vmatprep.mubr.bf16.mxu0 0
      %4107 = vmatmul.mubr.bf16.gmra.mrb[0].mxu0 %v3896
      %v4108 = vpop.f32.mrb[0].mxu0
      %v4109 = vadd.f32 0.0, %v4108
      %v4110 = vpop.f32.mrb[0].mxu0
      %v4111 = vpop.f32.mrb[0].mxu0
      %v4112 = vadd.f32 0.0, %v4111
      %v4113 = vpop.f32.mrb[0].mxu0
      %4114 = vmatprep.mubr.bf16.mxu0 0
      %4115 = vmatmul.mubr.bf16.gmra.mrb[0].mxu0 %v3897
      %v4116 = vpop.f32.mrb[0].mxu0
      %v4117 = vadd.f32 0.0, %v4116
      %v4118 = vpop.f32.mrb[0].mxu0
      %v4119 = vpop.f32.mrb[0].mxu0
      %v4120 = vadd.f32 0.0, %v4119
      %v4121 = vpop.f32.mrb[0].mxu0
      %4122 = vdwg.mxu0
      %v4123 = vadd.f32 %v3625, %v3997
      %v4124 = vadd.f32 %v3626, %v4000
      %v4125 = vadd.f32 %v3627, %v4005
      %v4126 = vadd.f32 %v3628, %v4008
      %v4127 = vadd.f32 %v3629, %v4013
      %v4128 = vadd.f32 %v3630, %v4016
      %v4129 = vadd.f32 %v3631, %v4021
      %v4130 = vadd.f32 %v3632, %v4024
      %v4131 = vadd.f32 %v3633, %v4029
      %v4132 = vadd.f32 %v3634, %v4032
      %v4133 = vadd.f32 %v3635, %v4037
      %v4134 = vadd.f32 %v3636, %v4040
      %v4135 = vadd.f32 %v3637, %v4045
      %v4136 = vadd.f32 %v3638, %v4048
      %v4137 = vadd.f32 %v3639, %v4053
      %v4138 = vadd.f32 %v3640, %v4056
      %v4139 = vadd.f32 %v3641, %v4061
      %v4140 = vadd.f32 %v3642, %v4064
      %v4141 = vadd.f32 %v3643, %v4069
      %v4142 = vadd.f32 %v3644, %v4072
      %v4143 = vadd.f32 %v3645, %v4077
      %v4144 = vadd.f32 %v3646, %v4080
      %v4145 = vadd.f32 %v3647, %v4085
      %v4146 = vadd.f32 %v3648, %v4088
      %v4147 = vadd.f32 %v3649, %v4093
      %v4148 = vadd.f32 %v3650, %v4096
      %v4149 = vadd.f32 %v3651, %v4101
      %v4150 = vadd.f32 %v3652, %v4104
      %v4151 = vadd.f32 %v3653, %v4109
      %v4152 = vadd.f32 %v3654, %v4112
      %v4153 = vadd.f32 %v3655, %v4117
      %v4154 = vadd.f32 %v3656, %v4120
      %s4155 = scalar_lea.vmem [#allocation2], 24
      %v4156 = vld [vmem:[%s4155] sm:$0xf]
      %v4157 = vld [vmem:[%s4155 + $0x4] sm:$0xf]
      %v4158 = vld [vmem:[%s4155 + $0xc] sm:$0xf]
      %v4159 = vld [vmem:[%s4155 + $0x10] sm:$0xf]
      %v4160 = vld [vmem:[%s4155 + $0x18] sm:$0xf]
      %v4161 = vld [vmem:[%s4155 + $0x1c] sm:$0xf]
      %v4162 = vld [vmem:[%s4155 + $0x24] sm:$0xf]
      %v4163 = vld [vmem:[%s4155 + $0x28] sm:$0xf]
      %v4164 = vld [vmem:[%s4155 + $0x30] sm:$0xf]
      %v4165 = vld [vmem:[%s4155 + $0x34] sm:$0xf]
      %v4166 = vld [vmem:[%s4155 + $0x3c] sm:$0xf]
      %v4167 = vld [vmem:[%s4155 + $0x40] sm:$0xf]
      %v4168 = vld [vmem:[%s4155 + $0x48] sm:$0xf]
      %v4169 = vld [vmem:[%s4155 + $0x4c] sm:$0xf]
      %v4170 = vld [vmem:[%s4155 + $0x54] sm:$0xf]
      %v4171 = vld [vmem:[%s4155 + $0x58] sm:$0xf]
      %v4172 = vld [vmem:[%s4155 + $0x60] sm:$0xf]
      %v4173 = vld [vmem:[%s4155 + $0x64] sm:$0xf]
      %v4174 = vld [vmem:[%s4155 + $0x6c] sm:$0xf]
      %v4175 = vld [vmem:[%s4155 + $0x70] sm:$0xf]
      %v4176 = vld [vmem:[%s4155 + $0x78] sm:$0xf]
      %v4177 = vld [vmem:[%s4155 + $0x7c] sm:$0xf]
      %v4178 = vld [vmem:[%s4155 + $0x84] sm:$0xf]
      %v4179 = vld [vmem:[%s4155 + $0x88] sm:$0xf]
      %v4180 = vld [vmem:[%s4155 + $0x90] sm:$0xf]
      %v4181 = vld [vmem:[%s4155 + $0x94] sm:$0xf]
      %v4182 = vld [vmem:[%s4155 + $0x9c] sm:$0xf]
      %v4183 = vld [vmem:[%s4155 + $0xa0] sm:$0xf]
      %v4184 = vld [vmem:[%s4155 + $0xa8] sm:$0xf]
      %v4185 = vld [vmem:[%s4155 + $0xac] sm:$0xf]
      %v4186 = vld [vmem:[%s4155 + $0xb4] sm:$0xf]
      %v4187 = vld [vmem:[%s4155 + $0xb8] sm:$0xf]
      %s4188 = scalar_lea.vmem %s1, 384
      %v4189 = vld [vmem:[%s4188] sm:$0xf]
      %v4190 = vld [vmem:[%s4188 + $0x4] sm:$0xf]
      %v4191 = vld [vmem:[%s4188 + $0x8] sm:$0xf]
      %v4192 = vld [vmem:[%s4188 + $0xc] sm:$0xf]
      %v4193 = vld [vmem:[%s4188 + $0x10] sm:$0xf]
      %v4194 = vld [vmem:[%s4188 + $0x14] sm:$0xf]
      %v4195 = vld [vmem:[%s4188 + $0x18] sm:$0xf]
      %v4196 = vld [vmem:[%s4188 + $0x1c] sm:$0xf]
      %v4197 = vld [vmem:[%s4188 + $0x20] sm:$0xf]
      %v4198 = vld [vmem:[%s4188 + $0x24] sm:$0xf]
      %v4199 = vld [vmem:[%s4188 + $0x28] sm:$0xf]
      %v4200 = vld [vmem:[%s4188 + $0x2c] sm:$0xf]
      %v4201 = vld [vmem:[%s4188 + $0x30] sm:$0xf]
      %v4202 = vld [vmem:[%s4188 + $0x34] sm:$0xf]
      %v4203 = vld [vmem:[%s4188 + $0x38] sm:$0xf]
      %v4204 = vld [vmem:[%s4188 + $0x3c] sm:$0xf]
      %v4237 = vunpack.c.l.b16 %v4156
      %v4238 = vunpack.c.l.b16 %v4157
      %v4239 = vunpack.c.l.b16 %v4158
      %v4240 = vunpack.c.l.b16 %v4159
      %v4241 = vunpack.c.l.b16 %v4160
      %v4242 = vunpack.c.l.b16 %v4161
      %v4243 = vunpack.c.l.b16 %v4162
      %v4244 = vunpack.c.l.b16 %v4163
      %v4245 = vunpack.c.l.b16 %v4164
      %v4246 = vunpack.c.l.b16 %v4165
      %v4247 = vunpack.c.l.b16 %v4166
      %v4248 = vunpack.c.l.b16 %v4167
      %v4249 = vunpack.c.l.b16 %v4168
      %v4250 = vunpack.c.l.b16 %v4169
      %v4251 = vunpack.c.l.b16 %v4170
      %v4252 = vunpack.c.l.b16 %v4171
      %v4253 = vunpack.c.l.b16 %v4172
      %v4254 = vunpack.c.l.b16 %v4173
      %v4255 = vunpack.c.l.b16 %v4174
      %v4256 = vunpack.c.l.b16 %v4175
      %v4257 = vunpack.c.l.b16 %v4176
      %v4258 = vunpack.c.l.b16 %v4177
      %v4259 = vunpack.c.l.b16 %v4178
      %v4260 = vunpack.c.l.b16 %v4179
      %v4261 = vunpack.c.l.b16 %v4180
      %v4262 = vunpack.c.l.b16 %v4181
      %v4263 = vunpack.c.l.b16 %v4182
      %v4264 = vunpack.c.l.b16 %v4183
      %v4265 = vunpack.c.l.b16 %v4184
      %v4266 = vunpack.c.l.b16 %v4185
      %v4267 = vunpack.c.l.b16 %v4186
      %v4268 = vunpack.c.l.b16 %v4187
      %v4269 = vpack.c.b16 %v4238, %v4237
      %v4270 = vpack.c.b16 %v4240, %v4239
      %v4271 = vpack.c.b16 %v4242, %v4241
      %v4272 = vpack.c.b16 %v4244, %v4243
      %v4273 = vpack.c.b16 %v4246, %v4245
      %v4274 = vpack.c.b16 %v4248, %v4247
      %v4275 = vpack.c.b16 %v4250, %v4249
      %v4276 = vpack.c.b16 %v4252, %v4251
      %v4277 = vpack.c.b16 %v4254, %v4253
      %v4278 = vpack.c.b16 %v4256, %v4255
      %v4279 = vpack.c.b16 %v4258, %v4257
      %v4280 = vpack.c.b16 %v4260, %v4259
      %v4281 = vpack.c.b16 %v4262, %v4261
      %v4282 = vpack.c.b16 %v4264, %v4263
      %v4283 = vpack.c.b16 %v4266, %v4265
      %v4284 = vpack.c.b16 %v4268, %v4267
      %v4317 = vunpack.c.l.b16 %v4189
      %v4318 = vunpack.c.l.b16 %v4190
      %v4319 = vunpack.c.l.b16 %v4191
      %v4320 = vunpack.c.l.b16 %v4192
      %v4321 = vunpack.c.l.b16 %v4193
      %v4322 = vunpack.c.l.b16 %v4194
      %v4323 = vunpack.c.l.b16 %v4195
      %v4324 = vunpack.c.l.b16 %v4196
      %v4325 = vunpack.c.l.b16 %v4197
      %v4326 = vunpack.c.l.b16 %v4198
      %v4327 = vunpack.c.l.b16 %v4199
      %v4328 = vunpack.c.l.b16 %v4200
      %v4329 = vunpack.c.l.b16 %v4201
      %v4330 = vunpack.c.l.b16 %v4202
      %v4331 = vunpack.c.l.b16 %v4203
      %v4332 = vunpack.c.l.b16 %v4204
      %v4333 = vpack.c.b16 %v4318, %v4317
      %v4334 = vpack.c.b16 %v4320, %v4319
      %v4335 = vpack.c.b16 %v4322, %v4321
      %v4336 = vpack.c.b16 %v4324, %v4323
      %v4337 = vpack.c.b16 %v4326, %v4325
      %v4338 = vpack.c.b16 %v4328, %v4327
      %v4339 = vpack.c.b16 %v4330, %v4329
      %v4340 = vpack.c.b16 %v4332, %v4331
      %4349 = vmatprep.subr.bf16.mxu0 0
      %4350 = vmatpush1.bf16.msra.mxu0 %v4333
      %4351 = vmatprep.subr.bf16.mxu0 0
      %4352 = vmatpush1.bf16.msra.mxu0 %v4334
      %4353 = vmatprep.subr.bf16.mxu0 0
      %4354 = vmatpush1.bf16.msra.mxu0 %v4335
      %4355 = vmatprep.subr.bf16.mxu0 0
      %4356 = vmatpush1.bf16.msra.mxu0 %v4336
      %4357 = vmatprep.subr.bf16.mxu0 0
      %4358 = vmatpush1.bf16.msra.mxu0 %v4337
      %4359 = vmatprep.subr.bf16.mxu0 0
      %4360 = vmatpush1.bf16.msra.mxu0 %v4338
      %4361 = vmatprep.subr.bf16.mxu0 0
      %4362 = vmatpush1.bf16.msra.mxu0 %v4339
      %4363 = vmatprep.subr.bf16.mxu0 0
      %4364 = vmatpush1.bf16.msra.mxu0 %v4340
      %4365 = vmatprep.subr.bf16.mxu0 0
      %4366 = vmatpush1.bf16.msra.mxu0 0
      %4367 = vmatprep.subr.bf16.mxu0 0
      %4368 = vmatpush1.bf16.msra.mxu0 0
      %4369 = vmatprep.subr.bf16.mxu0 0
      %4370 = vmatpush1.bf16.msra.mxu0 0
      %4371 = vmatprep.subr.bf16.mxu0 0
      %4372 = vmatpush1.bf16.msra.mxu0 0
      %4373 = vmatprep.subr.bf16.mxu0 0
      %4374 = vmatpush1.bf16.msra.mxu0 0
      %4375 = vmatprep.subr.bf16.mxu0 0
      %4376 = vmatpush1.bf16.msra.mxu0 0
      %4377 = vmatprep.subr.bf16.mxu0 0
      %4378 = vmatpush1.bf16.msra.mxu0 0
      %4379 = vmatprep.subr.bf16.mxu0 0
      %4380 = vmatpush1.bf16.msra.mxu0 0
      %4381 = vmatprep.mubr.bf16.mxu0 0
      %4382 = vmatmul.mubr.bf16.gmra.mrb[0].mxu0 %v4269
      %v4383 = vpop.f32.mrb[0].mxu0
      %v4384 = vadd.f32 0.0, %v4383
      %v4385 = vpop.f32.mrb[0].mxu0
      %v4386 = vpop.f32.mrb[0].mxu0
      %v4387 = vadd.f32 0.0, %v4386
      %v4388 = vpop.f32.mrb[0].mxu0
      %4389 = vmatprep.mubr.bf16.mxu0 0
      %4390 = vmatmul.mubr.bf16.gmra.mrb[0].mxu0 %v4270
      %v4391 = vpop.f32.mrb[0].mxu0
      %v4392 = vadd.f32 0.0, %v4391
      %v4393 = vpop.f32.mrb[0].mxu0
      %v4394 = vpop.f32.mrb[0].mxu0
      %v4395 = vadd.f32 0.0, %v4394
      %v4396 = vpop.f32.mrb[0].mxu0
      %4397 = vmatprep.mubr.bf16.mxu0 0
      %4398 = vmatmul.mubr.bf16.gmra.mrb[0].mxu0 %v4271
      %v4399 = vpop.f32.mrb[0].mxu0
      %v4400 = vadd.f32 0.0, %v4399
      %v4401 = vpop.f32.mrb[0].mxu0
      %v4402 = vpop.f32.mrb[0].mxu0
      %v4403 = vadd.f32 0.0, %v4402
      %v4404 = vpop.f32.mrb[0].mxu0
      %4405 = vmatprep.mubr.bf16.mxu0 0
      %4406 = vmatmul.mubr.bf16.gmra.mrb[0].mxu0 %v4272
      %v4407 = vpop.f32.mrb[0].mxu0
      %v4408 = vadd.f32 0.0, %v4407
      %v4409 = vpop.f32.mrb[0].mxu0
      %v4410 = vpop.f32.mrb[0].mxu0
      %v4411 = vadd.f32 0.0, %v4410
      %v4412 = vpop.f32.mrb[0].mxu0
      %4413 = vmatprep.mubr.bf16.mxu0 0
      %4414 = vmatmul.mubr.bf16.gmra.mrb[0].mxu0 %v4273
      %v4415 = vpop.f32.mrb[0].mxu0
      %v4416 = vadd.f32 0.0, %v4415
      %v4417 = vpop.f32.mrb[0].mxu0
      %v4418 = vpop.f32.mrb[0].mxu0
      %v4419 = vadd.f32 0.0, %v4418
      %v4420 = vpop.f32.mrb[0].mxu0
      %4421 = vmatprep.mubr.bf16.mxu0 0
      %4422 = vmatmul.mubr.bf16.gmra.mrb[0].mxu0 %v4274
      %v4423 = vpop.f32.mrb[0].mxu0
      %v4424 = vadd.f32 0.0, %v4423
      %v4425 = vpop.f32.mrb[0].mxu0
      %v4426 = vpop.f32.mrb[0].mxu0
      %v4427 = vadd.f32 0.0, %v4426
      %v4428 = vpop.f32.mrb[0].mxu0
      %4429 = vmatprep.mubr.bf16.mxu0 0
      %4430 = vmatmul.mubr.bf16.gmra.mrb[0].mxu0 %v4275
      %v4431 = vpop.f32.mrb[0].mxu0
      %v4432 = vadd.f32 0.0, %v4431
      %v4433 = vpop.f32.mrb[0].mxu0
      %v4434 = vpop.f32.mrb[0].mxu0
      %v4435 = vadd.f32 0.0, %v4434
      %v4436 = vpop.f32.mrb[0].mxu0
      %4437 = vmatprep.mubr.bf16.mxu0 0
      %4438 = vmatmul.mubr.bf16.gmra.mrb[0].mxu0 %v4276
      %v4439 = vpop.f32.mrb[0].mxu0
      %v4440 = vadd.f32 0.0, %v4439
      %v4441 = vpop.f32.mrb[0].mxu0
      %v4442 = vpop.f32.mrb[0].mxu0
      %v4443 = vadd.f32 0.0, %v4442
      %v4444 = vpop.f32.mrb[0].mxu0
      %4445 = vmatprep.mubr.bf16.mxu0 0
      %4446 = vmatmul.mubr.bf16.gmra.mrb[0].mxu0 %v4277
      %v4447 = vpop.f32.mrb[0].mxu0
      %v4448 = vadd.f32 0.0, %v4447
      %v4449 = vpop.f32.mrb[0].mxu0
      %v4450 = vpop.f32.mrb[0].mxu0
      %v4451 = vadd.f32 0.0, %v4450
      %v4452 = vpop.f32.mrb[0].mxu0
      %4453 = vmatprep.mubr.bf16.mxu0 0
      %4454 = vmatmul.mubr.bf16.gmra.mrb[0].mxu0 %v4278
      %v4455 = vpop.f32.mrb[0].mxu0
      %v4456 = vadd.f32 0.0, %v4455
      %v4457 = vpop.f32.mrb[0].mxu0
      %v4458 = vpop.f32.mrb[0].mxu0
      %v4459 = vadd.f32 0.0, %v4458
      %v4460 = vpop.f32.mrb[0].mxu0
      %4461 = vmatprep.mubr.bf16.mxu0 0
      %4462 = vmatmul.mubr.bf16.gmra.mrb[0].mxu0 %v4279
      %v4463 = vpop.f32.mrb[0].mxu0
      %v4464 = vadd.f32 0.0, %v4463
      %v4465 = vpop.f32.mrb[0].mxu0
      %v4466 = vpop.f32.mrb[0].mxu0
      %v4467 = vadd.f32 0.0, %v4466
      %v4468 = vpop.f32.mrb[0].mxu0
      %4469 = vmatprep.mubr.bf16.mxu0 0
      %4470 = vmatmul.mubr.bf16.gmra.mrb[0].mxu0 %v4280
      %v4471 = vpop.f32.mrb[0].mxu0
      %v4472 = vadd.f32 0.0, %v4471
      %v4473 = vpop.f32.mrb[0].mxu0
      %v4474 = vpop.f32.mrb[0].mxu0
      %v4475 = vadd.f32 0.0, %v4474
      %v4476 = vpop.f32.mrb[0].mxu0
      %4477 = vmatprep.mubr.bf16.mxu0 0
      %4478 = vmatmul.mubr.bf16.gmra.mrb[0].mxu0 %v4281
      %v4479 = vpop.f32.mrb[0].mxu0
      %v4480 = vadd.f32 0.0, %v4479
      %v4481 = vpop.f32.mrb[0].mxu0
      %v4482 = vpop.f32.mrb[0].mxu0
      %v4483 = vadd.f32 0.0, %v4482
      %v4484 = vpop.f32.mrb[0].mxu0
      %4485 = vmatprep.mubr.bf16.mxu0 0
      %4486 = vmatmul.mubr.bf16.gmra.mrb[0].mxu0 %v4282
      %v4487 = vpop.f32.mrb[0].mxu0
      %v4488 = vadd.f32 0.0, %v4487
      %v4489 = vpop.f32.mrb[0].mxu0
      %v4490 = vpop.f32.mrb[0].mxu0
      %v4491 = vadd.f32 0.0, %v4490
      %v4492 = vpop.f32.mrb[0].mxu0
      %4493 = vmatprep.mubr.bf16.mxu0 0
      %4494 = vmatmul.mubr.bf16.gmra.mrb[0].mxu0 %v4283
      %v4495 = vpop.f32.mrb[0].mxu0
      %v4496 = vadd.f32 0.0, %v4495
      %v4497 = vpop.f32.mrb[0].mxu0
      %v4498 = vpop.f32.mrb[0].mxu0
      %v4499 = vadd.f32 0.0, %v4498
      %v4500 = vpop.f32.mrb[0].mxu0
      %4501 = vmatprep.mubr.bf16.mxu0 0
      %4502 = vmatmul.mubr.bf16.gmra.mrb[0].mxu0 %v4284
      %v4503 = vpop.f32.mrb[0].mxu0
      %v4504 = vadd.f32 0.0, %v4503
      %v4505 = vpop.f32.mrb[0].mxu0
      %v4506 = vpop.f32.mrb[0].mxu0
      %v4507 = vadd.f32 0.0, %v4506
      %v4508 = vpop.f32.mrb[0].mxu0
      %4509 = vdwg.mxu0
      %v4510 = vadd.f32 %v4123, %v4384
      %v4511 = vadd.f32 %v4124, %v4387
      %v4512 = vadd.f32 %v4125, %v4392
      %v4513 = vadd.f32 %v4126, %v4395
      %v4514 = vadd.f32 %v4127, %v4400
      %v4515 = vadd.f32 %v4128, %v4403
      %v4516 = vadd.f32 %v4129, %v4408
      %v4517 = vadd.f32 %v4130, %v4411
      %v4518 = vadd.f32 %v4131, %v4416
      %v4519 = vadd.f32 %v4132, %v4419
      %v4520 = vadd.f32 %v4133, %v4424
      %v4521 = vadd.f32 %v4134, %v4427
      %v4522 = vadd.f32 %v4135, %v4432
      %v4523 = vadd.f32 %v4136, %v4435
      %v4524 = vadd.f32 %v4137, %v4440
      %v4525 = vadd.f32 %v4138, %v4443
      %v4526 = vadd.f32 %v4139, %v4448
      %v4527 = vadd.f32 %v4140, %v4451
      %v4528 = vadd.f32 %v4141, %v4456
      %v4529 = vadd.f32 %v4142, %v4459
      %v4530 = vadd.f32 %v4143, %v4464
      %v4531 = vadd.f32 %v4144, %v4467
      %v4532 = vadd.f32 %v4145, %v4472
      %v4533 = vadd.f32 %v4146, %v4475
      %v4534 = vadd.f32 %v4147, %v4480
      %v4535 = vadd.f32 %v4148, %v4483
      %v4536 = vadd.f32 %v4149, %v4488
      %v4537 = vadd.f32 %v4150, %v4491
      %v4538 = vadd.f32 %v4151, %v4496
      %v4539 = vadd.f32 %v4152, %v4499
      %v4540 = vadd.f32 %v4153, %v4504
      %v4541 = vadd.f32 %v4154, %v4507
      %v4542 = vld [vmem:[%s4155] sm:$0xf]
      %v4543 = vld [vmem:[%s4155 + $0x4] sm:$0xf]
      %v4544 = vld [vmem:[%s4155 + $0x8] sm:$0x1]
      %v4545 = vld [vmem:[%s4155 + $0xc] sm:$0xf]
      %v4546 = vld [vmem:[%s4155 + $0x10] sm:$0xf]
      %v4547 = vld [vmem:[%s4155 + $0x14] sm:$0x1]
      %v4548 = vld [vmem:[%s4155 + $0x18] sm:$0xf]
      %v4549 = vld [vmem:[%s4155 + $0x1c] sm:$0xf]
      %v4550 = vld [vmem:[%s4155 + $0x20] sm:$0x1]
      %v4551 = vld [vmem:[%s4155 + $0x24] sm:$0xf]
      %v4552 = vld [vmem:[%s4155 + $0x28] sm:$0xf]
      %v4553 = vld [vmem:[%s4155 + $0x2c] sm:$0x1]
      %v4554 = vld [vmem:[%s4155 + $0x30] sm:$0xf]
      %v4555 = vld [vmem:[%s4155 + $0x34] sm:$0xf]
      %v4556 = vld [vmem:[%s4155 + $0x38] sm:$0x1]
      %v4557 = vld [vmem:[%s4155 + $0x3c] sm:$0xf]
      %v4558 = vld [vmem:[%s4155 + $0x40] sm:$0xf]
      %v4559 = vld [vmem:[%s4155 + $0x44] sm:$0x1]
      %v4560 = vld [vmem:[%s4155 + $0x48] sm:$0xf]
      %v4561 = vld [vmem:[%s4155 + $0x4c] sm:$0xf]
      %v4562 = vld [vmem:[%s4155 + $0x50] sm:$0x1]
      %v4563 = vld [vmem:[%s4155 + $0x54] sm:$0xf]
      %v4564 = vld [vmem:[%s4155 + $0x58] sm:$0xf]
      %v4565 = vld [vmem:[%s4155 + $0x5c] sm:$0x1]
      %v4566 = vld [vmem:[%s4155 + $0x60] sm:$0xf]
      %v4567 = vld [vmem:[%s4155 + $0x64] sm:$0xf]
      %v4568 = vld [vmem:[%s4155 + $0x68] sm:$0x1]
      %v4569 = vld [vmem:[%s4155 + $0x6c] sm:$0xf]
      %v4570 = vld [vmem:[%s4155 + $0x70] sm:$0xf]
      %v4571 = vld [vmem:[%s4155 + $0x74] sm:$0x1]
      %v4572 = vld [vmem:[%s4155 + $0x78] sm:$0xf]
      %v4573 = vld [vmem:[%s4155 + $0x7c] sm:$0xf]
      %v4574 = vld [vmem:[%s4155 + $0x80] sm:$0x1]
      %v4575 = vld [vmem:[%s4155 + $0x84] sm:$0xf]
      %v4576 = vld [vmem:[%s4155 + $0x88] sm:$0xf]
      %v4577 = vld [vmem:[%s4155 + $0x8c] sm:$0x1]
      %v4578 = vld [vmem:[%s4155 + $0x90] sm:$0xf]
      %v4579 = vld [vmem:[%s4155 + $0x94] sm:$0xf]
      %v4580 = vld [vmem:[%s4155 + $0x98] sm:$0x1]
      %v4581 = vld [vmem:[%s4155 + $0x9c] sm:$0xf]
      %v4582 = vld [vmem:[%s4155 + $0xa0] sm:$0xf]
      %v4583 = vld [vmem:[%s4155 + $0xa4] sm:$0x1]
      %v4584 = vld [vmem:[%s4155 + $0xa8] sm:$0xf]
      %v4585 = vld [vmem:[%s4155 + $0xac] sm:$0xf]
      %v4586 = vld [vmem:[%s4155 + $0xb0] sm:$0x1]
      %v4587 = vld [vmem:[%s4155 + $0xb4] sm:$0xf]
      %v4588 = vld [vmem:[%s4155 + $0xb8] sm:$0xf]
      %v4589 = vld [vmem:[%s4155 + $0xbc] sm:$0x1]
      %v4591 = vshrl.u32 %v4542, 16
      %v4593 = vrot.slane %v4591, 4
      %v4594 = vshll.u32 %v4542, 16
      %v4596 = vrot.slane %v4594, 5
      %v4597 = vor.u32 %v4593, %v4596
      %v4598 = vrot.slane %v4597, 4
      %v4600 = vshll.u32 %v4543, 16
      %v4602 = vrot.slane %v4600, 5
      %v4603 = vsel %vm1052, %v4598, %v4602
      %v4604 = vshrl.u32 %v4543, 16
      %v4606 = vrot.slane %v4604, 4
      %v4607 = vor.u32 %v4606, %v4602
      %v4608 = vrot.slane %v4607, 4
      %v4610 = vshll.u32 %v4544, 16
      %v4612 = vrot.slane %v4610, 5
      %v4613 = vsel %vm1052, %v4608, %v4612
      %v4615 = vshrl.u32 %v4545, 16
      %v4617 = vrot.slane %v4615, 4
      %v4618 = vshll.u32 %v4545, 16
      %v4620 = vrot.slane %v4618, 5
      %v4621 = vor.u32 %v4617, %v4620
      %v4622 = vrot.slane %v4621, 4
      %v4624 = vshll.u32 %v4546, 16
      %v4626 = vrot.slane %v4624, 5
      %v4627 = vsel %vm1052, %v4622, %v4626
      %v4628 = vshrl.u32 %v4546, 16
      %v4630 = vrot.slane %v4628, 4
      %v4631 = vor.u32 %v4630, %v4626
      %v4632 = vrot.slane %v4631, 4
      %v4634 = vshll.u32 %v4547, 16
      %v4636 = vrot.slane %v4634, 5
      %v4637 = vsel %vm1052, %v4632, %v4636
      %v4639 = vshrl.u32 %v4548, 16
      %v4641 = vrot.slane %v4639, 4
      %v4642 = vshll.u32 %v4548, 16
      %v4644 = vrot.slane %v4642, 5
      %v4645 = vor.u32 %v4641, %v4644
      %v4646 = vrot.slane %v4645, 4
      %v4648 = vshll.u32 %v4549, 16
      %v4650 = vrot.slane %v4648, 5
      %v4651 = vsel %vm1052, %v4646, %v4650
      %v4652 = vshrl.u32 %v4549, 16
      %v4654 = vrot.slane %v4652, 4
      %v4655 = vor.u32 %v4654, %v4650
      %v4656 = vrot.slane %v4655, 4
      %v4658 = vshll.u32 %v4550, 16
      %v4660 = vrot.slane %v4658, 5
      %v4661 = vsel %vm1052, %v4656, %v4660
      %v4663 = vshrl.u32 %v4551, 16
      %v4665 = vrot.slane %v4663, 4
      %v4666 = vshll.u32 %v4551, 16
      %v4668 = vrot.slane %v4666, 5
      %v4669 = vor.u32 %v4665, %v4668
      %v4670 = vrot.slane %v4669, 4
      %v4672 = vshll.u32 %v4552, 16
      %v4674 = vrot.slane %v4672, 5
      %v4675 = vsel %vm1052, %v4670, %v4674
      %v4676 = vshrl.u32 %v4552, 16
      %v4678 = vrot.slane %v4676, 4
      %v4679 = vor.u32 %v4678, %v4674
      %v4680 = vrot.slane %v4679, 4
      %v4682 = vshll.u32 %v4553, 16
      %v4684 = vrot.slane %v4682, 5
      %v4685 = vsel %vm1052, %v4680, %v4684
      %v4687 = vshrl.u32 %v4554, 16
      %v4689 = vrot.slane %v4687, 4
      %v4690 = vshll.u32 %v4554, 16
      %v4692 = vrot.slane %v4690, 5
      %v4693 = vor.u32 %v4689, %v4692
      %v4694 = vrot.slane %v4693, 4
      %v4696 = vshll.u32 %v4555, 16
      %v4698 = vrot.slane %v4696, 5
      %v4699 = vsel %vm1052, %v4694, %v4698
      %v4700 = vshrl.u32 %v4555, 16
      %v4702 = vrot.slane %v4700, 4
      %v4703 = vor.u32 %v4702, %v4698
      %v4704 = vrot.slane %v4703, 4
      %v4706 = vshll.u32 %v4556, 16
      %v4708 = vrot.slane %v4706, 5
      %v4709 = vsel %vm1052, %v4704, %v4708
      %v4711 = vshrl.u32 %v4557, 16
      %v4713 = vrot.slane %v4711, 4
      %v4714 = vshll.u32 %v4557, 16
      %v4716 = vrot.slane %v4714, 5
      %v4717 = vor.u32 %v4713, %v4716
      %v4718 = vrot.slane %v4717, 4
      %v4720 = vshll.u32 %v4558, 16
      %v4722 = vrot.slane %v4720, 5
      %v4723 = vsel %vm1052, %v4718, %v4722
      %v4724 = vshrl.u32 %v4558, 16
      %v4726 = vrot.slane %v4724, 4
      %v4727 = vor.u32 %v4726, %v4722
      %v4728 = vrot.slane %v4727, 4
      %v4730 = vshll.u32 %v4559, 16
      %v4732 = vrot.slane %v4730, 5
      %v4733 = vsel %vm1052, %v4728, %v4732
      %v4735 = vshrl.u32 %v4560, 16
      %v4737 = vrot.slane %v4735, 4
      %v4738 = vshll.u32 %v4560, 16
      %v4740 = vrot.slane %v4738, 5
      %v4741 = vor.u32 %v4737, %v4740
      %v4742 = vrot.slane %v4741, 4
      %v4744 = vshll.u32 %v4561, 16
      %v4746 = vrot.slane %v4744, 5
      %v4747 = vsel %vm1052, %v4742, %v4746
      %v4748 = vshrl.u32 %v4561, 16
      %v4750 = vrot.slane %v4748, 4
      %v4751 = vor.u32 %v4750, %v4746
      %v4752 = vrot.slane %v4751, 4
      %v4754 = vshll.u32 %v4562, 16
      %v4756 = vrot.slane %v4754, 5
      %v4757 = vsel %vm1052, %v4752, %v4756
      %v4759 = vshrl.u32 %v4563, 16
      %v4761 = vrot.slane %v4759, 4
      %v4762 = vshll.u32 %v4563, 16
      %v4764 = vrot.slane %v4762, 5
      %v4765 = vor.u32 %v4761, %v4764
      %v4766 = vrot.slane %v4765, 4
      %v4768 = vshll.u32 %v4564, 16
      %v4770 = vrot.slane %v4768, 5
      %v4771 = vsel %vm1052, %v4766, %v4770
      %v4772 = vshrl.u32 %v4564, 16
      %v4774 = vrot.slane %v4772, 4
      %v4775 = vor.u32 %v4774, %v4770
      %v4776 = vrot.slane %v4775, 4
      %v4778 = vshll.u32 %v4565, 16
      %v4780 = vrot.slane %v4778, 5
      %v4781 = vsel %vm1052, %v4776, %v4780
      %v4783 = vshrl.u32 %v4566, 16
      %v4785 = vrot.slane %v4783, 4
      %v4786 = vshll.u32 %v4566, 16
      %v4788 = vrot.slane %v4786, 5
      %v4789 = vor.u32 %v4785, %v4788
      %v4790 = vrot.slane %v4789, 4
      %v4792 = vshll.u32 %v4567, 16
      %v4794 = vrot.slane %v4792, 5
      %v4795 = vsel %vm1052, %v4790, %v4794
      %v4796 = vshrl.u32 %v4567, 16
      %v4798 = vrot.slane %v4796, 4
      %v4799 = vor.u32 %v4798, %v4794
      %v4800 = vrot.slane %v4799, 4
      %v4802 = vshll.u32 %v4568, 16
      %v4804 = vrot.slane %v4802, 5
      %v4805 = vsel %vm1052, %v4800, %v4804
      %v4807 = vshrl.u32 %v4569, 16
      %v4809 = vrot.slane %v4807, 4
      %v4810 = vshll.u32 %v4569, 16
      %v4812 = vrot.slane %v4810, 5
      %v4813 = vor.u32 %v4809, %v4812
      %v4814 = vrot.slane %v4813, 4
      %v4816 = vshll.u32 %v4570, 16
      %v4818 = vrot.slane %v4816, 5
      %v4819 = vsel %vm1052, %v4814, %v4818
      %v4820 = vshrl.u32 %v4570, 16
      %v4822 = vrot.slane %v4820, 4
      %v4823 = vor.u32 %v4822, %v4818
      %v4824 = vrot.slane %v4823, 4
      %v4826 = vshll.u32 %v4571, 16
      %v4828 = vrot.slane %v4826, 5
      %v4829 = vsel %vm1052, %v4824, %v4828
      %v4831 = vshrl.u32 %v4572, 16
      %v4833 = vrot.slane %v4831, 4
      %v4834 = vshll.u32 %v4572, 16
      %v4836 = vrot.slane %v4834, 5
      %v4837 = vor.u32 %v4833, %v4836
      %v4838 = vrot.slane %v4837, 4
      %v4840 = vshll.u32 %v4573, 16
      %v4842 = vrot.slane %v4840, 5
      %v4843 = vsel %vm1052, %v4838, %v4842
      %v4844 = vshrl.u32 %v4573, 16
      %v4846 = vrot.slane %v4844, 4
      %v4847 = vor.u32 %v4846, %v4842
      %v4848 = vrot.slane %v4847, 4
      %v4850 = vshll.u32 %v4574, 16
      %v4852 = vrot.slane %v4850, 5
      %v4853 = vsel %vm1052, %v4848, %v4852
      %v4855 = vshrl.u32 %v4575, 16
      %v4857 = vrot.slane %v4855, 4
      %v4858 = vshll.u32 %v4575, 16
      %v4860 = vrot.slane %v4858, 5
      %v4861 = vor.u32 %v4857, %v4860
      %v4862 = vrot.slane %v4861, 4
      %v4864 = vshll.u32 %v4576, 16
      %v4866 = vrot.slane %v4864, 5
      %v4867 = vsel %vm1052, %v4862, %v4866
      %v4868 = vshrl.u32 %v4576, 16
      %v4870 = vrot.slane %v4868, 4
      %v4871 = vor.u32 %v4870, %v4866
      %v4872 = vrot.slane %v4871, 4
      %v4874 = vshll.u32 %v4577, 16
      %v4876 = vrot.slane %v4874, 5
      %v4877 = vsel %vm1052, %v4872, %v4876
      %v4879 = vshrl.u32 %v4578, 16
      %v4881 = vrot.slane %v4879, 4
      %v4882 = vshll.u32 %v4578, 16
      %v4884 = vrot.slane %v4882, 5
      %v4885 = vor.u32 %v4881, %v4884
      %v4886 = vrot.slane %v4885, 4
      %v4888 = vshll.u32 %v4579, 16
      %v4890 = vrot.slane %v4888, 5
      %v4891 = vsel %vm1052, %v4886, %v4890
      %v4892 = vshrl.u32 %v4579, 16
      %v4894 = vrot.slane %v4892, 4
      %v4895 = vor.u32 %v4894, %v4890
      %v4896 = vrot.slane %v4895, 4
      %v4898 = vshll.u32 %v4580, 16
      %v4900 = vrot.slane %v4898, 5
      %v4901 = vsel %vm1052, %v4896, %v4900
      %v4903 = vshrl.u32 %v4581, 16
      %v4905 = vrot.slane %v4903, 4
      %v4906 = vshll.u32 %v4581, 16
      %v4908 = vrot.slane %v4906, 5
      %v4909 = vor.u32 %v4905, %v4908
      %v4910 = vrot.slane %v4909, 4
      %v4912 = vshll.u32 %v4582, 16
      %v4914 = vrot.slane %v4912, 5
      %v4915 = vsel %vm1052, %v4910, %v4914
      %v4916 = vshrl.u32 %v4582, 16
      %v4918 = vrot.slane %v4916, 4
      %v4919 = vor.u32 %v4918, %v4914
      %v4920 = vrot.slane %v4919, 4
      %v4922 = vshll.u32 %v4583, 16
      %v4924 = vrot.slane %v4922, 5
      %v4925 = vsel %vm1052, %v4920, %v4924
      %v4927 = vshrl.u32 %v4584, 16
      %v4929 = vrot.slane %v4927, 4
      %v4930 = vshll.u32 %v4584, 16
      %v4932 = vrot.slane %v4930, 5
      %v4933 = vor.u32 %v4929, %v4932
      %v4934 = vrot.slane %v4933, 4
      %v4936 = vshll.u32 %v4585, 16
      %v4938 = vrot.slane %v4936, 5
      %v4939 = vsel %vm1052, %v4934, %v4938
      %v4940 = vshrl.u32 %v4585, 16
      %v4942 = vrot.slane %v4940, 4
      %v4943 = vor.u32 %v4942, %v4938
      %v4944 = vrot.slane %v4943, 4
      %v4946 = vshll.u32 %v4586, 16
      %v4948 = vrot.slane %v4946, 5
      %v4949 = vsel %vm1052, %v4944, %v4948
      %v4951 = vshrl.u32 %v4587, 16
      %v4953 = vrot.slane %v4951, 4
      %v4954 = vshll.u32 %v4587, 16
      %v4956 = vrot.slane %v4954, 5
      %v4957 = vor.u32 %v4953, %v4956
      %v4958 = vrot.slane %v4957, 4
      %v4960 = vshll.u32 %v4588, 16
      %v4962 = vrot.slane %v4960, 5
      %v4963 = vsel %vm1052, %v4958, %v4962
      %v4964 = vshrl.u32 %v4588, 16
      %v4966 = vrot.slane %v4964, 4
      %v4967 = vor.u32 %v4966, %v4962
      %v4968 = vrot.slane %v4967, 4
      %v4970 = vshll.u32 %v4589, 16
      %v4972 = vrot.slane %v4970, 5
      %v4973 = vsel %vm1052, %v4968, %v4972
      %s4974 = scalar_lea.vmem %s1, 448
      %v4975 = vld [vmem:[%s4974] sm:$0xf]
      %v4976 = vld [vmem:[%s4974 + $0x4] sm:$0xf]
      %v4977 = vld [vmem:[%s4974 + $0x8] sm:$0xf]
      %v4978 = vld [vmem:[%s4974 + $0xc] sm:$0xf]
      %v4979 = vld [vmem:[%s4974 + $0x10] sm:$0xf]
      %v4980 = vld [vmem:[%s4974 + $0x14] sm:$0xf]
      %v4981 = vld [vmem:[%s4974 + $0x18] sm:$0xf]
      %v4982 = vld [vmem:[%s4974 + $0x1c] sm:$0xf]
      %v4983 = vld [vmem:[%s4974 + $0x20] sm:$0xf]
      %v4984 = vld [vmem:[%s4974 + $0x24] sm:$0xf]
      %v4985 = vld [vmem:[%s4974 + $0x28] sm:$0xf]
      %v4986 = vld [vmem:[%s4974 + $0x2c] sm:$0xf]
      %v4987 = vld [vmem:[%s4974 + $0x30] sm:$0xf]
      %v4988 = vld [vmem:[%s4974 + $0x34] sm:$0xf]
      %v4989 = vld [vmem:[%s4974 + $0x38] sm:$0xf]
      %v4990 = vld [vmem:[%s4974 + $0x3c] sm:$0xf]
      %v4991 = vunpack.c.l.b16 %v4603
      %v4992 = vunpack.c.l.b16 %v4613
      %v4993 = vunpack.c.l.b16 %v4627
      %v4994 = vunpack.c.l.b16 %v4637
      %v4995 = vunpack.c.l.b16 %v4651
      %v4996 = vunpack.c.l.b16 %v4661
      %v4997 = vunpack.c.l.b16 %v4675
      %v4998 = vunpack.c.l.b16 %v4685
      %v4999 = vunpack.c.l.b16 %v4699
      %v5000 = vunpack.c.l.b16 %v4709
      %v5001 = vunpack.c.l.b16 %v4723
      %v5002 = vunpack.c.l.b16 %v4733
      %v5003 = vunpack.c.l.b16 %v4747
      %v5004 = vunpack.c.l.b16 %v4757
      %v5005 = vunpack.c.l.b16 %v4771
      %v5006 = vunpack.c.l.b16 %v4781
      %v5007 = vunpack.c.l.b16 %v4795
      %v5008 = vunpack.c.l.b16 %v4805
      %v5009 = vunpack.c.l.b16 %v4819
      %v5010 = vunpack.c.l.b16 %v4829
      %v5011 = vunpack.c.l.b16 %v4843
      %v5012 = vunpack.c.l.b16 %v4853
      %v5013 = vunpack.c.l.b16 %v4867
      %v5014 = vunpack.c.l.b16 %v4877
      %v5015 = vunpack.c.l.b16 %v4891
      %v5016 = vunpack.c.l.b16 %v4901
      %v5017 = vunpack.c.l.b16 %v4915
      %v5018 = vunpack.c.l.b16 %v4925
      %v5019 = vunpack.c.l.b16 %v4939
      %v5020 = vunpack.c.l.b16 %v4949
      %v5021 = vunpack.c.l.b16 %v4963
      %v5022 = vunpack.c.l.b16 %v4973
      %v5023 = vpack.c.b16 %v4992, %v4991
      %v5024 = vpack.c.b16 %v4994, %v4993
      %v5025 = vpack.c.b16 %v4996, %v4995
      %v5026 = vpack.c.b16 %v4998, %v4997
      %v5027 = vpack.c.b16 %v5000, %v4999
      %v5028 = vpack.c.b16 %v5002, %v5001
      %v5029 = vpack.c.b16 %v5004, %v5003
      %v5030 = vpack.c.b16 %v5006, %v5005
      %v5031 = vpack.c.b16 %v5008, %v5007
      %v5032 = vpack.c.b16 %v5010, %v5009
      %v5033 = vpack.c.b16 %v5012, %v5011
      %v5034 = vpack.c.b16 %v5014, %v5013
      %v5035 = vpack.c.b16 %v5016, %v5015
      %v5036 = vpack.c.b16 %v5018, %v5017
      %v5037 = vpack.c.b16 %v5020, %v5019
      %v5038 = vpack.c.b16 %v5022, %v5021
      %v5071 = vunpack.c.l.b16 %v4975
      %v5072 = vunpack.c.l.b16 %v4976
      %v5073 = vunpack.c.l.b16 %v4977
      %v5074 = vunpack.c.l.b16 %v4978
      %v5075 = vunpack.c.l.b16 %v4979
      %v5076 = vunpack.c.l.b16 %v4980
      %v5077 = vunpack.c.l.b16 %v4981
      %v5078 = vunpack.c.l.b16 %v4982
      %v5079 = vunpack.c.l.b16 %v4983
      %v5080 = vunpack.c.l.b16 %v4984
      %v5081 = vunpack.c.l.b16 %v4985
      %v5082 = vunpack.c.l.b16 %v4986
      %v5083 = vunpack.c.l.b16 %v4987
      %v5084 = vunpack.c.l.b16 %v4988
      %v5085 = vunpack.c.l.b16 %v4989
      %v5086 = vunpack.c.l.b16 %v4990
      %v5087 = vpack.c.b16 %v5072, %v5071
      %v5088 = vpack.c.b16 %v5074, %v5073
      %v5089 = vpack.c.b16 %v5076, %v5075
      %v5090 = vpack.c.b16 %v5078, %v5077
      %v5091 = vpack.c.b16 %v5080, %v5079
      %v5092 = vpack.c.b16 %v5082, %v5081
      %v5093 = vpack.c.b16 %v5084, %v5083
      %v5094 = vpack.c.b16 %v5086, %v5085
      %5103 = vmatprep.subr.bf16.mxu0 0
      %5104 = vmatpush1.bf16.msra.mxu0 %v5087
      %5105 = vmatprep.subr.bf16.mxu0 0
      %5106 = vmatpush1.bf16.msra.mxu0 %v5088
      %5107 = vmatprep.subr.bf16.mxu0 0
      %5108 = vmatpush1.bf16.msra.mxu0 %v5089
      %5109 = vmatprep.subr.bf16.mxu0 0
      %5110 = vmatpush1.bf16.msra.mxu0 %v5090
      %5111 = vmatprep.subr.bf16.mxu0 0
      %5112 = vmatpush1.bf16.msra.mxu0 %v5091
      %5113 = vmatprep.subr.bf16.mxu0 0
      %5114 = vmatpush1.bf16.msra.mxu0 %v5092
      %5115 = vmatprep.subr.bf16.mxu0 0
      %5116 = vmatpush1.bf16.msra.mxu0 %v5093
      %5117 = vmatprep.subr.bf16.mxu0 0
      %5118 = vmatpush1.bf16.msra.mxu0 %v5094
      %5119 = vmatprep.subr.bf16.mxu0 0
      %5120 = vmatpush1.bf16.msra.mxu0 0
      %5121 = vmatprep.subr.bf16.mxu0 0
      %5122 = vmatpush1.bf16.msra.mxu0 0
      %5123 = vmatprep.subr.bf16.mxu0 0
      %5124 = vmatpush1.bf16.msra.mxu0 0
      %5125 = vmatprep.subr.bf16.mxu0 0
      %5126 = vmatpush1.bf16.msra.mxu0 0
      %5127 = vmatprep.subr.bf16.mxu0 0
      %5128 = vmatpush1.bf16.msra.mxu0 0
      %5129 = vmatprep.subr.bf16.mxu0 0
      %5130 = vmatpush1.bf16.msra.mxu0 0
      %5131 = vmatprep.subr.bf16.mxu0 0
      %5132 = vmatpush1.bf16.msra.mxu0 0
      %5133 = vmatprep.subr.bf16.mxu0 0
      %5134 = vmatpush1.bf16.msra.mxu0 0
      %5135 = vmatprep.mubr.bf16.mxu0 0
      %5136 = vmatmul.mubr.bf16.gmra.mrb[0].mxu0 %v5023
      %v5137 = vpop.f32.mrb[0].mxu0
      %v5138 = vadd.f32 0.0, %v5137
      %v5139 = vpop.f32.mrb[0].mxu0
      %v5140 = vpop.f32.mrb[0].mxu0
      %v5141 = vadd.f32 0.0, %v5140
      %v5142 = vpop.f32.mrb[0].mxu0
      %5143 = vmatprep.mubr.bf16.mxu0 0
      %5144 = vmatmul.mubr.bf16.gmra.mrb[0].mxu0 %v5024
      %v5145 = vpop.f32.mrb[0].mxu0
      %v5146 = vadd.f32 0.0, %v5145
      %v5147 = vpop.f32.mrb[0].mxu0
      %v5148 = vpop.f32.mrb[0].mxu0
      %v5149 = vadd.f32 0.0, %v5148
      %v5150 = vpop.f32.mrb[0].mxu0
      %5151 = vmatprep.mubr.bf16.mxu0 0
      %5152 = vmatmul.mubr.bf16.gmra.mrb[0].mxu0 %v5025
      %v5153 = vpop.f32.mrb[0].mxu0
      %v5154 = vadd.f32 0.0, %v5153
      %v5155 = vpop.f32.mrb[0].mxu0
      %v5156 = vpop.f32.mrb[0].mxu0
      %v5157 = vadd.f32 0.0, %v5156
      %v5158 = vpop.f32.mrb[0].mxu0
      %5159 = vmatprep.mubr.bf16.mxu0 0
      %5160 = vmatmul.mubr.bf16.gmra.mrb[0].mxu0 %v5026
      %v5161 = vpop.f32.mrb[0].mxu0
      %v5162 = vadd.f32 0.0, %v5161
      %v5163 = vpop.f32.mrb[0].mxu0
      %v5164 = vpop.f32.mrb[0].mxu0
      %v5165 = vadd.f32 0.0, %v5164
      %v5166 = vpop.f32.mrb[0].mxu0
      %5167 = vmatprep.mubr.bf16.mxu0 0
      %5168 = vmatmul.mubr.bf16.gmra.mrb[0].mxu0 %v5027
      %v5169 = vpop.f32.mrb[0].mxu0
      %v5170 = vadd.f32 0.0, %v5169
      %v5171 = vpop.f32.mrb[0].mxu0
      %v5172 = vpop.f32.mrb[0].mxu0
      %v5173 = vadd.f32 0.0, %v5172
      %v5174 = vpop.f32.mrb[0].mxu0
      %5175 = vmatprep.mubr.bf16.mxu0 0
      %5176 = vmatmul.mubr.bf16.gmra.mrb[0].mxu0 %v5028
      %v5177 = vpop.f32.mrb[0].mxu0
      %v5178 = vadd.f32 0.0, %v5177
      %v5179 = vpop.f32.mrb[0].mxu0
      %v5180 = vpop.f32.mrb[0].mxu0
      %v5181 = vadd.f32 0.0, %v5180
      %v5182 = vpop.f32.mrb[0].mxu0
      %5183 = vmatprep.mubr.bf16.mxu0 0
      %5184 = vmatmul.mubr.bf16.gmra.mrb[0].mxu0 %v5029
      %v5185 = vpop.f32.mrb[0].mxu0
      %v5186 = vadd.f32 0.0, %v5185
      %v5187 = vpop.f32.mrb[0].mxu0
      %v5188 = vpop.f32.mrb[0].mxu0
      %v5189 = vadd.f32 0.0, %v5188
      %v5190 = vpop.f32.mrb[0].mxu0
      %5191 = vmatprep.mubr.bf16.mxu0 0
      %5192 = vmatmul.mubr.bf16.gmra.mrb[0].mxu0 %v5030
      %v5193 = vpop.f32.mrb[0].mxu0
      %v5194 = vadd.f32 0.0, %v5193
      %v5195 = vpop.f32.mrb[0].mxu0
      %v5196 = vpop.f32.mrb[0].mxu0
      %v5197 = vadd.f32 0.0, %v5196
      %v5198 = vpop.f32.mrb[0].mxu0
      %5199 = vmatprep.mubr.bf16.mxu0 0
      %5200 = vmatmul.mubr.bf16.gmra.mrb[0].mxu0 %v5031
      %v5201 = vpop.f32.mrb[0].mxu0
      %v5202 = vadd.f32 0.0, %v5201
      %v5203 = vpop.f32.mrb[0].mxu0
      %v5204 = vpop.f32.mrb[0].mxu0
      %v5205 = vadd.f32 0.0, %v5204
      %v5206 = vpop.f32.mrb[0].mxu0
      %5207 = vmatprep.mubr.bf16.mxu0 0
      %5208 = vmatmul.mubr.bf16.gmra.mrb[0].mxu0 %v5032
      %v5209 = vpop.f32.mrb[0].mxu0
      %v5210 = vadd.f32 0.0, %v5209
      %v5211 = vpop.f32.mrb[0].mxu0
      %v5212 = vpop.f32.mrb[0].mxu0
      %v5213 = vadd.f32 0.0, %v5212
      %v5214 = vpop.f32.mrb[0].mxu0
      %5215 = vmatprep.mubr.bf16.mxu0 0
      %5216 = vmatmul.mubr.bf16.gmra.mrb[0].mxu0 %v5033
      %v5217 = vpop.f32.mrb[0].mxu0
      %v5218 = vadd.f32 0.0, %v5217
      %v5219 = vpop.f32.mrb[0].mxu0
      %v5220 = vpop.f32.mrb[0].mxu0
      %v5221 = vadd.f32 0.0, %v5220
      %v5222 = vpop.f32.mrb[0].mxu0
      %5223 = vmatprep.mubr.bf16.mxu0 0
      %5224 = vmatmul.mubr.bf16.gmra.mrb[0].mxu0 %v5034
      %v5225 = vpop.f32.mrb[0].mxu0
      %v5226 = vadd.f32 0.0, %v5225
      %v5227 = vpop.f32.mrb[0].mxu0
      %v5228 = vpop.f32.mrb[0].mxu0
      %v5229 = vadd.f32 0.0, %v5228
      %v5230 = vpop.f32.mrb[0].mxu0
      %5231 = vmatprep.mubr.bf16.mxu0 0
      %5232 = vmatmul.mubr.bf16.gmra.mrb[0].mxu0 %v5035
      %v5233 = vpop.f32.mrb[0].mxu0
      %v5234 = vadd.f32 0.0, %v5233
      %v5235 = vpop.f32.mrb[0].mxu0
      %v5236 = vpop.f32.mrb[0].mxu0
      %v5237 = vadd.f32 0.0, %v5236
      %v5238 = vpop.f32.mrb[0].mxu0
      %5239 = vmatprep.mubr.bf16.mxu0 0
      %5240 = vmatmul.mubr.bf16.gmra.mrb[0].mxu0 %v5036
      %v5241 = vpop.f32.mrb[0].mxu0
      %v5242 = vadd.f32 0.0, %v5241
      %v5243 = vpop.f32.mrb[0].mxu0
      %v5244 = vpop.f32.mrb[0].mxu0
      %v5245 = vadd.f32 0.0, %v5244
      %v5246 = vpop.f32.mrb[0].mxu0
      %5247 = vmatprep.mubr.bf16.mxu0 0
      %5248 = vmatmul.mubr.bf16.gmra.mrb[0].mxu0 %v5037
      %v5249 = vpop.f32.mrb[0].mxu0
      %v5250 = vadd.f32 0.0, %v5249
      %v5251 = vpop.f32.mrb[0].mxu0
      %v5252 = vpop.f32.mrb[0].mxu0
      %v5253 = vadd.f32 0.0, %v5252
      %v5254 = vpop.f32.mrb[0].mxu0
      %5255 = vmatprep.mubr.bf16.mxu0 0
      %5256 = vmatmul.mubr.bf16.gmra.mrb[0].mxu0 %v5038
      %v5257 = vpop.f32.mrb[0].mxu0
      %v5258 = vadd.f32 0.0, %v5257
      %v5259 = vpop.f32.mrb[0].mxu0
      %v5260 = vpop.f32.mrb[0].mxu0
      %v5261 = vadd.f32 0.0, %v5260
      %v5262 = vpop.f32.mrb[0].mxu0
      %5263 = vdwg.mxu0
      %v5264 = vadd.f32 %v4510, %v5138
      %v5265 = vadd.f32 %v4511, %v5141
      %v5266 = vadd.f32 %v4512, %v5146
      %v5267 = vadd.f32 %v4513, %v5149
      %v5268 = vadd.f32 %v4514, %v5154
      %v5269 = vadd.f32 %v4515, %v5157
      %v5270 = vadd.f32 %v4516, %v5162
      %v5271 = vadd.f32 %v4517, %v5165
      %v5272 = vadd.f32 %v4518, %v5170
      %v5273 = vadd.f32 %v4519, %v5173
      %v5274 = vadd.f32 %v4520, %v5178
      %v5275 = vadd.f32 %v4521, %v5181
      %v5276 = vadd.f32 %v4522, %v5186
      %v5277 = vadd.f32 %v4523, %v5189
      %v5278 = vadd.f32 %v4524, %v5194
      %v5279 = vadd.f32 %v4525, %v5197
      %v5280 = vadd.f32 %v4526, %v5202
      %v5281 = vadd.f32 %v4527, %v5205
      %v5282 = vadd.f32 %v4528, %v5210
      %v5283 = vadd.f32 %v4529, %v5213
      %v5284 = vadd.f32 %v4530, %v5218
      %v5285 = vadd.f32 %v4531, %v5221
      %v5286 = vadd.f32 %v4532, %v5226
      %v5287 = vadd.f32 %v4533, %v5229
      %v5288 = vadd.f32 %v4534, %v5234
      %v5289 = vadd.f32 %v4535, %v5237
      %v5290 = vadd.f32 %v4536, %v5242
      %v5291 = vadd.f32 %v4537, %v5245
      %v5292 = vadd.f32 %v4538, %v5250
      %v5293 = vadd.f32 %v4539, %v5253
      %v5294 = vadd.f32 %v4540, %v5258
      %v5295 = vadd.f32 %v4541, %v5261
      %v5296 = vld [vmem:[%s4155] sm:$0xe]
      %v5297 = vld [vmem:[%s4155 + $0xc] sm:$0xe]
      %v5298 = vld [vmem:[%s4155 + $0x18] sm:$0xe]
      %v5299 = vld [vmem:[%s4155 + $0x24] sm:$0xe]
      %v5300 = vld [vmem:[%s4155 + $0x30] sm:$0xe]
      %v5301 = vld [vmem:[%s4155 + $0x3c] sm:$0xe]
      %v5302 = vld [vmem:[%s4155 + $0x48] sm:$0xe]
      %v5303 = vld [vmem:[%s4155 + $0x54] sm:$0xe]
      %v5304 = vld [vmem:[%s4155 + $0x60] sm:$0xe]
      %v5305 = vld [vmem:[%s4155 + $0x6c] sm:$0xe]
      %v5306 = vld [vmem:[%s4155 + $0x78] sm:$0xe]
      %v5307 = vld [vmem:[%s4155 + $0x84] sm:$0xe]
      %v5308 = vld [vmem:[%s4155 + $0x90] sm:$0xe]
      %v5309 = vld [vmem:[%s4155 + $0x9c] sm:$0xe]
      %v5310 = vld [vmem:[%s4155 + $0xa8] sm:$0xe]
      %v5311 = vld [vmem:[%s4155 + $0xb4] sm:$0xe]
      %v5360 = vrot.slane %v5296, 5
      %v5361 = vrot.slane %v5360, 4
      %v5362 = vrot.slane %v4543, 5
      %v5363 = vsel %vm2082, %v5361, %v5362
      %v5364 = vrot.slane %v5362, 4
      %v5365 = vrot.slane %v4544, 5
      %v5366 = vsel %vm2082, %v5364, %v5365
      %v5367 = vrot.slane %v5297, 5
      %v5368 = vrot.slane %v5367, 4
      %v5369 = vrot.slane %v4546, 5
      %v5370 = vsel %vm2082, %v5368, %v5369
      %v5371 = vrot.slane %v5369, 4
      %v5372 = vrot.slane %v4547, 5
      %v5373 = vsel %vm2082, %v5371, %v5372
      %v5374 = vrot.slane %v5298, 5
      %v5375 = vrot.slane %v5374, 4
      %v5376 = vrot.slane %v4549, 5
      %v5377 = vsel %vm2082, %v5375, %v5376
      %v5378 = vrot.slane %v5376, 4
      %v5379 = vrot.slane %v4550, 5
      %v5380 = vsel %vm2082, %v5378, %v5379
      %v5381 = vrot.slane %v5299, 5
      %v5382 = vrot.slane %v5381, 4
      %v5383 = vrot.slane %v4552, 5
      %v5384 = vsel %vm2082, %v5382, %v5383
      %v5385 = vrot.slane %v5383, 4
      %v5386 = vrot.slane %v4553, 5
      %v5387 = vsel %vm2082, %v5385, %v5386
      %v5388 = vrot.slane %v5300, 5
      %v5389 = vrot.slane %v5388, 4
      %v5390 = vrot.slane %v4555, 5
      %v5391 = vsel %vm2082, %v5389, %v5390
      %v5392 = vrot.slane %v5390, 4
      %v5393 = vrot.slane %v4556, 5
      %v5394 = vsel %vm2082, %v5392, %v5393
      %v5395 = vrot.slane %v5301, 5
      %v5396 = vrot.slane %v5395, 4
      %v5397 = vrot.slane %v4558, 5
      %v5398 = vsel %vm2082, %v5396, %v5397
      %v5399 = vrot.slane %v5397, 4
      %v5400 = vrot.slane %v4559, 5
      %v5401 = vsel %vm2082, %v5399, %v5400
      %v5402 = vrot.slane %v5302, 5
      %v5403 = vrot.slane %v5402, 4
      %v5404 = vrot.slane %v4561, 5
      %v5405 = vsel %vm2082, %v5403, %v5404
      %v5406 = vrot.slane %v5404, 4
      %v5407 = vrot.slane %v4562, 5
      %v5408 = vsel %vm2082, %v5406, %v5407
      %v5409 = vrot.slane %v5303, 5
      %v5410 = vrot.slane %v5409, 4
      %v5411 = vrot.slane %v4564, 5
      %v5412 = vsel %vm2082, %v5410, %v5411
      %v5413 = vrot.slane %v5411, 4
      %v5414 = vrot.slane %v4565, 5
      %v5415 = vsel %vm2082, %v5413, %v5414
      %v5416 = vrot.slane %v5304, 5
      %v5417 = vrot.slane %v5416, 4
      %v5418 = vrot.slane %v4567, 5
      %v5419 = vsel %vm2082, %v5417, %v5418
      %v5420 = vrot.slane %v5418, 4
      %v5421 = vrot.slane %v4568, 5
      %v5422 = vsel %vm2082, %v5420, %v5421
      %v5423 = vrot.slane %v5305, 5
      %v5424 = vrot.slane %v5423, 4
      %v5425 = vrot.slane %v4570, 5
      %v5426 = vsel %vm2082, %v5424, %v5425
      %v5427 = vrot.slane %v5425, 4
      %v5428 = vrot.slane %v4571, 5
      %v5429 = vsel %vm2082, %v5427, %v5428
      %v5430 = vrot.slane %v5306, 5
      %v5431 = vrot.slane %v5430, 4
      %v5432 = vrot.slane %v4573, 5
      %v5433 = vsel %vm2082, %v5431, %v5432
      %v5434 = vrot.slane %v5432, 4
      %v5435 = vrot.slane %v4574, 5
      %v5436 = vsel %vm2082, %v5434, %v5435
      %v5437 = vrot.slane %v5307, 5
      %v5438 = vrot.slane %v5437, 4
      %v5439 = vrot.slane %v4576, 5
      %v5440 = vsel %vm2082, %v5438, %v5439
      %v5441 = vrot.slane %v5439, 4
      %v5442 = vrot.slane %v4577, 5
      %v5443 = vsel %vm2082, %v5441, %v5442
      %v5444 = vrot.slane %v5308, 5
      %v5445 = vrot.slane %v5444, 4
      %v5446 = vrot.slane %v4579, 5
      %v5447 = vsel %vm2082, %v5445, %v5446
      %v5448 = vrot.slane %v5446, 4
      %v5449 = vrot.slane %v4580, 5
      %v5450 = vsel %vm2082, %v5448, %v5449
      %v5451 = vrot.slane %v5309, 5
      %v5452 = vrot.slane %v5451, 4
      %v5453 = vrot.slane %v4582, 5
      %v5454 = vsel %vm2082, %v5452, %v5453
      %v5455 = vrot.slane %v5453, 4
      %v5456 = vrot.slane %v4583, 5
      %v5457 = vsel %vm2082, %v5455, %v5456
      %v5458 = vrot.slane %v5310, 5
      %v5459 = vrot.slane %v5458, 4
      %v5460 = vrot.slane %v4585, 5
      %v5461 = vsel %vm2082, %v5459, %v5460
      %v5462 = vrot.slane %v5460, 4
      %v5463 = vrot.slane %v4586, 5
      %v5464 = vsel %vm2082, %v5462, %v5463
      %v5465 = vrot.slane %v5311, 5
      %v5466 = vrot.slane %v5465, 4
      %v5467 = vrot.slane %v4588, 5
      %v5468 = vsel %vm2082, %v5466, %v5467
      %v5469 = vrot.slane %v5467, 4
      %v5470 = vrot.slane %v4589, 5
      %v5471 = vsel %vm2082, %v5469, %v5470
      %s5472 = scalar_lea.vmem %s1, 512
      %v5473 = vld [vmem:[%s5472] sm:$0xf]
      %v5474 = vld [vmem:[%s5472 + $0x4] sm:$0xf]
      %v5475 = vld [vmem:[%s5472 + $0x8] sm:$0xf]
      %v5476 = vld [vmem:[%s5472 + $0xc] sm:$0xf]
      %v5477 = vld [vmem:[%s5472 + $0x10] sm:$0xf]
      %v5478 = vld [vmem:[%s5472 + $0x14] sm:$0xf]
      %v5479 = vld [vmem:[%s5472 + $0x18] sm:$0xf]
      %v5480 = vld [vmem:[%s5472 + $0x1c] sm:$0xf]
      %v5481 = vld [vmem:[%s5472 + $0x20] sm:$0xf]
      %v5482 = vld [vmem:[%s5472 + $0x24] sm:$0xf]
      %v5483 = vld [vmem:[%s5472 + $0x28] sm:$0xf]
      %v5484 = vld [vmem:[%s5472 + $0x2c] sm:$0xf]
      %v5485 = vld [vmem:[%s5472 + $0x30] sm:$0xf]
      %v5486 = vld [vmem:[%s5472 + $0x34] sm:$0xf]
      %v5487 = vld [vmem:[%s5472 + $0x38] sm:$0xf]
      %v5488 = vld [vmem:[%s5472 + $0x3c] sm:$0xf]
      %v5489 = vunpack.c.l.b16 %v5363
      %v5490 = vunpack.c.l.b16 %v5366
      %v5491 = vunpack.c.l.b16 %v5370
      %v5492 = vunpack.c.l.b16 %v5373
      %v5493 = vunpack.c.l.b16 %v5377
      %v5494 = vunpack.c.l.b16 %v5380
      %v5495 = vunpack.c.l.b16 %v5384
      %v5496 = vunpack.c.l.b16 %v5387
      %v5497 = vunpack.c.l.b16 %v5391
      %v5498 = vunpack.c.l.b16 %v5394
      %v5499 = vunpack.c.l.b16 %v5398
      %v5500 = vunpack.c.l.b16 %v5401
      %v5501 = vunpack.c.l.b16 %v5405
      %v5502 = vunpack.c.l.b16 %v5408
      %v5503 = vunpack.c.l.b16 %v5412
      %v5504 = vunpack.c.l.b16 %v5415
      %v5505 = vunpack.c.l.b16 %v5419
      %v5506 = vunpack.c.l.b16 %v5422
      %v5507 = vunpack.c.l.b16 %v5426
      %v5508 = vunpack.c.l.b16 %v5429
      %v5509 = vunpack.c.l.b16 %v5433
      %v5510 = vunpack.c.l.b16 %v5436
      %v5511 = vunpack.c.l.b16 %v5440
      %v5512 = vunpack.c.l.b16 %v5443
      %v5513 = vunpack.c.l.b16 %v5447
      %v5514 = vunpack.c.l.b16 %v5450
      %v5515 = vunpack.c.l.b16 %v5454
      %v5516 = vunpack.c.l.b16 %v5457
      %v5517 = vunpack.c.l.b16 %v5461
      %v5518 = vunpack.c.l.b16 %v5464
      %v5519 = vunpack.c.l.b16 %v5468
      %v5520 = vunpack.c.l.b16 %v5471
      %v5521 = vpack.c.b16 %v5490, %v5489
      %v5522 = vpack.c.b16 %v5492, %v5491
      %v5523 = vpack.c.b16 %v5494, %v5493
      %v5524 = vpack.c.b16 %v5496, %v5495
      %v5525 = vpack.c.b16 %v5498, %v5497
      %v5526 = vpack.c.b16 %v5500, %v5499
      %v5527 = vpack.c.b16 %v5502, %v5501
      %v5528 = vpack.c.b16 %v5504, %v5503
      %v5529 = vpack.c.b16 %v5506, %v5505
      %v5530 = vpack.c.b16 %v5508, %v5507
      %v5531 = vpack.c.b16 %v5510, %v5509
      %v5532 = vpack.c.b16 %v5512, %v5511
      %v5533 = vpack.c.b16 %v5514, %v5513
      %v5534 = vpack.c.b16 %v5516, %v5515
      %v5535 = vpack.c.b16 %v5518, %v5517
      %v5536 = vpack.c.b16 %v5520, %v5519
      %v5569 = vunpack.c.l.b16 %v5473
      %v5570 = vunpack.c.l.b16 %v5474
      %v5571 = vunpack.c.l.b16 %v5475
      %v5572 = vunpack.c.l.b16 %v5476
      %v5573 = vunpack.c.l.b16 %v5477
      %v5574 = vunpack.c.l.b16 %v5478
      %v5575 = vunpack.c.l.b16 %v5479
      %v5576 = vunpack.c.l.b16 %v5480
      %v5577 = vunpack.c.l.b16 %v5481
      %v5578 = vunpack.c.l.b16 %v5482
      %v5579 = vunpack.c.l.b16 %v5483
      %v5580 = vunpack.c.l.b16 %v5484
      %v5581 = vunpack.c.l.b16 %v5485
      %v5582 = vunpack.c.l.b16 %v5486
      %v5583 = vunpack.c.l.b16 %v5487
      %v5584 = vunpack.c.l.b16 %v5488
      %v5585 = vpack.c.b16 %v5570, %v5569
      %v5586 = vpack.c.b16 %v5572, %v5571
      %v5587 = vpack.c.b16 %v5574, %v5573
      %v5588 = vpack.c.b16 %v5576, %v5575
      %v5589 = vpack.c.b16 %v5578, %v5577
      %v5590 = vpack.c.b16 %v5580, %v5579
      %v5591 = vpack.c.b16 %v5582, %v5581
      %v5592 = vpack.c.b16 %v5584, %v5583
      %5601 = vmatprep.subr.bf16.mxu0 0
      %5602 = vmatpush1.bf16.msra.mxu0 %v5585
      %5603 = vmatprep.subr.bf16.mxu0 0
      %5604 = vmatpush1.bf16.msra.mxu0 %v5586
      %5605 = vmatprep.subr.bf16.mxu0 0
      %5606 = vmatpush1.bf16.msra.mxu0 %v5587
      %5607 = vmatprep.subr.bf16.mxu0 0
      %5608 = vmatpush1.bf16.msra.mxu0 %v5588
      %5609 = vmatprep.subr.bf16.mxu0 0
      %5610 = vmatpush1.bf16.msra.mxu0 %v5589
      %5611 = vmatprep.subr.bf16.mxu0 0
      %5612 = vmatpush1.bf16.msra.mxu0 %v5590
      %5613 = vmatprep.subr.bf16.mxu0 0
      %5614 = vmatpush1.bf16.msra.mxu0 %v5591
      %5615 = vmatprep.subr.bf16.mxu0 0
      %5616 = vmatpush1.bf16.msra.mxu0 %v5592
      %5617 = vmatprep.subr.bf16.mxu0 0
      %5618 = vmatpush1.bf16.msra.mxu0 0
      %5619 = vmatprep.subr.bf16.mxu0 0
      %5620 = vmatpush1.bf16.msra.mxu0 0
      %5621 = vmatprep.subr.bf16.mxu0 0
      %5622 = vmatpush1.bf16.msra.mxu0 0
      %5623 = vmatprep.subr.bf16.mxu0 0
      %5624 = vmatpush1.bf16.msra.mxu0 0
      %5625 = vmatprep.subr.bf16.mxu0 0
      %5626 = vmatpush1.bf16.msra.mxu0 0
      %5627 = vmatprep.subr.bf16.mxu0 0
      %5628 = vmatpush1.bf16.msra.mxu0 0
      %5629 = vmatprep.subr.bf16.mxu0 0
      %5630 = vmatpush1.bf16.msra.mxu0 0
      %5631 = vmatprep.subr.bf16.mxu0 0
      %5632 = vmatpush1.bf16.msra.mxu0 0
      %5633 = vmatprep.mubr.bf16.mxu0 0
      %5634 = vmatmul.mubr.bf16.gmra.mrb[0].mxu0 %v5521
      %v5635 = vpop.f32.mrb[0].mxu0
      %v5636 = vadd.f32 0.0, %v5635
      %v5637 = vpop.f32.mrb[0].mxu0
      %v5638 = vpop.f32.mrb[0].mxu0
      %v5639 = vadd.f32 0.0, %v5638
      %v5640 = vpop.f32.mrb[0].mxu0
      %5641 = vmatprep.mubr.bf16.mxu0 0
      %5642 = vmatmul.mubr.bf16.gmra.mrb[0].mxu0 %v5522
      %v5643 = vpop.f32.mrb[0].mxu0
      %v5644 = vadd.f32 0.0, %v5643
      %v5645 = vpop.f32.mrb[0].mxu0
      %v5646 = vpop.f32.mrb[0].mxu0
      %v5647 = vadd.f32 0.0, %v5646
      %v5648 = vpop.f32.mrb[0].mxu0
      %5649 = vmatprep.mubr.bf16.mxu0 0
      %5650 = vmatmul.mubr.bf16.gmra.mrb[0].mxu0 %v5523
      %v5651 = vpop.f32.mrb[0].mxu0
      %v5652 = vadd.f32 0.0, %v5651
      %v5653 = vpop.f32.mrb[0].mxu0
      %v5654 = vpop.f32.mrb[0].mxu0
      %v5655 = vadd.f32 0.0, %v5654
      %v5656 = vpop.f32.mrb[0].mxu0
      %5657 = vmatprep.mubr.bf16.mxu0 0
      %5658 = vmatmul.mubr.bf16.gmra.mrb[0].mxu0 %v5524
      %v5659 = vpop.f32.mrb[0].mxu0
      %v5660 = vadd.f32 0.0, %v5659
      %v5661 = vpop.f32.mrb[0].mxu0
      %v5662 = vpop.f32.mrb[0].mxu0
      %v5663 = vadd.f32 0.0, %v5662
      %v5664 = vpop.f32.mrb[0].mxu0
      %5665 = vmatprep.mubr.bf16.mxu0 0
      %5666 = vmatmul.mubr.bf16.gmra.mrb[0].mxu0 %v5525
      %v5667 = vpop.f32.mrb[0].mxu0
      %v5668 = vadd.f32 0.0, %v5667
      %v5669 = vpop.f32.mrb[0].mxu0
      %v5670 = vpop.f32.mrb[0].mxu0
      %v5671 = vadd.f32 0.0, %v5670
      %v5672 = vpop.f32.mrb[0].mxu0
      %5673 = vmatprep.mubr.bf16.mxu0 0
      %5674 = vmatmul.mubr.bf16.gmra.mrb[0].mxu0 %v5526
      %v5675 = vpop.f32.mrb[0].mxu0
      %v5676 = vadd.f32 0.0, %v5675
      %v5677 = vpop.f32.mrb[0].mxu0
      %v5678 = vpop.f32.mrb[0].mxu0
      %v5679 = vadd.f32 0.0, %v5678
      %v5680 = vpop.f32.mrb[0].mxu0
      %5681 = vmatprep.mubr.bf16.mxu0 0
      %5682 = vmatmul.mubr.bf16.gmra.mrb[0].mxu0 %v5527
      %v5683 = vpop.f32.mrb[0].mxu0
      %v5684 = vadd.f32 0.0, %v5683
      %v5685 = vpop.f32.mrb[0].mxu0
      %v5686 = vpop.f32.mrb[0].mxu0
      %v5687 = vadd.f32 0.0, %v5686
      %v5688 = vpop.f32.mrb[0].mxu0
      %5689 = vmatprep.mubr.bf16.mxu0 0
      %5690 = vmatmul.mubr.bf16.gmra.mrb[0].mxu0 %v5528
      %v5691 = vpop.f32.mrb[0].mxu0
      %v5692 = vadd.f32 0.0, %v5691
      %v5693 = vpop.f32.mrb[0].mxu0
      %v5694 = vpop.f32.mrb[0].mxu0
      %v5695 = vadd.f32 0.0, %v5694
      %v5696 = vpop.f32.mrb[0].mxu0
      %5697 = vmatprep.mubr.bf16.mxu0 0
      %5698 = vmatmul.mubr.bf16.gmra.mrb[0].mxu0 %v5529
      %v5699 = vpop.f32.mrb[0].mxu0
      %v5700 = vadd.f32 0.0, %v5699
      %v5701 = vpop.f32.mrb[0].mxu0
      %v5702 = vpop.f32.mrb[0].mxu0
      %v5703 = vadd.f32 0.0, %v5702
      %v5704 = vpop.f32.mrb[0].mxu0
      %5705 = vmatprep.mubr.bf16.mxu0 0
      %5706 = vmatmul.mubr.bf16.gmra.mrb[0].mxu0 %v5530
      %v5707 = vpop.f32.mrb[0].mxu0
      %v5708 = vadd.f32 0.0, %v5707
      %v5709 = vpop.f32.mrb[0].mxu0
      %v5710 = vpop.f32.mrb[0].mxu0
      %v5711 = vadd.f32 0.0, %v5710
      %v5712 = vpop.f32.mrb[0].mxu0
      %5713 = vmatprep.mubr.bf16.mxu0 0
      %5714 = vmatmul.mubr.bf16.gmra.mrb[0].mxu0 %v5531
      %v5715 = vpop.f32.mrb[0].mxu0
      %v5716 = vadd.f32 0.0, %v5715
      %v5717 = vpop.f32.mrb[0].mxu0
      %v5718 = vpop.f32.mrb[0].mxu0
      %v5719 = vadd.f32 0.0, %v5718
      %v5720 = vpop.f32.mrb[0].mxu0
      %5721 = vmatprep.mubr.bf16.mxu0 0
      %5722 = vmatmul.mubr.bf16.gmra.mrb[0].mxu0 %v5532
      %v5723 = vpop.f32.mrb[0].mxu0
      %v5724 = vadd.f32 0.0, %v5723
      %v5725 = vpop.f32.mrb[0].mxu0
      %v5726 = vpop.f32.mrb[0].mxu0
      %v5727 = vadd.f32 0.0, %v5726
      %v5728 = vpop.f32.mrb[0].mxu0
      %5729 = vmatprep.mubr.bf16.mxu0 0
      %5730 = vmatmul.mubr.bf16.gmra.mrb[0].mxu0 %v5533
      %v5731 = vpop.f32.mrb[0].mxu0
      %v5732 = vadd.f32 0.0, %v5731
      %v5733 = vpop.f32.mrb[0].mxu0
      %v5734 = vpop.f32.mrb[0].mxu0
      %v5735 = vadd.f32 0.0, %v5734
      %v5736 = vpop.f32.mrb[0].mxu0
      %5737 = vmatprep.mubr.bf16.mxu0 0
      %5738 = vmatmul.mubr.bf16.gmra.mrb[0].mxu0 %v5534
      %v5739 = vpop.f32.mrb[0].mxu0
      %v5740 = vadd.f32 0.0, %v5739
      %v5741 = vpop.f32.mrb[0].mxu0
      %v5742 = vpop.f32.mrb[0].mxu0
      %v5743 = vadd.f32 0.0, %v5742
      %v5744 = vpop.f32.mrb[0].mxu0
      %5745 = vmatprep.mubr.bf16.mxu0 0
      %5746 = vmatmul.mubr.bf16.gmra.mrb[0].mxu0 %v5535
      %v5747 = vpop.f32.mrb[0].mxu0
      %v5748 = vadd.f32 0.0, %v5747
      %v5749 = vpop.f32.mrb[0].mxu0
      %v5750 = vpop.f32.mrb[0].mxu0
      %v5751 = vadd.f32 0.0, %v5750
      %v5752 = vpop.f32.mrb[0].mxu0
      %5753 = vmatprep.mubr.bf16.mxu0 0
      %5754 = vmatmul.mubr.bf16.gmra.mrb[0].mxu0 %v5536
      %v5755 = vpop.f32.mrb[0].mxu0
      %v5756 = vadd.f32 0.0, %v5755
      %v5757 = vpop.f32.mrb[0].mxu0
      %v5758 = vpop.f32.mrb[0].mxu0
      %v5759 = vadd.f32 0.0, %v5758
      %v5760 = vpop.f32.mrb[0].mxu0
      %5761 = vdwg.mxu0
      %v5762 = vadd.f32 %v5264, %v5636
      %v5763 = vadd.f32 %v5265, %v5639
      %v5764 = vadd.f32 %v5266, %v5644
      %v5765 = vadd.f32 %v5267, %v5647
      %v5766 = vadd.f32 %v5268, %v5652
      %v5767 = vadd.f32 %v5269, %v5655
      %v5768 = vadd.f32 %v5270, %v5660
      %v5769 = vadd.f32 %v5271, %v5663
      %v5770 = vadd.f32 %v5272, %v5668
      %v5771 = vadd.f32 %v5273, %v5671
      %v5772 = vadd.f32 %v5274, %v5676
      %v5773 = vadd.f32 %v5275, %v5679
      %v5774 = vadd.f32 %v5276, %v5684
      %v5775 = vadd.f32 %v5277, %v5687
      %v5776 = vadd.f32 %v5278, %v5692
      %v5777 = vadd.f32 %v5279, %v5695
      %v5778 = vadd.f32 %v5280, %v5700
      %v5779 = vadd.f32 %v5281, %v5703
      %v5780 = vadd.f32 %v5282, %v5708
      %v5781 = vadd.f32 %v5283, %v5711
      %v5782 = vadd.f32 %v5284, %v5716
      %v5783 = vadd.f32 %v5285, %v5719
      %v5784 = vadd.f32 %v5286, %v5724
      %v5785 = vadd.f32 %v5287, %v5727
      %v5786 = vadd.f32 %v5288, %v5732
      %v5787 = vadd.f32 %v5289, %v5735
      %v5788 = vadd.f32 %v5290, %v5740
      %v5789 = vadd.f32 %v5291, %v5743
      %v5790 = vadd.f32 %v5292, %v5748
      %v5791 = vadd.f32 %v5293, %v5751
      %v5792 = vadd.f32 %v5294, %v5756
      %v5793 = vadd.f32 %v5295, %v5759
      %v5794 = vld [vmem:[%s4] sm:$0x1]
      %v5796 = vlaneseq
      %v5797 = vshrl.u32 %v5796, 7
      %v5798 = vsub.s32 0, %v5797
      %v5799 = vrot.slane %v5794, %v5798
      %v5801 = vmul.f32 %v5762, %v5799
      %v5802 = vmul.f32 %v5763, %v5799
      %v5803 = vmul.f32 %v5764, %v5799
      %v5804 = vmul.f32 %v5765, %v5799
      %v5805 = vmul.f32 %v5766, %v5799
      %v5806 = vmul.f32 %v5767, %v5799
      %v5807 = vmul.f32 %v5768, %v5799
      %v5808 = vmul.f32 %v5769, %v5799
      %v5809 = vmul.f32 %v5770, %v5799
      %v5810 = vmul.f32 %v5771, %v5799
      %v5811 = vmul.f32 %v5772, %v5799
      %v5812 = vmul.f32 %v5773, %v5799
      %v5813 = vmul.f32 %v5774, %v5799
      %v5814 = vmul.f32 %v5775, %v5799
      %v5815 = vmul.f32 %v5776, %v5799
      %v5816 = vmul.f32 %v5777, %v5799
      %v5817 = vmul.f32 %v5778, %v5799
      %v5818 = vmul.f32 %v5779, %v5799
      %v5819 = vmul.f32 %v5780, %v5799
      %v5820 = vmul.f32 %v5781, %v5799
      %v5821 = vmul.f32 %v5782, %v5799
      %v5822 = vmul.f32 %v5783, %v5799
      %v5823 = vmul.f32 %v5784, %v5799
      %v5824 = vmul.f32 %v5785, %v5799
      %v5825 = vmul.f32 %v5786, %v5799
      %v5826 = vmul.f32 %v5787, %v5799
      %v5827 = vmul.f32 %v5788, %v5799
      %v5828 = vmul.f32 %v5789, %v5799
      %v5829 = vmul.f32 %v5790, %v5799
      %v5830 = vmul.f32 %v5791, %v5799
      %v5831 = vmul.f32 %v5792, %v5799
      %v5832 = vmul.f32 %v5793, %v5799
      %v5833 = vld [vmem:[%s5] sm:$0x1]
      %v5835 = vlaneseq
      %v5836 = vshrl.u32 %v5835, 7
      %v5837 = vsub.s32 0, %v5836
      %v5838 = vrot.slane %v5833, %v5837
      %v5840 = vadd.f32 %v5801, %v5838
      %v5841 = vadd.f32 %v5802, %v5838
      %v5842 = vadd.f32 %v5803, %v5838
      %v5843 = vadd.f32 %v5804, %v5838
      %v5844 = vadd.f32 %v5805, %v5838
      %v5845 = vadd.f32 %v5806, %v5838
      %v5846 = vadd.f32 %v5807, %v5838
      %v5847 = vadd.f32 %v5808, %v5838
      %v5848 = vadd.f32 %v5809, %v5838
      %v5849 = vadd.f32 %v5810, %v5838
      %v5850 = vadd.f32 %v5811, %v5838
      %v5851 = vadd.f32 %v5812, %v5838
      %v5852 = vadd.f32 %v5813, %v5838
      %v5853 = vadd.f32 %v5814, %v5838
      %v5854 = vadd.f32 %v5815, %v5838
      %v5855 = vadd.f32 %v5816, %v5838
      %v5856 = vadd.f32 %v5817, %v5838
      %v5857 = vadd.f32 %v5818, %v5838
      %v5858 = vadd.f32 %v5819, %v5838
      %v5859 = vadd.f32 %v5820, %v5838
      %v5860 = vadd.f32 %v5821, %v5838
      %v5861 = vadd.f32 %v5822, %v5838
      %v5862 = vadd.f32 %v5823, %v5838
      %v5863 = vadd.f32 %v5824, %v5838
      %v5864 = vadd.f32 %v5825, %v5838
      %v5865 = vadd.f32 %v5826, %v5838
      %v5866 = vadd.f32 %v5827, %v5838
      %v5867 = vadd.f32 %v5828, %v5838
      %v5868 = vadd.f32 %v5829, %v5838
      %v5869 = vadd.f32 %v5830, %v5838
      %v5870 = vadd.f32 %v5831, %v5838
      %v5871 = vadd.f32 %v5832, %v5838
      %v5872 = vmax.f32 %v5840, 0.0
      %v5873 = vmax.f32 %v5841, 0.0
      %v5874 = vmax.f32 %v5842, 0.0
      %v5875 = vmax.f32 %v5843, 0.0
      %v5876 = vmax.f32 %v5844, 0.0
      %v5877 = vmax.f32 %v5845, 0.0
      %v5878 = vmax.f32 %v5846, 0.0
      %v5879 = vmax.f32 %v5847, 0.0
      %v5880 = vmax.f32 %v5848, 0.0
      %v5881 = vmax.f32 %v5849, 0.0
      %v5882 = vmax.f32 %v5850, 0.0
      %v5883 = vmax.f32 %v5851, 0.0
      %v5884 = vmax.f32 %v5852, 0.0
      %v5885 = vmax.f32 %v5853, 0.0
      %v5886 = vmax.f32 %v5854, 0.0
      %v5887 = vmax.f32 %v5855, 0.0
      %v5888 = vmax.f32 %v5856, 0.0
      %v5889 = vmax.f32 %v5857, 0.0
      %v5890 = vmax.f32 %v5858, 0.0
      %v5891 = vmax.f32 %v5859, 0.0
      %v5892 = vmax.f32 %v5860, 0.0
      %v5893 = vmax.f32 %v5861, 0.0
      %v5894 = vmax.f32 %v5862, 0.0
      %v5895 = vmax.f32 %v5863, 0.0
      %v5896 = vmax.f32 %v5864, 0.0
      %v5897 = vmax.f32 %v5865, 0.0
      %v5898 = vmax.f32 %v5866, 0.0
      %v5899 = vmax.f32 %v5867, 0.0
      %v5900 = vmax.f32 %v5868, 0.0
      %v5901 = vmax.f32 %v5869, 0.0
      %v5902 = vmax.f32 %v5870, 0.0
      %v5903 = vmax.f32 %v5871, 0.0
      %v5904 = vpack.c.bf16 %v5873, %v5872
      %v5905 = vpack.c.bf16 %v5875, %v5874
      %v5906 = vpack.c.bf16 %v5877, %v5876
      %v5907 = vpack.c.bf16 %v5879, %v5878
      %v5908 = vpack.c.bf16 %v5881, %v5880
      %v5909 = vpack.c.bf16 %v5883, %v5882
      %v5910 = vpack.c.bf16 %v5885, %v5884
      %v5911 = vpack.c.bf16 %v5887, %v5886
      %v5912 = vpack.c.bf16 %v5889, %v5888
      %v5913 = vpack.c.bf16 %v5891, %v5890
      %v5914 = vpack.c.bf16 %v5893, %v5892
      %v5915 = vpack.c.bf16 %v5895, %v5894
      %v5916 = vpack.c.bf16 %v5897, %v5896
      %v5917 = vpack.c.bf16 %v5899, %v5898
      %v5918 = vpack.c.bf16 %v5901, %v5900
      %v5919 = vpack.c.bf16 %v5903, %v5902
      %v5936 = vunpack.c.l.b16 %v5904
      %v5937 = vunpack.c.h.b16 %v5904
      %v5938 = vunpack.c.l.b16 %v5905
      %v5939 = vunpack.c.h.b16 %v5905
      %v5940 = vunpack.c.l.b16 %v5906
      %v5941 = vunpack.c.h.b16 %v5906
      %v5942 = vunpack.c.l.b16 %v5907
      %v5943 = vunpack.c.h.b16 %v5907
      %v5944 = vunpack.c.l.b16 %v5908
      %v5945 = vunpack.c.h.b16 %v5908
      %v5946 = vunpack.c.l.b16 %v5909
      %v5947 = vunpack.c.h.b16 %v5909
      %v5948 = vunpack.c.l.b16 %v5910
      %v5949 = vunpack.c.h.b16 %v5910
      %v5950 = vunpack.c.l.b16 %v5911
      %v5951 = vunpack.c.h.b16 %v5911
      %v5952 = vunpack.c.l.b16 %v5912
      %v5953 = vunpack.c.h.b16 %v5912
      %v5954 = vunpack.c.l.b16 %v5913
      %v5955 = vunpack.c.h.b16 %v5913
      %v5956 = vunpack.c.l.b16 %v5914
      %v5957 = vunpack.c.h.b16 %v5914
      %v5958 = vunpack.c.l.b16 %v5915
      %v5959 = vunpack.c.h.b16 %v5915
      %v5960 = vunpack.c.l.b16 %v5916
      %v5961 = vunpack.c.h.b16 %v5916
      %v5962 = vunpack.c.l.b16 %v5917
      %v5963 = vunpack.c.h.b16 %v5917
      %v5964 = vunpack.c.l.b16 %v5918
      %v5965 = vunpack.c.h.b16 %v5918
      %v5966 = vunpack.c.l.b16 %v5919
      %v5967 = vunpack.c.h.b16 %v5919
      %v5968 = vpack.c.b16 %v5936, %v5936
      %v5969 = vpack.c.b16 %v5937, %v5937
      %v5970 = vpack.c.b16 %v5938, %v5938
      %v5971 = vpack.c.b16 %v5939, %v5939
      %v5972 = vpack.c.b16 %v5940, %v5940
      %v5973 = vpack.c.b16 %v5941, %v5941
      %v5974 = vpack.c.b16 %v5942, %v5942
      %v5975 = vpack.c.b16 %v5943, %v5943
      %v5976 = vpack.c.b16 %v5944, %v5944
      %v5977 = vpack.c.b16 %v5945, %v5945
      %v5978 = vpack.c.b16 %v5946, %v5946
      %v5979 = vpack.c.b16 %v5947, %v5947
      %v5980 = vpack.c.b16 %v5948, %v5948
      %v5981 = vpack.c.b16 %v5949, %v5949
      %v5982 = vpack.c.b16 %v5950, %v5950
      %v5983 = vpack.c.b16 %v5951, %v5951
      %v5984 = vpack.c.b16 %v5952, %v5952
      %v5985 = vpack.c.b16 %v5953, %v5953
      %v5986 = vpack.c.b16 %v5954, %v5954
      %v5987 = vpack.c.b16 %v5955, %v5955
      %v5988 = vpack.c.b16 %v5956, %v5956
      %v5989 = vpack.c.b16 %v5957, %v5957
      %v5990 = vpack.c.b16 %v5958, %v5958
      %v5991 = vpack.c.b16 %v5959, %v5959
      %v5992 = vpack.c.b16 %v5960, %v5960
      %v5993 = vpack.c.b16 %v5961, %v5961
      %v5994 = vpack.c.b16 %v5962, %v5962
      %v5995 = vpack.c.b16 %v5963, %v5963
      %v5996 = vpack.c.b16 %v5964, %v5964
      %v5997 = vpack.c.b16 %v5965, %v5965
      %v5998 = vpack.c.b16 %v5966, %v5966
      %v5999 = vpack.c.b16 %v5967, %v5967
      %6032 = vst [vmem:[%s251] sm:$0xf] %v5968
      %6033 = vst [vmem:[%s251 + $0x4] sm:$0xf] %v5969
      %6034 = vst [vmem:[%s251 + $0x8] sm:$0xf] %v5970
      %6035 = vst [vmem:[%s251 + $0xc] sm:$0xf] %v5971
      %6036 = vst [vmem:[%s251 + $0x10] sm:$0xf] %v5972
      %6037 = vst [vmem:[%s251 + $0x14] sm:$0xf] %v5973
      %6038 = vst [vmem:[%s251 + $0x18] sm:$0xf] %v5974
      %6039 = vst [vmem:[%s251 + $0x1c] sm:$0xf] %v5975
      %6040 = vst [vmem:[%s251 + $0x20] sm:$0xf] %v5976
      %6041 = vst [vmem:[%s251 + $0x24] sm:$0xf] %v5977
      %6042 = vst [vmem:[%s251 + $0x28] sm:$0xf] %v5978
      %6043 = vst [vmem:[%s251 + $0x2c] sm:$0xf] %v5979
      %6044 = vst [vmem:[%s251 + $0x30] sm:$0xf] %v5980
      %6045 = vst [vmem:[%s251 + $0x34] sm:$0xf] %v5981
      %6046 = vst [vmem:[%s251 + $0x38] sm:$0xf] %v5982
      %6047 = vst [vmem:[%s251 + $0x3c] sm:$0xf] %v5983
      %6048 = vst [vmem:[%s251 + $0x40] sm:$0xf] %v5984
      %6049 = vst [vmem:[%s251 + $0x44] sm:$0xf] %v5985
      %6050 = vst [vmem:[%s251 + $0x48] sm:$0xf] %v5986
      %6051 = vst [vmem:[%s251 + $0x4c] sm:$0xf] %v5987
      %6052 = vst [vmem:[%s251 + $0x50] sm:$0xf] %v5988
      %6053 = vst [vmem:[%s251 + $0x54] sm:$0xf] %v5989
      %6054 = vst [vmem:[%s251 + $0x58] sm:$0xf] %v5990
      %6055 = vst [vmem:[%s251 + $0x5c] sm:$0xf] %v5991
      %6056 = vst [vmem:[%s251 + $0x60] sm:$0xf] %v5992
      %6057 = vst [vmem:[%s251 + $0x64] sm:$0xf] %v5993
      %6058 = vst [vmem:[%s251 + $0x68] sm:$0xf] %v5994
      %6059 = vst [vmem:[%s251 + $0x6c] sm:$0xf] %v5995
      %6060 = vst [vmem:[%s251 + $0x70] sm:$0xf] %v5996
      %6061 = vst [vmem:[%s251 + $0x74] sm:$0xf] %v5997
      %6062 = vst [vmem:[%s251 + $0x78] sm:$0xf] %v5998
      %6063 = vst [vmem:[%s251 + $0x7c] sm:$0xf] %v5999
      %p6064 = scmp.lt.s32.totalorder %s17, 1
      %s6065 = scalar_select %p6064, %s17, 1
      %s6066 = smul.addr %s6065, 32
      %s6067 = smul.addr %s6066, 4
      %s6068 = scalar_lea.vmem %s6, %s6067
      // Predicated region
      $region45: #{_forward_impl.2} parent=43 // pred_check
        %p6069 = pneg %p166
      $region46: #{_forward_impl.2} parent=43 // pred_check_branch
        %6071 = sbr.rel (%p6069) target = $region48
      $region47: #{_forward_impl.2} parent=43 // pred_region
        _
      $region48: #{_forward_impl.2} parent=43 // pred_fallthru
        _
    $region44: #{_forward_impl.2} parent=5 // pred_fallthru
      _
    %p6072 = scmp.le.s32.totalorder 2, %s12
    // Predicated region
    $region49: #{_forward_impl.2} parent=5 // pred_check
      %p6073 = pneg %p6072
    $region50: #{_forward_impl.2} parent=5 // pred_check_branch
      %6075 = sbr.rel (%p6073) target = $region52
    $region51: #{_forward_impl.2} parent=5 // pred_region
      %s6076 = ssub.s32 %s12, 2
      // Predicated region
      $region53: #{_forward_impl.2} parent=51 // pred_check
        %p6077 = pneg %p172
      $region54: #{_forward_impl.2} parent=51 // pred_check_branch
        %6079 = sbr.rel (%p6077) target = $region56
      $region55: #{_forward_impl.2} parent=51 // pred_region
        %p6080 = scmp.lt.s32.totalorder %s18, 1
        %s6081 = scalar_select %p6080, %s18, 1
        %s6082 = smul.addr %s6081, 32
        %s6083 = smul.addr %s6082, 4
        %s6084 = scalar_lea.vmem %s6, %s6083
      $region56: #{_forward_impl.2} parent=51 // pred_fallthru
        _
    $region52: #{_forward_impl.2} parent=5 // pred_fallthru
      _
  $region6: #{_forward_impl.2} parent=0 // loop_footer
    %s16 = sadd.s32 1, %s12
  $region7: #{_forward_impl.2} parent=0 // loop_footer_branch
    %11 = sbr.rel target = $region3
  $region8: #{_forward_impl.2} parent=0 // loop_exit
    _

</llo_original>
